<compile_context>
chip_gen: v7x
topology: tpu7x:2x2x1
jax: 0.10.0
libtpu: 0.0.40
codegen_flags: <defaults>
</compile_context>

<pallas_src>
import jax
import jax.numpy as jnp
from jax import lax
from jax.experimental import pallas as pl
from jax.experimental.pallas import tpu as pltpu

TEMP = 0.1  # RelaxedBernoulli temperature used by the PyTorch module


def rnn_local_kernel(cin_ref, noise_ref,
                     w1c_ref, w1x_ref, b1_ref,
                     w2_ref, b2_ref, w3_ref, b3_ref,
                     w4_ref, b4_ref,
                     wir_ref, wiz_ref, win_ref,
                     whr_ref, whz_ref, whn_ref,
                     br_ref, bz_ref, bin_ref, bhn_ref,
                     wout_ref, bout_ref,
                     out_ref):
    S, B, H = cin_ref.shape

    # ---- hoist loop-invariant weight loads / bias broadcasts (done once) ----
    w1c = w1c_ref[...]
    w1x = w1x_ref[...]
    w2 = w2_ref[...]
    w3 = w3_ref[...]
    w4 = w4_ref[...]          # already scaled by 1/TEMP host-side
    wir = wir_ref[...]
    wiz = wiz_ref[...]
    win = win_ref[...]
    whr = whr_ref[...]
    whz = whz_ref[...]
    whn = whn_ref[...]

    b1 = jnp.broadcast_to(b1_ref[...], (B, 2 * H))
    b2 = jnp.broadcast_to(b2_ref[...], (B, 2 * H))
    b3 = jnp.broadcast_to(b3_ref[...], (B, 2 * H))
    b4 = jnp.broadcast_to(b4_ref[...], (B, 1))          # already scaled by 1/TEMP
    br = jnp.broadcast_to(br_ref[...], (B, H))           # b_ih_r + b_hh_r
    bz = jnp.broadcast_to(bz_ref[...], (B, H))           # b_ih_z + b_hh_z
    bin_ = jnp.broadcast_to(bin_ref[...], (B, H))         # b_ih_n
    bhn = jnp.broadcast_to(bhn_ref[...], (B, H))          # b_hh_n

    def gru(xv, hv):
        # nn.GRUCell semantics with per-gate weights (no 3H slicing).
        r = jax.nn.sigmoid(
            jnp.dot(xv, wir, preferred_element_type=jnp.float32)
            + jnp.dot(hv, whr, preferred_element_type=jnp.float32) + br)
        z = jax.nn.sigmoid(
            jnp.dot(xv, wiz, preferred_element_type=jnp.float32)
            + jnp.dot(hv, whz, preferred_element_type=jnp.float32) + bz)
        hn = jnp.dot(hv, whn, preferred_element_type=jnp.float32) + bhn
        ng = jnp.tanh(jnp.dot(xv, win, preferred_element_type=jnp.float32)
                      + bin_ + r * hn)
        return (1.0 - z) * ng + z * hv

    def step(s, carry):
        c, h, n = carry
        c_in = cin_ref[s]      # (B, H)  precomputed tanh(x_s @ W_cin + b_cin)
        noise = noise_ref[s]   # (B, 1)  logistic noise, already scaled by 1/TEMP

        # alpha logit MLP on [c, c_in] without a concat (W1 split host-side).
        a1 = jax.nn.relu(
            jnp.dot(c, w1c, preferred_element_type=jnp.float32)
            + jnp.dot(c_in, w1x, preferred_element_type=jnp.float32) + b1)
        a2 = jax.nn.relu(jnp.dot(a1, w2, preferred_element_type=jnp.float32) + b2)
        a3 = jax.nn.relu(jnp.dot(a2, w3, preferred_element_type=jnp.float32) + b3)
        logit = jnp.dot(a3, w4, preferred_element_type=jnp.float32) + b4  # (B, 1)

        # RelaxedBernoulli(temperature=TEMP, logits).sample(); 1/TEMP pre-folded.
        alpha = jax.nn.sigmoid(logit + noise)

        h_new = h * (1.0 - alpha) + alpha * gru(c, h)
        new_n = n * (1.0 - alpha) + 1.0
        inv_n = pl.reciprocal(new_n, approx=True)   # new_n >= 1, well conditioned
        c_new = (c * n * (1.0 - alpha) + c_in) * inv_n
        return c_new, h_new, new_n

    c0 = jnp.zeros((B, H), jnp.float32)
    h0 = jnp.zeros((B, H), jnp.float32)
    n0 = jnp.zeros((B, 1), jnp.float32)
    c, h, _ = lax.fori_loop(0, S, step, (c0, h0, n0), unroll=True)

    # Epilogue: final GRU step + output Linear (straight-line post-loop code).
    h_final = gru(c, h)
    out_ref[...] = (jnp.dot(h_final, wout_ref[...],
                            preferred_element_type=jnp.float32)
                    + bout_ref[...])


def rnn_local_forward(x, noise, params):
    """x: (B, S, D_in) float32, noise: (S, B, 1) logistic noise. Returns (B, O)."""
    B, S, D_in = x.shape
    H = params["w_cin"].shape[1]
    O = params["w_out"].shape[1]
    inv_t = 1.0 / TEMP

    # --- host-side (XLA) preprocessing: hoist the x-only matmul, split weights ---
    # c_in for every timestep in one batched matmul, time-major (S, B, H).
    c_in_all = jnp.tanh(
        jnp.einsum("bsd,dh->sbh", x, params["w_cin"]) + params["b_cin"])
    noise_scaled = noise * inv_t

    w1 = params["w1"]
    w1c, w1x = w1[:H], w1[H:]                         # [c | c_in] split
    w4s = params["w4"] * inv_t
    b4s = params["b4"] * inv_t

    w_ih, w_hh = params["w_ih"], params["w_hh"]
    b_ih, b_hh = params["b_ih"], params["b_hh"]
    wir, wiz, win = w_ih[:, :H], w_ih[:, H:2 * H], w_ih[:, 2 * H:]
    whr, whz, whn = w_hh[:, :H], w_hh[:, H:2 * H], w_hh[:, 2 * H:]
    br = b_ih[:, :H] + b_hh[:, :H]
    bz = b_ih[:, H:2 * H] + b_hh[:, H:2 * H]
    bin_ = b_ih[:, 2 * H:]
    bhn = b_hh[:, 2 * H:]

    operands = [
        c_in_all, noise_scaled,
        w1c, w1x, params["b1"],
        params["w2"], params["b2"], params["w3"], params["b3"],
        w4s, b4s,
        wir, wiz, win, whr, whz, whn,
        br, bz, bin_, bhn,
        params["w_out"], params["b_out"],
    ]

    def full_spec(arr):
        nd = arr.ndim
        return pl.BlockSpec(arr.shape, lambda i, _nd=nd: (0,) * _nd)

    # Single grid point: everything is VMEM-resident, recurrence runs in-kernel.
    return pl.pallas_call(
        rnn_local_kernel,
        out_shape=jax.ShapeDtypeStruct((B, O), jnp.float32),
        grid_spec=pltpu.PrefetchScalarGridSpec(
            num_scalar_prefetch=0,
            grid=(1,),
            in_specs=[full_spec(a) for a in operands],
            out_specs=pl.BlockSpec((B, O), lambda i: (0, 0)),
        ),
        compiler_params=pltpu.CompilerParams(
            dimension_semantics=("arbitrary",)),
    )(*operands)


def rnn_local_reference(x, noise, params):
    """Pure-JAX reference mirroring the PyTorch forward (same noise)."""
    B, S, _ = x.shape
    H = params["w_cin"].shape[1]

    def gru(xv, hv):
        gi = xv @ params["w_ih"] + params["b_ih"]
        gh = hv @ params["w_hh"] + params["b_hh"]
        i_r, i_z, i_n = gi[:, :H], gi[:, H:2 * H], gi[:, 2 * H:]
        h_r, h_z, h_n = gh[:, :H], gh[:, H:2 * H], gh[:, 2 * H:]
        r = jax.nn.sigmoid(i_r + h_r)
        z = jax.nn.sigmoid(i_z + h_z)
        ng = jnp.tanh(i_n + r * h_n)
        return (1.0 - z) * ng + z * hv

    c = jnp.zeros((B, H), jnp.float32)
    h = jnp.zeros((B, H), jnp.float32)
    n = jnp.zeros((B, 1), jnp.float32)
    for s in range(S):
        x_s = x[:, s, :]
        c_in = jnp.tanh(x_s @ params["w_cin"] + params["b_cin"])
        com = jnp.concatenate([c, c_in], axis=1)
        a1 = jax.nn.relu(com @ params["w1"] + params["b1"])
        a2 = jax.nn.relu(a1 @ params["w2"] + params["b2"])
        a3 = jax.nn.relu(a2 @ params["w3"] + params["b3"])
        logit = a3 @ params["w4"] + params["b4"]
        alpha = jax.nn.sigmoid((logit + noise[s]) / TEMP)
        h = h * (1.0 - alpha) + alpha * gru(c, h)
        new_n = n * (1.0 - alpha) + 1.0
        c = (c * n * (1.0 - alpha) + c_in) / new_n
        n = new_n
    h = gru(c, h)
    return h @ params["w_out"] + params["b_out"]


if __name__ == "__main__":
    # Small shapes consistent with the module: x is (batch, seq, input_dim).
    B, S, D_in, H, O = 8, 8, 16, 32, 8

    key = jax.random.PRNGKey(0)
    keys = jax.random.split(key, 20)

    def uinit(k, shape, fan_in):
        bound = 1.0 / float(fan_in) ** 0.5
        return jax.random.uniform(k, shape, jnp.float32, -bound, bound)

    params = {
        "w_cin": uinit(keys[0], (D_in, H), D_in),
        "b_cin": uinit(keys[1], (1, H), D_in),
        "w1": uinit(keys[2], (2 * H, 2 * H), 2 * H),
        "b1": uinit(keys[3], (1, 2 * H), 2 * H),
        "w2": uinit(keys[4], (2 * H, 2 * H), 2 * H),
        "b2": uinit(keys[5], (1, 2 * H), 2 * H),
        "w3": uinit(keys[6], (2 * H, 2 * H), 2 * H),
        "b3": uinit(keys[7], (1, 2 * H), 2 * H),
        "w4": uinit(keys[8], (2 * H, 1), 2 * H),
        "b4": uinit(keys[9], (1, 1), 2 * H),
        "w_ih": uinit(keys[10], (H, 3 * H), H),
        "b_ih": uinit(keys[11], (1, 3 * H), H),
        "w_hh": uinit(keys[12], (H, 3 * H), H),
        "b_hh": uinit(keys[13], (1, 3 * H), H),
        "w_out": uinit(keys[14], (H, O), H),
        "b_out": uinit(keys[15], (1, O), H),
    }

    x = jax.random.normal(keys[16], (B, S, D_in), jnp.float32)
    # Logistic noise for the RelaxedBernoulli sample: log(u) - log(1-u)
    u = jax.random.uniform(keys[17], (S, B, 1), jnp.float32, 1e-6, 1.0 - 1e-6)
    noise = jnp.log(u) - jnp.log1p(-u)

    out = rnn_local_forward(x, noise, params)
    out = jax.block_until_ready(out)

    ref = rnn_local_reference(x, noise, params)
    assert out.shape == (B, O)
    assert jnp.allclose(out, ref, atol=2e-2, rtol=2e-2), (out, ref)
    print("KERNEL_OK")
</pallas_src>

<mosaic_0001>
module attributes {stable_mosaic.version = 11 : i64} {
  func.func @rnn_local_kernel(%arg0: i32, %arg1: memref<8x8x32xf32, #tpu.memory_space<vmem>>, %arg2: memref<8x8x1xf32, #tpu.memory_space<vmem>>, %arg3: memref<32x64xf32, #tpu.memory_space<vmem>>, %arg4: memref<32x64xf32, #tpu.memory_space<vmem>>, %arg5: memref<1x64xf32, #tpu.memory_space<vmem>>, %arg6: memref<64x64xf32, #tpu.memory_space<vmem>>, %arg7: memref<1x64xf32, #tpu.memory_space<vmem>>, %arg8: memref<64x64xf32, #tpu.memory_space<vmem>>, %arg9: memref<1x64xf32, #tpu.memory_space<vmem>>, %arg10: memref<64x1xf32, #tpu.memory_space<vmem>>, %arg11: memref<1x1xf32, #tpu.memory_space<vmem>>, %arg12: memref<32x32xf32, #tpu.memory_space<vmem>>, %arg13: memref<32x32xf32, #tpu.memory_space<vmem>>, %arg14: memref<32x32xf32, #tpu.memory_space<vmem>>, %arg15: memref<32x32xf32, #tpu.memory_space<vmem>>, %arg16: memref<32x32xf32, #tpu.memory_space<vmem>>, %arg17: memref<32x32xf32, #tpu.memory_space<vmem>>, %arg18: memref<1x32xf32, #tpu.memory_space<vmem>>, %arg19: memref<1x32xf32, #tpu.memory_space<vmem>>, %arg20: memref<1x32xf32, #tpu.memory_space<vmem>>, %arg21: memref<1x32xf32, #tpu.memory_space<vmem>>, %arg22: memref<32x8xf32, #tpu.memory_space<vmem>>, %arg23: memref<1x8xf32, #tpu.memory_space<vmem>>, %arg24: memref<8x8xf32, #tpu.memory_space<vmem>>) attributes {dimension_semantics = [#tpu.dimension_semantics<arbitrary>], iteration_bounds = array<i64: 1>, scalar_prefetch = 0 : i64, scratch_operands = 0 : i64, tpu.core_type = #tpu.core_type<tc>, window_params = [{pipeline_mode = #tpu.pipeline_mode<synchronous>, transform_indices = @transform_0, window_bounds = array<i64: 8, 8, 32>}, {pipeline_mode = #tpu.pipeline_mode<synchronous>, transform_indices = @transform_1, window_bounds = array<i64: 8, 8, 1>}, {pipeline_mode = #tpu.pipeline_mode<synchronous>, transform_indices = @transform_2, window_bounds = array<i64: 32, 64>}, {pipeline_mode = #tpu.pipeline_mode<synchronous>, transform_indices = @transform_3, window_bounds = array<i64: 32, 64>}, {pipeline_mode = #tpu.pipeline_mode<synchronous>, transform_indices = @transform_4, window_bounds = array<i64: 1, 64>}, {pipeline_mode = #tpu.pipeline_mode<synchronous>, transform_indices = @transform_5, window_bounds = array<i64: 64, 64>}, {pipeline_mode = #tpu.pipeline_mode<synchronous>, transform_indices = @transform_6, window_bounds = array<i64: 1, 64>}, {pipeline_mode = #tpu.pipeline_mode<synchronous>, transform_indices = @transform_7, window_bounds = array<i64: 64, 64>}, {pipeline_mode = #tpu.pipeline_mode<synchronous>, transform_indices = @transform_8, window_bounds = array<i64: 1, 64>}, {pipeline_mode = #tpu.pipeline_mode<synchronous>, transform_indices = @transform_9, window_bounds = array<i64: 64, 1>}, {pipeline_mode = #tpu.pipeline_mode<synchronous>, transform_indices = @transform_10, window_bounds = array<i64: 1, 1>}, {pipeline_mode = #tpu.pipeline_mode<synchronous>, transform_indices = @transform_11, window_bounds = array<i64: 32, 32>}, {pipeline_mode = #tpu.pipeline_mode<synchronous>, transform_indices = @transform_12, window_bounds = array<i64: 32, 32>}, {pipeline_mode = #tpu.pipeline_mode<synchronous>, transform_indices = @transform_13, window_bounds = array<i64: 32, 32>}, {pipeline_mode = #tpu.pipeline_mode<synchronous>, transform_indices = @transform_14, window_bounds = array<i64: 32, 32>}, {pipeline_mode = #tpu.pipeline_mode<synchronous>, transform_indices = @transform_15, window_bounds = array<i64: 32, 32>}, {pipeline_mode = #tpu.pipeline_mode<synchronous>, transform_indices = @transform_16, window_bounds = array<i64: 32, 32>}, {pipeline_mode = #tpu.pipeline_mode<synchronous>, transform_indices = @transform_17, window_bounds = array<i64: 1, 32>}, {pipeline_mode = #tpu.pipeline_mode<synchronous>, transform_indices = @transform_18, window_bounds = array<i64: 1, 32>}, {pipeline_mode = #tpu.pipeline_mode<synchronous>, transform_indices = @transform_19, window_bounds = array<i64: 1, 32>}, {pipeline_mode = #tpu.pipeline_mode<synchronous>, transform_indices = @transform_20, window_bounds = array<i64: 1, 32>}, {pipeline_mode = #tpu.pipeline_mode<synchronous>, transform_indices = @transform_21, window_bounds = array<i64: 32, 8>}, {pipeline_mode = #tpu.pipeline_mode<synchronous>, transform_indices = @transform_22, window_bounds = array<i64: 1, 8>}, {pipeline_mode = #tpu.pipeline_mode<synchronous>, transform_indices = @transform_23, window_bounds = array<i64: 8, 8>}]} {
    %c0 = arith.constant 0 : index
    %c0_0 = arith.constant 0 : index
    %0 = vector.load %arg3[%c0, %c0_0] : memref<32x64xf32, #tpu.memory_space<vmem>>, vector<32x64xf32>
    %c0_1 = arith.constant 0 : index
    %c0_2 = arith.constant 0 : index
    %1 = vector.load %arg4[%c0_1, %c0_2] : memref<32x64xf32, #tpu.memory_space<vmem>>, vector<32x64xf32>
    %c0_3 = arith.constant 0 : index
    %c0_4 = arith.constant 0 : index
    %2 = vector.load %arg6[%c0_3, %c0_4] : memref<64x64xf32, #tpu.memory_space<vmem>>, vector<64x64xf32>
    %c0_5 = arith.constant 0 : index
    %c0_6 = arith.constant 0 : index
    %3 = vector.load %arg8[%c0_5, %c0_6] : memref<64x64xf32, #tpu.memory_space<vmem>>, vector<64x64xf32>
    %c0_7 = arith.constant 0 : index
    %c0_8 = arith.constant 0 : index
    %4 = vector.load %arg10[%c0_7, %c0_8] : memref<64x1xf32, #tpu.memory_space<vmem>>, vector<64x1xf32>
    %c0_9 = arith.constant 0 : index
    %c0_10 = arith.constant 0 : index
    %5 = vector.load %arg12[%c0_9, %c0_10] : memref<32x32xf32, #tpu.memory_space<vmem>>, vector<32x32xf32>
    %c0_11 = arith.constant 0 : index
    %c0_12 = arith.constant 0 : index
    %6 = vector.load %arg13[%c0_11, %c0_12] : memref<32x32xf32, #tpu.memory_space<vmem>>, vector<32x32xf32>
    %c0_13 = arith.constant 0 : index
    %c0_14 = arith.constant 0 : index
    %7 = vector.load %arg14[%c0_13, %c0_14] : memref<32x32xf32, #tpu.memory_space<vmem>>, vector<32x32xf32>
    %c0_15 = arith.constant 0 : index
    %c0_16 = arith.constant 0 : index
    %8 = vector.load %arg15[%c0_15, %c0_16] : memref<32x32xf32, #tpu.memory_space<vmem>>, vector<32x32xf32>
    %c0_17 = arith.constant 0 : index
    %c0_18 = arith.constant 0 : index
    %9 = vector.load %arg16[%c0_17, %c0_18] : memref<32x32xf32, #tpu.memory_space<vmem>>, vector<32x32xf32>
    %c0_19 = arith.constant 0 : index
    %c0_20 = arith.constant 0 : index
    %10 = vector.load %arg17[%c0_19, %c0_20] : memref<32x32xf32, #tpu.memory_space<vmem>>, vector<32x32xf32>
    %c0_21 = arith.constant 0 : index
    %c0_22 = arith.constant 0 : index
    %11 = vector.load %arg5[%c0_21, %c0_22] : memref<1x64xf32, #tpu.memory_space<vmem>>, vector<1x64xf32>
    %12 = vector.shape_cast %11 : vector<1x64xf32> to vector<1x64xf32>
    %13 = vector.broadcast %12 : vector<1x64xf32> to vector<8x64xf32>
    %c0_23 = arith.constant 0 : index
    %c0_24 = arith.constant 0 : index
    %14 = vector.load %arg7[%c0_23, %c0_24] : memref<1x64xf32, #tpu.memory_space<vmem>>, vector<1x64xf32>
    %15 = vector.shape_cast %14 : vector<1x64xf32> to vector<1x64xf32>
    %16 = vector.broadcast %15 : vector<1x64xf32> to vector<8x64xf32>
    %c0_25 = arith.constant 0 : index
    %c0_26 = arith.constant 0 : index
    %17 = vector.load %arg9[%c0_25, %c0_26] : memref<1x64xf32, #tpu.memory_space<vmem>>, vector<1x64xf32>
    %18 = vector.shape_cast %17 : vector<1x64xf32> to vector<1x64xf32>
    %19 = vector.broadcast %18 : vector<1x64xf32> to vector<8x64xf32>
    %c0_27 = arith.constant 0 : index
    %c0_28 = arith.constant 0 : index
    %20 = vector.load %arg11[%c0_27, %c0_28] : memref<1x1xf32, #tpu.memory_space<vmem>>, vector<1x1xf32>
    %21 = vector.shape_cast %20 : vector<1x1xf32> to vector<1x1xf32>
    %22 = vector.broadcast %21 : vector<1x1xf32> to vector<8x1xf32>
    %c0_29 = arith.constant 0 : index
    %c0_30 = arith.constant 0 : index
    %23 = vector.load %arg18[%c0_29, %c0_30] : memref<1x32xf32, #tpu.memory_space<vmem>>, vector<1x32xf32>
    %24 = vector.shape_cast %23 : vector<1x32xf32> to vector<1x32xf32>
    %25 = vector.broadcast %24 : vector<1x32xf32> to vector<8x32xf32>
    %c0_31 = arith.constant 0 : index
    %c0_32 = arith.constant 0 : index
    %26 = vector.load %arg19[%c0_31, %c0_32] : memref<1x32xf32, #tpu.memory_space<vmem>>, vector<1x32xf32>
    %27 = vector.shape_cast %26 : vector<1x32xf32> to vector<1x32xf32>
    %28 = vector.broadcast %27 : vector<1x32xf32> to vector<8x32xf32>
    %c0_33 = arith.constant 0 : index
    %c0_34 = arith.constant 0 : index
    %29 = vector.load %arg20[%c0_33, %c0_34] : memref<1x32xf32, #tpu.memory_space<vmem>>, vector<1x32xf32>
    %30 = vector.shape_cast %29 : vector<1x32xf32> to vector<1x32xf32>
    %31 = vector.broadcast %30 : vector<1x32xf32> to vector<8x32xf32>
    %c0_35 = arith.constant 0 : index
    %c0_36 = arith.constant 0 : index
    %32 = vector.load %arg21[%c0_35, %c0_36] : memref<1x32xf32, #tpu.memory_space<vmem>>, vector<1x32xf32>
    %33 = vector.shape_cast %32 : vector<1x32xf32> to vector<1x32xf32>
    %34 = vector.broadcast %33 : vector<1x32xf32> to vector<8x32xf32>
    %cst = arith.constant 0.000000e+00 : f32
    %35 = vector.broadcast %cst : f32 to vector<8x32xf32>
    %cst_37 = arith.constant 0.000000e+00 : f32
    %36 = vector.broadcast %cst_37 : f32 to vector<8x32xf32>
    %cst_38 = arith.constant 0.000000e+00 : f32
    %37 = vector.broadcast %cst_38 : f32 to vector<8x1xf32>
    %c0_i32 = arith.constant 0 : i32
    %38 = arith.index_cast %c0_i32 : i32 to index
    %c0_39 = arith.constant 0 : index
    %c0_40 = arith.constant 0 : index
    %39 = vector.load %arg1[%38, %c0_39, %c0_40] : memref<8x8x32xf32, #tpu.memory_space<vmem>>, vector<1x8x32xf32>
    %40 = vector.shape_cast %39 : vector<1x8x32xf32> to vector<8x32xf32>
    %41 = arith.index_cast %c0_i32 : i32 to index
    %c0_41 = arith.constant 0 : index
    %c0_42 = arith.constant 0 : index
    %42 = vector.load %arg2[%41, %c0_41, %c0_42] : memref<8x8x1xf32, #tpu.memory_space<vmem>>, vector<1x8x1xf32>
    %43 = vector.shape_cast %42 : vector<1x8x1xf32> to vector<8x1xf32>
    %cst_43 = arith.constant dense<0.000000e+00> : vector<8x64xf32>
    %44 = tpu.matmul %35, %0, %cst_43 {dimension_numbers = #tpu.dot_dimension_numbers<[1], [0], [0], [1], [0, 0, 1, 1], [], []>} : vector<8x32xf32>, vector<32x64xf32>, vector<8x64xf32> -> vector<8x64xf32>
    %cst_44 = arith.constant dense<0.000000e+00> : vector<8x64xf32>
    %45 = tpu.matmul %40, %1, %cst_44 {dimension_numbers = #tpu.dot_dimension_numbers<[1], [0], [0], [1], [0, 0, 1, 1], [], []>} : vector<8x32xf32>, vector<32x64xf32>, vector<8x64xf32> -> vector<8x64xf32>
    %46 = arith.addf %44, %45 : vector<8x64xf32>
    %47 = arith.addf %46, %13 : vector<8x64xf32>
    %cst_45 = arith.constant 0.000000e+00 : f32
    %48 = vector.broadcast %cst_45 : f32 to vector<8x64xf32>
    %49 = arith.maximumf %47, %48 : vector<8x64xf32>
    %cst_46 = arith.constant dense<0.000000e+00> : vector<8x64xf32>
    %50 = tpu.matmul %49, %2, %cst_46 {dimension_numbers = #tpu.dot_dimension_numbers<[1], [0], [0], [1], [0, 0, 1, 1], [], []>} : vector<8x64xf32>, vector<64x64xf32>, vector<8x64xf32> -> vector<8x64xf32>
    %51 = arith.addf %50, %16 : vector<8x64xf32>
    %cst_47 = arith.constant 0.000000e+00 : f32
    %52 = vector.broadcast %cst_47 : f32 to vector<8x64xf32>
    %53 = arith.maximumf %51, %52 : vector<8x64xf32>
    %cst_48 = arith.constant dense<0.000000e+00> : vector<8x64xf32>
    %54 = tpu.matmul %53, %3, %cst_48 {dimension_numbers = #tpu.dot_dimension_numbers<[1], [0], [0], [1], [0, 0, 1, 1], [], []>} : vector<8x64xf32>, vector<64x64xf32>, vector<8x64xf32> -> vector<8x64xf32>
    %55 = arith.addf %54, %19 : vector<8x64xf32>
    %cst_49 = arith.constant 0.000000e+00 : f32
    %56 = vector.broadcast %cst_49 : f32 to vector<8x64xf32>
    %57 = arith.maximumf %55, %56 : vector<8x64xf32>
    %cst_50 = arith.constant dense<0.000000e+00> : vector<8x1xf32>
    %58 = tpu.matmul %57, %4, %cst_50 {dimension_numbers = #tpu.dot_dimension_numbers<[1], [0], [0], [1], [0, 0, 1, 1], [], []>} : vector<8x64xf32>, vector<64x1xf32>, vector<8x1xf32> -> vector<8x1xf32>
    %59 = arith.addf %58, %22 : vector<8x1xf32>
    %60 = arith.addf %59, %43 : vector<8x1xf32>
    %61 = arith.negf %60 : vector<8x1xf32>
    %62 = math.exp %61 : vector<8x1xf32>
    %cst_51 = arith.constant 1.000000e+00 : f32
    %63 = vector.broadcast %cst_51 : f32 to vector<8x1xf32>
    %64 = arith.addf %63, %62 : vector<8x1xf32>
    %65 = arith.divf %63, %64 : vector<8x1xf32>
    %cst_52 = arith.constant 1.000000e+00 : f32
    %66 = vector.broadcast %cst_52 : f32 to vector<8x1xf32>
    %67 = arith.subf %66, %65 : vector<8x1xf32>
    %68 = vector.broadcast %67 : vector<8x1xf32> to vector<8x32xf32>
    %69 = arith.mulf %36, %68 : vector<8x32xf32>
    %cst_53 = arith.constant dense<0.000000e+00> : vector<8x32xf32>
    %70 = tpu.matmul %35, %5, %cst_53 {dimension_numbers = #tpu.dot_dimension_numbers<[1], [0], [0], [1], [0, 0, 1, 1], [], []>} : vector<8x32xf32>, vector<32x32xf32>, vector<8x32xf32> -> vector<8x32xf32>
    %cst_54 = arith.constant dense<0.000000e+00> : vector<8x32xf32>
    %71 = tpu.matmul %36, %8, %cst_54 {dimension_numbers = #tpu.dot_dimension_numbers<[1], [0], [0], [1], [0, 0, 1, 1], [], []>} : vector<8x32xf32>, vector<32x32xf32>, vector<8x32xf32> -> vector<8x32xf32>
    %72 = arith.addf %70, %71 : vector<8x32xf32>
    %73 = arith.addf %72, %25 : vector<8x32xf32>
    %74 = arith.negf %73 : vector<8x32xf32>
    %75 = math.exp %74 : vector<8x32xf32>
    %cst_55 = arith.constant 1.000000e+00 : f32
    %76 = vector.broadcast %cst_55 : f32 to vector<8x32xf32>
    %77 = arith.addf %76, %75 : vector<8x32xf32>
    %78 = arith.divf %76, %77 : vector<8x32xf32>
    %cst_56 = arith.constant dense<0.000000e+00> : vector<8x32xf32>
    %79 = tpu.matmul %35, %6, %cst_56 {dimension_numbers = #tpu.dot_dimension_numbers<[1], [0], [0], [1], [0, 0, 1, 1], [], []>} : vector<8x32xf32>, vector<32x32xf32>, vector<8x32xf32> -> vector<8x32xf32>
    %cst_57 = arith.constant dense<0.000000e+00> : vector<8x32xf32>
    %80 = tpu.matmul %36, %9, %cst_57 {dimension_numbers = #tpu.dot_dimension_numbers<[1], [0], [0], [1], [0, 0, 1, 1], [], []>} : vector<8x32xf32>, vector<32x32xf32>, vector<8x32xf32> -> vector<8x32xf32>
    %81 = arith.addf %79, %80 : vector<8x32xf32>
    %82 = arith.addf %81, %28 : vector<8x32xf32>
    %83 = arith.negf %82 : vector<8x32xf32>
    %84 = math.exp %83 : vector<8x32xf32>
    %cst_58 = arith.constant 1.000000e+00 : f32
    %85 = vector.broadcast %cst_58 : f32 to vector<8x32xf32>
    %86 = arith.addf %85, %84 : vector<8x32xf32>
    %87 = arith.divf %85, %86 : vector<8x32xf32>
    %cst_59 = arith.constant dense<0.000000e+00> : vector<8x32xf32>
    %88 = tpu.matmul %36, %10, %cst_59 {dimension_numbers = #tpu.dot_dimension_numbers<[1], [0], [0], [1], [0, 0, 1, 1], [], []>} : vector<8x32xf32>, vector<32x32xf32>, vector<8x32xf32> -> vector<8x32xf32>
    %89 = arith.addf %88, %34 : vector<8x32xf32>
    %cst_60 = arith.constant dense<0.000000e+00> : vector<8x32xf32>
    %90 = tpu.matmul %35, %7, %cst_60 {dimension_numbers = #tpu.dot_dimension_numbers<[1], [0], [0], [1], [0, 0, 1, 1], [], []>} : vector<8x32xf32>, vector<32x32xf32>, vector<8x32xf32> -> vector<8x32xf32>
    %91 = arith.addf %90, %31 : vector<8x32xf32>
    %92 = arith.mulf %78, %89 : vector<8x32xf32>
    %93 = arith.addf %91, %92 : vector<8x32xf32>
    %94 = math.tanh %93 : vector<8x32xf32>
    %cst_61 = arith.constant 1.000000e+00 : f32
    %95 = vector.broadcast %cst_61 : f32 to vector<8x32xf32>
    %96 = arith.subf %95, %87 : vector<8x32xf32>
    %97 = arith.mulf %96, %94 : vector<8x32xf32>
    %98 = arith.mulf %87, %36 : vector<8x32xf32>
    %99 = arith.addf %97, %98 : vector<8x32xf32>
    %100 = vector.broadcast %65 : vector<8x1xf32> to vector<8x32xf32>
    %101 = arith.mulf %100, %99 : vector<8x32xf32>
    %102 = arith.addf %69, %101 : vector<8x32xf32>
    %cst_62 = arith.constant 1.000000e+00 : f32
    %103 = vector.broadcast %cst_62 : f32 to vector<8x1xf32>
    %104 = arith.subf %103, %65 : vector<8x1xf32>
    %105 = arith.mulf %37, %104 : vector<8x1xf32>
    %cst_63 = arith.constant 1.000000e+00 : f32
    %106 = vector.broadcast %cst_63 : f32 to vector<8x1xf32>
    %107 = arith.addf %105, %106 : vector<8x1xf32>
    %108 = tpu.reciprocal %107 {approx = true} : vector<8x1xf32> -> vector<8x1xf32>
    %109 = vector.broadcast %37 : vector<8x1xf32> to vector<8x32xf32>
    %110 = arith.mulf %35, %109 : vector<8x32xf32>
    %cst_64 = arith.constant 1.000000e+00 : f32
    %111 = vector.broadcast %cst_64 : f32 to vector<8x1xf32>
    %112 = arith.subf %111, %65 : vector<8x1xf32>
    %113 = vector.broadcast %112 : vector<8x1xf32> to vector<8x32xf32>
    %114 = arith.mulf %110, %113 : vector<8x32xf32>
    %115 = arith.addf %114, %40 : vector<8x32xf32>
    %116 = vector.broadcast %108 : vector<8x1xf32> to vector<8x32xf32>
    %117 = arith.mulf %115, %116 : vector<8x32xf32>
    %c1_i32 = arith.constant 1 : i32
    %118 = arith.index_cast %c1_i32 : i32 to index
    %c0_65 = arith.constant 0 : index
    %c0_66 = arith.constant 0 : index
    %119 = vector.load %arg1[%118, %c0_65, %c0_66] : memref<8x8x32xf32, #tpu.memory_space<vmem>>, vector<1x8x32xf32>
    %120 = vector.shape_cast %119 : vector<1x8x32xf32> to vector<8x32xf32>
    %121 = arith.index_cast %c1_i32 : i32 to index
    %c0_67 = arith.constant 0 : index
    %c0_68 = arith.constant 0 : index
    %122 = vector.load %arg2[%121, %c0_67, %c0_68] : memref<8x8x1xf32, #tpu.memory_space<vmem>>, vector<1x8x1xf32>
    %123 = vector.shape_cast %122 : vector<1x8x1xf32> to vector<8x1xf32>
    %cst_69 = arith.constant dense<0.000000e+00> : vector<8x64xf32>
    %124 = tpu.matmul %117, %0, %cst_69 {dimension_numbers = #tpu.dot_dimension_numbers<[1], [0], [0], [1], [0, 0, 1, 1], [], []>} : vector<8x32xf32>, vector<32x64xf32>, vector<8x64xf32> -> vector<8x64xf32>
    %cst_70 = arith.constant dense<0.000000e+00> : vector<8x64xf32>
    %125 = tpu.matmul %120, %1, %cst_70 {dimension_numbers = #tpu.dot_dimension_numbers<[1], [0], [0], [1], [0, 0, 1, 1], [], []>} : vector<8x32xf32>, vector<32x64xf32>, vector<8x64xf32> -> vector<8x64xf32>
    %126 = arith.addf %124, %125 : vector<8x64xf32>
    %127 = arith.addf %126, %13 : vector<8x64xf32>
    %cst_71 = arith.constant 0.000000e+00 : f32
    %128 = vector.broadcast %cst_71 : f32 to vector<8x64xf32>
    %129 = arith.maximumf %127, %128 : vector<8x64xf32>
    %cst_72 = arith.constant dense<0.000000e+00> : vector<8x64xf32>
    %130 = tpu.matmul %129, %2, %cst_72 {dimension_numbers = #tpu.dot_dimension_numbers<[1], [0], [0], [1], [0, 0, 1, 1], [], []>} : vector<8x64xf32>, vector<64x64xf32>, vector<8x64xf32> -> vector<8x64xf32>
    %131 = arith.addf %130, %16 : vector<8x64xf32>
    %cst_73 = arith.constant 0.000000e+00 : f32
    %132 = vector.broadcast %cst_73 : f32 to vector<8x64xf32>
    %133 = arith.maximumf %131, %132 : vector<8x64xf32>
    %cst_74 = arith.constant dense<0.000000e+00> : vector<8x64xf32>
    %134 = tpu.matmul %133, %3, %cst_74 {dimension_numbers = #tpu.dot_dimension_numbers<[1], [0], [0], [1], [0, 0, 1, 1], [], []>} : vector<8x64xf32>, vector<64x64xf32>, vector<8x64xf32> -> vector<8x64xf32>
    %135 = arith.addf %134, %19 : vector<8x64xf32>
    %cst_75 = arith.constant 0.000000e+00 : f32
    %136 = vector.broadcast %cst_75 : f32 to vector<8x64xf32>
    %137 = arith.maximumf %135, %136 : vector<8x64xf32>
    %cst_76 = arith.constant dense<0.000000e+00> : vector<8x1xf32>
    %138 = tpu.matmul %137, %4, %cst_76 {dimension_numbers = #tpu.dot_dimension_numbers<[1], [0], [0], [1], [0, 0, 1, 1], [], []>} : vector<8x64xf32>, vector<64x1xf32>, vector<8x1xf32> -> vector<8x1xf32>
    %139 = arith.addf %138, %22 : vector<8x1xf32>
    %140 = arith.addf %139, %123 : vector<8x1xf32>
    %141 = arith.negf %140 : vector<8x1xf32>
    %142 = math.exp %141 : vector<8x1xf32>
    %cst_77 = arith.constant 1.000000e+00 : f32
    %143 = vector.broadcast %cst_77 : f32 to vector<8x1xf32>
    %144 = arith.addf %143, %142 : vector<8x1xf32>
    %145 = arith.divf %143, %144 : vector<8x1xf32>
    %cst_78 = arith.constant 1.000000e+00 : f32
    %146 = vector.broadcast %cst_78 : f32 to vector<8x1xf32>
    %147 = arith.subf %146, %145 : vector<8x1xf32>
    %148 = vector.broadcast %147 : vector<8x1xf32> to vector<8x32xf32>
    %149 = arith.mulf %102, %148 : vector<8x32xf32>
    %cst_79 = arith.constant dense<0.000000e+00> : vector<8x32xf32>
    %150 = tpu.matmul %117, %5, %cst_79 {dimension_numbers = #tpu.dot_dimension_numbers<[1], [0], [0], [1], [0, 0, 1, 1], [], []>} : vector<8x32xf32>, vector<32x32xf32>, vector<8x32xf32> -> vector<8x32xf32>
    %cst_80 = arith.constant dense<0.000000e+00> : vector<8x32xf32>
    %151 = tpu.matmul %102, %8, %cst_80 {dimension_numbers = #tpu.dot_dimension_numbers<[1], [0], [0], [1], [0, 0, 1, 1], [], []>} : vector<8x32xf32>, vector<32x32xf32>, vector<8x32xf32> -> vector<8x32xf32>
    %152 = arith.addf %150, %151 : vector<8x32xf32>
    %153 = arith.addf %152, %25 : vector<8x32xf32>
    %154 = arith.negf %153 : vector<8x32xf32>
    %155 = math.exp %154 : vector<8x32xf32>
    %cst_81 = arith.constant 1.000000e+00 : f32
    %156 = vector.broadcast %cst_81 : f32 to vector<8x32xf32>
    %157 = arith.addf %156, %155 : vector<8x32xf32>
    %158 = arith.divf %156, %157 : vector<8x32xf32>
    %cst_82 = arith.constant dense<0.000000e+00> : vector<8x32xf32>
    %159 = tpu.matmul %117, %6, %cst_82 {dimension_numbers = #tpu.dot_dimension_numbers<[1], [0], [0], [1], [0, 0, 1, 1], [], []>} : vector<8x32xf32>, vector<32x32xf32>, vector<8x32xf32> -> vector<8x32xf32>
    %cst_83 = arith.constant dense<0.000000e+00> : vector<8x32xf32>
    %160 = tpu.matmul %102, %9, %cst_83 {dimension_numbers = #tpu.dot_dimension_numbers<[1], [0], [0], [1], [0, 0, 1, 1], [], []>} : vector<8x32xf32>, vector<32x32xf32>, vector<8x32xf32> -> vector<8x32xf32>
    %161 = arith.addf %159, %160 : vector<8x32xf32>
    %162 = arith.addf %161, %28 : vector<8x32xf32>
    %163 = arith.negf %162 : vector<8x32xf32>
    %164 = math.exp %163 : vector<8x32xf32>
    %cst_84 = arith.constant 1.000000e+00 : f32
    %165 = vector.broadcast %cst_84 : f32 to vector<8x32xf32>
    %166 = arith.addf %165, %164 : vector<8x32xf32>
    %167 = arith.divf %165, %166 : vector<8x32xf32>
    %cst_85 = arith.constant dense<0.000000e+00> : vector<8x32xf32>
    %168 = tpu.matmul %102, %10, %cst_85 {dimension_numbers = #tpu.dot_dimension_numbers<[1], [0], [0], [1], [0, 0, 1, 1], [], []>} : vector<8x32xf32>, vector<32x32xf32>, vector<8x32xf32> -> vector<8x32xf32>
    %169 = arith.addf %168, %34 : vector<8x32xf32>
    %cst_86 = arith.constant dense<0.000000e+00> : vector<8x32xf32>
    %170 = tpu.matmul %117, %7, %cst_86 {dimension_numbers = #tpu.dot_dimension_numbers<[1], [0], [0], [1], [0, 0, 1, 1], [], []>} : vector<8x32xf32>, vector<32x32xf32>, vector<8x32xf32> -> vector<8x32xf32>
    %171 = arith.addf %170, %31 : vector<8x32xf32>
    %172 = arith.mulf %158, %169 : vector<8x32xf32>
    %173 = arith.addf %171, %172 : vector<8x32xf32>
    %174 = math.tanh %173 : vector<8x32xf32>
    %cst_87 = arith.constant 1.000000e+00 : f32
    %175 = vector.broadcast %cst_87 : f32 to vector<8x32xf32>
    %176 = arith.subf %175, %167 : vector<8x32xf32>
    %177 = arith.mulf %176, %174 : vector<8x32xf32>
    %178 = arith.mulf %167, %102 : vector<8x32xf32>
    %179 = arith.addf %177, %178 : vector<8x32xf32>
    %180 = vector.broadcast %145 : vector<8x1xf32> to vector<8x32xf32>
    %181 = arith.mulf %180, %179 : vector<8x32xf32>
    %182 = arith.addf %149, %181 : vector<8x32xf32>
    %cst_88 = arith.constant 1.000000e+00 : f32
    %183 = vector.broadcast %cst_88 : f32 to vector<8x1xf32>
    %184 = arith.subf %183, %145 : vector<8x1xf32>
    %185 = arith.mulf %107, %184 : vector<8x1xf32>
    %cst_89 = arith.constant 1.000000e+00 : f32
    %186 = vector.broadcast %cst_89 : f32 to vector<8x1xf32>
    %187 = arith.addf %185, %186 : vector<8x1xf32>
    %188 = tpu.reciprocal %187 {approx = true} : vector<8x1xf32> -> vector<8x1xf32>
    %189 = vector.broadcast %107 : vector<8x1xf32> to vector<8x32xf32>
    %190 = arith.mulf %117, %189 : vector<8x32xf32>
    %cst_90 = arith.constant 1.000000e+00 : f32
    %191 = vector.broadcast %cst_90 : f32 to vector<8x1xf32>
    %192 = arith.subf %191, %145 : vector<8x1xf32>
    %193 = vector.broadcast %192 : vector<8x1xf32> to vector<8x32xf32>
    %194 = arith.mulf %190, %193 : vector<8x32xf32>
    %195 = arith.addf %194, %120 : vector<8x32xf32>
    %196 = vector.broadcast %188 : vector<8x1xf32> to vector<8x32xf32>
    %197 = arith.mulf %195, %196 : vector<8x32xf32>
    %c2_i32 = arith.constant 2 : i32
    %198 = arith.index_cast %c2_i32 : i32 to index
    %c0_91 = arith.constant 0 : index
    %c0_92 = arith.constant 0 : index
    %199 = vector.load %arg1[%198, %c0_91, %c0_92] : memref<8x8x32xf32, #tpu.memory_space<vmem>>, vector<1x8x32xf32>
    %200 = vector.shape_cast %199 : vector<1x8x32xf32> to vector<8x32xf32>
    %201 = arith.index_cast %c2_i32 : i32 to index
    %c0_93 = arith.constant 0 : index
    %c0_94 = arith.constant 0 : index
    %202 = vector.load %arg2[%201, %c0_93, %c0_94] : memref<8x8x1xf32, #tpu.memory_space<vmem>>, vector<1x8x1xf32>
    %203 = vector.shape_cast %202 : vector<1x8x1xf32> to vector<8x1xf32>
    %cst_95 = arith.constant dense<0.000000e+00> : vector<8x64xf32>
    %204 = tpu.matmul %197, %0, %cst_95 {dimension_numbers = #tpu.dot_dimension_numbers<[1], [0], [0], [1], [0, 0, 1, 1], [], []>} : vector<8x32xf32>, vector<32x64xf32>, vector<8x64xf32> -> vector<8x64xf32>
    %cst_96 = arith.constant dense<0.000000e+00> : vector<8x64xf32>
    %205 = tpu.matmul %200, %1, %cst_96 {dimension_numbers = #tpu.dot_dimension_numbers<[1], [0], [0], [1], [0, 0, 1, 1], [], []>} : vector<8x32xf32>, vector<32x64xf32>, vector<8x64xf32> -> vector<8x64xf32>
    %206 = arith.addf %204, %205 : vector<8x64xf32>
    %207 = arith.addf %206, %13 : vector<8x64xf32>
    %cst_97 = arith.constant 0.000000e+00 : f32
    %208 = vector.broadcast %cst_97 : f32 to vector<8x64xf32>
    %209 = arith.maximumf %207, %208 : vector<8x64xf32>
    %cst_98 = arith.constant dense<0.000000e+00> : vector<8x64xf32>
    %210 = tpu.matmul %209, %2, %cst_98 {dimension_numbers = #tpu.dot_dimension_numbers<[1], [0], [0], [1], [0, 0, 1, 1], [], []>} : vector<8x64xf32>, vector<64x64xf32>, vector<8x64xf32> -> vector<8x64xf32>
    %211 = arith.addf %210, %16 : vector<8x64xf32>
    %cst_99 = arith.constant 0.000000e+00 : f32
    %212 = vector.broadcast %cst_99 : f32 to vector<8x64xf32>
    %213 = arith.maximumf %211, %212 : vector<8x64xf32>
    %cst_100 = arith.constant dense<0.000000e+00> : vector<8x64xf32>
    %214 = tpu.matmul %213, %3, %cst_100 {dimension_numbers = #tpu.dot_dimension_numbers<[1], [0], [0], [1], [0, 0, 1, 1], [], []>} : vector<8x64xf32>, vector<64x64xf32>, vector<8x64xf32> -> vector<8x64xf32>
    %215 = arith.addf %214, %19 : vector<8x64xf32>
    %cst_101 = arith.constant 0.000000e+00 : f32
    %216 = vector.broadcast %cst_101 : f32 to vector<8x64xf32>
    %217 = arith.maximumf %215, %216 : vector<8x64xf32>
    %cst_102 = arith.constant dense<0.000000e+00> : vector<8x1xf32>
    %218 = tpu.matmul %217, %4, %cst_102 {dimension_numbers = #tpu.dot_dimension_numbers<[1], [0], [0], [1], [0, 0, 1, 1], [], []>} : vector<8x64xf32>, vector<64x1xf32>, vector<8x1xf32> -> vector<8x1xf32>
    %219 = arith.addf %218, %22 : vector<8x1xf32>
    %220 = arith.addf %219, %203 : vector<8x1xf32>
    %221 = arith.negf %220 : vector<8x1xf32>
    %222 = math.exp %221 : vector<8x1xf32>
    %cst_103 = arith.constant 1.000000e+00 : f32
    %223 = vector.broadcast %cst_103 : f32 to vector<8x1xf32>
    %224 = arith.addf %223, %222 : vector<8x1xf32>
    %225 = arith.divf %223, %224 : vector<8x1xf32>
    %cst_104 = arith.constant 1.000000e+00 : f32
    %226 = vector.broadcast %cst_104 : f32 to vector<8x1xf32>
    %227 = arith.subf %226, %225 : vector<8x1xf32>
    %228 = vector.broadcast %227 : vector<8x1xf32> to vector<8x32xf32>
    %229 = arith.mulf %182, %228 : vector<8x32xf32>
    %cst_105 = arith.constant dense<0.000000e+00> : vector<8x32xf32>
    %230 = tpu.matmul %197, %5, %cst_105 {dimension_numbers = #tpu.dot_dimension_numbers<[1], [0], [0], [1], [0, 0, 1, 1], [], []>} : vector<8x32xf32>, vector<32x32xf32>, vector<8x32xf32> -> vector<8x32xf32>
    %cst_106 = arith.constant dense<0.000000e+00> : vector<8x32xf32>
    %231 = tpu.matmul %182, %8, %cst_106 {dimension_numbers = #tpu.dot_dimension_numbers<[1], [0], [0], [1], [0, 0, 1, 1], [], []>} : vector<8x32xf32>, vector<32x32xf32>, vector<8x32xf32> -> vector<8x32xf32>
    %232 = arith.addf %230, %231 : vector<8x32xf32>
    %233 = arith.addf %232, %25 : vector<8x32xf32>
    %234 = arith.negf %233 : vector<8x32xf32>
    %235 = math.exp %234 : vector<8x32xf32>
    %cst_107 = arith.constant 1.000000e+00 : f32
    %236 = vector.broadcast %cst_107 : f32 to vector<8x32xf32>
    %237 = arith.addf %236, %235 : vector<8x32xf32>
    %238 = arith.divf %236, %237 : vector<8x32xf32>
    %cst_108 = arith.constant dense<0.000000e+00> : vector<8x32xf32>
    %239 = tpu.matmul %197, %6, %cst_108 {dimension_numbers = #tpu.dot_dimension_numbers<[1], [0], [0], [1], [0, 0, 1, 1], [], []>} : vector<8x32xf32>, vector<32x32xf32>, vector<8x32xf32> -> vector<8x32xf32>
    %cst_109 = arith.constant dense<0.000000e+00> : vector<8x32xf32>
    %240 = tpu.matmul %182, %9, %cst_109 {dimension_numbers = #tpu.dot_dimension_numbers<[1], [0], [0], [1], [0, 0, 1, 1], [], []>} : vector<8x32xf32>, vector<32x32xf32>, vector<8x32xf32> -> vector<8x32xf32>
    %241 = arith.addf %239, %240 : vector<8x32xf32>
    %242 = arith.addf %241, %28 : vector<8x32xf32>
    %243 = arith.negf %242 : vector<8x32xf32>
    %244 = math.exp %243 : vector<8x32xf32>
    %cst_110 = arith.constant 1.000000e+00 : f32
    %245 = vector.broadcast %cst_110 : f32 to vector<8x32xf32>
    %246 = arith.addf %245, %244 : vector<8x32xf32>
    %247 = arith.divf %245, %246 : vector<8x32xf32>
    %cst_111 = arith.constant dense<0.000000e+00> : vector<8x32xf32>
    %248 = tpu.matmul %182, %10, %cst_111 {dimension_numbers = #tpu.dot_dimension_numbers<[1], [0], [0], [1], [0, 0, 1, 1], [], []>} : vector<8x32xf32>, vector<32x32xf32>, vector<8x32xf32> -> vector<8x32xf32>
    %249 = arith.addf %248, %34 : vector<8x32xf32>
    %cst_112 = arith.constant dense<0.000000e+00> : vector<8x32xf32>
    %250 = tpu.matmul %197, %7, %cst_112 {dimension_numbers = #tpu.dot_dimension_numbers<[1], [0], [0], [1], [0, 0, 1, 1], [], []>} : vector<8x32xf32>, vector<32x32xf32>, vector<8x32xf32> -> vector<8x32xf32>
    %251 = arith.addf %250, %31 : vector<8x32xf32>
    %252 = arith.mulf %238, %249 : vector<8x32xf32>
    %253 = arith.addf %251, %252 : vector<8x32xf32>
    %254 = math.tanh %253 : vector<8x32xf32>
    %cst_113 = arith.constant 1.000000e+00 : f32
    %255 = vector.broadcast %cst_113 : f32 to vector<8x32xf32>
    %256 = arith.subf %255, %247 : vector<8x32xf32>
    %257 = arith.mulf %256, %254 : vector<8x32xf32>
    %258 = arith.mulf %247, %182 : vector<8x32xf32>
    %259 = arith.addf %257, %258 : vector<8x32xf32>
    %260 = vector.broadcast %225 : vector<8x1xf32> to vector<8x32xf32>
    %261 = arith.mulf %260, %259 : vector<8x32xf32>
    %262 = arith.addf %229, %261 : vector<8x32xf32>
    %cst_114 = arith.constant 1.000000e+00 : f32
    %263 = vector.broadcast %cst_114 : f32 to vector<8x1xf32>
    %264 = arith.subf %263, %225 : vector<8x1xf32>
    %265 = arith.mulf %187, %264 : vector<8x1xf32>
    %cst_115 = arith.constant 1.000000e+00 : f32
    %266 = vector.broadcast %cst_115 : f32 to vector<8x1xf32>
    %267 = arith.addf %265, %266 : vector<8x1xf32>
    %268 = tpu.reciprocal %267 {approx = true} : vector<8x1xf32> -> vector<8x1xf32>
    %269 = vector.broadcast %187 : vector<8x1xf32> to vector<8x32xf32>
    %270 = arith.mulf %197, %269 : vector<8x32xf32>
    %cst_116 = arith.constant 1.000000e+00 : f32
    %271 = vector.broadcast %cst_116 : f32 to vector<8x1xf32>
    %272 = arith.subf %271, %225 : vector<8x1xf32>
    %273 = vector.broadcast %272 : vector<8x1xf32> to vector<8x32xf32>
    %274 = arith.mulf %270, %273 : vector<8x32xf32>
    %275 = arith.addf %274, %200 : vector<8x32xf32>
    %276 = vector.broadcast %268 : vector<8x1xf32> to vector<8x32xf32>
    %277 = arith.mulf %275, %276 : vector<8x32xf32>
    %c3_i32 = arith.constant 3 : i32
    %278 = arith.index_cast %c3_i32 : i32 to index
    %c0_117 = arith.constant 0 : index
    %c0_118 = arith.constant 0 : index
    %279 = vector.load %arg1[%278, %c0_117, %c0_118] : memref<8x8x32xf32, #tpu.memory_space<vmem>>, vector<1x8x32xf32>
    %280 = vector.shape_cast %279 : vector<1x8x32xf32> to vector<8x32xf32>
    %281 = arith.index_cast %c3_i32 : i32 to index
    %c0_119 = arith.constant 0 : index
    %c0_120 = arith.constant 0 : index
    %282 = vector.load %arg2[%281, %c0_119, %c0_120] : memref<8x8x1xf32, #tpu.memory_space<vmem>>, vector<1x8x1xf32>
    %283 = vector.shape_cast %282 : vector<1x8x1xf32> to vector<8x1xf32>
    %cst_121 = arith.constant dense<0.000000e+00> : vector<8x64xf32>
    %284 = tpu.matmul %277, %0, %cst_121 {dimension_numbers = #tpu.dot_dimension_numbers<[1], [0], [0], [1], [0, 0, 1, 1], [], []>} : vector<8x32xf32>, vector<32x64xf32>, vector<8x64xf32> -> vector<8x64xf32>
    %cst_122 = arith.constant dense<0.000000e+00> : vector<8x64xf32>
    %285 = tpu.matmul %280, %1, %cst_122 {dimension_numbers = #tpu.dot_dimension_numbers<[1], [0], [0], [1], [0, 0, 1, 1], [], []>} : vector<8x32xf32>, vector<32x64xf32>, vector<8x64xf32> -> vector<8x64xf32>
    %286 = arith.addf %284, %285 : vector<8x64xf32>
    %287 = arith.addf %286, %13 : vector<8x64xf32>
    %cst_123 = arith.constant 0.000000e+00 : f32
    %288 = vector.broadcast %cst_123 : f32 to vector<8x64xf32>
    %289 = arith.maximumf %287, %288 : vector<8x64xf32>
    %cst_124 = arith.constant dense<0.000000e+00> : vector<8x64xf32>
    %290 = tpu.matmul %289, %2, %cst_124 {dimension_numbers = #tpu.dot_dimension_numbers<[1], [0], [0], [1], [0, 0, 1, 1], [], []>} : vector<8x64xf32>, vector<64x64xf32>, vector<8x64xf32> -> vector<8x64xf32>
    %291 = arith.addf %290, %16 : vector<8x64xf32>
    %cst_125 = arith.constant 0.000000e+00 : f32
    %292 = vector.broadcast %cst_125 : f32 to vector<8x64xf32>
    %293 = arith.maximumf %291, %292 : vector<8x64xf32>
    %cst_126 = arith.constant dense<0.000000e+00> : vector<8x64xf32>
    %294 = tpu.matmul %293, %3, %cst_126 {dimension_numbers = #tpu.dot_dimension_numbers<[1], [0], [0], [1], [0, 0, 1, 1], [], []>} : vector<8x64xf32>, vector<64x64xf32>, vector<8x64xf32> -> vector<8x64xf32>
    %295 = arith.addf %294, %19 : vector<8x64xf32>
    %cst_127 = arith.constant 0.000000e+00 : f32
    %296 = vector.broadcast %cst_127 : f32 to vector<8x64xf32>
    %297 = arith.maximumf %295, %296 : vector<8x64xf32>
    %cst_128 = arith.constant dense<0.000000e+00> : vector<8x1xf32>
    %298 = tpu.matmul %297, %4, %cst_128 {dimension_numbers = #tpu.dot_dimension_numbers<[1], [0], [0], [1], [0, 0, 1, 1], [], []>} : vector<8x64xf32>, vector<64x1xf32>, vector<8x1xf32> -> vector<8x1xf32>
    %299 = arith.addf %298, %22 : vector<8x1xf32>
    %300 = arith.addf %299, %283 : vector<8x1xf32>
    %301 = arith.negf %300 : vector<8x1xf32>
    %302 = math.exp %301 : vector<8x1xf32>
    %cst_129 = arith.constant 1.000000e+00 : f32
    %303 = vector.broadcast %cst_129 : f32 to vector<8x1xf32>
    %304 = arith.addf %303, %302 : vector<8x1xf32>
    %305 = arith.divf %303, %304 : vector<8x1xf32>
    %cst_130 = arith.constant 1.000000e+00 : f32
    %306 = vector.broadcast %cst_130 : f32 to vector<8x1xf32>
    %307 = arith.subf %306, %305 : vector<8x1xf32>
    %308 = vector.broadcast %307 : vector<8x1xf32> to vector<8x32xf32>
    %309 = arith.mulf %262, %308 : vector<8x32xf32>
    %cst_131 = arith.constant dense<0.000000e+00> : vector<8x32xf32>
    %310 = tpu.matmul %277, %5, %cst_131 {dimension_numbers = #tpu.dot_dimension_numbers<[1], [0], [0], [1], [0, 0, 1, 1], [], []>} : vector<8x32xf32>, vector<32x32xf32>, vector<8x32xf32> -> vector<8x32xf32>
    %cst_132 = arith.constant dense<0.000000e+00> : vector<8x32xf32>
    %311 = tpu.matmul %262, %8, %cst_132 {dimension_numbers = #tpu.dot_dimension_numbers<[1], [0], [0], [1], [0, 0, 1, 1], [], []>} : vector<8x32xf32>, vector<32x32xf32>, vector<8x32xf32> -> vector<8x32xf32>
    %312 = arith.addf %310, %311 : vector<8x32xf32>
    %313 = arith.addf %312, %25 : vector<8x32xf32>
    %314 = arith.negf %313 : vector<8x32xf32>
    %315 = math.exp %314 : vector<8x32xf32>
    %cst_133 = arith.constant 1.000000e+00 : f32
    %316 = vector.broadcast %cst_133 : f32 to vector<8x32xf32>
    %317 = arith.addf %316, %315 : vector<8x32xf32>
    %318 = arith.divf %316, %317 : vector<8x32xf32>
    %cst_134 = arith.constant dense<0.000000e+00> : vector<8x32xf32>
    %319 = tpu.matmul %277, %6, %cst_134 {dimension_numbers = #tpu.dot_dimension_numbers<[1], [0], [0], [1], [0, 0, 1, 1], [], []>} : vector<8x32xf32>, vector<32x32xf32>, vector<8x32xf32> -> vector<8x32xf32>
    %cst_135 = arith.constant dense<0.000000e+00> : vector<8x32xf32>
    %320 = tpu.matmul %262, %9, %cst_135 {dimension_numbers = #tpu.dot_dimension_numbers<[1], [0], [0], [1], [0, 0, 1, 1], [], []>} : vector<8x32xf32>, vector<32x32xf32>, vector<8x32xf32> -> vector<8x32xf32>
    %321 = arith.addf %319, %320 : vector<8x32xf32>
    %322 = arith.addf %321, %28 : vector<8x32xf32>
    %323 = arith.negf %322 : vector<8x32xf32>
    %324 = math.exp %323 : vector<8x32xf32>
    %cst_136 = arith.constant 1.000000e+00 : f32
    %325 = vector.broadcast %cst_136 : f32 to vector<8x32xf32>
    %326 = arith.addf %325, %324 : vector<8x32xf32>
    %327 = arith.divf %325, %326 : vector<8x32xf32>
    %cst_137 = arith.constant dense<0.000000e+00> : vector<8x32xf32>
    %328 = tpu.matmul %262, %10, %cst_137 {dimension_numbers = #tpu.dot_dimension_numbers<[1], [0], [0], [1], [0, 0, 1, 1], [], []>} : vector<8x32xf32>, vector<32x32xf32>, vector<8x32xf32> -> vector<8x32xf32>
    %329 = arith.addf %328, %34 : vector<8x32xf32>
    %cst_138 = arith.constant dense<0.000000e+00> : vector<8x32xf32>
    %330 = tpu.matmul %277, %7, %cst_138 {dimension_numbers = #tpu.dot_dimension_numbers<[1], [0], [0], [1], [0, 0, 1, 1], [], []>} : vector<8x32xf32>, vector<32x32xf32>, vector<8x32xf32> -> vector<8x32xf32>
    %331 = arith.addf %330, %31 : vector<8x32xf32>
    %332 = arith.mulf %318, %329 : vector<8x32xf32>
    %333 = arith.addf %331, %332 : vector<8x32xf32>
    %334 = math.tanh %333 : vector<8x32xf32>
    %cst_139 = arith.constant 1.000000e+00 : f32
    %335 = vector.broadcast %cst_139 : f32 to vector<8x32xf32>
    %336 = arith.subf %335, %327 : vector<8x32xf32>
    %337 = arith.mulf %336, %334 : vector<8x32xf32>
    %338 = arith.mulf %327, %262 : vector<8x32xf32>
    %339 = arith.addf %337, %338 : vector<8x32xf32>
    %340 = vector.broadcast %305 : vector<8x1xf32> to vector<8x32xf32>
    %341 = arith.mulf %340, %339 : vector<8x32xf32>
    %342 = arith.addf %309, %341 : vector<8x32xf32>
    %cst_140 = arith.constant 1.000000e+00 : f32
    %343 = vector.broadcast %cst_140 : f32 to vector<8x1xf32>
    %344 = arith.subf %343, %305 : vector<8x1xf32>
    %345 = arith.mulf %267, %344 : vector<8x1xf32>
    %cst_141 = arith.constant 1.000000e+00 : f32
    %346 = vector.broadcast %cst_141 : f32 to vector<8x1xf32>
    %347 = arith.addf %345, %346 : vector<8x1xf32>
    %348 = tpu.reciprocal %347 {approx = true} : vector<8x1xf32> -> vector<8x1xf32>
    %349 = vector.broadcast %267 : vector<8x1xf32> to vector<8x32xf32>
    %350 = arith.mulf %277, %349 : vector<8x32xf32>
    %cst_142 = arith.constant 1.000000e+00 : f32
    %351 = vector.broadcast %cst_142 : f32 to vector<8x1xf32>
    %352 = arith.subf %351, %305 : vector<8x1xf32>
    %353 = vector.broadcast %352 : vector<8x1xf32> to vector<8x32xf32>
    %354 = arith.mulf %350, %353 : vector<8x32xf32>
    %355 = arith.addf %354, %280 : vector<8x32xf32>
    %356 = vector.broadcast %348 : vector<8x1xf32> to vector<8x32xf32>
    %357 = arith.mulf %355, %356 : vector<8x32xf32>
    %c4_i32 = arith.constant 4 : i32
    %358 = arith.index_cast %c4_i32 : i32 to index
    %c0_143 = arith.constant 0 : index
    %c0_144 = arith.constant 0 : index
    %359 = vector.load %arg1[%358, %c0_143, %c0_144] : memref<8x8x32xf32, #tpu.memory_space<vmem>>, vector<1x8x32xf32>
    %360 = vector.shape_cast %359 : vector<1x8x32xf32> to vector<8x32xf32>
    %361 = arith.index_cast %c4_i32 : i32 to index
    %c0_145 = arith.constant 0 : index
    %c0_146 = arith.constant 0 : index
    %362 = vector.load %arg2[%361, %c0_145, %c0_146] : memref<8x8x1xf32, #tpu.memory_space<vmem>>, vector<1x8x1xf32>
    %363 = vector.shape_cast %362 : vector<1x8x1xf32> to vector<8x1xf32>
    %cst_147 = arith.constant dense<0.000000e+00> : vector<8x64xf32>
    %364 = tpu.matmul %357, %0, %cst_147 {dimension_numbers = #tpu.dot_dimension_numbers<[1], [0], [0], [1], [0, 0, 1, 1], [], []>} : vector<8x32xf32>, vector<32x64xf32>, vector<8x64xf32> -> vector<8x64xf32>
    %cst_148 = arith.constant dense<0.000000e+00> : vector<8x64xf32>
    %365 = tpu.matmul %360, %1, %cst_148 {dimension_numbers = #tpu.dot_dimension_numbers<[1], [0], [0], [1], [0, 0, 1, 1], [], []>} : vector<8x32xf32>, vector<32x64xf32>, vector<8x64xf32> -> vector<8x64xf32>
    %366 = arith.addf %364, %365 : vector<8x64xf32>
    %367 = arith.addf %366, %13 : vector<8x64xf32>
    %cst_149 = arith.constant 0.000000e+00 : f32
    %368 = vector.broadcast %cst_149 : f32 to vector<8x64xf32>
    %369 = arith.maximumf %367, %368 : vector<8x64xf32>
    %cst_150 = arith.constant dense<0.000000e+00> : vector<8x64xf32>
    %370 = tpu.matmul %369, %2, %cst_150 {dimension_numbers = #tpu.dot_dimension_numbers<[1], [0], [0], [1], [0, 0, 1, 1], [], []>} : vector<8x64xf32>, vector<64x64xf32>, vector<8x64xf32> -> vector<8x64xf32>
    %371 = arith.addf %370, %16 : vector<8x64xf32>
    %cst_151 = arith.constant 0.000000e+00 : f32
    %372 = vector.broadcast %cst_151 : f32 to vector<8x64xf32>
    %373 = arith.maximumf %371, %372 : vector<8x64xf32>
    %cst_152 = arith.constant dense<0.000000e+00> : vector<8x64xf32>
    %374 = tpu.matmul %373, %3, %cst_152 {dimension_numbers = #tpu.dot_dimension_numbers<[1], [0], [0], [1], [0, 0, 1, 1], [], []>} : vector<8x64xf32>, vector<64x64xf32>, vector<8x64xf32> -> vector<8x64xf32>
    %375 = arith.addf %374, %19 : vector<8x64xf32>
    %cst_153 = arith.constant 0.000000e+00 : f32
    %376 = vector.broadcast %cst_153 : f32 to vector<8x64xf32>
    %377 = arith.maximumf %375, %376 : vector<8x64xf32>
    %cst_154 = arith.constant dense<0.000000e+00> : vector<8x1xf32>
    %378 = tpu.matmul %377, %4, %cst_154 {dimension_numbers = #tpu.dot_dimension_numbers<[1], [0], [0], [1], [0, 0, 1, 1], [], []>} : vector<8x64xf32>, vector<64x1xf32>, vector<8x1xf32> -> vector<8x1xf32>
    %379 = arith.addf %378, %22 : vector<8x1xf32>
    %380 = arith.addf %379, %363 : vector<8x1xf32>
    %381 = arith.negf %380 : vector<8x1xf32>
    %382 = math.exp %381 : vector<8x1xf32>
    %cst_155 = arith.constant 1.000000e+00 : f32
    %383 = vector.broadcast %cst_155 : f32 to vector<8x1xf32>
    %384 = arith.addf %383, %382 : vector<8x1xf32>
    %385 = arith.divf %383, %384 : vector<8x1xf32>
    %cst_156 = arith.constant 1.000000e+00 : f32
    %386 = vector.broadcast %cst_156 : f32 to vector<8x1xf32>
    %387 = arith.subf %386, %385 : vector<8x1xf32>
    %388 = vector.broadcast %387 : vector<8x1xf32> to vector<8x32xf32>
    %389 = arith.mulf %342, %388 : vector<8x32xf32>
    %cst_157 = arith.constant dense<0.000000e+00> : vector<8x32xf32>
    %390 = tpu.matmul %357, %5, %cst_157 {dimension_numbers = #tpu.dot_dimension_numbers<[1], [0], [0], [1], [0, 0, 1, 1], [], []>} : vector<8x32xf32>, vector<32x32xf32>, vector<8x32xf32> -> vector<8x32xf32>
    %cst_158 = arith.constant dense<0.000000e+00> : vector<8x32xf32>
    %391 = tpu.matmul %342, %8, %cst_158 {dimension_numbers = #tpu.dot_dimension_numbers<[1], [0], [0], [1], [0, 0, 1, 1], [], []>} : vector<8x32xf32>, vector<32x32xf32>, vector<8x32xf32> -> vector<8x32xf32>
    %392 = arith.addf %390, %391 : vector<8x32xf32>
    %393 = arith.addf %392, %25 : vector<8x32xf32>
    %394 = arith.negf %393 : vector<8x32xf32>
    %395 = math.exp %394 : vector<8x32xf32>
    %cst_159 = arith.constant 1.000000e+00 : f32
    %396 = vector.broadcast %cst_159 : f32 to vector<8x32xf32>
    %397 = arith.addf %396, %395 : vector<8x32xf32>
    %398 = arith.divf %396, %397 : vector<8x32xf32>
    %cst_160 = arith.constant dense<0.000000e+00> : vector<8x32xf32>
    %399 = tpu.matmul %357, %6, %cst_160 {dimension_numbers = #tpu.dot_dimension_numbers<[1], [0], [0], [1], [0, 0, 1, 1], [], []>} : vector<8x32xf32>, vector<32x32xf32>, vector<8x32xf32> -> vector<8x32xf32>
    %cst_161 = arith.constant dense<0.000000e+00> : vector<8x32xf32>
    %400 = tpu.matmul %342, %9, %cst_161 {dimension_numbers = #tpu.dot_dimension_numbers<[1], [0], [0], [1], [0, 0, 1, 1], [], []>} : vector<8x32xf32>, vector<32x32xf32>, vector<8x32xf32> -> vector<8x32xf32>
    %401 = arith.addf %399, %400 : vector<8x32xf32>
    %402 = arith.addf %401, %28 : vector<8x32xf32>
    %403 = arith.negf %402 : vector<8x32xf32>
    %404 = math.exp %403 : vector<8x32xf32>
    %cst_162 = arith.constant 1.000000e+00 : f32
    %405 = vector.broadcast %cst_162 : f32 to vector<8x32xf32>
    %406 = arith.addf %405, %404 : vector<8x32xf32>
    %407 = arith.divf %405, %406 : vector<8x32xf32>
    %cst_163 = arith.constant dense<0.000000e+00> : vector<8x32xf32>
    %408 = tpu.matmul %342, %10, %cst_163 {dimension_numbers = #tpu.dot_dimension_numbers<[1], [0], [0], [1], [0, 0, 1, 1], [], []>} : vector<8x32xf32>, vector<32x32xf32>, vector<8x32xf32> -> vector<8x32xf32>
    %409 = arith.addf %408, %34 : vector<8x32xf32>
    %cst_164 = arith.constant dense<0.000000e+00> : vector<8x32xf32>
    %410 = tpu.matmul %357, %7, %cst_164 {dimension_numbers = #tpu.dot_dimension_numbers<[1], [0], [0], [1], [0, 0, 1, 1], [], []>} : vector<8x32xf32>, vector<32x32xf32>, vector<8x32xf32> -> vector<8x32xf32>
    %411 = arith.addf %410, %31 : vector<8x32xf32>
    %412 = arith.mulf %398, %409 : vector<8x32xf32>
    %413 = arith.addf %411, %412 : vector<8x32xf32>
    %414 = math.tanh %413 : vector<8x32xf32>
    %cst_165 = arith.constant 1.000000e+00 : f32
    %415 = vector.broadcast %cst_165 : f32 to vector<8x32xf32>
    %416 = arith.subf %415, %407 : vector<8x32xf32>
    %417 = arith.mulf %416, %414 : vector<8x32xf32>
    %418 = arith.mulf %407, %342 : vector<8x32xf32>
    %419 = arith.addf %417, %418 : vector<8x32xf32>
    %420 = vector.broadcast %385 : vector<8x1xf32> to vector<8x32xf32>
    %421 = arith.mulf %420, %419 : vector<8x32xf32>
    %422 = arith.addf %389, %421 : vector<8x32xf32>
    %cst_166 = arith.constant 1.000000e+00 : f32
    %423 = vector.broadcast %cst_166 : f32 to vector<8x1xf32>
    %424 = arith.subf %423, %385 : vector<8x1xf32>
    %425 = arith.mulf %347, %424 : vector<8x1xf32>
    %cst_167 = arith.constant 1.000000e+00 : f32
    %426 = vector.broadcast %cst_167 : f32 to vector<8x1xf32>
    %427 = arith.addf %425, %426 : vector<8x1xf32>
    %428 = tpu.reciprocal %427 {approx = true} : vector<8x1xf32> -> vector<8x1xf32>
    %429 = vector.broadcast %347 : vector<8x1xf32> to vector<8x32xf32>
    %430 = arith.mulf %357, %429 : vector<8x32xf32>
    %cst_168 = arith.constant 1.000000e+00 : f32
    %431 = vector.broadcast %cst_168 : f32 to vector<8x1xf32>
    %432 = arith.subf %431, %385 : vector<8x1xf32>
    %433 = vector.broadcast %432 : vector<8x1xf32> to vector<8x32xf32>
    %434 = arith.mulf %430, %433 : vector<8x32xf32>
    %435 = arith.addf %434, %360 : vector<8x32xf32>
    %436 = vector.broadcast %428 : vector<8x1xf32> to vector<8x32xf32>
    %437 = arith.mulf %435, %436 : vector<8x32xf32>
    %c5_i32 = arith.constant 5 : i32
    %438 = arith.index_cast %c5_i32 : i32 to index
    %c0_169 = arith.constant 0 : index
    %c0_170 = arith.constant 0 : index
    %439 = vector.load %arg1[%438, %c0_169, %c0_170] : memref<8x8x32xf32, #tpu.memory_space<vmem>>, vector<1x8x32xf32>
    %440 = vector.shape_cast %439 : vector<1x8x32xf32> to vector<8x32xf32>
    %441 = arith.index_cast %c5_i32 : i32 to index
    %c0_171 = arith.constant 0 : index
    %c0_172 = arith.constant 0 : index
    %442 = vector.load %arg2[%441, %c0_171, %c0_172] : memref<8x8x1xf32, #tpu.memory_space<vmem>>, vector<1x8x1xf32>
    %443 = vector.shape_cast %442 : vector<1x8x1xf32> to vector<8x1xf32>
    %cst_173 = arith.constant dense<0.000000e+00> : vector<8x64xf32>
    %444 = tpu.matmul %437, %0, %cst_173 {dimension_numbers = #tpu.dot_dimension_numbers<[1], [0], [0], [1], [0, 0, 1, 1], [], []>} : vector<8x32xf32>, vector<32x64xf32>, vector<8x64xf32> -> vector<8x64xf32>
    %cst_174 = arith.constant dense<0.000000e+00> : vector<8x64xf32>
    %445 = tpu.matmul %440, %1, %cst_174 {dimension_numbers = #tpu.dot_dimension_numbers<[1], [0], [0], [1], [0, 0, 1, 1], [], []>} : vector<8x32xf32>, vector<32x64xf32>, vector<8x64xf32> -> vector<8x64xf32>
    %446 = arith.addf %444, %445 : vector<8x64xf32>
    %447 = arith.addf %446, %13 : vector<8x64xf32>
    %cst_175 = arith.constant 0.000000e+00 : f32
    %448 = vector.broadcast %cst_175 : f32 to vector<8x64xf32>
    %449 = arith.maximumf %447, %448 : vector<8x64xf32>
    %cst_176 = arith.constant dense<0.000000e+00> : vector<8x64xf32>
    %450 = tpu.matmul %449, %2, %cst_176 {dimension_numbers = #tpu.dot_dimension_numbers<[1], [0], [0], [1], [0, 0, 1, 1], [], []>} : vector<8x64xf32>, vector<64x64xf32>, vector<8x64xf32> -> vector<8x64xf32>
    %451 = arith.addf %450, %16 : vector<8x64xf32>
    %cst_177 = arith.constant 0.000000e+00 : f32
    %452 = vector.broadcast %cst_177 : f32 to vector<8x64xf32>
    %453 = arith.maximumf %451, %452 : vector<8x64xf32>
    %cst_178 = arith.constant dense<0.000000e+00> : vector<8x64xf32>
    %454 = tpu.matmul %453, %3, %cst_178 {dimension_numbers = #tpu.dot_dimension_numbers<[1], [0], [0], [1], [0, 0, 1, 1], [], []>} : vector<8x64xf32>, vector<64x64xf32>, vector<8x64xf32> -> vector<8x64xf32>
    %455 = arith.addf %454, %19 : vector<8x64xf32>
    %cst_179 = arith.constant 0.000000e+00 : f32
    %456 = vector.broadcast %cst_179 : f32 to vector<8x64xf32>
    %457 = arith.maximumf %455, %456 : vector<8x64xf32>
    %cst_180 = arith.constant dense<0.000000e+00> : vector<8x1xf32>
    %458 = tpu.matmul %457, %4, %cst_180 {dimension_numbers = #tpu.dot_dimension_numbers<[1], [0], [0], [1], [0, 0, 1, 1], [], []>} : vector<8x64xf32>, vector<64x1xf32>, vector<8x1xf32> -> vector<8x1xf32>
    %459 = arith.addf %458, %22 : vector<8x1xf32>
    %460 = arith.addf %459, %443 : vector<8x1xf32>
    %461 = arith.negf %460 : vector<8x1xf32>
    %462 = math.exp %461 : vector<8x1xf32>
    %cst_181 = arith.constant 1.000000e+00 : f32
    %463 = vector.broadcast %cst_181 : f32 to vector<8x1xf32>
    %464 = arith.addf %463, %462 : vector<8x1xf32>
    %465 = arith.divf %463, %464 : vector<8x1xf32>
    %cst_182 = arith.constant 1.000000e+00 : f32
    %466 = vector.broadcast %cst_182 : f32 to vector<8x1xf32>
    %467 = arith.subf %466, %465 : vector<8x1xf32>
    %468 = vector.broadcast %467 : vector<8x1xf32> to vector<8x32xf32>
    %469 = arith.mulf %422, %468 : vector<8x32xf32>
    %cst_183 = arith.constant dense<0.000000e+00> : vector<8x32xf32>
    %470 = tpu.matmul %437, %5, %cst_183 {dimension_numbers = #tpu.dot_dimension_numbers<[1], [0], [0], [1], [0, 0, 1, 1], [], []>} : vector<8x32xf32>, vector<32x32xf32>, vector<8x32xf32> -> vector<8x32xf32>
    %cst_184 = arith.constant dense<0.000000e+00> : vector<8x32xf32>
    %471 = tpu.matmul %422, %8, %cst_184 {dimension_numbers = #tpu.dot_dimension_numbers<[1], [0], [0], [1], [0, 0, 1, 1], [], []>} : vector<8x32xf32>, vector<32x32xf32>, vector<8x32xf32> -> vector<8x32xf32>
    %472 = arith.addf %470, %471 : vector<8x32xf32>
    %473 = arith.addf %472, %25 : vector<8x32xf32>
    %474 = arith.negf %473 : vector<8x32xf32>
    %475 = math.exp %474 : vector<8x32xf32>
    %cst_185 = arith.constant 1.000000e+00 : f32
    %476 = vector.broadcast %cst_185 : f32 to vector<8x32xf32>
    %477 = arith.addf %476, %475 : vector<8x32xf32>
    %478 = arith.divf %476, %477 : vector<8x32xf32>
    %cst_186 = arith.constant dense<0.000000e+00> : vector<8x32xf32>
    %479 = tpu.matmul %437, %6, %cst_186 {dimension_numbers = #tpu.dot_dimension_numbers<[1], [0], [0], [1], [0, 0, 1, 1], [], []>} : vector<8x32xf32>, vector<32x32xf32>, vector<8x32xf32> -> vector<8x32xf32>
    %cst_187 = arith.constant dense<0.000000e+00> : vector<8x32xf32>
    %480 = tpu.matmul %422, %9, %cst_187 {dimension_numbers = #tpu.dot_dimension_numbers<[1], [0], [0], [1], [0, 0, 1, 1], [], []>} : vector<8x32xf32>, vector<32x32xf32>, vector<8x32xf32> -> vector<8x32xf32>
    %481 = arith.addf %479, %480 : vector<8x32xf32>
    %482 = arith.addf %481, %28 : vector<8x32xf32>
    %483 = arith.negf %482 : vector<8x32xf32>
    %484 = math.exp %483 : vector<8x32xf32>
    %cst_188 = arith.constant 1.000000e+00 : f32
    %485 = vector.broadcast %cst_188 : f32 to vector<8x32xf32>
    %486 = arith.addf %485, %484 : vector<8x32xf32>
    %487 = arith.divf %485, %486 : vector<8x32xf32>
    %cst_189 = arith.constant dense<0.000000e+00> : vector<8x32xf32>
    %488 = tpu.matmul %422, %10, %cst_189 {dimension_numbers = #tpu.dot_dimension_numbers<[1], [0], [0], [1], [0, 0, 1, 1], [], []>} : vector<8x32xf32>, vector<32x32xf32>, vector<8x32xf32> -> vector<8x32xf32>
    %489 = arith.addf %488, %34 : vector<8x32xf32>
    %cst_190 = arith.constant dense<0.000000e+00> : vector<8x32xf32>
    %490 = tpu.matmul %437, %7, %cst_190 {dimension_numbers = #tpu.dot_dimension_numbers<[1], [0], [0], [1], [0, 0, 1, 1], [], []>} : vector<8x32xf32>, vector<32x32xf32>, vector<8x32xf32> -> vector<8x32xf32>
    %491 = arith.addf %490, %31 : vector<8x32xf32>
    %492 = arith.mulf %478, %489 : vector<8x32xf32>
    %493 = arith.addf %491, %492 : vector<8x32xf32>
    %494 = math.tanh %493 : vector<8x32xf32>
    %cst_191 = arith.constant 1.000000e+00 : f32
    %495 = vector.broadcast %cst_191 : f32 to vector<8x32xf32>
    %496 = arith.subf %495, %487 : vector<8x32xf32>
    %497 = arith.mulf %496, %494 : vector<8x32xf32>
    %498 = arith.mulf %487, %422 : vector<8x32xf32>
    %499 = arith.addf %497, %498 : vector<8x32xf32>
    %500 = vector.broadcast %465 : vector<8x1xf32> to vector<8x32xf32>
    %501 = arith.mulf %500, %499 : vector<8x32xf32>
    %502 = arith.addf %469, %501 : vector<8x32xf32>
    %cst_192 = arith.constant 1.000000e+00 : f32
    %503 = vector.broadcast %cst_192 : f32 to vector<8x1xf32>
    %504 = arith.subf %503, %465 : vector<8x1xf32>
    %505 = arith.mulf %427, %504 : vector<8x1xf32>
    %cst_193 = arith.constant 1.000000e+00 : f32
    %506 = vector.broadcast %cst_193 : f32 to vector<8x1xf32>
    %507 = arith.addf %505, %506 : vector<8x1xf32>
    %508 = tpu.reciprocal %507 {approx = true} : vector<8x1xf32> -> vector<8x1xf32>
    %509 = vector.broadcast %427 : vector<8x1xf32> to vector<8x32xf32>
    %510 = arith.mulf %437, %509 : vector<8x32xf32>
    %cst_194 = arith.constant 1.000000e+00 : f32
    %511 = vector.broadcast %cst_194 : f32 to vector<8x1xf32>
    %512 = arith.subf %511, %465 : vector<8x1xf32>
    %513 = vector.broadcast %512 : vector<8x1xf32> to vector<8x32xf32>
    %514 = arith.mulf %510, %513 : vector<8x32xf32>
    %515 = arith.addf %514, %440 : vector<8x32xf32>
    %516 = vector.broadcast %508 : vector<8x1xf32> to vector<8x32xf32>
    %517 = arith.mulf %515, %516 : vector<8x32xf32>
    %c6_i32 = arith.constant 6 : i32
    %518 = arith.index_cast %c6_i32 : i32 to index
    %c0_195 = arith.constant 0 : index
    %c0_196 = arith.constant 0 : index
    %519 = vector.load %arg1[%518, %c0_195, %c0_196] : memref<8x8x32xf32, #tpu.memory_space<vmem>>, vector<1x8x32xf32>
    %520 = vector.shape_cast %519 : vector<1x8x32xf32> to vector<8x32xf32>
    %521 = arith.index_cast %c6_i32 : i32 to index
    %c0_197 = arith.constant 0 : index
    %c0_198 = arith.constant 0 : index
    %522 = vector.load %arg2[%521, %c0_197, %c0_198] : memref<8x8x1xf32, #tpu.memory_space<vmem>>, vector<1x8x1xf32>
    %523 = vector.shape_cast %522 : vector<1x8x1xf32> to vector<8x1xf32>
    %cst_199 = arith.constant dense<0.000000e+00> : vector<8x64xf32>
    %524 = tpu.matmul %517, %0, %cst_199 {dimension_numbers = #tpu.dot_dimension_numbers<[1], [0], [0], [1], [0, 0, 1, 1], [], []>} : vector<8x32xf32>, vector<32x64xf32>, vector<8x64xf32> -> vector<8x64xf32>
    %cst_200 = arith.constant dense<0.000000e+00> : vector<8x64xf32>
    %525 = tpu.matmul %520, %1, %cst_200 {dimension_numbers = #tpu.dot_dimension_numbers<[1], [0], [0], [1], [0, 0, 1, 1], [], []>} : vector<8x32xf32>, vector<32x64xf32>, vector<8x64xf32> -> vector<8x64xf32>
    %526 = arith.addf %524, %525 : vector<8x64xf32>
    %527 = arith.addf %526, %13 : vector<8x64xf32>
    %cst_201 = arith.constant 0.000000e+00 : f32
    %528 = vector.broadcast %cst_201 : f32 to vector<8x64xf32>
    %529 = arith.maximumf %527, %528 : vector<8x64xf32>
    %cst_202 = arith.constant dense<0.000000e+00> : vector<8x64xf32>
    %530 = tpu.matmul %529, %2, %cst_202 {dimension_numbers = #tpu.dot_dimension_numbers<[1], [0], [0], [1], [0, 0, 1, 1], [], []>} : vector<8x64xf32>, vector<64x64xf32>, vector<8x64xf32> -> vector<8x64xf32>
    %531 = arith.addf %530, %16 : vector<8x64xf32>
    %cst_203 = arith.constant 0.000000e+00 : f32
    %532 = vector.broadcast %cst_203 : f32 to vector<8x64xf32>
    %533 = arith.maximumf %531, %532 : vector<8x64xf32>
    %cst_204 = arith.constant dense<0.000000e+00> : vector<8x64xf32>
    %534 = tpu.matmul %533, %3, %cst_204 {dimension_numbers = #tpu.dot_dimension_numbers<[1], [0], [0], [1], [0, 0, 1, 1], [], []>} : vector<8x64xf32>, vector<64x64xf32>, vector<8x64xf32> -> vector<8x64xf32>
    %535 = arith.addf %534, %19 : vector<8x64xf32>
    %cst_205 = arith.constant 0.000000e+00 : f32
    %536 = vector.broadcast %cst_205 : f32 to vector<8x64xf32>
    %537 = arith.maximumf %535, %536 : vector<8x64xf32>
    %cst_206 = arith.constant dense<0.000000e+00> : vector<8x1xf32>
    %538 = tpu.matmul %537, %4, %cst_206 {dimension_numbers = #tpu.dot_dimension_numbers<[1], [0], [0], [1], [0, 0, 1, 1], [], []>} : vector<8x64xf32>, vector<64x1xf32>, vector<8x1xf32> -> vector<8x1xf32>
    %539 = arith.addf %538, %22 : vector<8x1xf32>
    %540 = arith.addf %539, %523 : vector<8x1xf32>
    %541 = arith.negf %540 : vector<8x1xf32>
    %542 = math.exp %541 : vector<8x1xf32>
    %cst_207 = arith.constant 1.000000e+00 : f32
    %543 = vector.broadcast %cst_207 : f32 to vector<8x1xf32>
    %544 = arith.addf %543, %542 : vector<8x1xf32>
    %545 = arith.divf %543, %544 : vector<8x1xf32>
    %cst_208 = arith.constant 1.000000e+00 : f32
    %546 = vector.broadcast %cst_208 : f32 to vector<8x1xf32>
    %547 = arith.subf %546, %545 : vector<8x1xf32>
    %548 = vector.broadcast %547 : vector<8x1xf32> to vector<8x32xf32>
    %549 = arith.mulf %502, %548 : vector<8x32xf32>
    %cst_209 = arith.constant dense<0.000000e+00> : vector<8x32xf32>
    %550 = tpu.matmul %517, %5, %cst_209 {dimension_numbers = #tpu.dot_dimension_numbers<[1], [0], [0], [1], [0, 0, 1, 1], [], []>} : vector<8x32xf32>, vector<32x32xf32>, vector<8x32xf32> -> vector<8x32xf32>
    %cst_210 = arith.constant dense<0.000000e+00> : vector<8x32xf32>
    %551 = tpu.matmul %502, %8, %cst_210 {dimension_numbers = #tpu.dot_dimension_numbers<[1], [0], [0], [1], [0, 0, 1, 1], [], []>} : vector<8x32xf32>, vector<32x32xf32>, vector<8x32xf32> -> vector<8x32xf32>
    %552 = arith.addf %550, %551 : vector<8x32xf32>
    %553 = arith.addf %552, %25 : vector<8x32xf32>
    %554 = arith.negf %553 : vector<8x32xf32>
    %555 = math.exp %554 : vector<8x32xf32>
    %cst_211 = arith.constant 1.000000e+00 : f32
    %556 = vector.broadcast %cst_211 : f32 to vector<8x32xf32>
    %557 = arith.addf %556, %555 : vector<8x32xf32>
    %558 = arith.divf %556, %557 : vector<8x32xf32>
    %cst_212 = arith.constant dense<0.000000e+00> : vector<8x32xf32>
    %559 = tpu.matmul %517, %6, %cst_212 {dimension_numbers = #tpu.dot_dimension_numbers<[1], [0], [0], [1], [0, 0, 1, 1], [], []>} : vector<8x32xf32>, vector<32x32xf32>, vector<8x32xf32> -> vector<8x32xf32>
    %cst_213 = arith.constant dense<0.000000e+00> : vector<8x32xf32>
    %560 = tpu.matmul %502, %9, %cst_213 {dimension_numbers = #tpu.dot_dimension_numbers<[1], [0], [0], [1], [0, 0, 1, 1], [], []>} : vector<8x32xf32>, vector<32x32xf32>, vector<8x32xf32> -> vector<8x32xf32>
    %561 = arith.addf %559, %560 : vector<8x32xf32>
    %562 = arith.addf %561, %28 : vector<8x32xf32>
    %563 = arith.negf %562 : vector<8x32xf32>
    %564 = math.exp %563 : vector<8x32xf32>
    %cst_214 = arith.constant 1.000000e+00 : f32
    %565 = vector.broadcast %cst_214 : f32 to vector<8x32xf32>
    %566 = arith.addf %565, %564 : vector<8x32xf32>
    %567 = arith.divf %565, %566 : vector<8x32xf32>
    %cst_215 = arith.constant dense<0.000000e+00> : vector<8x32xf32>
    %568 = tpu.matmul %502, %10, %cst_215 {dimension_numbers = #tpu.dot_dimension_numbers<[1], [0], [0], [1], [0, 0, 1, 1], [], []>} : vector<8x32xf32>, vector<32x32xf32>, vector<8x32xf32> -> vector<8x32xf32>
    %569 = arith.addf %568, %34 : vector<8x32xf32>
    %cst_216 = arith.constant dense<0.000000e+00> : vector<8x32xf32>
    %570 = tpu.matmul %517, %7, %cst_216 {dimension_numbers = #tpu.dot_dimension_numbers<[1], [0], [0], [1], [0, 0, 1, 1], [], []>} : vector<8x32xf32>, vector<32x32xf32>, vector<8x32xf32> -> vector<8x32xf32>
    %571 = arith.addf %570, %31 : vector<8x32xf32>
    %572 = arith.mulf %558, %569 : vector<8x32xf32>
    %573 = arith.addf %571, %572 : vector<8x32xf32>
    %574 = math.tanh %573 : vector<8x32xf32>
    %cst_217 = arith.constant 1.000000e+00 : f32
    %575 = vector.broadcast %cst_217 : f32 to vector<8x32xf32>
    %576 = arith.subf %575, %567 : vector<8x32xf32>
    %577 = arith.mulf %576, %574 : vector<8x32xf32>
    %578 = arith.mulf %567, %502 : vector<8x32xf32>
    %579 = arith.addf %577, %578 : vector<8x32xf32>
    %580 = vector.broadcast %545 : vector<8x1xf32> to vector<8x32xf32>
    %581 = arith.mulf %580, %579 : vector<8x32xf32>
    %582 = arith.addf %549, %581 : vector<8x32xf32>
    %cst_218 = arith.constant 1.000000e+00 : f32
    %583 = vector.broadcast %cst_218 : f32 to vector<8x1xf32>
    %584 = arith.subf %583, %545 : vector<8x1xf32>
    %585 = arith.mulf %507, %584 : vector<8x1xf32>
    %cst_219 = arith.constant 1.000000e+00 : f32
    %586 = vector.broadcast %cst_219 : f32 to vector<8x1xf32>
    %587 = arith.addf %585, %586 : vector<8x1xf32>
    %588 = tpu.reciprocal %587 {approx = true} : vector<8x1xf32> -> vector<8x1xf32>
    %589 = vector.broadcast %507 : vector<8x1xf32> to vector<8x32xf32>
    %590 = arith.mulf %517, %589 : vector<8x32xf32>
    %cst_220 = arith.constant 1.000000e+00 : f32
    %591 = vector.broadcast %cst_220 : f32 to vector<8x1xf32>
    %592 = arith.subf %591, %545 : vector<8x1xf32>
    %593 = vector.broadcast %592 : vector<8x1xf32> to vector<8x32xf32>
    %594 = arith.mulf %590, %593 : vector<8x32xf32>
    %595 = arith.addf %594, %520 : vector<8x32xf32>
    %596 = vector.broadcast %588 : vector<8x1xf32> to vector<8x32xf32>
    %597 = arith.mulf %595, %596 : vector<8x32xf32>
    %c7_i32 = arith.constant 7 : i32
    %598 = arith.index_cast %c7_i32 : i32 to index
    %c0_221 = arith.constant 0 : index
    %c0_222 = arith.constant 0 : index
    %599 = vector.load %arg1[%598, %c0_221, %c0_222] : memref<8x8x32xf32, #tpu.memory_space<vmem>>, vector<1x8x32xf32>
    %600 = vector.shape_cast %599 : vector<1x8x32xf32> to vector<8x32xf32>
    %601 = arith.index_cast %c7_i32 : i32 to index
    %c0_223 = arith.constant 0 : index
    %c0_224 = arith.constant 0 : index
    %602 = vector.load %arg2[%601, %c0_223, %c0_224] : memref<8x8x1xf32, #tpu.memory_space<vmem>>, vector<1x8x1xf32>
    %603 = vector.shape_cast %602 : vector<1x8x1xf32> to vector<8x1xf32>
    %cst_225 = arith.constant dense<0.000000e+00> : vector<8x64xf32>
    %604 = tpu.matmul %597, %0, %cst_225 {dimension_numbers = #tpu.dot_dimension_numbers<[1], [0], [0], [1], [0, 0, 1, 1], [], []>} : vector<8x32xf32>, vector<32x64xf32>, vector<8x64xf32> -> vector<8x64xf32>
    %cst_226 = arith.constant dense<0.000000e+00> : vector<8x64xf32>
    %605 = tpu.matmul %600, %1, %cst_226 {dimension_numbers = #tpu.dot_dimension_numbers<[1], [0], [0], [1], [0, 0, 1, 1], [], []>} : vector<8x32xf32>, vector<32x64xf32>, vector<8x64xf32> -> vector<8x64xf32>
    %606 = arith.addf %604, %605 : vector<8x64xf32>
    %607 = arith.addf %606, %13 : vector<8x64xf32>
    %cst_227 = arith.constant 0.000000e+00 : f32
    %608 = vector.broadcast %cst_227 : f32 to vector<8x64xf32>
    %609 = arith.maximumf %607, %608 : vector<8x64xf32>
    %cst_228 = arith.constant dense<0.000000e+00> : vector<8x64xf32>
    %610 = tpu.matmul %609, %2, %cst_228 {dimension_numbers = #tpu.dot_dimension_numbers<[1], [0], [0], [1], [0, 0, 1, 1], [], []>} : vector<8x64xf32>, vector<64x64xf32>, vector<8x64xf32> -> vector<8x64xf32>
    %611 = arith.addf %610, %16 : vector<8x64xf32>
    %cst_229 = arith.constant 0.000000e+00 : f32
    %612 = vector.broadcast %cst_229 : f32 to vector<8x64xf32>
    %613 = arith.maximumf %611, %612 : vector<8x64xf32>
    %cst_230 = arith.constant dense<0.000000e+00> : vector<8x64xf32>
    %614 = tpu.matmul %613, %3, %cst_230 {dimension_numbers = #tpu.dot_dimension_numbers<[1], [0], [0], [1], [0, 0, 1, 1], [], []>} : vector<8x64xf32>, vector<64x64xf32>, vector<8x64xf32> -> vector<8x64xf32>
    %615 = arith.addf %614, %19 : vector<8x64xf32>
    %cst_231 = arith.constant 0.000000e+00 : f32
    %616 = vector.broadcast %cst_231 : f32 to vector<8x64xf32>
    %617 = arith.maximumf %615, %616 : vector<8x64xf32>
    %cst_232 = arith.constant dense<0.000000e+00> : vector<8x1xf32>
    %618 = tpu.matmul %617, %4, %cst_232 {dimension_numbers = #tpu.dot_dimension_numbers<[1], [0], [0], [1], [0, 0, 1, 1], [], []>} : vector<8x64xf32>, vector<64x1xf32>, vector<8x1xf32> -> vector<8x1xf32>
    %619 = arith.addf %618, %22 : vector<8x1xf32>
    %620 = arith.addf %619, %603 : vector<8x1xf32>
    %621 = arith.negf %620 : vector<8x1xf32>
    %622 = math.exp %621 : vector<8x1xf32>
    %cst_233 = arith.constant 1.000000e+00 : f32
    %623 = vector.broadcast %cst_233 : f32 to vector<8x1xf32>
    %624 = arith.addf %623, %622 : vector<8x1xf32>
    %625 = arith.divf %623, %624 : vector<8x1xf32>
    %cst_234 = arith.constant 1.000000e+00 : f32
    %626 = vector.broadcast %cst_234 : f32 to vector<8x1xf32>
    %627 = arith.subf %626, %625 : vector<8x1xf32>
    %628 = vector.broadcast %627 : vector<8x1xf32> to vector<8x32xf32>
    %629 = arith.mulf %582, %628 : vector<8x32xf32>
    %cst_235 = arith.constant dense<0.000000e+00> : vector<8x32xf32>
    %630 = tpu.matmul %597, %5, %cst_235 {dimension_numbers = #tpu.dot_dimension_numbers<[1], [0], [0], [1], [0, 0, 1, 1], [], []>} : vector<8x32xf32>, vector<32x32xf32>, vector<8x32xf32> -> vector<8x32xf32>
    %cst_236 = arith.constant dense<0.000000e+00> : vector<8x32xf32>
    %631 = tpu.matmul %582, %8, %cst_236 {dimension_numbers = #tpu.dot_dimension_numbers<[1], [0], [0], [1], [0, 0, 1, 1], [], []>} : vector<8x32xf32>, vector<32x32xf32>, vector<8x32xf32> -> vector<8x32xf32>
    %632 = arith.addf %630, %631 : vector<8x32xf32>
    %633 = arith.addf %632, %25 : vector<8x32xf32>
    %634 = arith.negf %633 : vector<8x32xf32>
    %635 = math.exp %634 : vector<8x32xf32>
    %cst_237 = arith.constant 1.000000e+00 : f32
    %636 = vector.broadcast %cst_237 : f32 to vector<8x32xf32>
    %637 = arith.addf %636, %635 : vector<8x32xf32>
    %638 = arith.divf %636, %637 : vector<8x32xf32>
    %cst_238 = arith.constant dense<0.000000e+00> : vector<8x32xf32>
    %639 = tpu.matmul %597, %6, %cst_238 {dimension_numbers = #tpu.dot_dimension_numbers<[1], [0], [0], [1], [0, 0, 1, 1], [], []>} : vector<8x32xf32>, vector<32x32xf32>, vector<8x32xf32> -> vector<8x32xf32>
    %cst_239 = arith.constant dense<0.000000e+00> : vector<8x32xf32>
    %640 = tpu.matmul %582, %9, %cst_239 {dimension_numbers = #tpu.dot_dimension_numbers<[1], [0], [0], [1], [0, 0, 1, 1], [], []>} : vector<8x32xf32>, vector<32x32xf32>, vector<8x32xf32> -> vector<8x32xf32>
    %641 = arith.addf %639, %640 : vector<8x32xf32>
    %642 = arith.addf %641, %28 : vector<8x32xf32>
    %643 = arith.negf %642 : vector<8x32xf32>
    %644 = math.exp %643 : vector<8x32xf32>
    %cst_240 = arith.constant 1.000000e+00 : f32
    %645 = vector.broadcast %cst_240 : f32 to vector<8x32xf32>
    %646 = arith.addf %645, %644 : vector<8x32xf32>
    %647 = arith.divf %645, %646 : vector<8x32xf32>
    %cst_241 = arith.constant dense<0.000000e+00> : vector<8x32xf32>
    %648 = tpu.matmul %582, %10, %cst_241 {dimension_numbers = #tpu.dot_dimension_numbers<[1], [0], [0], [1], [0, 0, 1, 1], [], []>} : vector<8x32xf32>, vector<32x32xf32>, vector<8x32xf32> -> vector<8x32xf32>
    %649 = arith.addf %648, %34 : vector<8x32xf32>
    %cst_242 = arith.constant dense<0.000000e+00> : vector<8x32xf32>
    %650 = tpu.matmul %597, %7, %cst_242 {dimension_numbers = #tpu.dot_dimension_numbers<[1], [0], [0], [1], [0, 0, 1, 1], [], []>} : vector<8x32xf32>, vector<32x32xf32>, vector<8x32xf32> -> vector<8x32xf32>
    %651 = arith.addf %650, %31 : vector<8x32xf32>
    %652 = arith.mulf %638, %649 : vector<8x32xf32>
    %653 = arith.addf %651, %652 : vector<8x32xf32>
    %654 = math.tanh %653 : vector<8x32xf32>
    %cst_243 = arith.constant 1.000000e+00 : f32
    %655 = vector.broadcast %cst_243 : f32 to vector<8x32xf32>
    %656 = arith.subf %655, %647 : vector<8x32xf32>
    %657 = arith.mulf %656, %654 : vector<8x32xf32>
    %658 = arith.mulf %647, %582 : vector<8x32xf32>
    %659 = arith.addf %657, %658 : vector<8x32xf32>
    %660 = vector.broadcast %625 : vector<8x1xf32> to vector<8x32xf32>
    %661 = arith.mulf %660, %659 : vector<8x32xf32>
    %662 = arith.addf %629, %661 : vector<8x32xf32>
    %cst_244 = arith.constant 1.000000e+00 : f32
    %663 = vector.broadcast %cst_244 : f32 to vector<8x1xf32>
    %664 = arith.subf %663, %625 : vector<8x1xf32>
    %665 = arith.mulf %587, %664 : vector<8x1xf32>
    %cst_245 = arith.constant 1.000000e+00 : f32
    %666 = vector.broadcast %cst_245 : f32 to vector<8x1xf32>
    %667 = arith.addf %665, %666 : vector<8x1xf32>
    %668 = tpu.reciprocal %667 {approx = true} : vector<8x1xf32> -> vector<8x1xf32>
    %669 = vector.broadcast %587 : vector<8x1xf32> to vector<8x32xf32>
    %670 = arith.mulf %597, %669 : vector<8x32xf32>
    %cst_246 = arith.constant 1.000000e+00 : f32
    %671 = vector.broadcast %cst_246 : f32 to vector<8x1xf32>
    %672 = arith.subf %671, %625 : vector<8x1xf32>
    %673 = vector.broadcast %672 : vector<8x1xf32> to vector<8x32xf32>
    %674 = arith.mulf %670, %673 : vector<8x32xf32>
    %675 = arith.addf %674, %600 : vector<8x32xf32>
    %676 = vector.broadcast %668 : vector<8x1xf32> to vector<8x32xf32>
    %677 = arith.mulf %675, %676 : vector<8x32xf32>
    %c8_i32 = arith.constant 8 : i32
    %cst_247 = arith.constant dense<0.000000e+00> : vector<8x32xf32>
    %678 = tpu.matmul %677, %5, %cst_247 {dimension_numbers = #tpu.dot_dimension_numbers<[1], [0], [0], [1], [0, 0, 1, 1], [], []>} : vector<8x32xf32>, vector<32x32xf32>, vector<8x32xf32> -> vector<8x32xf32>
    %cst_248 = arith.constant dense<0.000000e+00> : vector<8x32xf32>
    %679 = tpu.matmul %662, %8, %cst_248 {dimension_numbers = #tpu.dot_dimension_numbers<[1], [0], [0], [1], [0, 0, 1, 1], [], []>} : vector<8x32xf32>, vector<32x32xf32>, vector<8x32xf32> -> vector<8x32xf32>
    %680 = arith.addf %678, %679 : vector<8x32xf32>
    %681 = arith.addf %680, %25 : vector<8x32xf32>
    %682 = arith.negf %681 : vector<8x32xf32>
    %683 = math.exp %682 : vector<8x32xf32>
    %cst_249 = arith.constant 1.000000e+00 : f32
    %684 = vector.broadcast %cst_249 : f32 to vector<8x32xf32>
    %685 = arith.addf %684, %683 : vector<8x32xf32>
    %686 = arith.divf %684, %685 : vector<8x32xf32>
    %cst_250 = arith.constant dense<0.000000e+00> : vector<8x32xf32>
    %687 = tpu.matmul %677, %6, %cst_250 {dimension_numbers = #tpu.dot_dimension_numbers<[1], [0], [0], [1], [0, 0, 1, 1], [], []>} : vector<8x32xf32>, vector<32x32xf32>, vector<8x32xf32> -> vector<8x32xf32>
    %cst_251 = arith.constant dense<0.000000e+00> : vector<8x32xf32>
    %688 = tpu.matmul %662, %9, %cst_251 {dimension_numbers = #tpu.dot_dimension_numbers<[1], [0], [0], [1], [0, 0, 1, 1], [], []>} : vector<8x32xf32>, vector<32x32xf32>, vector<8x32xf32> -> vector<8x32xf32>
    %689 = arith.addf %687, %688 : vector<8x32xf32>
    %690 = arith.addf %689, %28 : vector<8x32xf32>
    %691 = arith.negf %690 : vector<8x32xf32>
    %692 = math.exp %691 : vector<8x32xf32>
    %cst_252 = arith.constant 1.000000e+00 : f32
    %693 = vector.broadcast %cst_252 : f32 to vector<8x32xf32>
    %694 = arith.addf %693, %692 : vector<8x32xf32>
    %695 = arith.divf %693, %694 : vector<8x32xf32>
    %cst_253 = arith.constant dense<0.000000e+00> : vector<8x32xf32>
    %696 = tpu.matmul %662, %10, %cst_253 {dimension_numbers = #tpu.dot_dimension_numbers<[1], [0], [0], [1], [0, 0, 1, 1], [], []>} : vector<8x32xf32>, vector<32x32xf32>, vector<8x32xf32> -> vector<8x32xf32>
    %697 = arith.addf %696, %34 : vector<8x32xf32>
    %cst_254 = arith.constant dense<0.000000e+00> : vector<8x32xf32>
    %698 = tpu.matmul %677, %7, %cst_254 {dimension_numbers = #tpu.dot_dimension_numbers<[1], [0], [0], [1], [0, 0, 1, 1], [], []>} : vector<8x32xf32>, vector<32x32xf32>, vector<8x32xf32> -> vector<8x32xf32>
    %699 = arith.addf %698, %31 : vector<8x32xf32>
    %700 = arith.mulf %686, %697 : vector<8x32xf32>
    %701 = arith.addf %699, %700 : vector<8x32xf32>
    %702 = math.tanh %701 : vector<8x32xf32>
    %cst_255 = arith.constant 1.000000e+00 : f32
    %703 = vector.broadcast %cst_255 : f32 to vector<8x32xf32>
    %704 = arith.subf %703, %695 : vector<8x32xf32>
    %705 = arith.mulf %704, %702 : vector<8x32xf32>
    %706 = arith.mulf %695, %662 : vector<8x32xf32>
    %707 = arith.addf %705, %706 : vector<8x32xf32>
    %c0_256 = arith.constant 0 : index
    %c0_257 = arith.constant 0 : index
    %708 = vector.load %arg22[%c0_256, %c0_257] : memref<32x8xf32, #tpu.memory_space<vmem>>, vector<32x8xf32>
    %cst_258 = arith.constant dense<0.000000e+00> : vector<8x8xf32>
    %709 = tpu.matmul %707, %708, %cst_258 {dimension_numbers = #tpu.dot_dimension_numbers<[1], [0], [0], [1], [0, 0, 1, 1], [], []>} : vector<8x32xf32>, vector<32x8xf32>, vector<8x8xf32> -> vector<8x8xf32>
    %c0_259 = arith.constant 0 : index
    %c0_260 = arith.constant 0 : index
    %710 = vector.load %arg23[%c0_259, %c0_260] : memref<1x8xf32, #tpu.memory_space<vmem>>, vector<1x8xf32>
    %711 = vector.broadcast %710 : vector<1x8xf32> to vector<8x8xf32>
    %712 = arith.addf %709, %711 : vector<8x8xf32>
    %c0_261 = arith.constant 0 : index
    %c0_262 = arith.constant 0 : index
    %713 = vector.load %arg24[%c0_261, %c0_262] : memref<8x8xf32, #tpu.memory_space<vmem>>, vector<8x8xf32>
    tpu.vector_store %arg24[%c0_261, %c0_262], %712 {strides = array<i32>} : memref<8x8xf32, #tpu.memory_space<vmem>>, vector<8x8xf32>,
    return
  }
  func.func @transform_0(%arg0: i32) -> (i32, i32, i32) {
    %c0_i32 = arith.constant 0 : i32
    %c0_i32_0 = arith.constant 0 : i32
    %c0_i32_1 = arith.constant 0 : i32
    %c0_i32_2 = arith.constant 0 : i32
    return %c0_i32, %c0_i32_0, %c0_i32_1 : i32, i32, i32
  }
  func.func @transform_1(%arg0: i32) -> (i32, i32, i32) {
    %c0_i32 = arith.constant 0 : i32
    %c0_i32_0 = arith.constant 0 : i32
    %c0_i32_1 = arith.constant 0 : i32
    %c0_i32_2 = arith.constant 0 : i32
    return %c0_i32, %c0_i32_0, %c0_i32_1 : i32, i32, i32
  }
  func.func @transform_2(%arg0: i32) -> (i32, i32) {
    %c0_i32 = arith.constant 0 : i32
    %c0_i32_0 = arith.constant 0 : i32
    %c0_i32_1 = arith.constant 0 : i32
    return %c0_i32, %c0_i32_0 : i32, i32
  }
  func.func @transform_3(%arg0: i32) -> (i32, i32) {
    %c0_i32 = arith.constant 0 : i32
    %c0_i32_0 = arith.constant 0 : i32
    %c0_i32_1 = arith.constant 0 : i32
    return %c0_i32, %c0_i32_0 : i32, i32
  }
  func.func @transform_4(%arg0: i32) -> (i32, i32) {
    %c0_i32 = arith.constant 0 : i32
    %c0_i32_0 = arith.constant 0 : i32
    %c0_i32_1 = arith.constant 0 : i32
    return %c0_i32, %c0_i32_0 : i32, i32
  }
  func.func @transform_5(%arg0: i32) -> (i32, i32) {
    %c0_i32 = arith.constant 0 : i32
    %c0_i32_0 = arith.constant 0 : i32
    %c0_i32_1 = arith.constant 0 : i32
    return %c0_i32, %c0_i32_0 : i32, i32
  }
  func.func @transform_6(%arg0: i32) -> (i32, i32) {
    %c0_i32 = arith.constant 0 : i32
    %c0_i32_0 = arith.constant 0 : i32
    %c0_i32_1 = arith.constant 0 : i32
    return %c0_i32, %c0_i32_0 : i32, i32
  }
  func.func @transform_7(%arg0: i32) -> (i32, i32) {
    %c0_i32 = arith.constant 0 : i32
    %c0_i32_0 = arith.constant 0 : i32
    %c0_i32_1 = arith.constant 0 : i32
    return %c0_i32, %c0_i32_0 : i32, i32
  }
  func.func @transform_8(%arg0: i32) -> (i32, i32) {
    %c0_i32 = arith.constant 0 : i32
    %c0_i32_0 = arith.constant 0 : i32
    %c0_i32_1 = arith.constant 0 : i32
    return %c0_i32, %c0_i32_0 : i32, i32
  }
  func.func @transform_9(%arg0: i32) -> (i32, i32) {
    %c0_i32 = arith.constant 0 : i32
    %c0_i32_0 = arith.constant 0 : i32
    %c0_i32_1 = arith.constant 0 : i32
    return %c0_i32, %c0_i32_0 : i32, i32
  }
  func.func @transform_10(%arg0: i32) -> (i32, i32) {
    %c0_i32 = arith.constant 0 : i32
    %c0_i32_0 = arith.constant 0 : i32
    %c0_i32_1 = arith.constant 0 : i32
    return %c0_i32, %c0_i32_0 : i32, i32
  }
  func.func @transform_11(%arg0: i32) -> (i32, i32) {
    %c0_i32 = arith.constant 0 : i32
    %c0_i32_0 = arith.constant 0 : i32
    %c0_i32_1 = arith.constant 0 : i32
    return %c0_i32, %c0_i32_0 : i32, i32
  }
  func.func @transform_12(%arg0: i32) -> (i32, i32) {
    %c0_i32 = arith.constant 0 : i32
    %c0_i32_0 = arith.constant 0 : i32
    %c0_i32_1 = arith.constant 0 : i32
    return %c0_i32, %c0_i32_0 : i32, i32
  }
  func.func @transform_13(%arg0: i32) -> (i32, i32) {
    %c0_i32 = arith.constant 0 : i32
    %c0_i32_0 = arith.constant 0 : i32
    %c0_i32_1 = arith.constant 0 : i32
    return %c0_i32, %c0_i32_0 : i32, i32
  }
  func.func @transform_14(%arg0: i32) -> (i32, i32) {
    %c0_i32 = arith.constant 0 : i32
    %c0_i32_0 = arith.constant 0 : i32
    %c0_i32_1 = arith.constant 0 : i32
    return %c0_i32, %c0_i32_0 : i32, i32
  }
  func.func @transform_15(%arg0: i32) -> (i32, i32) {
    %c0_i32 = arith.constant 0 : i32
    %c0_i32_0 = arith.constant 0 : i32
    %c0_i32_1 = arith.constant 0 : i32
    return %c0_i32, %c0_i32_0 : i32, i32
  }
  func.func @transform_16(%arg0: i32) -> (i32, i32) {
    %c0_i32 = arith.constant 0 : i32
    %c0_i32_0 = arith.constant 0 : i32
    %c0_i32_1 = arith.constant 0 : i32
    return %c0_i32, %c0_i32_0 : i32, i32
  }
  func.func @transform_17(%arg0: i32) -> (i32, i32) {
    %c0_i32 = arith.constant 0 : i32
    %c0_i32_0 = arith.constant 0 : i32
    %c0_i32_1 = arith.constant 0 : i32
    return %c0_i32, %c0_i32_0 : i32, i32
  }
  func.func @transform_18(%arg0: i32) -> (i32, i32) {
    %c0_i32 = arith.constant 0 : i32
    %c0_i32_0 = arith.constant 0 : i32
    %c0_i32_1 = arith.constant 0 : i32
    return %c0_i32, %c0_i32_0 : i32, i32
  }
  func.func @transform_19(%arg0: i32) -> (i32, i32) {
    %c0_i32 = arith.constant 0 : i32
    %c0_i32_0 = arith.constant 0 : i32
    %c0_i32_1 = arith.constant 0 : i32
    return %c0_i32, %c0_i32_0 : i32, i32
  }
  func.func @transform_20(%arg0: i32) -> (i32, i32) {
    %c0_i32 = arith.constant 0 : i32
    %c0_i32_0 = arith.constant 0 : i32
    %c0_i32_1 = arith.constant 0 : i32
    return %c0_i32, %c0_i32_0 : i32, i32
  }
  func.func @transform_21(%arg0: i32) -> (i32, i32) {
    %c0_i32 = arith.constant 0 : i32
    %c0_i32_0 = arith.constant 0 : i32
    %c0_i32_1 = arith.constant 0 : i32
    return %c0_i32, %c0_i32_0 : i32, i32
  }
  func.func @transform_22(%arg0: i32) -> (i32, i32) {
    %c0_i32 = arith.constant 0 : i32
    %c0_i32_0 = arith.constant 0 : i32
    %c0_i32_1 = arith.constant 0 : i32
    return %c0_i32, %c0_i32_0 : i32, i32
  }
  func.func @transform_23(%arg0: i32) -> (i32, i32) {
    %c0_i32 = arith.constant 0 : i32
    %c0_i32_0 = arith.constant 0 : i32
    %c0_i32_1 = arith.constant 0 : i32
    return %c0_i32, %c0_i32_0 : i32, i32
  }
}

</mosaic_0001>

<llo_original>
// kernel: tpu_custom_call.1
$region0: #{tpu_custom_call.1}
  #allocation0 [shape = 'u32[]', space=smem, size = 0x4, offset = 0x4, fixed_abs, tag = 'smem constant byte address 0x4 - core index']
  #allocation1 [shape = 'u32[144,128]{1,0:T(1,128)}', space=vmem, size = 0x12000, scoped, tag = 'internal scratch']
  #allocation2 [shape = 'f32[1,1]{1,0:T(1,128)S(1)}', space=vmem, size = 0x200, scoped, tag = 'scoped memory for tpu_custom_call.1']
  %s0 = inlined_call_operand.vmem [shape: f32[8,8,32], index: 0, kind: input, shape index: {}]
  %s1 = inlined_call_operand.vmem [shape: f32[8,8,1], index: 1, kind: input, shape index: {}]
  %s2 = inlined_call_operand.hbm [shape: f32[32,64], index: 2, kind: input, shape index: {}]
  %s3 = inlined_call_operand.hbm [shape: f32[32,64], index: 3, kind: input, shape index: {}]
  %s4 = inlined_call_operand.hbm [shape: f32[1,64], index: 4, kind: input, shape index: {}]
  %s5 = inlined_call_operand.vmem [shape: f32[64,64], index: 5, kind: input, shape index: {}]
  %s6 = inlined_call_operand.hbm [shape: f32[1,64], index: 6, kind: input, shape index: {}]
  %s7 = inlined_call_operand.vmem [shape: f32[64,64], index: 7, kind: input, shape index: {}]
  %s8 = inlined_call_operand.hbm [shape: f32[1,64], index: 8, kind: input, shape index: {}]
  %s9 = inlined_call_operand.vmem [shape: f32[64,1], index: 9, kind: input, shape index: {}]
  %s10 = inlined_call_operand.<no memory space> [shape: f32[1,1], index: 10, kind: input, shape index: {}]
  %s11 = inlined_call_operand.hbm [shape: f32[32,32], index: 11, kind: input, shape index: {}]
  %s12 = inlined_call_operand.hbm [shape: f32[32,32], index: 12, kind: input, shape index: {}]
  %s13 = inlined_call_operand.vmem [shape: f32[32,32], index: 13, kind: input, shape index: {}]
  %s14 = inlined_call_operand.hbm [shape: f32[32,32], index: 14, kind: input, shape index: {}]
  %s15 = inlined_call_operand.hbm [shape: f32[32,32], index: 15, kind: input, shape index: {}]
  %s16 = inlined_call_operand.hbm [shape: f32[32,32], index: 16, kind: input, shape index: {}]
  %s17 = inlined_call_operand.vmem [shape: f32[1,32], index: 17, kind: input, shape index: {}]
  %s18 = inlined_call_operand.vmem [shape: f32[1,32], index: 18, kind: input, shape index: {}]
  %s19 = inlined_call_operand.vmem [shape: f32[1,32], index: 19, kind: input, shape index: {}]
  %s20 = inlined_call_operand.vmem [shape: f32[1,32], index: 20, kind: input, shape index: {}]
  %s21 = inlined_call_operand.vmem [shape: f32[32,8], index: 21, kind: input, shape index: {}]
  %s22 = inlined_call_operand.vmem [shape: f32[1,8], index: 22, kind: input, shape index: {}]
  %s23 = inlined_call_operand.hbm [shape: f32[8,8], index: 23, kind: output, shape index: {}]
  %s24 = sld [smem:[#allocation0]]
  $region142: #{tpu_custom_call.1} parent=0
    _
  %s26 = ssub.s32 1, %s24
  %s27 = scalar_select 0, %s26, %s24
  %v28 = vstv %s10
  %29 = vst [vmem:[#allocation2] sm:$0x1] %v28
  $region1: #{tpu_custom_call.1} parent=0
    #allocation3 [shape = 'u8[16384]{0}', space=vmem, size = 0x4000, scoped, tag = 'input window, operand 2, single buffered']
    #allocation4 [shape = 's32[1]{0}', space=sflag, size = 0x4, scoped, tag = 'scoped memory for tpu_custom_call.1']
    #allocation5 [shape = 's32[1]{0}', space=sflag, size = 0x4, scoped, tag = 'scoped memory for tpu_custom_call.1']
    #allocation6 [shape = 'u8[16384]{0}', space=vmem, size = 0x4000, scoped, tag = 'input window, operand 3, single buffered']
    #allocation7 [shape = 's32[1]{0}', space=sflag, size = 0x4, scoped, tag = 'scoped memory for tpu_custom_call.1']
    #allocation8 [shape = 'u8[512]{0}', space=vmem, size = 0x400, scoped, tag = 'input window, operand 4, single buffered']
    #allocation9 [shape = 'u8[512]{0}', space=vmem, size = 0x400, scoped, tag = 'input window, operand 6, single buffered']
    #allocation10 [shape = 's32[1]{0}', space=sflag, size = 0x4, scoped, tag = 'scoped memory for tpu_custom_call.1']
    #allocation11 [shape = 'u8[512]{0}', space=vmem, size = 0x400, scoped, tag = 'input window, operand 8, single buffered']
    #allocation12 [shape = 'u8[16384]{0}', space=vmem, size = 0x4000, scoped, tag = 'input window, operand 11, single buffered']
    #allocation13 [shape = 's32[1]{0}', space=sflag, size = 0x4, scoped, tag = 'scoped memory for tpu_custom_call.1']
    #allocation14 [shape = 'u8[16384]{0}', space=vmem, size = 0x4000, scoped, tag = 'input window, operand 12, single buffered']
    #allocation15 [shape = 'u8[16384]{0}', space=vmem, size = 0x4000, scoped, tag = 'input window, operand 14, single buffered']
    #allocation16 [shape = 's32[1]{0}', space=sflag, size = 0x4, scoped, tag = 'scoped memory for tpu_custom_call.1']
    #allocation17 [shape = 'u8[16384]{0}', space=vmem, size = 0x4000, scoped, tag = 'input window, operand 15, single buffered']
    #allocation18 [shape = 'u8[16384]{0}', space=vmem, size = 0x4000, scoped, tag = 'input window, operand 16, single buffered']
    #allocation19 [shape = 's32[1]{0}', space=sflag, size = 0x4, scoped, tag = 'scoped memory for tpu_custom_call.1']
    #allocation20 [shape = 'u8[4096]{0}', space=vmem, size = 0x1000, scoped, tag = 'output window, operand 0, single buffered']
    %30 = vsyncpa [#allocation4], 0
    %31 = vsyncpa [#allocation7], 0
    %32 = vsyncpa [#allocation10], 0
    %33 = vsyncpa [#allocation13], 0
    %34 = vsyncpa [#allocation16], 0
    %35 = vsyncpa [#allocation19], 0
    %36 = vsyncpa [#allocation5], 0
    // Predicated region
    $region2: #{tpu_custom_call.1} parent=1 // pred_check
      _
    $region3: #{tpu_custom_call.1} parent=1 // pred_check_branch
      %38 = sbr.rel (0) target = $region5
    $region4: #{tpu_custom_call.1} parent=1 // pred_region
      _
    $region5: #{tpu_custom_call.1} parent=1 // pred_fallthru
      _
    // Predicated region
    $region6: #{tpu_custom_call.1} parent=1 // pred_check
      _
    $region7: #{tpu_custom_call.1} parent=1 // pred_check_branch
      %40 = sbr.rel (0) target = $region9
    $region8: #{tpu_custom_call.1} parent=1 // pred_region
      _
    $region9: #{tpu_custom_call.1} parent=1 // pred_fallthru
      _
    // Predicated region
    $region10: #{tpu_custom_call.1} parent=1 // pred_check
      _
    $region11: #{tpu_custom_call.1} parent=1 // pred_check_branch
      %42 = sbr.rel (0) target = $region13
    $region12: #{tpu_custom_call.1} parent=1 // pred_region
      %s44 = ssub.s32 512, 512
      %45 = vsyncadd [#allocation4], %s44
      %s46 = sshll.u32 [#allocation3], 4
      %s47 = int_to_ptr.vmem [resolvable:$true] %s46
      %52 = dma.hbm_to_vmem [thread:$0]  %s2, 512, %s47, [#allocation4], 128, 128, 8
    $region13: #{tpu_custom_call.1} parent=1 // pred_fallthru
      _
    // Predicated region
    $region14: #{tpu_custom_call.1} parent=1 // pred_check
      _
    $region15: #{tpu_custom_call.1} parent=1 // pred_check_branch
      %54 = sbr.rel (0) target = $region17
    $region16: #{tpu_custom_call.1} parent=1 // pred_region
      %s56 = ssub.s32 512, 512
      %57 = vsyncadd [#allocation7], %s56
      %s58 = sshll.u32 [#allocation6], 4
      %s59 = int_to_ptr.vmem [resolvable:$true] %s58
      %64 = dma.hbm_to_vmem [thread:$0]  %s3, 512, %s59, [#allocation7], 128, 128, 8
    $region17: #{tpu_custom_call.1} parent=1 // pred_fallthru
      _
    // Predicated region
    $region18: #{tpu_custom_call.1} parent=1 // pred_check
      _
    $region19: #{tpu_custom_call.1} parent=1 // pred_check_branch
      %66 = sbr.rel (0) target = $region21
    $region20: #{tpu_custom_call.1} parent=1 // pred_region
      %s68 = ssub.s32 16, 16
      %69 = vsyncadd [#allocation7], %s68
      %s71 = sshll.u32 [#allocation8], 4
      %s72 = int_to_ptr.vmem [resolvable:$true] %s71
      %74 = dma.hbm_to_vmem [thread:$0]  %s4, 16, %s72, [#allocation7]
    $region21: #{tpu_custom_call.1} parent=1 // pred_fallthru
      _
    // Predicated region
    $region22: #{tpu_custom_call.1} parent=1 // pred_check
      _
    $region23: #{tpu_custom_call.1} parent=1 // pred_check_branch
      %76 = sbr.rel (0) target = $region25
    $region24: #{tpu_custom_call.1} parent=1 // pred_region
      _
    $region25: #{tpu_custom_call.1} parent=1 // pred_fallthru
      _
    // Predicated region
    $region26: #{tpu_custom_call.1} parent=1 // pred_check
      _
    $region27: #{tpu_custom_call.1} parent=1 // pred_check_branch
      %78 = sbr.rel (0) target = $region29
    $region28: #{tpu_custom_call.1} parent=1 // pred_region
      %s80 = ssub.s32 16, 16
      %81 = vsyncadd [#allocation10], %s80
      %s83 = sshll.u32 [#allocation9], 4
      %s84 = int_to_ptr.vmem [resolvable:$true] %s83
      %86 = dma.hbm_to_vmem [thread:$0]  %s6, 16, %s84, [#allocation10]
    $region29: #{tpu_custom_call.1} parent=1 // pred_fallthru
      _
    // Predicated region
    $region30: #{tpu_custom_call.1} parent=1 // pred_check
      _
    $region31: #{tpu_custom_call.1} parent=1 // pred_check_branch
      %88 = sbr.rel (0) target = $region33
    $region32: #{tpu_custom_call.1} parent=1 // pred_region
      _
    $region33: #{tpu_custom_call.1} parent=1 // pred_fallthru
      _
    // Predicated region
    $region34: #{tpu_custom_call.1} parent=1 // pred_check
      _
    $region35: #{tpu_custom_call.1} parent=1 // pred_check_branch
      %90 = sbr.rel (0) target = $region37
    $region36: #{tpu_custom_call.1} parent=1 // pred_region
      %s92 = ssub.s32 16, 16
      %93 = vsyncadd [#allocation10], %s92
      %s95 = sshll.u32 [#allocation11], 4
      %s96 = int_to_ptr.vmem [resolvable:$true] %s95
      %98 = dma.hbm_to_vmem [thread:$0]  %s8, 16, %s96, [#allocation10]
    $region37: #{tpu_custom_call.1} parent=1 // pred_fallthru
      _
    // Predicated region
    $region38: #{tpu_custom_call.1} parent=1 // pred_check
      _
    $region39: #{tpu_custom_call.1} parent=1 // pred_check_branch
      %100 = sbr.rel (0) target = $region41
    $region40: #{tpu_custom_call.1} parent=1 // pred_region
      _
    $region41: #{tpu_custom_call.1} parent=1 // pred_fallthru
      _
    // Predicated region
    $region42: #{tpu_custom_call.1} parent=1 // pred_check
      _
    $region43: #{tpu_custom_call.1} parent=1 // pred_check_branch
      %102 = sbr.rel (0) target = $region45
    $region44: #{tpu_custom_call.1} parent=1 // pred_region
      _
    $region45: #{tpu_custom_call.1} parent=1 // pred_fallthru
      _
    // Predicated region
    $region46: #{tpu_custom_call.1} parent=1 // pred_check
      _
    $region47: #{tpu_custom_call.1} parent=1 // pred_check_branch
      %104 = sbr.rel (0) target = $region49
    $region48: #{tpu_custom_call.1} parent=1 // pred_region
      %s106 = ssub.s32 512, 512
      %107 = vsyncadd [#allocation13], %s106
      %s108 = sshll.u32 [#allocation12], 4
      %s109 = int_to_ptr.vmem [resolvable:$true] %s108
      %114 = dma.hbm_to_vmem [thread:$0]  %s11, 512, %s109, [#allocation13], 128, 128, 8
    $region49: #{tpu_custom_call.1} parent=1 // pred_fallthru
      _
    // Predicated region
    $region50: #{tpu_custom_call.1} parent=1 // pred_check
      _
    $region51: #{tpu_custom_call.1} parent=1 // pred_check_branch
      %116 = sbr.rel (0) target = $region53
    $region52: #{tpu_custom_call.1} parent=1 // pred_region
      %s118 = ssub.s32 512, 512
      %119 = vsyncadd [#allocation13], %s118
      %s120 = sshll.u32 [#allocation14], 4
      %s121 = int_to_ptr.vmem [resolvable:$true] %s120
      %126 = dma.hbm_to_vmem [thread:$0]  %s12, 512, %s121, [#allocation13], 128, 128, 8
    $region53: #{tpu_custom_call.1} parent=1 // pred_fallthru
      _
    // Predicated region
    $region54: #{tpu_custom_call.1} parent=1 // pred_check
      _
    $region55: #{tpu_custom_call.1} parent=1 // pred_check_branch
      %128 = sbr.rel (0) target = $region57
    $region56: #{tpu_custom_call.1} parent=1 // pred_region
      _
    $region57: #{tpu_custom_call.1} parent=1 // pred_fallthru
      _
    // Predicated region
    $region58: #{tpu_custom_call.1} parent=1 // pred_check
      _
    $region59: #{tpu_custom_call.1} parent=1 // pred_check_branch
      %130 = sbr.rel (0) target = $region61
    $region60: #{tpu_custom_call.1} parent=1 // pred_region
      %s132 = ssub.s32 512, 512
      %133 = vsyncadd [#allocation16], %s132
      %s134 = sshll.u32 [#allocation15], 4
      %s135 = int_to_ptr.vmem [resolvable:$true] %s134
      %140 = dma.hbm_to_vmem [thread:$0]  %s14, 512, %s135, [#allocation16], 128, 128, 8
    $region61: #{tpu_custom_call.1} parent=1 // pred_fallthru
      _
    // Predicated region
    $region62: #{tpu_custom_call.1} parent=1 // pred_check
      _
    $region63: #{tpu_custom_call.1} parent=1 // pred_check_branch
      %142 = sbr.rel (0) target = $region65
    $region64: #{tpu_custom_call.1} parent=1 // pred_region
      %s144 = ssub.s32 512, 512
      %145 = vsyncadd [#allocation16], %s144
      %s146 = sshll.u32 [#allocation17], 4
      %s147 = int_to_ptr.vmem [resolvable:$true] %s146
      %152 = dma.hbm_to_vmem [thread:$0]  %s15, 512, %s147, [#allocation16], 128, 128, 8
    $region65: #{tpu_custom_call.1} parent=1 // pred_fallthru
      _
    // Predicated region
    $region66: #{tpu_custom_call.1} parent=1 // pred_check
      _
    $region67: #{tpu_custom_call.1} parent=1 // pred_check_branch
      %154 = sbr.rel (0) target = $region69
    $region68: #{tpu_custom_call.1} parent=1 // pred_region
      %s156 = ssub.s32 512, 512
      %157 = vsyncadd [#allocation19], %s156
      %s158 = sshll.u32 [#allocation18], 4
      %s159 = int_to_ptr.vmem [resolvable:$true] %s158
      %164 = dma.hbm_to_vmem [thread:$0]  %s16, 512, %s159, [#allocation19], 128, 128, 8
    $region69: #{tpu_custom_call.1} parent=1 // pred_fallthru
      _
    // Predicated region
    $region70: #{tpu_custom_call.1} parent=1 // pred_check
      _
    $region71: #{tpu_custom_call.1} parent=1 // pred_check_branch
      %166 = sbr.rel (0) target = $region73
    $region72: #{tpu_custom_call.1} parent=1 // pred_region
      _
    $region73: #{tpu_custom_call.1} parent=1 // pred_fallthru
      _
    // Predicated region
    $region74: #{tpu_custom_call.1} parent=1 // pred_check
      _
    $region75: #{tpu_custom_call.1} parent=1 // pred_check_branch
      %168 = sbr.rel (0) target = $region77
    $region76: #{tpu_custom_call.1} parent=1 // pred_region
      _
    $region77: #{tpu_custom_call.1} parent=1 // pred_fallthru
      _
    // Predicated region
    $region78: #{tpu_custom_call.1} parent=1 // pred_check
      _
    $region79: #{tpu_custom_call.1} parent=1 // pred_check_branch
      %170 = sbr.rel (0) target = $region81
    $region80: #{tpu_custom_call.1} parent=1 // pred_region
      _
    $region81: #{tpu_custom_call.1} parent=1 // pred_fallthru
      _
    // Predicated region
    $region82: #{tpu_custom_call.1} parent=1 // pred_check
      _
    $region83: #{tpu_custom_call.1} parent=1 // pred_check_branch
      %172 = sbr.rel (0) target = $region85
    $region84: #{tpu_custom_call.1} parent=1 // pred_region
      _
    $region85: #{tpu_custom_call.1} parent=1 // pred_fallthru
      _
    // Predicated region
    $region86: #{tpu_custom_call.1} parent=1 // pred_check
      _
    $region87: #{tpu_custom_call.1} parent=1 // pred_check_branch
      %174 = sbr.rel (0) target = $region89
    $region88: #{tpu_custom_call.1} parent=1 // pred_region
      _
    $region89: #{tpu_custom_call.1} parent=1 // pred_fallthru
      _
    // Predicated region
    $region90: #{tpu_custom_call.1} parent=1 // pred_check
      _
    $region91: #{tpu_custom_call.1} parent=1 // pred_check_branch
      %176 = sbr.rel (0) target = $region93
    $region92: #{tpu_custom_call.1} parent=1 // pred_region
      _
    $region93: #{tpu_custom_call.1} parent=1 // pred_fallthru
      _
    // Predicated region
    $region94: #{tpu_custom_call.1} parent=1 // pred_check
      _
    $region95: #{tpu_custom_call.1} parent=1 // pred_check_branch
      %178 = sbr.rel (0) target = $region97
    $region96: #{tpu_custom_call.1} parent=1 // pred_region
      %179 = dma.done [#allocation4], 512
    $region97: #{tpu_custom_call.1} parent=1 // pred_fallthru
      _
    // Predicated region
    $region98: #{tpu_custom_call.1} parent=1 // pred_check
      _
    $region99: #{tpu_custom_call.1} parent=1 // pred_check_branch
      %181 = sbr.rel (0) target = $region101
    $region100: #{tpu_custom_call.1} parent=1 // pred_region
      %182 = dma.done [#allocation7], 512
    $region101: #{tpu_custom_call.1} parent=1 // pred_fallthru
      _
    // Predicated region
    $region102: #{tpu_custom_call.1} parent=1 // pred_check
      _
    $region103: #{tpu_custom_call.1} parent=1 // pred_check_branch
      %184 = sbr.rel (0) target = $region105
    $region104: #{tpu_custom_call.1} parent=1 // pred_region
      %185 = dma.done [#allocation7], 16
    $region105: #{tpu_custom_call.1} parent=1 // pred_fallthru
      _
    // Predicated region
    $region106: #{tpu_custom_call.1} parent=1 // pred_check
      _
    $region107: #{tpu_custom_call.1} parent=1 // pred_check_branch
      %187 = sbr.rel (0) target = $region109
    $region108: #{tpu_custom_call.1} parent=1 // pred_region
      %188 = dma.done [#allocation10], 16
    $region109: #{tpu_custom_call.1} parent=1 // pred_fallthru
      _
    // Predicated region
    $region110: #{tpu_custom_call.1} parent=1 // pred_check
      _
    $region111: #{tpu_custom_call.1} parent=1 // pred_check_branch
      %190 = sbr.rel (0) target = $region113
    $region112: #{tpu_custom_call.1} parent=1 // pred_region
      %191 = dma.done [#allocation10], 16
    $region113: #{tpu_custom_call.1} parent=1 // pred_fallthru
      _
    // Predicated region
    $region114: #{tpu_custom_call.1} parent=1 // pred_check
      _
    $region115: #{tpu_custom_call.1} parent=1 // pred_check_branch
      %193 = sbr.rel (0) target = $region117
    $region116: #{tpu_custom_call.1} parent=1 // pred_region
      %194 = dma.done [#allocation13], 512
    $region117: #{tpu_custom_call.1} parent=1 // pred_fallthru
      _
    // Predicated region
    $region118: #{tpu_custom_call.1} parent=1 // pred_check
      _
    $region119: #{tpu_custom_call.1} parent=1 // pred_check_branch
      %196 = sbr.rel (0) target = $region121
    $region120: #{tpu_custom_call.1} parent=1 // pred_region
      %197 = dma.done [#allocation13], 512
    $region121: #{tpu_custom_call.1} parent=1 // pred_fallthru
      _
    // Predicated region
    $region122: #{tpu_custom_call.1} parent=1 // pred_check
      _
    $region123: #{tpu_custom_call.1} parent=1 // pred_check_branch
      %199 = sbr.rel (0) target = $region125
    $region124: #{tpu_custom_call.1} parent=1 // pred_region
      %200 = dma.done [#allocation16], 512
    $region125: #{tpu_custom_call.1} parent=1 // pred_fallthru
      _
    // Predicated region
    $region126: #{tpu_custom_call.1} parent=1 // pred_check
      _
    $region127: #{tpu_custom_call.1} parent=1 // pred_check_branch
      %202 = sbr.rel (0) target = $region129
    $region128: #{tpu_custom_call.1} parent=1 // pred_region
      %203 = dma.done [#allocation16], 512
    $region129: #{tpu_custom_call.1} parent=1 // pred_fallthru
      _
    // Predicated region
    $region130: #{tpu_custom_call.1} parent=1 // pred_check
      _
    $region131: #{tpu_custom_call.1} parent=1 // pred_check_branch
      %205 = sbr.rel (0) target = $region133
    $region132: #{tpu_custom_call.1} parent=1 // pred_region
      %206 = dma.done [#allocation19], 512
    $region133: #{tpu_custom_call.1} parent=1 // pred_fallthru
      _
    %v207 = vld [vmem:[#allocation3] sm:$0xff]
    %v208 = vld [vmem:[#allocation3 + $0x8] sm:$0xff]
    %v209 = vld [vmem:[#allocation3 + $0x10] sm:$0xff]
    %v210 = vld [vmem:[#allocation3 + $0x18] sm:$0xff]
    %v211 = vld [vmem:[#allocation6] sm:$0xff]
    %v212 = vld [vmem:[#allocation6 + $0x8] sm:$0xff]
    %v213 = vld [vmem:[#allocation6 + $0x10] sm:$0xff]
    %v214 = vld [vmem:[#allocation6 + $0x18] sm:$0xff]
    %v215 = vld [vmem:[%s5] sm:$0xff]
    %v216 = vld [vmem:[%s5 + $0x8] sm:$0xff]
    %v217 = vld [vmem:[%s5 + $0x10] sm:$0xff]
    %v218 = vld [vmem:[%s5 + $0x18] sm:$0xff]
    %v219 = vld [vmem:[%s5 + $0x20] sm:$0xff]
    %v220 = vld [vmem:[%s5 + $0x28] sm:$0xff]
    %v221 = vld [vmem:[%s5 + $0x30] sm:$0xff]
    %v222 = vld [vmem:[%s5 + $0x38] sm:$0xff]
    %v223 = vld [vmem:[%s7] sm:$0xff]
    %v224 = vld [vmem:[%s7 + $0x8] sm:$0xff]
    %v225 = vld [vmem:[%s7 + $0x10] sm:$0xff]
    %v226 = vld [vmem:[%s7 + $0x18] sm:$0xff]
    %v227 = vld [vmem:[%s7 + $0x20] sm:$0xff]
    %v228 = vld [vmem:[%s7 + $0x28] sm:$0xff]
    %v229 = vld [vmem:[%s7 + $0x30] sm:$0xff]
    %v230 = vld [vmem:[%s7 + $0x38] sm:$0xff]
    %v231 = vld [vmem:[%s9] sm:$0xff]
    %v232 = vld [vmem:[%s9 + $0x8] sm:$0xff]
    %v233 = vld [vmem:[%s9 + $0x10] sm:$0xff]
    %v234 = vld [vmem:[%s9 + $0x18] sm:$0xff]
    %v235 = vld [vmem:[%s9 + $0x20] sm:$0xff]
    %v236 = vld [vmem:[%s9 + $0x28] sm:$0xff]
    %v237 = vld [vmem:[%s9 + $0x30] sm:$0xff]
    %v238 = vld [vmem:[%s9 + $0x38] sm:$0xff]
    %v239 = vld [vmem:[#allocation12] sm:$0xff]
    %v240 = vld [vmem:[#allocation12 + $0x8] sm:$0xff]
    %v241 = vld [vmem:[#allocation12 + $0x10] sm:$0xff]
    %v242 = vld [vmem:[#allocation12 + $0x18] sm:$0xff]
    %v243 = vld [vmem:[#allocation14] sm:$0xff]
    %v244 = vld [vmem:[#allocation14 + $0x8] sm:$0xff]
    %v245 = vld [vmem:[#allocation14 + $0x10] sm:$0xff]
    %v246 = vld [vmem:[#allocation14 + $0x18] sm:$0xff]
    %v247 = vld [vmem:[%s13] sm:$0xff]
    %v248 = vld [vmem:[%s13 + $0x8] sm:$0xff]
    %v249 = vld [vmem:[%s13 + $0x10] sm:$0xff]
    %v250 = vld [vmem:[%s13 + $0x18] sm:$0xff]
    %v251 = vld [vmem:[#allocation15] sm:$0xff]
    %v252 = vld [vmem:[#allocation15 + $0x8] sm:$0xff]
    %v253 = vld [vmem:[#allocation15 + $0x10] sm:$0xff]
    %v254 = vld [vmem:[#allocation15 + $0x18] sm:$0xff]
    %v255 = vld [vmem:[#allocation17] sm:$0xff]
    %v256 = vld [vmem:[#allocation17 + $0x8] sm:$0xff]
    %v257 = vld [vmem:[#allocation17 + $0x10] sm:$0xff]
    %v258 = vld [vmem:[#allocation17 + $0x18] sm:$0xff]
    %v259 = vld [vmem:[#allocation18] sm:$0xff]
    %v260 = vld [vmem:[#allocation18 + $0x8] sm:$0xff]
    %v261 = vld [vmem:[#allocation18 + $0x10] sm:$0xff]
    %v262 = vld [vmem:[#allocation18 + $0x18] sm:$0xff]
    %v263 = vld [vmem:[#allocation8] sm:$0x1]
    %v265 = vlaneseq
    %v266 = vshrl.u32 %v265, 7
    %v267 = vsub.s32 0, %v266
    %v268 = vrot.slane %v263, %v267
    %v270 = vld [vmem:[#allocation9] sm:$0x1]
    %v272 = vlaneseq
    %v273 = vshrl.u32 %v272, 7
    %v274 = vsub.s32 0, %v273
    %v275 = vrot.slane %v270, %v274
    %v277 = vld [vmem:[#allocation11] sm:$0x1]
    %v279 = vlaneseq
    %v280 = vshrl.u32 %v279, 7
    %v281 = vsub.s32 0, %v280
    %v282 = vrot.slane %v277, %v281
    %v284 = vld [vmem:[#allocation2] sm:$0x1]
    %v286 = vlaneseq
    %v287 = vshrl.u32 %v286, 7
    %v288 = vsub.s32 0, %v287
    %v289 = vrot.slane %v284, %v288
    %v291 = vld [vmem:[%s17] sm:$0x1]
    %v293 = vlaneseq
    %v294 = vshrl.u32 %v293, 7
    %v295 = vsub.s32 0, %v294
    %v296 = vrot.slane %v291, %v295
    %v298 = vld [vmem:[%s18] sm:$0x1]
    %v300 = vlaneseq
    %v301 = vshrl.u32 %v300, 7
    %v302 = vsub.s32 0, %v301
    %v303 = vrot.slane %v298, %v302
    %v305 = vld [vmem:[%s19] sm:$0x1]
    %v307 = vlaneseq
    %v308 = vshrl.u32 %v307, 7
    %v309 = vsub.s32 0, %v308
    %v310 = vrot.slane %v305, %v309
    %v312 = vld [vmem:[%s20] sm:$0x1]
    %v314 = vlaneseq
    %v315 = vshrl.u32 %v314, 7
    %v316 = vsub.s32 0, %v315
    %v317 = vrot.slane %v312, %v316
    %v319 = vld [vmem:[%s0] sm:$0xff]
    %v320 = vld [vmem:[%s1] sm:$0xff]
    %vm321 = vcmask 261120
    %v323 = vsel %vm321, %v319, 0
    %325 = vmatprep.subr.mxu0 0.0
    %326 = vmatpush1.msra.mxu0 %v211
    %327 = vmatprep.subr.mxu0 0.0
    %328 = vmatpush1.msra.mxu0 %v212
    %329 = vmatprep.subr.mxu0 0.0
    %330 = vmatpush1.msra.mxu0 %v213
    %331 = vmatprep.subr.mxu0 0.0
    %332 = vmatpush1.msra.mxu0 %v214
    %333 = vmatprep.subr.mxu0 0.0
    %334 = vmatpush1.msra.mxu0 0.0
    %335 = vmatprep.subr.mxu0 0.0
    %336 = vmatpush1.msra.mxu0 0.0
    %337 = vmatprep.subr.mxu0 0.0
    %338 = vmatpush1.msra.mxu0 0.0
    %339 = vmatprep.subr.mxu0 0.0
    %340 = vmatpush1.msra.mxu0 0.0
    %341 = vmatprep.subr.mxu0 0.0
    %342 = vmatpush1.msra.mxu0 0.0
    %343 = vmatprep.subr.mxu0 0.0
    %344 = vmatpush1.msra.mxu0 0.0
    %345 = vmatprep.subr.mxu0 0.0
    %346 = vmatpush1.msra.mxu0 0.0
    %347 = vmatprep.subr.mxu0 0.0
    %348 = vmatpush1.msra.mxu0 0.0
    %349 = vmatprep.subr.mxu0 0.0
    %350 = vmatpush1.msra.mxu0 0.0
    %351 = vmatprep.subr.mxu0 0.0
    %352 = vmatpush1.msra.mxu0 0.0
    %353 = vmatprep.subr.mxu0 0.0
    %354 = vmatpush1.msra.mxu0 0.0
    %355 = vmatprep.subr.mxu0 0.0
    %356 = vmatpush1.msra.mxu0 0.0
    %357 = vmatprep.subr.mxu0 0.0
    %358 = vmatpush1.msra.mxu0 0.0
    %359 = vmatprep.subr.mxu0 0.0
    %360 = vmatpush1.msra.mxu0 0.0
    %361 = vmatprep.subr.mxu0 0.0
    %362 = vmatpush1.msra.mxu0 0.0
    %363 = vmatprep.subr.mxu0 0.0
    %364 = vmatpush1.msra.mxu0 0.0
    %365 = vmatprep.subr.mxu0 0.0
    %366 = vmatpush1.msra.mxu0 0.0
    %367 = vmatprep.subr.mxu0 0.0
    %368 = vmatpush1.msra.mxu0 0.0
    %369 = vmatprep.subr.mxu0 0.0
    %370 = vmatpush1.msra.mxu0 0.0
    %371 = vmatprep.subr.mxu0 0.0
    %372 = vmatpush1.msra.mxu0 0.0
    %373 = vmatprep.subr.mxu0 0.0
    %374 = vmatpush1.msra.mxu0 0.0
    %375 = vmatprep.subr.mxu0 0.0
    %376 = vmatpush1.msra.mxu0 0.0
    %377 = vmatprep.subr.mxu0 0.0
    %378 = vmatpush1.msra.mxu0 0.0
    %379 = vmatprep.subr.mxu0 0.0
    %380 = vmatpush1.msra.mxu0 0.0
    %381 = vmatprep.subr.mxu0 0.0
    %382 = vmatpush1.msra.mxu0 0.0
    %383 = vmatprep.subr.mxu0 0.0
    %384 = vmatpush1.msra.mxu0 0.0
    %385 = vmatprep.subr.mxu0 0.0
    %386 = vmatpush1.msra.mxu0 0.0
    %387 = vmatprep.subr.mxu0 0.0
    %388 = vmatpush1.msra.mxu0 0.0
    %389 = vmatprep.mubr.f32.mxu0 0.0
    %390 = vmatmul.mubr.f32.gmra.mrb[0].mxu0 %v323
    %v391 = vpop.f32.mrb[0].mxu0
    %v392 = vadd.f32 0.0, %v391
    %v393 = vpop.f32.mrb[0].mxu0
    %394 = vdwg.mxu0
    %v396 = vsel %vm321, 0.0, 0
    %398 = vmatprep.subr.mxu0 0.0
    %399 = vmatpush1.msra.mxu0 %v207
    %400 = vmatprep.subr.mxu0 0.0
    %401 = vmatpush1.msra.mxu0 %v208
    %402 = vmatprep.subr.mxu0 0.0
    %403 = vmatpush1.msra.mxu0 %v209
    %404 = vmatprep.subr.mxu0 0.0
    %405 = vmatpush1.msra.mxu0 %v210
    %406 = vmatprep.subr.mxu0 0.0
    %407 = vmatpush1.msra.mxu0 0.0
    %408 = vmatprep.subr.mxu0 0.0
    %409 = vmatpush1.msra.mxu0 0.0
    %410 = vmatprep.subr.mxu0 0.0
    %411 = vmatpush1.msra.mxu0 0.0
    %412 = vmatprep.subr.mxu0 0.0
    %413 = vmatpush1.msra.mxu0 0.0
    %414 = vmatprep.subr.mxu0 0.0
    %415 = vmatpush1.msra.mxu0 0.0
    %416 = vmatprep.subr.mxu0 0.0
    %417 = vmatpush1.msra.mxu0 0.0
    %418 = vmatprep.subr.mxu0 0.0
    %419 = vmatpush1.msra.mxu0 0.0
    %420 = vmatprep.subr.mxu0 0.0
    %421 = vmatpush1.msra.mxu0 0.0
    %422 = vmatprep.subr.mxu0 0.0
    %423 = vmatpush1.msra.mxu0 0.0
    %424 = vmatprep.subr.mxu0 0.0
    %425 = vmatpush1.msra.mxu0 0.0
    %426 = vmatprep.subr.mxu0 0.0
    %427 = vmatpush1.msra.mxu0 0.0
    %428 = vmatprep.subr.mxu0 0.0
    %429 = vmatpush1.msra.mxu0 0.0
    %430 = vmatprep.subr.mxu0 0.0
    %431 = vmatpush1.msra.mxu0 0.0
    %432 = vmatprep.subr.mxu0 0.0
    %433 = vmatpush1.msra.mxu0 0.0
    %434 = vmatprep.subr.mxu0 0.0
    %435 = vmatpush1.msra.mxu0 0.0
    %436 = vmatprep.subr.mxu0 0.0
    %437 = vmatpush1.msra.mxu0 0.0
    %438 = vmatprep.subr.mxu0 0.0
    %439 = vmatpush1.msra.mxu0 0.0
    %440 = vmatprep.subr.mxu0 0.0
    %441 = vmatpush1.msra.mxu0 0.0
    %442 = vmatprep.subr.mxu0 0.0
    %443 = vmatpush1.msra.mxu0 0.0
    %444 = vmatprep.subr.mxu0 0.0
    %445 = vmatpush1.msra.mxu0 0.0
    %446 = vmatprep.subr.mxu0 0.0
    %447 = vmatpush1.msra.mxu0 0.0
    %448 = vmatprep.subr.mxu0 0.0
    %449 = vmatpush1.msra.mxu0 0.0
    %450 = vmatprep.subr.mxu0 0.0
    %451 = vmatpush1.msra.mxu0 0.0
    %452 = vmatprep.subr.mxu0 0.0
    %453 = vmatpush1.msra.mxu0 0.0
    %454 = vmatprep.subr.mxu0 0.0
    %455 = vmatpush1.msra.mxu0 0.0
    %456 = vmatprep.subr.mxu0 0.0
    %457 = vmatpush1.msra.mxu0 0.0
    %458 = vmatprep.subr.mxu0 0.0
    %459 = vmatpush1.msra.mxu0 0.0
    %460 = vmatprep.subr.mxu0 0.0
    %461 = vmatpush1.msra.mxu0 0.0
    %462 = vmatprep.mubr.f32.mxu0 0.0
    %463 = vmatmul.mubr.f32.gmra.mrb[0].mxu0 %v396
    %v464 = vpop.f32.mrb[0].mxu0
    %v465 = vadd.f32 %v392, %v464
    %v466 = vpop.f32.mrb[0].mxu0
    %467 = vdwg.mxu0
    %v468 = vadd.f32 %v465, %v268
    %v469 = vmax.f32 %v468, 0.0
    %vm470 = vcmask 523264
    %v472 = vsel %vm470, %v469, 0
    %474 = vmatprep.subr.mxu0 0.0
    %475 = vmatpush1.msra.mxu0 %v215
    %476 = vmatprep.subr.mxu0 0.0
    %477 = vmatpush1.msra.mxu0 %v216
    %478 = vmatprep.subr.mxu0 0.0
    %479 = vmatpush1.msra.mxu0 %v217
    %480 = vmatprep.subr.mxu0 0.0
    %481 = vmatpush1.msra.mxu0 %v218
    %482 = vmatprep.subr.mxu0 0.0
    %483 = vmatpush1.msra.mxu0 %v219
    %484 = vmatprep.subr.mxu0 0.0
    %485 = vmatpush1.msra.mxu0 %v220
    %486 = vmatprep.subr.mxu0 0.0
    %487 = vmatpush1.msra.mxu0 %v221
    %488 = vmatprep.subr.mxu0 0.0
    %489 = vmatpush1.msra.mxu0 %v222
    %490 = vmatprep.subr.mxu0 0.0
    %491 = vmatpush1.msra.mxu0 0.0
    %492 = vmatprep.subr.mxu0 0.0
    %493 = vmatpush1.msra.mxu0 0.0
    %494 = vmatprep.subr.mxu0 0.0
    %495 = vmatpush1.msra.mxu0 0.0
    %496 = vmatprep.subr.mxu0 0.0
    %497 = vmatpush1.msra.mxu0 0.0
    %498 = vmatprep.subr.mxu0 0.0
    %499 = vmatpush1.msra.mxu0 0.0
    %500 = vmatprep.subr.mxu0 0.0
    %501 = vmatpush1.msra.mxu0 0.0
    %502 = vmatprep.subr.mxu0 0.0
    %503 = vmatpush1.msra.mxu0 0.0
    %504 = vmatprep.subr.mxu0 0.0
    %505 = vmatpush1.msra.mxu0 0.0
    %506 = vmatprep.subr.mxu0 0.0
    %507 = vmatpush1.msra.mxu0 0.0
    %508 = vmatprep.subr.mxu0 0.0
    %509 = vmatpush1.msra.mxu0 0.0
    %510 = vmatprep.subr.mxu0 0.0
    %511 = vmatpush1.msra.mxu0 0.0
    %512 = vmatprep.subr.mxu0 0.0
    %513 = vmatpush1.msra.mxu0 0.0
    %514 = vmatprep.subr.mxu0 0.0
    %515 = vmatpush1.msra.mxu0 0.0
    %516 = vmatprep.subr.mxu0 0.0
    %517 = vmatpush1.msra.mxu0 0.0
    %518 = vmatprep.subr.mxu0 0.0
    %519 = vmatpush1.msra.mxu0 0.0
    %520 = vmatprep.subr.mxu0 0.0
    %521 = vmatpush1.msra.mxu0 0.0
    %522 = vmatprep.subr.mxu0 0.0
    %523 = vmatpush1.msra.mxu0 0.0
    %524 = vmatprep.subr.mxu0 0.0
    %525 = vmatpush1.msra.mxu0 0.0
    %526 = vmatprep.subr.mxu0 0.0
    %527 = vmatpush1.msra.mxu0 0.0
    %528 = vmatprep.subr.mxu0 0.0
    %529 = vmatpush1.msra.mxu0 0.0
    %530 = vmatprep.subr.mxu0 0.0
    %531 = vmatpush1.msra.mxu0 0.0
    %532 = vmatprep.subr.mxu0 0.0
    %533 = vmatpush1.msra.mxu0 0.0
    %534 = vmatprep.subr.mxu0 0.0
    %535 = vmatpush1.msra.mxu0 0.0
    %536 = vmatprep.subr.mxu0 0.0
    %537 = vmatpush1.msra.mxu0 0.0
    %538 = vmatprep.mubr.f32.mxu0 0.0
    %539 = vmatmul.mubr.f32.gmra.mrb[0].mxu0 %v472
    %v540 = vpop.f32.mrb[0].mxu0
    %v541 = vadd.f32 %v275, %v540
    %v542 = vpop.f32.mrb[0].mxu0
    %543 = vdwg.mxu0
    %v544 = vmax.f32 %v541, 0.0
    %v546 = vsel %vm470, %v544, 0
    %548 = vmatprep.subr.mxu0 0.0
    %549 = vmatpush1.msra.mxu0 %v223
    %550 = vmatprep.subr.mxu0 0.0
    %551 = vmatpush1.msra.mxu0 %v224
    %552 = vmatprep.subr.mxu0 0.0
    %553 = vmatpush1.msra.mxu0 %v225
    %554 = vmatprep.subr.mxu0 0.0
    %555 = vmatpush1.msra.mxu0 %v226
    %556 = vmatprep.subr.mxu0 0.0
    %557 = vmatpush1.msra.mxu0 %v227
    %558 = vmatprep.subr.mxu0 0.0
    %559 = vmatpush1.msra.mxu0 %v228
    %560 = vmatprep.subr.mxu0 0.0
    %561 = vmatpush1.msra.mxu0 %v229
    %562 = vmatprep.subr.mxu0 0.0
    %563 = vmatpush1.msra.mxu0 %v230
    %564 = vmatprep.subr.mxu0 0.0
    %565 = vmatpush1.msra.mxu0 0.0
    %566 = vmatprep.subr.mxu0 0.0
    %567 = vmatpush1.msra.mxu0 0.0
    %568 = vmatprep.subr.mxu0 0.0
    %569 = vmatpush1.msra.mxu0 0.0
    %570 = vmatprep.subr.mxu0 0.0
    %571 = vmatpush1.msra.mxu0 0.0
    %572 = vmatprep.subr.mxu0 0.0
    %573 = vmatpush1.msra.mxu0 0.0
    %574 = vmatprep.subr.mxu0 0.0
    %575 = vmatpush1.msra.mxu0 0.0
    %576 = vmatprep.subr.mxu0 0.0
    %577 = vmatpush1.msra.mxu0 0.0
    %578 = vmatprep.subr.mxu0 0.0
    %579 = vmatpush1.msra.mxu0 0.0
    %580 = vmatprep.subr.mxu0 0.0
    %581 = vmatpush1.msra.mxu0 0.0
    %582 = vmatprep.subr.mxu0 0.0
    %583 = vmatpush1.msra.mxu0 0.0
    %584 = vmatprep.subr.mxu0 0.0
    %585 = vmatpush1.msra.mxu0 0.0
    %586 = vmatprep.subr.mxu0 0.0
    %587 = vmatpush1.msra.mxu0 0.0
    %588 = vmatprep.subr.mxu0 0.0
    %589 = vmatpush1.msra.mxu0 0.0
    %590 = vmatprep.subr.mxu0 0.0
    %591 = vmatpush1.msra.mxu0 0.0
    %592 = vmatprep.subr.mxu0 0.0
    %593 = vmatpush1.msra.mxu0 0.0
    %594 = vmatprep.subr.mxu0 0.0
    %595 = vmatpush1.msra.mxu0 0.0
    %596 = vmatprep.subr.mxu0 0.0
    %597 = vmatpush1.msra.mxu0 0.0
    %598 = vmatprep.subr.mxu0 0.0
    %599 = vmatpush1.msra.mxu0 0.0
    %600 = vmatprep.subr.mxu0 0.0
    %601 = vmatpush1.msra.mxu0 0.0
    %602 = vmatprep.subr.mxu0 0.0
    %603 = vmatpush1.msra.mxu0 0.0
    %604 = vmatprep.subr.mxu0 0.0
    %605 = vmatpush1.msra.mxu0 0.0
    %606 = vmatprep.subr.mxu0 0.0
    %607 = vmatpush1.msra.mxu0 0.0
    %608 = vmatprep.subr.mxu0 0.0
    %609 = vmatpush1.msra.mxu0 0.0
    %610 = vmatprep.subr.mxu0 0.0
    %611 = vmatpush1.msra.mxu0 0.0
    %612 = vmatprep.mubr.f32.mxu0 0.0
    %613 = vmatmul.mubr.f32.gmra.mrb[0].mxu0 %v546
    %v614 = vpop.f32.mrb[0].mxu0
    %v615 = vadd.f32 %v282, %v614
    %v616 = vpop.f32.mrb[0].mxu0
    %617 = vdwg.mxu0
    %v618 = vmax.f32 %v615, 0.0
    %v620 = vsel %vm470, %v618, 0
    %622 = vmatprep.subr.mxu0 0.0
    %623 = vmatpush1.msra.mxu0 %v231
    %624 = vmatprep.subr.mxu0 0.0
    %625 = vmatpush1.msra.mxu0 %v232
    %626 = vmatprep.subr.mxu0 0.0
    %627 = vmatpush1.msra.mxu0 %v233
    %628 = vmatprep.subr.mxu0 0.0
    %629 = vmatpush1.msra.mxu0 %v234
    %630 = vmatprep.subr.mxu0 0.0
    %631 = vmatpush1.msra.mxu0 %v235
    %632 = vmatprep.subr.mxu0 0.0
    %633 = vmatpush1.msra.mxu0 %v236
    %634 = vmatprep.subr.mxu0 0.0
    %635 = vmatpush1.msra.mxu0 %v237
    %636 = vmatprep.subr.mxu0 0.0
    %637 = vmatpush1.msra.mxu0 %v238
    %638 = vmatprep.subr.mxu0 0.0
    %639 = vmatpush1.msra.mxu0 0.0
    %640 = vmatprep.subr.mxu0 0.0
    %641 = vmatpush1.msra.mxu0 0.0
    %642 = vmatprep.subr.mxu0 0.0
    %643 = vmatpush1.msra.mxu0 0.0
    %644 = vmatprep.subr.mxu0 0.0
    %645 = vmatpush1.msra.mxu0 0.0
    %646 = vmatprep.subr.mxu0 0.0
    %647 = vmatpush1.msra.mxu0 0.0
    %648 = vmatprep.subr.mxu0 0.0
    %649 = vmatpush1.msra.mxu0 0.0
    %650 = vmatprep.subr.mxu0 0.0
    %651 = vmatpush1.msra.mxu0 0.0
    %652 = vmatprep.subr.mxu0 0.0
    %653 = vmatpush1.msra.mxu0 0.0
    %654 = vmatprep.subr.mxu0 0.0
    %655 = vmatpush1.msra.mxu0 0.0
    %656 = vmatprep.subr.mxu0 0.0
    %657 = vmatpush1.msra.mxu0 0.0
    %658 = vmatprep.subr.mxu0 0.0
    %659 = vmatpush1.msra.mxu0 0.0
    %660 = vmatprep.subr.mxu0 0.0
    %661 = vmatpush1.msra.mxu0 0.0
    %662 = vmatprep.subr.mxu0 0.0
    %663 = vmatpush1.msra.mxu0 0.0
    %664 = vmatprep.subr.mxu0 0.0
    %665 = vmatpush1.msra.mxu0 0.0
    %666 = vmatprep.subr.mxu0 0.0
    %667 = vmatpush1.msra.mxu0 0.0
    %668 = vmatprep.subr.mxu0 0.0
    %669 = vmatpush1.msra.mxu0 0.0
    %670 = vmatprep.subr.mxu0 0.0
    %671 = vmatpush1.msra.mxu0 0.0
    %672 = vmatprep.subr.mxu0 0.0
    %673 = vmatpush1.msra.mxu0 0.0
    %674 = vmatprep.subr.mxu0 0.0
    %675 = vmatpush1.msra.mxu0 0.0
    %676 = vmatprep.subr.mxu0 0.0
    %677 = vmatpush1.msra.mxu0 0.0
    %678 = vmatprep.subr.mxu0 0.0
    %679 = vmatpush1.msra.mxu0 0.0
    %680 = vmatprep.subr.mxu0 0.0
    %681 = vmatpush1.msra.mxu0 0.0
    %682 = vmatprep.subr.mxu0 0.0
    %683 = vmatpush1.msra.mxu0 0.0
    %684 = vmatprep.subr.mxu0 0.0
    %685 = vmatpush1.msra.mxu0 0.0
    %686 = vmatprep.mubr.f32.mxu0 0.0
    %687 = vmatmul.mubr.f32.gmra.mrb[0].mxu0 %v620
    %v688 = vpop.f32.mrb[0].mxu0
    %v689 = vadd.f32 %v289, %v688
    %v690 = vpop.f32.mrb[0].mxu0
    %691 = vdwg.mxu0
    %v692 = vadd.f32 %v689, %v320
    %v693 = vxor.u32 %v692, 2147483648
    %v694 = vmul.f32 %v693, 1.442695
    %v695 = vpow.pop %v694
    %v696 = vadd.f32 %v695, 1.0
    %v697 = vrcp.pop %v696
    %v698 = vmul.f32 1.0, %v697
    %v699 = vsub.f32 1.0, %v698
    %701 = vset.pattern.permute.xlu0 0
    %702 = vperm.xlu0 %701, %v699
    %v703 = vpop.permute.xlu0 %702
    %v705 = vmul.f32 %v703, 0.0
    %706 = vmatprep.subr.mxu0 0.0
    %707 = vmatpush1.msra.mxu0 %v251
    %708 = vmatprep.subr.mxu0 0.0
    %709 = vmatpush1.msra.mxu0 %v252
    %710 = vmatprep.subr.mxu0 0.0
    %711 = vmatpush1.msra.mxu0 %v253
    %712 = vmatprep.subr.mxu0 0.0
    %713 = vmatpush1.msra.mxu0 %v254
    %714 = vmatprep.subr.mxu0 0.0
    %715 = vmatpush1.msra.mxu0 0.0
    %716 = vmatprep.subr.mxu0 0.0
    %717 = vmatpush1.msra.mxu0 0.0
    %718 = vmatprep.subr.mxu0 0.0
    %719 = vmatpush1.msra.mxu0 0.0
    %720 = vmatprep.subr.mxu0 0.0
    %721 = vmatpush1.msra.mxu0 0.0
    %722 = vmatprep.subr.mxu0 0.0
    %723 = vmatpush1.msra.mxu0 0.0
    %724 = vmatprep.subr.mxu0 0.0
    %725 = vmatpush1.msra.mxu0 0.0
    %726 = vmatprep.subr.mxu0 0.0
    %727 = vmatpush1.msra.mxu0 0.0
    %728 = vmatprep.subr.mxu0 0.0
    %729 = vmatpush1.msra.mxu0 0.0
    %730 = vmatprep.subr.mxu0 0.0
    %731 = vmatpush1.msra.mxu0 0.0
    %732 = vmatprep.subr.mxu0 0.0
    %733 = vmatpush1.msra.mxu0 0.0
    %734 = vmatprep.subr.mxu0 0.0
    %735 = vmatpush1.msra.mxu0 0.0
    %736 = vmatprep.subr.mxu0 0.0
    %737 = vmatpush1.msra.mxu0 0.0
    %738 = vmatprep.subr.mxu0 0.0
    %739 = vmatpush1.msra.mxu0 0.0
    %740 = vmatprep.subr.mxu0 0.0
    %741 = vmatpush1.msra.mxu0 0.0
    %742 = vmatprep.subr.mxu0 0.0
    %743 = vmatpush1.msra.mxu0 0.0
    %744 = vmatprep.subr.mxu0 0.0
    %745 = vmatpush1.msra.mxu0 0.0
    %746 = vmatprep.subr.mxu0 0.0
    %747 = vmatpush1.msra.mxu0 0.0
    %748 = vmatprep.subr.mxu0 0.0
    %749 = vmatpush1.msra.mxu0 0.0
    %750 = vmatprep.subr.mxu0 0.0
    %751 = vmatpush1.msra.mxu0 0.0
    %752 = vmatprep.subr.mxu0 0.0
    %753 = vmatpush1.msra.mxu0 0.0
    %754 = vmatprep.subr.mxu0 0.0
    %755 = vmatpush1.msra.mxu0 0.0
    %756 = vmatprep.subr.mxu0 0.0
    %757 = vmatpush1.msra.mxu0 0.0
    %758 = vmatprep.subr.mxu0 0.0
    %759 = vmatpush1.msra.mxu0 0.0
    %760 = vmatprep.subr.mxu0 0.0
    %761 = vmatpush1.msra.mxu0 0.0
    %762 = vmatprep.subr.mxu0 0.0
    %763 = vmatpush1.msra.mxu0 0.0
    %764 = vmatprep.subr.mxu0 0.0
    %765 = vmatpush1.msra.mxu0 0.0
    %766 = vmatprep.subr.mxu0 0.0
    %767 = vmatpush1.msra.mxu0 0.0
    %768 = vmatprep.subr.mxu0 0.0
    %769 = vmatpush1.msra.mxu0 0.0
    %770 = vmatprep.mubr.f32.mxu0 0.0
    %771 = vmatmul.mubr.f32.gmra.mrb[0].mxu0 %v396
    %v772 = vpop.f32.mrb[0].mxu0
    %v773 = vadd.f32 0.0, %v772
    %v774 = vpop.f32.mrb[0].mxu0
    %775 = vdwg.mxu0
    %776 = vmatprep.subr.mxu0 0.0
    %777 = vmatpush1.msra.mxu0 %v239
    %778 = vmatprep.subr.mxu0 0.0
    %779 = vmatpush1.msra.mxu0 %v240
    %780 = vmatprep.subr.mxu0 0.0
    %781 = vmatpush1.msra.mxu0 %v241
    %782 = vmatprep.subr.mxu0 0.0
    %783 = vmatpush1.msra.mxu0 %v242
    %784 = vmatprep.subr.mxu0 0.0
    %785 = vmatpush1.msra.mxu0 0.0
    %786 = vmatprep.subr.mxu0 0.0
    %787 = vmatpush1.msra.mxu0 0.0
    %788 = vmatprep.subr.mxu0 0.0
    %789 = vmatpush1.msra.mxu0 0.0
    %790 = vmatprep.subr.mxu0 0.0
    %791 = vmatpush1.msra.mxu0 0.0
    %792 = vmatprep.subr.mxu0 0.0
    %793 = vmatpush1.msra.mxu0 0.0
    %794 = vmatprep.subr.mxu0 0.0
    %795 = vmatpush1.msra.mxu0 0.0
    %796 = vmatprep.subr.mxu0 0.0
    %797 = vmatpush1.msra.mxu0 0.0
    %798 = vmatprep.subr.mxu0 0.0
    %799 = vmatpush1.msra.mxu0 0.0
    %800 = vmatprep.subr.mxu0 0.0
    %801 = vmatpush1.msra.mxu0 0.0
    %802 = vmatprep.subr.mxu0 0.0
    %803 = vmatpush1.msra.mxu0 0.0
    %804 = vmatprep.subr.mxu0 0.0
    %805 = vmatpush1.msra.mxu0 0.0
    %806 = vmatprep.subr.mxu0 0.0
    %807 = vmatpush1.msra.mxu0 0.0
    %808 = vmatprep.subr.mxu0 0.0
    %809 = vmatpush1.msra.mxu0 0.0
    %810 = vmatprep.subr.mxu0 0.0
    %811 = vmatpush1.msra.mxu0 0.0
    %812 = vmatprep.subr.mxu0 0.0
    %813 = vmatpush1.msra.mxu0 0.0
    %814 = vmatprep.subr.mxu0 0.0
    %815 = vmatpush1.msra.mxu0 0.0
    %816 = vmatprep.subr.mxu0 0.0
    %817 = vmatpush1.msra.mxu0 0.0
    %818 = vmatprep.subr.mxu0 0.0
    %819 = vmatpush1.msra.mxu0 0.0
    %820 = vmatprep.subr.mxu0 0.0
    %821 = vmatpush1.msra.mxu0 0.0
    %822 = vmatprep.subr.mxu0 0.0
    %823 = vmatpush1.msra.mxu0 0.0
    %824 = vmatprep.subr.mxu0 0.0
    %825 = vmatpush1.msra.mxu0 0.0
    %826 = vmatprep.subr.mxu0 0.0
    %827 = vmatpush1.msra.mxu0 0.0
    %828 = vmatprep.subr.mxu0 0.0
    %829 = vmatpush1.msra.mxu0 0.0
    %830 = vmatprep.subr.mxu0 0.0
    %831 = vmatpush1.msra.mxu0 0.0
    %832 = vmatprep.subr.mxu0 0.0
    %833 = vmatpush1.msra.mxu0 0.0
    %834 = vmatprep.subr.mxu0 0.0
    %835 = vmatpush1.msra.mxu0 0.0
    %836 = vmatprep.subr.mxu0 0.0
    %837 = vmatpush1.msra.mxu0 0.0
    %838 = vmatprep.subr.mxu0 0.0
    %839 = vmatpush1.msra.mxu0 0.0
    %840 = vmatprep.mubr.f32.mxu0 0.0
    %841 = vmatmul.mubr.f32.gmra.mrb[0].mxu0 %v396
    %v842 = vpop.f32.mrb[0].mxu0
    %v843 = vadd.f32 %v773, %v842
    %v844 = vpop.f32.mrb[0].mxu0
    %845 = vdwg.mxu0
    %v846 = vadd.f32 %v843, %v296
    %v847 = vxor.u32 %v846, 2147483648
    %v848 = vmul.f32 %v847, 1.442695
    %v849 = vpow.pop %v848
    %v850 = vadd.f32 %v849, 1.0
    %v851 = vrcp.pop %v850
    %v852 = vmul.f32 1.0, %v851
    %853 = vmatprep.subr.mxu0 0.0
    %854 = vmatpush1.msra.mxu0 %v255
    %855 = vmatprep.subr.mxu0 0.0
    %856 = vmatpush1.msra.mxu0 %v256
    %857 = vmatprep.subr.mxu0 0.0
    %858 = vmatpush1.msra.mxu0 %v257
    %859 = vmatprep.subr.mxu0 0.0
    %860 = vmatpush1.msra.mxu0 %v258
    %861 = vmatprep.subr.mxu0 0.0
    %862 = vmatpush1.msra.mxu0 0.0
    %863 = vmatprep.subr.mxu0 0.0
    %864 = vmatpush1.msra.mxu0 0.0
    %865 = vmatprep.subr.mxu0 0.0
    %866 = vmatpush1.msra.mxu0 0.0
    %867 = vmatprep.subr.mxu0 0.0
    %868 = vmatpush1.msra.mxu0 0.0
    %869 = vmatprep.subr.mxu0 0.0
    %870 = vmatpush1.msra.mxu0 0.0
    %871 = vmatprep.subr.mxu0 0.0
    %872 = vmatpush1.msra.mxu0 0.0
    %873 = vmatprep.subr.mxu0 0.0
    %874 = vmatpush1.msra.mxu0 0.0
    %875 = vmatprep.subr.mxu0 0.0
    %876 = vmatpush1.msra.mxu0 0.0
    %877 = vmatprep.subr.mxu0 0.0
    %878 = vmatpush1.msra.mxu0 0.0
    %879 = vmatprep.subr.mxu0 0.0
    %880 = vmatpush1.msra.mxu0 0.0
    %881 = vmatprep.subr.mxu0 0.0
    %882 = vmatpush1.msra.mxu0 0.0
    %883 = vmatprep.subr.mxu0 0.0
    %884 = vmatpush1.msra.mxu0 0.0
    %885 = vmatprep.subr.mxu0 0.0
    %886 = vmatpush1.msra.mxu0 0.0
    %887 = vmatprep.subr.mxu0 0.0
    %888 = vmatpush1.msra.mxu0 0.0
    %889 = vmatprep.subr.mxu0 0.0
    %890 = vmatpush1.msra.mxu0 0.0
    %891 = vmatprep.subr.mxu0 0.0
    %892 = vmatpush1.msra.mxu0 0.0
    %893 = vmatprep.subr.mxu0 0.0
    %894 = vmatpush1.msra.mxu0 0.0
    %895 = vmatprep.subr.mxu0 0.0
    %896 = vmatpush1.msra.mxu0 0.0
    %897 = vmatprep.subr.mxu0 0.0
    %898 = vmatpush1.msra.mxu0 0.0
    %899 = vmatprep.subr.mxu0 0.0
    %900 = vmatpush1.msra.mxu0 0.0
    %901 = vmatprep.subr.mxu0 0.0
    %902 = vmatpush1.msra.mxu0 0.0
    %903 = vmatprep.subr.mxu0 0.0
    %904 = vmatpush1.msra.mxu0 0.0
    %905 = vmatprep.subr.mxu0 0.0
    %906 = vmatpush1.msra.mxu0 0.0
    %907 = vmatprep.subr.mxu0 0.0
    %908 = vmatpush1.msra.mxu0 0.0
    %909 = vmatprep.subr.mxu0 0.0
    %910 = vmatpush1.msra.mxu0 0.0
    %911 = vmatprep.subr.mxu0 0.0
    %912 = vmatpush1.msra.mxu0 0.0
    %913 = vmatprep.subr.mxu0 0.0
    %914 = vmatpush1.msra.mxu0 0.0
    %915 = vmatprep.subr.mxu0 0.0
    %916 = vmatpush1.msra.mxu0 0.0
    %917 = vmatprep.mubr.f32.mxu0 0.0
    %918 = vmatmul.mubr.f32.gmra.mrb[0].mxu0 %v396
    %v919 = vpop.f32.mrb[0].mxu0
    %v920 = vadd.f32 0.0, %v919
    %v921 = vpop.f32.mrb[0].mxu0
    %922 = vdwg.mxu0
    %923 = vmatprep.subr.mxu0 0.0
    %924 = vmatpush1.msra.mxu0 %v243
    %925 = vmatprep.subr.mxu0 0.0
    %926 = vmatpush1.msra.mxu0 %v244
    %927 = vmatprep.subr.mxu0 0.0
    %928 = vmatpush1.msra.mxu0 %v245
    %929 = vmatprep.subr.mxu0 0.0
    %930 = vmatpush1.msra.mxu0 %v246
    %931 = vmatprep.subr.mxu0 0.0
    %932 = vmatpush1.msra.mxu0 0.0
    %933 = vmatprep.subr.mxu0 0.0
    %934 = vmatpush1.msra.mxu0 0.0
    %935 = vmatprep.subr.mxu0 0.0
    %936 = vmatpush1.msra.mxu0 0.0
    %937 = vmatprep.subr.mxu0 0.0
    %938 = vmatpush1.msra.mxu0 0.0
    %939 = vmatprep.subr.mxu0 0.0
    %940 = vmatpush1.msra.mxu0 0.0
    %941 = vmatprep.subr.mxu0 0.0
    %942 = vmatpush1.msra.mxu0 0.0
    %943 = vmatprep.subr.mxu0 0.0
    %944 = vmatpush1.msra.mxu0 0.0
    %945 = vmatprep.subr.mxu0 0.0
    %946 = vmatpush1.msra.mxu0 0.0
    %947 = vmatprep.subr.mxu0 0.0
    %948 = vmatpush1.msra.mxu0 0.0
    %949 = vmatprep.subr.mxu0 0.0
    %950 = vmatpush1.msra.mxu0 0.0
    %951 = vmatprep.subr.mxu0 0.0
    %952 = vmatpush1.msra.mxu0 0.0
    %953 = vmatprep.subr.mxu0 0.0
    %954 = vmatpush1.msra.mxu0 0.0
    %955 = vmatprep.subr.mxu0 0.0
    %956 = vmatpush1.msra.mxu0 0.0
    %957 = vmatprep.subr.mxu0 0.0
    %958 = vmatpush1.msra.mxu0 0.0
    %959 = vmatprep.subr.mxu0 0.0
    %960 = vmatpush1.msra.mxu0 0.0
    %961 = vmatprep.subr.mxu0 0.0
    %962 = vmatpush1.msra.mxu0 0.0
    %963 = vmatprep.subr.mxu0 0.0
    %964 = vmatpush1.msra.mxu0 0.0
    %965 = vmatprep.subr.mxu0 0.0
    %966 = vmatpush1.msra.mxu0 0.0
    %967 = vmatprep.subr.mxu0 0.0
    %968 = vmatpush1.msra.mxu0 0.0
    %969 = vmatprep.subr.mxu0 0.0
    %970 = vmatpush1.msra.mxu0 0.0
    %971 = vmatprep.subr.mxu0 0.0
    %972 = vmatpush1.msra.mxu0 0.0
    %973 = vmatprep.subr.mxu0 0.0
    %974 = vmatpush1.msra.mxu0 0.0
    %975 = vmatprep.subr.mxu0 0.0
    %976 = vmatpush1.msra.mxu0 0.0
    %977 = vmatprep.subr.mxu0 0.0
    %978 = vmatpush1.msra.mxu0 0.0
    %979 = vmatprep.subr.mxu0 0.0
    %980 = vmatpush1.msra.mxu0 0.0
    %981 = vmatprep.subr.mxu0 0.0
    %982 = vmatpush1.msra.mxu0 0.0
    %983 = vmatprep.subr.mxu0 0.0
    %984 = vmatpush1.msra.mxu0 0.0
    %985 = vmatprep.subr.mxu0 0.0
    %986 = vmatpush1.msra.mxu0 0.0
    %987 = vmatprep.mubr.f32.mxu0 0.0
    %988 = vmatmul.mubr.f32.gmra.mrb[0].mxu0 %v396
    %v989 = vpop.f32.mrb[0].mxu0
    %v990 = vadd.f32 %v920, %v989
    %v991 = vpop.f32.mrb[0].mxu0
    %992 = vdwg.mxu0
    %v993 = vadd.f32 %v990, %v303
    %v994 = vxor.u32 %v993, 2147483648
    %v995 = vmul.f32 %v994, 1.442695
    %v996 = vpow.pop %v995
    %v997 = vadd.f32 %v996, 1.0
    %v998 = vrcp.pop %v997
    %v999 = vmul.f32 1.0, %v998
    %1000 = vmatprep.subr.mxu0 0.0
    %1001 = vmatpush1.msra.mxu0 %v259
    %1002 = vmatprep.subr.mxu0 0.0
    %1003 = vmatpush1.msra.mxu0 %v260
    %1004 = vmatprep.subr.mxu0 0.0
    %1005 = vmatpush1.msra.mxu0 %v261
    %1006 = vmatprep.subr.mxu0 0.0
    %1007 = vmatpush1.msra.mxu0 %v262
    %1008 = vmatprep.subr.mxu0 0.0
    %1009 = vmatpush1.msra.mxu0 0.0
    %1010 = vmatprep.subr.mxu0 0.0
    %1011 = vmatpush1.msra.mxu0 0.0
    %1012 = vmatprep.subr.mxu0 0.0
    %1013 = vmatpush1.msra.mxu0 0.0
    %1014 = vmatprep.subr.mxu0 0.0
    %1015 = vmatpush1.msra.mxu0 0.0
    %1016 = vmatprep.subr.mxu0 0.0
    %1017 = vmatpush1.msra.mxu0 0.0
    %1018 = vmatprep.subr.mxu0 0.0
    %1019 = vmatpush1.msra.mxu0 0.0
    %1020 = vmatprep.subr.mxu0 0.0
    %1021 = vmatpush1.msra.mxu0 0.0
    %1022 = vmatprep.subr.mxu0 0.0
    %1023 = vmatpush1.msra.mxu0 0.0
    %1024 = vmatprep.subr.mxu0 0.0
    %1025 = vmatpush1.msra.mxu0 0.0
    %1026 = vmatprep.subr.mxu0 0.0
    %1027 = vmatpush1.msra.mxu0 0.0
    %1028 = vmatprep.subr.mxu0 0.0
    %1029 = vmatpush1.msra.mxu0 0.0
    %1030 = vmatprep.subr.mxu0 0.0
    %1031 = vmatpush1.msra.mxu0 0.0
    %1032 = vmatprep.subr.mxu0 0.0
    %1033 = vmatpush1.msra.mxu0 0.0
    %1034 = vmatprep.subr.mxu0 0.0
    %1035 = vmatpush1.msra.mxu0 0.0
    %1036 = vmatprep.subr.mxu0 0.0
    %1037 = vmatpush1.msra.mxu0 0.0
    %1038 = vmatprep.subr.mxu0 0.0
    %1039 = vmatpush1.msra.mxu0 0.0
    %1040 = vmatprep.subr.mxu0 0.0
    %1041 = vmatpush1.msra.mxu0 0.0
    %1042 = vmatprep.subr.mxu0 0.0
    %1043 = vmatpush1.msra.mxu0 0.0
    %1044 = vmatprep.subr.mxu0 0.0
    %1045 = vmatpush1.msra.mxu0 0.0
    %1046 = vmatprep.subr.mxu0 0.0
    %1047 = vmatpush1.msra.mxu0 0.0
    %1048 = vmatprep.subr.mxu0 0.0
    %1049 = vmatpush1.msra.mxu0 0.0
    %1050 = vmatprep.subr.mxu0 0.0
    %1051 = vmatpush1.msra.mxu0 0.0
    %1052 = vmatprep.subr.mxu0 0.0
    %1053 = vmatpush1.msra.mxu0 0.0
    %1054 = vmatprep.subr.mxu0 0.0
    %1055 = vmatpush1.msra.mxu0 0.0
    %1056 = vmatprep.subr.mxu0 0.0
    %1057 = vmatpush1.msra.mxu0 0.0
    %1058 = vmatprep.subr.mxu0 0.0
    %1059 = vmatpush1.msra.mxu0 0.0
    %1060 = vmatprep.subr.mxu0 0.0
    %1061 = vmatpush1.msra.mxu0 0.0
    %1062 = vmatprep.subr.mxu0 0.0
    %1063 = vmatpush1.msra.mxu0 0.0
    %1064 = vmatprep.mubr.f32.mxu0 0.0
    %1065 = vmatmul.mubr.f32.gmra.mrb[0].mxu0 %v396
    %v1066 = vpop.f32.mrb[0].mxu0
    %v1067 = vadd.f32 %v317, %v1066
    %v1068 = vpop.f32.mrb[0].mxu0
    %1069 = vdwg.mxu0
    %1070 = vmatprep.subr.mxu0 0.0
    %1071 = vmatpush1.msra.mxu0 %v247
    %1072 = vmatprep.subr.mxu0 0.0
    %1073 = vmatpush1.msra.mxu0 %v248
    %1074 = vmatprep.subr.mxu0 0.0
    %1075 = vmatpush1.msra.mxu0 %v249
    %1076 = vmatprep.subr.mxu0 0.0
    %1077 = vmatpush1.msra.mxu0 %v250
    %1078 = vmatprep.subr.mxu0 0.0
    %1079 = vmatpush1.msra.mxu0 0.0
    %1080 = vmatprep.subr.mxu0 0.0
    %1081 = vmatpush1.msra.mxu0 0.0
    %1082 = vmatprep.subr.mxu0 0.0
    %1083 = vmatpush1.msra.mxu0 0.0
    %1084 = vmatprep.subr.mxu0 0.0
    %1085 = vmatpush1.msra.mxu0 0.0
    %1086 = vmatprep.subr.mxu0 0.0
    %1087 = vmatpush1.msra.mxu0 0.0
    %1088 = vmatprep.subr.mxu0 0.0
    %1089 = vmatpush1.msra.mxu0 0.0
    %1090 = vmatprep.subr.mxu0 0.0
    %1091 = vmatpush1.msra.mxu0 0.0
    %1092 = vmatprep.subr.mxu0 0.0
    %1093 = vmatpush1.msra.mxu0 0.0
    %1094 = vmatprep.subr.mxu0 0.0
    %1095 = vmatpush1.msra.mxu0 0.0
    %1096 = vmatprep.subr.mxu0 0.0
    %1097 = vmatpush1.msra.mxu0 0.0
    %1098 = vmatprep.subr.mxu0 0.0
    %1099 = vmatpush1.msra.mxu0 0.0
    %1100 = vmatprep.subr.mxu0 0.0
    %1101 = vmatpush1.msra.mxu0 0.0
    %1102 = vmatprep.subr.mxu0 0.0
    %1103 = vmatpush1.msra.mxu0 0.0
    %1104 = vmatprep.subr.mxu0 0.0
    %1105 = vmatpush1.msra.mxu0 0.0
    %1106 = vmatprep.subr.mxu0 0.0
    %1107 = vmatpush1.msra.mxu0 0.0
    %1108 = vmatprep.subr.mxu0 0.0
    %1109 = vmatpush1.msra.mxu0 0.0
    %1110 = vmatprep.subr.mxu0 0.0
    %1111 = vmatpush1.msra.mxu0 0.0
    %1112 = vmatprep.subr.mxu0 0.0
    %1113 = vmatpush1.msra.mxu0 0.0
    %1114 = vmatprep.subr.mxu0 0.0
    %1115 = vmatpush1.msra.mxu0 0.0
    %1116 = vmatprep.subr.mxu0 0.0
    %1117 = vmatpush1.msra.mxu0 0.0
    %1118 = vmatprep.subr.mxu0 0.0
    %1119 = vmatpush1.msra.mxu0 0.0
    %1120 = vmatprep.subr.mxu0 0.0
    %1121 = vmatpush1.msra.mxu0 0.0
    %1122 = vmatprep.subr.mxu0 0.0
    %1123 = vmatpush1.msra.mxu0 0.0
    %1124 = vmatprep.subr.mxu0 0.0
    %1125 = vmatpush1.msra.mxu0 0.0
    %1126 = vmatprep.subr.mxu0 0.0
    %1127 = vmatpush1.msra.mxu0 0.0
    %1128 = vmatprep.subr.mxu0 0.0
    %1129 = vmatpush1.msra.mxu0 0.0
    %1130 = vmatprep.subr.mxu0 0.0
    %1131 = vmatpush1.msra.mxu0 0.0
    %1132 = vmatprep.subr.mxu0 0.0
    %1133 = vmatpush1.msra.mxu0 0.0
    %1134 = vmatprep.mubr.f32.mxu0 0.0
    %1135 = vmatmul.mubr.f32.gmra.mrb[0].mxu0 %v396
    %v1136 = vpop.f32.mrb[0].mxu0
    %v1137 = vadd.f32 %v310, %v1136
    %v1138 = vpop.f32.mrb[0].mxu0
    %1139 = vdwg.mxu0
    %v1140 = vmul.f32 %v852, %v1067
    %v1141 = vadd.f32 %v1137, %v1140
    %v1142 = vtanh.pop %v1141
    %v1143 = vsub.f32 1.0, %v999
    %v1144 = vmul.f32 %v1143, %v1142
    %v1145 = vmul.f32 %v999, 0.0
    %v1146 = vadd.f32 %v1144, %v1145
    %1148 = vset.pattern.permute.xlu0 0
    %1149 = vperm.xlu0 %1148, %v698
    %v1150 = vpop.permute.xlu0 %1149
    %v1152 = vmul.f32 %v1150, %v1146
    %v1153 = vadd.f32 %v705, %v1152
    %v1154 = vmul.f32 %v699, 0.0
    %v1155 = vadd.f32 %v1154, 1.0
    %v1156 = vrcp.pop %v1155
    %v1157 = vadd.f32 %v705, %v319
    %1159 = vset.pattern.permute.xlu0 0
    %1160 = vperm.xlu0 %1159, %v1156
    %v1161 = vpop.permute.xlu0 %1160
    %v1163 = vmul.f32 %v1157, %v1161
    %s1164 = scalar_lea.vmem %s0, 8
    %v1165 = vld [vmem:[%s1164] sm:$0xff]
    %s1166 = scalar_lea.vmem %s1, 8
    %v1167 = vld [vmem:[%s1166] sm:$0xff]
    %v1169 = vsel %vm321, %v1165, 0
    %1171 = vmatprep.subr.mxu0 0.0
    %1172 = vmatpush1.msra.mxu0 %v211
    %1173 = vmatprep.subr.mxu0 0.0
    %1174 = vmatpush1.msra.mxu0 %v212
    %1175 = vmatprep.subr.mxu0 0.0
    %1176 = vmatpush1.msra.mxu0 %v213
    %1177 = vmatprep.subr.mxu0 0.0
    %1178 = vmatpush1.msra.mxu0 %v214
    %1179 = vmatprep.subr.mxu0 0.0
    %1180 = vmatpush1.msra.mxu0 0.0
    %1181 = vmatprep.subr.mxu0 0.0
    %1182 = vmatpush1.msra.mxu0 0.0
    %1183 = vmatprep.subr.mxu0 0.0
    %1184 = vmatpush1.msra.mxu0 0.0
    %1185 = vmatprep.subr.mxu0 0.0
    %1186 = vmatpush1.msra.mxu0 0.0
    %1187 = vmatprep.subr.mxu0 0.0
    %1188 = vmatpush1.msra.mxu0 0.0
    %1189 = vmatprep.subr.mxu0 0.0
    %1190 = vmatpush1.msra.mxu0 0.0
    %1191 = vmatprep.subr.mxu0 0.0
    %1192 = vmatpush1.msra.mxu0 0.0
    %1193 = vmatprep.subr.mxu0 0.0
    %1194 = vmatpush1.msra.mxu0 0.0
    %1195 = vmatprep.subr.mxu0 0.0
    %1196 = vmatpush1.msra.mxu0 0.0
    %1197 = vmatprep.subr.mxu0 0.0
    %1198 = vmatpush1.msra.mxu0 0.0
    %1199 = vmatprep.subr.mxu0 0.0
    %1200 = vmatpush1.msra.mxu0 0.0
    %1201 = vmatprep.subr.mxu0 0.0
    %1202 = vmatpush1.msra.mxu0 0.0
    %1203 = vmatprep.subr.mxu0 0.0
    %1204 = vmatpush1.msra.mxu0 0.0
    %1205 = vmatprep.subr.mxu0 0.0
    %1206 = vmatpush1.msra.mxu0 0.0
    %1207 = vmatprep.subr.mxu0 0.0
    %1208 = vmatpush1.msra.mxu0 0.0
    %1209 = vmatprep.subr.mxu0 0.0
    %1210 = vmatpush1.msra.mxu0 0.0
    %1211 = vmatprep.subr.mxu0 0.0
    %1212 = vmatpush1.msra.mxu0 0.0
    %1213 = vmatprep.subr.mxu0 0.0
    %1214 = vmatpush1.msra.mxu0 0.0
    %1215 = vmatprep.subr.mxu0 0.0
    %1216 = vmatpush1.msra.mxu0 0.0
    %1217 = vmatprep.subr.mxu0 0.0
    %1218 = vmatpush1.msra.mxu0 0.0
    %1219 = vmatprep.subr.mxu0 0.0
    %1220 = vmatpush1.msra.mxu0 0.0
    %1221 = vmatprep.subr.mxu0 0.0
    %1222 = vmatpush1.msra.mxu0 0.0
    %1223 = vmatprep.subr.mxu0 0.0
    %1224 = vmatpush1.msra.mxu0 0.0
    %1225 = vmatprep.subr.mxu0 0.0
    %1226 = vmatpush1.msra.mxu0 0.0
    %1227 = vmatprep.subr.mxu0 0.0
    %1228 = vmatpush1.msra.mxu0 0.0
    %1229 = vmatprep.subr.mxu0 0.0
    %1230 = vmatpush1.msra.mxu0 0.0
    %1231 = vmatprep.subr.mxu0 0.0
    %1232 = vmatpush1.msra.mxu0 0.0
    %1233 = vmatprep.subr.mxu0 0.0
    %1234 = vmatpush1.msra.mxu0 0.0
    %1235 = vmatprep.mubr.f32.mxu0 0.0
    %1236 = vmatmul.mubr.f32.gmra.mrb[0].mxu0 %v1169
    %v1237 = vpop.f32.mrb[0].mxu0
    %v1238 = vadd.f32 0.0, %v1237
    %v1239 = vpop.f32.mrb[0].mxu0
    %1240 = vdwg.mxu0
    %v1242 = vsel %vm321, %v1163, 0
    %1244 = vmatprep.subr.mxu0 0.0
    %1245 = vmatpush1.msra.mxu0 %v207
    %1246 = vmatprep.subr.mxu0 0.0
    %1247 = vmatpush1.msra.mxu0 %v208
    %1248 = vmatprep.subr.mxu0 0.0
    %1249 = vmatpush1.msra.mxu0 %v209
    %1250 = vmatprep.subr.mxu0 0.0
    %1251 = vmatpush1.msra.mxu0 %v210
    %1252 = vmatprep.subr.mxu0 0.0
    %1253 = vmatpush1.msra.mxu0 0.0
    %1254 = vmatprep.subr.mxu0 0.0
    %1255 = vmatpush1.msra.mxu0 0.0
    %1256 = vmatprep.subr.mxu0 0.0
    %1257 = vmatpush1.msra.mxu0 0.0
    %1258 = vmatprep.subr.mxu0 0.0
    %1259 = vmatpush1.msra.mxu0 0.0
    %1260 = vmatprep.subr.mxu0 0.0
    %1261 = vmatpush1.msra.mxu0 0.0
    %1262 = vmatprep.subr.mxu0 0.0
    %1263 = vmatpush1.msra.mxu0 0.0
    %1264 = vmatprep.subr.mxu0 0.0
    %1265 = vmatpush1.msra.mxu0 0.0
    %1266 = vmatprep.subr.mxu0 0.0
    %1267 = vmatpush1.msra.mxu0 0.0
    %1268 = vmatprep.subr.mxu0 0.0
    %1269 = vmatpush1.msra.mxu0 0.0
    %1270 = vmatprep.subr.mxu0 0.0
    %1271 = vmatpush1.msra.mxu0 0.0
    %1272 = vmatprep.subr.mxu0 0.0
    %1273 = vmatpush1.msra.mxu0 0.0
    %1274 = vmatprep.subr.mxu0 0.0
    %1275 = vmatpush1.msra.mxu0 0.0
    %1276 = vmatprep.subr.mxu0 0.0
    %1277 = vmatpush1.msra.mxu0 0.0
    %1278 = vmatprep.subr.mxu0 0.0
    %1279 = vmatpush1.msra.mxu0 0.0
    %1280 = vmatprep.subr.mxu0 0.0
    %1281 = vmatpush1.msra.mxu0 0.0
    %1282 = vmatprep.subr.mxu0 0.0
    %1283 = vmatpush1.msra.mxu0 0.0
    %1284 = vmatprep.subr.mxu0 0.0
    %1285 = vmatpush1.msra.mxu0 0.0
    %1286 = vmatprep.subr.mxu0 0.0
    %1287 = vmatpush1.msra.mxu0 0.0
    %1288 = vmatprep.subr.mxu0 0.0
    %1289 = vmatpush1.msra.mxu0 0.0
    %1290 = vmatprep.subr.mxu0 0.0
    %1291 = vmatpush1.msra.mxu0 0.0
    %1292 = vmatprep.subr.mxu0 0.0
    %1293 = vmatpush1.msra.mxu0 0.0
    %1294 = vmatprep.subr.mxu0 0.0
    %1295 = vmatpush1.msra.mxu0 0.0
    %1296 = vmatprep.subr.mxu0 0.0
    %1297 = vmatpush1.msra.mxu0 0.0
    %1298 = vmatprep.subr.mxu0 0.0
    %1299 = vmatpush1.msra.mxu0 0.0
    %1300 = vmatprep.subr.mxu0 0.0
    %1301 = vmatpush1.msra.mxu0 0.0
    %1302 = vmatprep.subr.mxu0 0.0
    %1303 = vmatpush1.msra.mxu0 0.0
    %1304 = vmatprep.subr.mxu0 0.0
    %1305 = vmatpush1.msra.mxu0 0.0
    %1306 = vmatprep.subr.mxu0 0.0
    %1307 = vmatpush1.msra.mxu0 0.0
    %1308 = vmatprep.mubr.f32.mxu0 0.0
    %1309 = vmatmul.mubr.f32.gmra.mrb[0].mxu0 %v1242
    %v1310 = vpop.f32.mrb[0].mxu0
    %v1311 = vadd.f32 %v1238, %v1310
    %v1312 = vpop.f32.mrb[0].mxu0
    %1313 = vdwg.mxu0
    %v1314 = vadd.f32 %v1311, %v268
    %v1315 = vmax.f32 %v1314, 0.0
    %v1317 = vsel %vm470, %v1315, 0
    %1319 = vmatprep.subr.mxu0 0.0
    %1320 = vmatpush1.msra.mxu0 %v215
    %1321 = vmatprep.subr.mxu0 0.0
    %1322 = vmatpush1.msra.mxu0 %v216
    %1323 = vmatprep.subr.mxu0 0.0
    %1324 = vmatpush1.msra.mxu0 %v217
    %1325 = vmatprep.subr.mxu0 0.0
    %1326 = vmatpush1.msra.mxu0 %v218
    %1327 = vmatprep.subr.mxu0 0.0
    %1328 = vmatpush1.msra.mxu0 %v219
    %1329 = vmatprep.subr.mxu0 0.0
    %1330 = vmatpush1.msra.mxu0 %v220
    %1331 = vmatprep.subr.mxu0 0.0
    %1332 = vmatpush1.msra.mxu0 %v221
    %1333 = vmatprep.subr.mxu0 0.0
    %1334 = vmatpush1.msra.mxu0 %v222
    %1335 = vmatprep.subr.mxu0 0.0
    %1336 = vmatpush1.msra.mxu0 0.0
    %1337 = vmatprep.subr.mxu0 0.0
    %1338 = vmatpush1.msra.mxu0 0.0
    %1339 = vmatprep.subr.mxu0 0.0
    %1340 = vmatpush1.msra.mxu0 0.0
    %1341 = vmatprep.subr.mxu0 0.0
    %1342 = vmatpush1.msra.mxu0 0.0
    %1343 = vmatprep.subr.mxu0 0.0
    %1344 = vmatpush1.msra.mxu0 0.0
    %1345 = vmatprep.subr.mxu0 0.0
    %1346 = vmatpush1.msra.mxu0 0.0
    %1347 = vmatprep.subr.mxu0 0.0
    %1348 = vmatpush1.msra.mxu0 0.0
    %1349 = vmatprep.subr.mxu0 0.0
    %1350 = vmatpush1.msra.mxu0 0.0
    %1351 = vmatprep.subr.mxu0 0.0
    %1352 = vmatpush1.msra.mxu0 0.0
    %1353 = vmatprep.subr.mxu0 0.0
    %1354 = vmatpush1.msra.mxu0 0.0
    %1355 = vmatprep.subr.mxu0 0.0
    %1356 = vmatpush1.msra.mxu0 0.0
    %1357 = vmatprep.subr.mxu0 0.0
    %1358 = vmatpush1.msra.mxu0 0.0
    %1359 = vmatprep.subr.mxu0 0.0
    %1360 = vmatpush1.msra.mxu0 0.0
    %1361 = vmatprep.subr.mxu0 0.0
    %1362 = vmatpush1.msra.mxu0 0.0
    %1363 = vmatprep.subr.mxu0 0.0
    %1364 = vmatpush1.msra.mxu0 0.0
    %1365 = vmatprep.subr.mxu0 0.0
    %1366 = vmatpush1.msra.mxu0 0.0
    %1367 = vmatprep.subr.mxu0 0.0
    %1368 = vmatpush1.msra.mxu0 0.0
    %1369 = vmatprep.subr.mxu0 0.0
    %1370 = vmatpush1.msra.mxu0 0.0
    %1371 = vmatprep.subr.mxu0 0.0
    %1372 = vmatpush1.msra.mxu0 0.0
    %1373 = vmatprep.subr.mxu0 0.0
    %1374 = vmatpush1.msra.mxu0 0.0
    %1375 = vmatprep.subr.mxu0 0.0
    %1376 = vmatpush1.msra.mxu0 0.0
    %1377 = vmatprep.subr.mxu0 0.0
    %1378 = vmatpush1.msra.mxu0 0.0
    %1379 = vmatprep.subr.mxu0 0.0
    %1380 = vmatpush1.msra.mxu0 0.0
    %1381 = vmatprep.subr.mxu0 0.0
    %1382 = vmatpush1.msra.mxu0 0.0
    %1383 = vmatprep.mubr.f32.mxu0 0.0
    %1384 = vmatmul.mubr.f32.gmra.mrb[0].mxu0 %v1317
    %v1385 = vpop.f32.mrb[0].mxu0
    %v1386 = vadd.f32 %v275, %v1385
    %v1387 = vpop.f32.mrb[0].mxu0
    %1388 = vdwg.mxu0
    %v1389 = vmax.f32 %v1386, 0.0
    %v1391 = vsel %vm470, %v1389, 0
    %1393 = vmatprep.subr.mxu0 0.0
    %1394 = vmatpush1.msra.mxu0 %v223
    %1395 = vmatprep.subr.mxu0 0.0
    %1396 = vmatpush1.msra.mxu0 %v224
    %1397 = vmatprep.subr.mxu0 0.0
    %1398 = vmatpush1.msra.mxu0 %v225
    %1399 = vmatprep.subr.mxu0 0.0
    %1400 = vmatpush1.msra.mxu0 %v226
    %1401 = vmatprep.subr.mxu0 0.0
    %1402 = vmatpush1.msra.mxu0 %v227
    %1403 = vmatprep.subr.mxu0 0.0
    %1404 = vmatpush1.msra.mxu0 %v228
    %1405 = vmatprep.subr.mxu0 0.0
    %1406 = vmatpush1.msra.mxu0 %v229
    %1407 = vmatprep.subr.mxu0 0.0
    %1408 = vmatpush1.msra.mxu0 %v230
    %1409 = vmatprep.subr.mxu0 0.0
    %1410 = vmatpush1.msra.mxu0 0.0
    %1411 = vmatprep.subr.mxu0 0.0
    %1412 = vmatpush1.msra.mxu0 0.0
    %1413 = vmatprep.subr.mxu0 0.0
    %1414 = vmatpush1.msra.mxu0 0.0
    %1415 = vmatprep.subr.mxu0 0.0
    %1416 = vmatpush1.msra.mxu0 0.0
    %1417 = vmatprep.subr.mxu0 0.0
    %1418 = vmatpush1.msra.mxu0 0.0
    %1419 = vmatprep.subr.mxu0 0.0
    %1420 = vmatpush1.msra.mxu0 0.0
    %1421 = vmatprep.subr.mxu0 0.0
    %1422 = vmatpush1.msra.mxu0 0.0
    %1423 = vmatprep.subr.mxu0 0.0
    %1424 = vmatpush1.msra.mxu0 0.0
    %1425 = vmatprep.subr.mxu0 0.0
    %1426 = vmatpush1.msra.mxu0 0.0
    %1427 = vmatprep.subr.mxu0 0.0
    %1428 = vmatpush1.msra.mxu0 0.0
    %1429 = vmatprep.subr.mxu0 0.0
    %1430 = vmatpush1.msra.mxu0 0.0
    %1431 = vmatprep.subr.mxu0 0.0
    %1432 = vmatpush1.msra.mxu0 0.0
    %1433 = vmatprep.subr.mxu0 0.0
    %1434 = vmatpush1.msra.mxu0 0.0
    %1435 = vmatprep.subr.mxu0 0.0
    %1436 = vmatpush1.msra.mxu0 0.0
    %1437 = vmatprep.subr.mxu0 0.0
    %1438 = vmatpush1.msra.mxu0 0.0
    %1439 = vmatprep.subr.mxu0 0.0
    %1440 = vmatpush1.msra.mxu0 0.0
    %1441 = vmatprep.subr.mxu0 0.0
    %1442 = vmatpush1.msra.mxu0 0.0
    %1443 = vmatprep.subr.mxu0 0.0
    %1444 = vmatpush1.msra.mxu0 0.0
    %1445 = vmatprep.subr.mxu0 0.0
    %1446 = vmatpush1.msra.mxu0 0.0
    %1447 = vmatprep.subr.mxu0 0.0
    %1448 = vmatpush1.msra.mxu0 0.0
    %1449 = vmatprep.subr.mxu0 0.0
    %1450 = vmatpush1.msra.mxu0 0.0
    %1451 = vmatprep.subr.mxu0 0.0
    %1452 = vmatpush1.msra.mxu0 0.0
    %1453 = vmatprep.subr.mxu0 0.0
    %1454 = vmatpush1.msra.mxu0 0.0
    %1455 = vmatprep.subr.mxu0 0.0
    %1456 = vmatpush1.msra.mxu0 0.0
    %1457 = vmatprep.mubr.f32.mxu0 0.0
    %1458 = vmatmul.mubr.f32.gmra.mrb[0].mxu0 %v1391
    %v1459 = vpop.f32.mrb[0].mxu0
    %v1460 = vadd.f32 %v282, %v1459
    %v1461 = vpop.f32.mrb[0].mxu0
    %1462 = vdwg.mxu0
    %v1463 = vmax.f32 %v1460, 0.0
    %v1465 = vsel %vm470, %v1463, 0
    %1467 = vmatprep.subr.mxu0 0.0
    %1468 = vmatpush1.msra.mxu0 %v231
    %1469 = vmatprep.subr.mxu0 0.0
    %1470 = vmatpush1.msra.mxu0 %v232
    %1471 = vmatprep.subr.mxu0 0.0
    %1472 = vmatpush1.msra.mxu0 %v233
    %1473 = vmatprep.subr.mxu0 0.0
    %1474 = vmatpush1.msra.mxu0 %v234
    %1475 = vmatprep.subr.mxu0 0.0
    %1476 = vmatpush1.msra.mxu0 %v235
    %1477 = vmatprep.subr.mxu0 0.0
    %1478 = vmatpush1.msra.mxu0 %v236
    %1479 = vmatprep.subr.mxu0 0.0
    %1480 = vmatpush1.msra.mxu0 %v237
    %1481 = vmatprep.subr.mxu0 0.0
    %1482 = vmatpush1.msra.mxu0 %v238
    %1483 = vmatprep.subr.mxu0 0.0
    %1484 = vmatpush1.msra.mxu0 0.0
    %1485 = vmatprep.subr.mxu0 0.0
    %1486 = vmatpush1.msra.mxu0 0.0
    %1487 = vmatprep.subr.mxu0 0.0
    %1488 = vmatpush1.msra.mxu0 0.0
    %1489 = vmatprep.subr.mxu0 0.0
    %1490 = vmatpush1.msra.mxu0 0.0
    %1491 = vmatprep.subr.mxu0 0.0
    %1492 = vmatpush1.msra.mxu0 0.0
    %1493 = vmatprep.subr.mxu0 0.0
    %1494 = vmatpush1.msra.mxu0 0.0
    %1495 = vmatprep.subr.mxu0 0.0
    %1496 = vmatpush1.msra.mxu0 0.0
    %1497 = vmatprep.subr.mxu0 0.0
    %1498 = vmatpush1.msra.mxu0 0.0
    %1499 = vmatprep.subr.mxu0 0.0
    %1500 = vmatpush1.msra.mxu0 0.0
    %1501 = vmatprep.subr.mxu0 0.0
    %1502 = vmatpush1.msra.mxu0 0.0
    %1503 = vmatprep.subr.mxu0 0.0
    %1504 = vmatpush1.msra.mxu0 0.0
    %1505 = vmatprep.subr.mxu0 0.0
    %1506 = vmatpush1.msra.mxu0 0.0
    %1507 = vmatprep.subr.mxu0 0.0
    %1508 = vmatpush1.msra.mxu0 0.0
    %1509 = vmatprep.subr.mxu0 0.0
    %1510 = vmatpush1.msra.mxu0 0.0
    %1511 = vmatprep.subr.mxu0 0.0
    %1512 = vmatpush1.msra.mxu0 0.0
    %1513 = vmatprep.subr.mxu0 0.0
    %1514 = vmatpush1.msra.mxu0 0.0
    %1515 = vmatprep.subr.mxu0 0.0
    %1516 = vmatpush1.msra.mxu0 0.0
    %1517 = vmatprep.subr.mxu0 0.0
    %1518 = vmatpush1.msra.mxu0 0.0
    %1519 = vmatprep.subr.mxu0 0.0
    %1520 = vmatpush1.msra.mxu0 0.0
    %1521 = vmatprep.subr.mxu0 0.0
    %1522 = vmatpush1.msra.mxu0 0.0
    %1523 = vmatprep.subr.mxu0 0.0
    %1524 = vmatpush1.msra.mxu0 0.0
    %1525 = vmatprep.subr.mxu0 0.0
    %1526 = vmatpush1.msra.mxu0 0.0
    %1527 = vmatprep.subr.mxu0 0.0
    %1528 = vmatpush1.msra.mxu0 0.0
    %1529 = vmatprep.subr.mxu0 0.0
    %1530 = vmatpush1.msra.mxu0 0.0
    %1531 = vmatprep.mubr.f32.mxu0 0.0
    %1532 = vmatmul.mubr.f32.gmra.mrb[0].mxu0 %v1465
    %v1533 = vpop.f32.mrb[0].mxu0
    %v1534 = vadd.f32 %v289, %v1533
    %v1535 = vpop.f32.mrb[0].mxu0
    %1536 = vdwg.mxu0
    %v1537 = vadd.f32 %v1534, %v1167
    %v1538 = vxor.u32 %v1537, 2147483648
    %v1539 = vmul.f32 %v1538, 1.442695
    %v1540 = vpow.pop %v1539
    %v1541 = vadd.f32 %v1540, 1.0
    %v1542 = vrcp.pop %v1541
    %v1543 = vmul.f32 1.0, %v1542
    %v1544 = vsub.f32 1.0, %v1543
    %1546 = vset.pattern.permute.xlu0 0
    %1547 = vperm.xlu0 %1546, %v1544
    %v1548 = vpop.permute.xlu0 %1547
    %v1550 = vmul.f32 %v1153, %v1548
    %v1552 = vsel %vm321, %v1153, 0
    %1554 = vmatprep.subr.mxu0 0.0
    %1555 = vmatpush1.msra.mxu0 %v251
    %1556 = vmatprep.subr.mxu0 0.0
    %1557 = vmatpush1.msra.mxu0 %v252
    %1558 = vmatprep.subr.mxu0 0.0
    %1559 = vmatpush1.msra.mxu0 %v253
    %1560 = vmatprep.subr.mxu0 0.0
    %1561 = vmatpush1.msra.mxu0 %v254
    %1562 = vmatprep.subr.mxu0 0.0
    %1563 = vmatpush1.msra.mxu0 0.0
    %1564 = vmatprep.subr.mxu0 0.0
    %1565 = vmatpush1.msra.mxu0 0.0
    %1566 = vmatprep.subr.mxu0 0.0
    %1567 = vmatpush1.msra.mxu0 0.0
    %1568 = vmatprep.subr.mxu0 0.0
    %1569 = vmatpush1.msra.mxu0 0.0
    %1570 = vmatprep.subr.mxu0 0.0
    %1571 = vmatpush1.msra.mxu0 0.0
    %1572 = vmatprep.subr.mxu0 0.0
    %1573 = vmatpush1.msra.mxu0 0.0
    %1574 = vmatprep.subr.mxu0 0.0
    %1575 = vmatpush1.msra.mxu0 0.0
    %1576 = vmatprep.subr.mxu0 0.0
    %1577 = vmatpush1.msra.mxu0 0.0
    %1578 = vmatprep.subr.mxu0 0.0
    %1579 = vmatpush1.msra.mxu0 0.0
    %1580 = vmatprep.subr.mxu0 0.0
    %1581 = vmatpush1.msra.mxu0 0.0
    %1582 = vmatprep.subr.mxu0 0.0
    %1583 = vmatpush1.msra.mxu0 0.0
    %1584 = vmatprep.subr.mxu0 0.0
    %1585 = vmatpush1.msra.mxu0 0.0
    %1586 = vmatprep.subr.mxu0 0.0
    %1587 = vmatpush1.msra.mxu0 0.0
    %1588 = vmatprep.subr.mxu0 0.0
    %1589 = vmatpush1.msra.mxu0 0.0
    %1590 = vmatprep.subr.mxu0 0.0
    %1591 = vmatpush1.msra.mxu0 0.0
    %1592 = vmatprep.subr.mxu0 0.0
    %1593 = vmatpush1.msra.mxu0 0.0
    %1594 = vmatprep.subr.mxu0 0.0
    %1595 = vmatpush1.msra.mxu0 0.0
    %1596 = vmatprep.subr.mxu0 0.0
    %1597 = vmatpush1.msra.mxu0 0.0
    %1598 = vmatprep.subr.mxu0 0.0
    %1599 = vmatpush1.msra.mxu0 0.0
    %1600 = vmatprep.subr.mxu0 0.0
    %1601 = vmatpush1.msra.mxu0 0.0
    %1602 = vmatprep.subr.mxu0 0.0
    %1603 = vmatpush1.msra.mxu0 0.0
    %1604 = vmatprep.subr.mxu0 0.0
    %1605 = vmatpush1.msra.mxu0 0.0
    %1606 = vmatprep.subr.mxu0 0.0
    %1607 = vmatpush1.msra.mxu0 0.0
    %1608 = vmatprep.subr.mxu0 0.0
    %1609 = vmatpush1.msra.mxu0 0.0
    %1610 = vmatprep.subr.mxu0 0.0
    %1611 = vmatpush1.msra.mxu0 0.0
    %1612 = vmatprep.subr.mxu0 0.0
    %1613 = vmatpush1.msra.mxu0 0.0
    %1614 = vmatprep.subr.mxu0 0.0
    %1615 = vmatpush1.msra.mxu0 0.0
    %1616 = vmatprep.subr.mxu0 0.0
    %1617 = vmatpush1.msra.mxu0 0.0
    %1618 = vmatprep.mubr.f32.mxu0 0.0
    %1619 = vmatmul.mubr.f32.gmra.mrb[0].mxu0 %v1552
    %v1620 = vpop.f32.mrb[0].mxu0
    %v1621 = vadd.f32 0.0, %v1620
    %v1622 = vpop.f32.mrb[0].mxu0
    %1623 = vdwg.mxu0
    %1624 = vmatprep.subr.mxu0 0.0
    %1625 = vmatpush1.msra.mxu0 %v239
    %1626 = vmatprep.subr.mxu0 0.0
    %1627 = vmatpush1.msra.mxu0 %v240
    %1628 = vmatprep.subr.mxu0 0.0
    %1629 = vmatpush1.msra.mxu0 %v241
    %1630 = vmatprep.subr.mxu0 0.0
    %1631 = vmatpush1.msra.mxu0 %v242
    %1632 = vmatprep.subr.mxu0 0.0
    %1633 = vmatpush1.msra.mxu0 0.0
    %1634 = vmatprep.subr.mxu0 0.0
    %1635 = vmatpush1.msra.mxu0 0.0
    %1636 = vmatprep.subr.mxu0 0.0
    %1637 = vmatpush1.msra.mxu0 0.0
    %1638 = vmatprep.subr.mxu0 0.0
    %1639 = vmatpush1.msra.mxu0 0.0
    %1640 = vmatprep.subr.mxu0 0.0
    %1641 = vmatpush1.msra.mxu0 0.0
    %1642 = vmatprep.subr.mxu0 0.0
    %1643 = vmatpush1.msra.mxu0 0.0
    %1644 = vmatprep.subr.mxu0 0.0
    %1645 = vmatpush1.msra.mxu0 0.0
    %1646 = vmatprep.subr.mxu0 0.0
    %1647 = vmatpush1.msra.mxu0 0.0
    %1648 = vmatprep.subr.mxu0 0.0
    %1649 = vmatpush1.msra.mxu0 0.0
    %1650 = vmatprep.subr.mxu0 0.0
    %1651 = vmatpush1.msra.mxu0 0.0
    %1652 = vmatprep.subr.mxu0 0.0
    %1653 = vmatpush1.msra.mxu0 0.0
    %1654 = vmatprep.subr.mxu0 0.0
    %1655 = vmatpush1.msra.mxu0 0.0
    %1656 = vmatprep.subr.mxu0 0.0
    %1657 = vmatpush1.msra.mxu0 0.0
    %1658 = vmatprep.subr.mxu0 0.0
    %1659 = vmatpush1.msra.mxu0 0.0
    %1660 = vmatprep.subr.mxu0 0.0
    %1661 = vmatpush1.msra.mxu0 0.0
    %1662 = vmatprep.subr.mxu0 0.0
    %1663 = vmatpush1.msra.mxu0 0.0
    %1664 = vmatprep.subr.mxu0 0.0
    %1665 = vmatpush1.msra.mxu0 0.0
    %1666 = vmatprep.subr.mxu0 0.0
    %1667 = vmatpush1.msra.mxu0 0.0
    %1668 = vmatprep.subr.mxu0 0.0
    %1669 = vmatpush1.msra.mxu0 0.0
    %1670 = vmatprep.subr.mxu0 0.0
    %1671 = vmatpush1.msra.mxu0 0.0
    %1672 = vmatprep.subr.mxu0 0.0
    %1673 = vmatpush1.msra.mxu0 0.0
    %1674 = vmatprep.subr.mxu0 0.0
    %1675 = vmatpush1.msra.mxu0 0.0
    %1676 = vmatprep.subr.mxu0 0.0
    %1677 = vmatpush1.msra.mxu0 0.0
    %1678 = vmatprep.subr.mxu0 0.0
    %1679 = vmatpush1.msra.mxu0 0.0
    %1680 = vmatprep.subr.mxu0 0.0
    %1681 = vmatpush1.msra.mxu0 0.0
    %1682 = vmatprep.subr.mxu0 0.0
    %1683 = vmatpush1.msra.mxu0 0.0
    %1684 = vmatprep.subr.mxu0 0.0
    %1685 = vmatpush1.msra.mxu0 0.0
    %1686 = vmatprep.subr.mxu0 0.0
    %1687 = vmatpush1.msra.mxu0 0.0
    %1688 = vmatprep.mubr.f32.mxu0 0.0
    %1689 = vmatmul.mubr.f32.gmra.mrb[0].mxu0 %v1242
    %v1690 = vpop.f32.mrb[0].mxu0
    %v1691 = vadd.f32 %v1621, %v1690
    %v1692 = vpop.f32.mrb[0].mxu0
    %1693 = vdwg.mxu0
    %v1694 = vadd.f32 %v1691, %v296
    %v1695 = vxor.u32 %v1694, 2147483648
    %v1696 = vmul.f32 %v1695, 1.442695
    %v1697 = vpow.pop %v1696
    %v1698 = vadd.f32 %v1697, 1.0
    %v1699 = vrcp.pop %v1698
    %v1700 = vmul.f32 1.0, %v1699
    %1701 = vmatprep.subr.mxu0 0.0
    %1702 = vmatpush1.msra.mxu0 %v255
    %1703 = vmatprep.subr.mxu0 0.0
    %1704 = vmatpush1.msra.mxu0 %v256
    %1705 = vmatprep.subr.mxu0 0.0
    %1706 = vmatpush1.msra.mxu0 %v257
    %1707 = vmatprep.subr.mxu0 0.0
    %1708 = vmatpush1.msra.mxu0 %v258
    %1709 = vmatprep.subr.mxu0 0.0
    %1710 = vmatpush1.msra.mxu0 0.0
    %1711 = vmatprep.subr.mxu0 0.0
    %1712 = vmatpush1.msra.mxu0 0.0
    %1713 = vmatprep.subr.mxu0 0.0
    %1714 = vmatpush1.msra.mxu0 0.0
    %1715 = vmatprep.subr.mxu0 0.0
    %1716 = vmatpush1.msra.mxu0 0.0
    %1717 = vmatprep.subr.mxu0 0.0
    %1718 = vmatpush1.msra.mxu0 0.0
    %1719 = vmatprep.subr.mxu0 0.0
    %1720 = vmatpush1.msra.mxu0 0.0
    %1721 = vmatprep.subr.mxu0 0.0
    %1722 = vmatpush1.msra.mxu0 0.0
    %1723 = vmatprep.subr.mxu0 0.0
    %1724 = vmatpush1.msra.mxu0 0.0
    %1725 = vmatprep.subr.mxu0 0.0
    %1726 = vmatpush1.msra.mxu0 0.0
    %1727 = vmatprep.subr.mxu0 0.0
    %1728 = vmatpush1.msra.mxu0 0.0
    %1729 = vmatprep.subr.mxu0 0.0
    %1730 = vmatpush1.msra.mxu0 0.0
    %1731 = vmatprep.subr.mxu0 0.0
    %1732 = vmatpush1.msra.mxu0 0.0
    %1733 = vmatprep.subr.mxu0 0.0
    %1734 = vmatpush1.msra.mxu0 0.0
    %1735 = vmatprep.subr.mxu0 0.0
    %1736 = vmatpush1.msra.mxu0 0.0
    %1737 = vmatprep.subr.mxu0 0.0
    %1738 = vmatpush1.msra.mxu0 0.0
    %1739 = vmatprep.subr.mxu0 0.0
    %1740 = vmatpush1.msra.mxu0 0.0
    %1741 = vmatprep.subr.mxu0 0.0
    %1742 = vmatpush1.msra.mxu0 0.0
    %1743 = vmatprep.subr.mxu0 0.0
    %1744 = vmatpush1.msra.mxu0 0.0
    %1745 = vmatprep.subr.mxu0 0.0
    %1746 = vmatpush1.msra.mxu0 0.0
    %1747 = vmatprep.subr.mxu0 0.0
    %1748 = vmatpush1.msra.mxu0 0.0
    %1749 = vmatprep.subr.mxu0 0.0
    %1750 = vmatpush1.msra.mxu0 0.0
    %1751 = vmatprep.subr.mxu0 0.0
    %1752 = vmatpush1.msra.mxu0 0.0
    %1753 = vmatprep.subr.mxu0 0.0
    %1754 = vmatpush1.msra.mxu0 0.0
    %1755 = vmatprep.subr.mxu0 0.0
    %1756 = vmatpush1.msra.mxu0 0.0
    %1757 = vmatprep.subr.mxu0 0.0
    %1758 = vmatpush1.msra.mxu0 0.0
    %1759 = vmatprep.subr.mxu0 0.0
    %1760 = vmatpush1.msra.mxu0 0.0
    %1761 = vmatprep.subr.mxu0 0.0
    %1762 = vmatpush1.msra.mxu0 0.0
    %1763 = vmatprep.subr.mxu0 0.0
    %1764 = vmatpush1.msra.mxu0 0.0
    %1765 = vmatprep.mubr.f32.mxu0 0.0
    %1766 = vmatmul.mubr.f32.gmra.mrb[0].mxu0 %v1552
    %v1767 = vpop.f32.mrb[0].mxu0
    %v1768 = vadd.f32 0.0, %v1767
    %v1769 = vpop.f32.mrb[0].mxu0
    %1770 = vdwg.mxu0
    %1771 = vmatprep.subr.mxu0 0.0
    %1772 = vmatpush1.msra.mxu0 %v243
    %1773 = vmatprep.subr.mxu0 0.0
    %1774 = vmatpush1.msra.mxu0 %v244
    %1775 = vmatprep.subr.mxu0 0.0
    %1776 = vmatpush1.msra.mxu0 %v245
    %1777 = vmatprep.subr.mxu0 0.0
    %1778 = vmatpush1.msra.mxu0 %v246
    %1779 = vmatprep.subr.mxu0 0.0
    %1780 = vmatpush1.msra.mxu0 0.0
    %1781 = vmatprep.subr.mxu0 0.0
    %1782 = vmatpush1.msra.mxu0 0.0
    %1783 = vmatprep.subr.mxu0 0.0
    %1784 = vmatpush1.msra.mxu0 0.0
    %1785 = vmatprep.subr.mxu0 0.0
    %1786 = vmatpush1.msra.mxu0 0.0
    %1787 = vmatprep.subr.mxu0 0.0
    %1788 = vmatpush1.msra.mxu0 0.0
    %1789 = vmatprep.subr.mxu0 0.0
    %1790 = vmatpush1.msra.mxu0 0.0
    %1791 = vmatprep.subr.mxu0 0.0
    %1792 = vmatpush1.msra.mxu0 0.0
    %1793 = vmatprep.subr.mxu0 0.0
    %1794 = vmatpush1.msra.mxu0 0.0
    %1795 = vmatprep.subr.mxu0 0.0
    %1796 = vmatpush1.msra.mxu0 0.0
    %1797 = vmatprep.subr.mxu0 0.0
    %1798 = vmatpush1.msra.mxu0 0.0
    %1799 = vmatprep.subr.mxu0 0.0
    %1800 = vmatpush1.msra.mxu0 0.0
    %1801 = vmatprep.subr.mxu0 0.0
    %1802 = vmatpush1.msra.mxu0 0.0
    %1803 = vmatprep.subr.mxu0 0.0
    %1804 = vmatpush1.msra.mxu0 0.0
    %1805 = vmatprep.subr.mxu0 0.0
    %1806 = vmatpush1.msra.mxu0 0.0
    %1807 = vmatprep.subr.mxu0 0.0
    %1808 = vmatpush1.msra.mxu0 0.0
    %1809 = vmatprep.subr.mxu0 0.0
    %1810 = vmatpush1.msra.mxu0 0.0
    %1811 = vmatprep.subr.mxu0 0.0
    %1812 = vmatpush1.msra.mxu0 0.0
    %1813 = vmatprep.subr.mxu0 0.0
    %1814 = vmatpush1.msra.mxu0 0.0
    %1815 = vmatprep.subr.mxu0 0.0
    %1816 = vmatpush1.msra.mxu0 0.0
    %1817 = vmatprep.subr.mxu0 0.0
    %1818 = vmatpush1.msra.mxu0 0.0
    %1819 = vmatprep.subr.mxu0 0.0
    %1820 = vmatpush1.msra.mxu0 0.0
    %1821 = vmatprep.subr.mxu0 0.0
    %1822 = vmatpush1.msra.mxu0 0.0
    %1823 = vmatprep.subr.mxu0 0.0
    %1824 = vmatpush1.msra.mxu0 0.0
    %1825 = vmatprep.subr.mxu0 0.0
    %1826 = vmatpush1.msra.mxu0 0.0
    %1827 = vmatprep.subr.mxu0 0.0
    %1828 = vmatpush1.msra.mxu0 0.0
    %1829 = vmatprep.subr.mxu0 0.0
    %1830 = vmatpush1.msra.mxu0 0.0
    %1831 = vmatprep.subr.mxu0 0.0
    %1832 = vmatpush1.msra.mxu0 0.0
    %1833 = vmatprep.subr.mxu0 0.0
    %1834 = vmatpush1.msra.mxu0 0.0
    %1835 = vmatprep.mubr.f32.mxu0 0.0
    %1836 = vmatmul.mubr.f32.gmra.mrb[0].mxu0 %v1242
    %v1837 = vpop.f32.mrb[0].mxu0
    %v1838 = vadd.f32 %v1768, %v1837
    %v1839 = vpop.f32.mrb[0].mxu0
    %1840 = vdwg.mxu0
    %v1841 = vadd.f32 %v1838, %v303
    %v1842 = vxor.u32 %v1841, 2147483648
    %v1843 = vmul.f32 %v1842, 1.442695
    %v1844 = vpow.pop %v1843
    %v1845 = vadd.f32 %v1844, 1.0
    %v1846 = vrcp.pop %v1845
    %v1847 = vmul.f32 1.0, %v1846
    %1848 = vmatprep.subr.mxu0 0.0
    %1849 = vmatpush1.msra.mxu0 %v259
    %1850 = vmatprep.subr.mxu0 0.0
    %1851 = vmatpush1.msra.mxu0 %v260
    %1852 = vmatprep.subr.mxu0 0.0
    %1853 = vmatpush1.msra.mxu0 %v261
    %1854 = vmatprep.subr.mxu0 0.0
    %1855 = vmatpush1.msra.mxu0 %v262
    %1856 = vmatprep.subr.mxu0 0.0
    %1857 = vmatpush1.msra.mxu0 0.0
    %1858 = vmatprep.subr.mxu0 0.0
    %1859 = vmatpush1.msra.mxu0 0.0
    %1860 = vmatprep.subr.mxu0 0.0
    %1861 = vmatpush1.msra.mxu0 0.0
    %1862 = vmatprep.subr.mxu0 0.0
    %1863 = vmatpush1.msra.mxu0 0.0
    %1864 = vmatprep.subr.mxu0 0.0
    %1865 = vmatpush1.msra.mxu0 0.0
    %1866 = vmatprep.subr.mxu0 0.0
    %1867 = vmatpush1.msra.mxu0 0.0
    %1868 = vmatprep.subr.mxu0 0.0
    %1869 = vmatpush1.msra.mxu0 0.0
    %1870 = vmatprep.subr.mxu0 0.0
    %1871 = vmatpush1.msra.mxu0 0.0
    %1872 = vmatprep.subr.mxu0 0.0
    %1873 = vmatpush1.msra.mxu0 0.0
    %1874 = vmatprep.subr.mxu0 0.0
    %1875 = vmatpush1.msra.mxu0 0.0
    %1876 = vmatprep.subr.mxu0 0.0
    %1877 = vmatpush1.msra.mxu0 0.0
    %1878 = vmatprep.subr.mxu0 0.0
    %1879 = vmatpush1.msra.mxu0 0.0
    %1880 = vmatprep.subr.mxu0 0.0
    %1881 = vmatpush1.msra.mxu0 0.0
    %1882 = vmatprep.subr.mxu0 0.0
    %1883 = vmatpush1.msra.mxu0 0.0
    %1884 = vmatprep.subr.mxu0 0.0
    %1885 = vmatpush1.msra.mxu0 0.0
    %1886 = vmatprep.subr.mxu0 0.0
    %1887 = vmatpush1.msra.mxu0 0.0
    %1888 = vmatprep.subr.mxu0 0.0
    %1889 = vmatpush1.msra.mxu0 0.0
    %1890 = vmatprep.subr.mxu0 0.0
    %1891 = vmatpush1.msra.mxu0 0.0
    %1892 = vmatprep.subr.mxu0 0.0
    %1893 = vmatpush1.msra.mxu0 0.0
    %1894 = vmatprep.subr.mxu0 0.0
    %1895 = vmatpush1.msra.mxu0 0.0
    %1896 = vmatprep.subr.mxu0 0.0
    %1897 = vmatpush1.msra.mxu0 0.0
    %1898 = vmatprep.subr.mxu0 0.0
    %1899 = vmatpush1.msra.mxu0 0.0
    %1900 = vmatprep.subr.mxu0 0.0
    %1901 = vmatpush1.msra.mxu0 0.0
    %1902 = vmatprep.subr.mxu0 0.0
    %1903 = vmatpush1.msra.mxu0 0.0
    %1904 = vmatprep.subr.mxu0 0.0
    %1905 = vmatpush1.msra.mxu0 0.0
    %1906 = vmatprep.subr.mxu0 0.0
    %1907 = vmatpush1.msra.mxu0 0.0
    %1908 = vmatprep.subr.mxu0 0.0
    %1909 = vmatpush1.msra.mxu0 0.0
    %1910 = vmatprep.subr.mxu0 0.0
    %1911 = vmatpush1.msra.mxu0 0.0
    %1912 = vmatprep.mubr.f32.mxu0 0.0
    %1913 = vmatmul.mubr.f32.gmra.mrb[0].mxu0 %v1552
    %v1914 = vpop.f32.mrb[0].mxu0
    %v1915 = vadd.f32 %v317, %v1914
    %v1916 = vpop.f32.mrb[0].mxu0
    %1917 = vdwg.mxu0
    %1918 = vmatprep.subr.mxu0 0.0
    %1919 = vmatpush1.msra.mxu0 %v247
    %1920 = vmatprep.subr.mxu0 0.0
    %1921 = vmatpush1.msra.mxu0 %v248
    %1922 = vmatprep.subr.mxu0 0.0
    %1923 = vmatpush1.msra.mxu0 %v249
    %1924 = vmatprep.subr.mxu0 0.0
    %1925 = vmatpush1.msra.mxu0 %v250
    %1926 = vmatprep.subr.mxu0 0.0
    %1927 = vmatpush1.msra.mxu0 0.0
    %1928 = vmatprep.subr.mxu0 0.0
    %1929 = vmatpush1.msra.mxu0 0.0
    %1930 = vmatprep.subr.mxu0 0.0
    %1931 = vmatpush1.msra.mxu0 0.0
    %1932 = vmatprep.subr.mxu0 0.0
    %1933 = vmatpush1.msra.mxu0 0.0
    %1934 = vmatprep.subr.mxu0 0.0
    %1935 = vmatpush1.msra.mxu0 0.0
    %1936 = vmatprep.subr.mxu0 0.0
    %1937 = vmatpush1.msra.mxu0 0.0
    %1938 = vmatprep.subr.mxu0 0.0
    %1939 = vmatpush1.msra.mxu0 0.0
    %1940 = vmatprep.subr.mxu0 0.0
    %1941 = vmatpush1.msra.mxu0 0.0
    %1942 = vmatprep.subr.mxu0 0.0
    %1943 = vmatpush1.msra.mxu0 0.0
    %1944 = vmatprep.subr.mxu0 0.0
    %1945 = vmatpush1.msra.mxu0 0.0
    %1946 = vmatprep.subr.mxu0 0.0
    %1947 = vmatpush1.msra.mxu0 0.0
    %1948 = vmatprep.subr.mxu0 0.0
    %1949 = vmatpush1.msra.mxu0 0.0
    %1950 = vmatprep.subr.mxu0 0.0
    %1951 = vmatpush1.msra.mxu0 0.0
    %1952 = vmatprep.subr.mxu0 0.0
    %1953 = vmatpush1.msra.mxu0 0.0
    %1954 = vmatprep.subr.mxu0 0.0
    %1955 = vmatpush1.msra.mxu0 0.0
    %1956 = vmatprep.subr.mxu0 0.0
    %1957 = vmatpush1.msra.mxu0 0.0
    %1958 = vmatprep.subr.mxu0 0.0
    %1959 = vmatpush1.msra.mxu0 0.0
    %1960 = vmatprep.subr.mxu0 0.0
    %1961 = vmatpush1.msra.mxu0 0.0
    %1962 = vmatprep.subr.mxu0 0.0
    %1963 = vmatpush1.msra.mxu0 0.0
    %1964 = vmatprep.subr.mxu0 0.0
    %1965 = vmatpush1.msra.mxu0 0.0
    %1966 = vmatprep.subr.mxu0 0.0
    %1967 = vmatpush1.msra.mxu0 0.0
    %1968 = vmatprep.subr.mxu0 0.0
    %1969 = vmatpush1.msra.mxu0 0.0
    %1970 = vmatprep.subr.mxu0 0.0
    %1971 = vmatpush1.msra.mxu0 0.0
    %1972 = vmatprep.subr.mxu0 0.0
    %1973 = vmatpush1.msra.mxu0 0.0
    %1974 = vmatprep.subr.mxu0 0.0
    %1975 = vmatpush1.msra.mxu0 0.0
    %1976 = vmatprep.subr.mxu0 0.0
    %1977 = vmatpush1.msra.mxu0 0.0
    %1978 = vmatprep.subr.mxu0 0.0
    %1979 = vmatpush1.msra.mxu0 0.0
    %1980 = vmatprep.subr.mxu0 0.0
    %1981 = vmatpush1.msra.mxu0 0.0
    %1982 = vmatprep.mubr.f32.mxu0 0.0
    %1983 = vmatmul.mubr.f32.gmra.mrb[0].mxu0 %v1242
    %v1984 = vpop.f32.mrb[0].mxu0
    %v1985 = vadd.f32 %v310, %v1984
    %v1986 = vpop.f32.mrb[0].mxu0
    %1987 = vdwg.mxu0
    %v1988 = vmul.f32 %v1700, %v1915
    %v1989 = vadd.f32 %v1985, %v1988
    %v1990 = vtanh.pop %v1989
    %v1991 = vsub.f32 1.0, %v1847
    %v1992 = vmul.f32 %v1991, %v1990
    %v1993 = vmul.f32 %v1847, %v1153
    %v1994 = vadd.f32 %v1992, %v1993
    %1996 = vset.pattern.permute.xlu0 0
    %1997 = vperm.xlu0 %1996, %v1543
    %v1998 = vpop.permute.xlu0 %1997
    %v2000 = vmul.f32 %v1998, %v1994
    %v2001 = vadd.f32 %v1550, %v2000
    %v2002 = vmul.f32 %v1155, %v1544
    %v2003 = vadd.f32 %v2002, 1.0
    %v2004 = vrcp.pop %v2003
    %2006 = vset.pattern.permute.xlu0 0
    %2007 = vperm.xlu0 %2006, %v1155
    %v2008 = vpop.permute.xlu0 %2007
    %v2010 = vmul.f32 %v1163, %v2008
    %v2011 = vmul.f32 %v2010, %v1548
    %v2012 = vadd.f32 %v2011, %v1165
    %2014 = vset.pattern.permute.xlu0 0
    %2015 = vperm.xlu0 %2014, %v2004
    %v2016 = vpop.permute.xlu0 %2015
    %v2018 = vmul.f32 %v2012, %v2016
    %s2019 = scalar_lea.vmem %s0, 16
    %v2020 = vld [vmem:[%s2019] sm:$0xff]
    %s2021 = scalar_lea.vmem %s1, 16
    %v2022 = vld [vmem:[%s2021] sm:$0xff]
    %v2024 = vsel %vm321, %v2020, 0
    %2026 = vmatprep.subr.mxu0 0.0
    %2027 = vmatpush1.msra.mxu0 %v211
    %2028 = vmatprep.subr.mxu0 0.0
    %2029 = vmatpush1.msra.mxu0 %v212
    %2030 = vmatprep.subr.mxu0 0.0
    %2031 = vmatpush1.msra.mxu0 %v213
    %2032 = vmatprep.subr.mxu0 0.0
    %2033 = vmatpush1.msra.mxu0 %v214
    %2034 = vmatprep.subr.mxu0 0.0
    %2035 = vmatpush1.msra.mxu0 0.0
    %2036 = vmatprep.subr.mxu0 0.0
    %2037 = vmatpush1.msra.mxu0 0.0
    %2038 = vmatprep.subr.mxu0 0.0
    %2039 = vmatpush1.msra.mxu0 0.0
    %2040 = vmatprep.subr.mxu0 0.0
    %2041 = vmatpush1.msra.mxu0 0.0
    %2042 = vmatprep.subr.mxu0 0.0
    %2043 = vmatpush1.msra.mxu0 0.0
    %2044 = vmatprep.subr.mxu0 0.0
    %2045 = vmatpush1.msra.mxu0 0.0
    %2046 = vmatprep.subr.mxu0 0.0
    %2047 = vmatpush1.msra.mxu0 0.0
    %2048 = vmatprep.subr.mxu0 0.0
    %2049 = vmatpush1.msra.mxu0 0.0
    %2050 = vmatprep.subr.mxu0 0.0
    %2051 = vmatpush1.msra.mxu0 0.0
    %2052 = vmatprep.subr.mxu0 0.0
    %2053 = vmatpush1.msra.mxu0 0.0
    %2054 = vmatprep.subr.mxu0 0.0
    %2055 = vmatpush1.msra.mxu0 0.0
    %2056 = vmatprep.subr.mxu0 0.0
    %2057 = vmatpush1.msra.mxu0 0.0
    %2058 = vmatprep.subr.mxu0 0.0
    %2059 = vmatpush1.msra.mxu0 0.0
    %2060 = vmatprep.subr.mxu0 0.0
    %2061 = vmatpush1.msra.mxu0 0.0
    %2062 = vmatprep.subr.mxu0 0.0
    %2063 = vmatpush1.msra.mxu0 0.0
    %2064 = vmatprep.subr.mxu0 0.0
    %2065 = vmatpush1.msra.mxu0 0.0
    %2066 = vmatprep.subr.mxu0 0.0
    %2067 = vmatpush1.msra.mxu0 0.0
    %2068 = vmatprep.subr.mxu0 0.0
    %2069 = vmatpush1.msra.mxu0 0.0
    %2070 = vmatprep.subr.mxu0 0.0
    %2071 = vmatpush1.msra.mxu0 0.0
    %2072 = vmatprep.subr.mxu0 0.0
    %2073 = vmatpush1.msra.mxu0 0.0
    %2074 = vmatprep.subr.mxu0 0.0
    %2075 = vmatpush1.msra.mxu0 0.0
    %2076 = vmatprep.subr.mxu0 0.0
    %2077 = vmatpush1.msra.mxu0 0.0
    %2078 = vmatprep.subr.mxu0 0.0
    %2079 = vmatpush1.msra.mxu0 0.0
    %2080 = vmatprep.subr.mxu0 0.0
    %2081 = vmatpush1.msra.mxu0 0.0
    %2082 = vmatprep.subr.mxu0 0.0
    %2083 = vmatpush1.msra.mxu0 0.0
    %2084 = vmatprep.subr.mxu0 0.0
    %2085 = vmatpush1.msra.mxu0 0.0
    %2086 = vmatprep.subr.mxu0 0.0
    %2087 = vmatpush1.msra.mxu0 0.0
    %2088 = vmatprep.subr.mxu0 0.0
    %2089 = vmatpush1.msra.mxu0 0.0
    %2090 = vmatprep.mubr.f32.mxu0 0.0
    %2091 = vmatmul.mubr.f32.gmra.mrb[0].mxu0 %v2024
    %v2092 = vpop.f32.mrb[0].mxu0
    %v2093 = vadd.f32 0.0, %v2092
    %v2094 = vpop.f32.mrb[0].mxu0
    %2095 = vdwg.mxu0
    %v2097 = vsel %vm321, %v2018, 0
    %2099 = vmatprep.subr.mxu0 0.0
    %2100 = vmatpush1.msra.mxu0 %v207
    %2101 = vmatprep.subr.mxu0 0.0
    %2102 = vmatpush1.msra.mxu0 %v208
    %2103 = vmatprep.subr.mxu0 0.0
    %2104 = vmatpush1.msra.mxu0 %v209
    %2105 = vmatprep.subr.mxu0 0.0
    %2106 = vmatpush1.msra.mxu0 %v210
    %2107 = vmatprep.subr.mxu0 0.0
    %2108 = vmatpush1.msra.mxu0 0.0
    %2109 = vmatprep.subr.mxu0 0.0
    %2110 = vmatpush1.msra.mxu0 0.0
    %2111 = vmatprep.subr.mxu0 0.0
    %2112 = vmatpush1.msra.mxu0 0.0
    %2113 = vmatprep.subr.mxu0 0.0
    %2114 = vmatpush1.msra.mxu0 0.0
    %2115 = vmatprep.subr.mxu0 0.0
    %2116 = vmatpush1.msra.mxu0 0.0
    %2117 = vmatprep.subr.mxu0 0.0
    %2118 = vmatpush1.msra.mxu0 0.0
    %2119 = vmatprep.subr.mxu0 0.0
    %2120 = vmatpush1.msra.mxu0 0.0
    %2121 = vmatprep.subr.mxu0 0.0
    %2122 = vmatpush1.msra.mxu0 0.0
    %2123 = vmatprep.subr.mxu0 0.0
    %2124 = vmatpush1.msra.mxu0 0.0
    %2125 = vmatprep.subr.mxu0 0.0
    %2126 = vmatpush1.msra.mxu0 0.0
    %2127 = vmatprep.subr.mxu0 0.0
    %2128 = vmatpush1.msra.mxu0 0.0
    %2129 = vmatprep.subr.mxu0 0.0
    %2130 = vmatpush1.msra.mxu0 0.0
    %2131 = vmatprep.subr.mxu0 0.0
    %2132 = vmatpush1.msra.mxu0 0.0
    %2133 = vmatprep.subr.mxu0 0.0
    %2134 = vmatpush1.msra.mxu0 0.0
    %2135 = vmatprep.subr.mxu0 0.0
    %2136 = vmatpush1.msra.mxu0 0.0
    %2137 = vmatprep.subr.mxu0 0.0
    %2138 = vmatpush1.msra.mxu0 0.0
    %2139 = vmatprep.subr.mxu0 0.0
    %2140 = vmatpush1.msra.mxu0 0.0
    %2141 = vmatprep.subr.mxu0 0.0
    %2142 = vmatpush1.msra.mxu0 0.0
    %2143 = vmatprep.subr.mxu0 0.0
    %2144 = vmatpush1.msra.mxu0 0.0
    %2145 = vmatprep.subr.mxu0 0.0
    %2146 = vmatpush1.msra.mxu0 0.0
    %2147 = vmatprep.subr.mxu0 0.0
    %2148 = vmatpush1.msra.mxu0 0.0
    %2149 = vmatprep.subr.mxu0 0.0
    %2150 = vmatpush1.msra.mxu0 0.0
    %2151 = vmatprep.subr.mxu0 0.0
    %2152 = vmatpush1.msra.mxu0 0.0
    %2153 = vmatprep.subr.mxu0 0.0
    %2154 = vmatpush1.msra.mxu0 0.0
    %2155 = vmatprep.subr.mxu0 0.0
    %2156 = vmatpush1.msra.mxu0 0.0
    %2157 = vmatprep.subr.mxu0 0.0
    %2158 = vmatpush1.msra.mxu0 0.0
    %2159 = vmatprep.subr.mxu0 0.0
    %2160 = vmatpush1.msra.mxu0 0.0
    %2161 = vmatprep.subr.mxu0 0.0
    %2162 = vmatpush1.msra.mxu0 0.0
    %2163 = vmatprep.mubr.f32.mxu0 0.0
    %2164 = vmatmul.mubr.f32.gmra.mrb[0].mxu0 %v2097
    %v2165 = vpop.f32.mrb[0].mxu0
    %v2166 = vadd.f32 %v2093, %v2165
    %v2167 = vpop.f32.mrb[0].mxu0
    %2168 = vdwg.mxu0
    %v2169 = vadd.f32 %v2166, %v268
    %v2170 = vmax.f32 %v2169, 0.0
    %v2172 = vsel %vm470, %v2170, 0
    %2174 = vmatprep.subr.mxu0 0.0
    %2175 = vmatpush1.msra.mxu0 %v215
    %2176 = vmatprep.subr.mxu0 0.0
    %2177 = vmatpush1.msra.mxu0 %v216
    %2178 = vmatprep.subr.mxu0 0.0
    %2179 = vmatpush1.msra.mxu0 %v217
    %2180 = vmatprep.subr.mxu0 0.0
    %2181 = vmatpush1.msra.mxu0 %v218
    %2182 = vmatprep.subr.mxu0 0.0
    %2183 = vmatpush1.msra.mxu0 %v219
    %2184 = vmatprep.subr.mxu0 0.0
    %2185 = vmatpush1.msra.mxu0 %v220
    %2186 = vmatprep.subr.mxu0 0.0
    %2187 = vmatpush1.msra.mxu0 %v221
    %2188 = vmatprep.subr.mxu0 0.0
    %2189 = vmatpush1.msra.mxu0 %v222
    %2190 = vmatprep.subr.mxu0 0.0
    %2191 = vmatpush1.msra.mxu0 0.0
    %2192 = vmatprep.subr.mxu0 0.0
    %2193 = vmatpush1.msra.mxu0 0.0
    %2194 = vmatprep.subr.mxu0 0.0
    %2195 = vmatpush1.msra.mxu0 0.0
    %2196 = vmatprep.subr.mxu0 0.0
    %2197 = vmatpush1.msra.mxu0 0.0
    %2198 = vmatprep.subr.mxu0 0.0
    %2199 = vmatpush1.msra.mxu0 0.0
    %2200 = vmatprep.subr.mxu0 0.0
    %2201 = vmatpush1.msra.mxu0 0.0
    %2202 = vmatprep.subr.mxu0 0.0
    %2203 = vmatpush1.msra.mxu0 0.0
    %2204 = vmatprep.subr.mxu0 0.0
    %2205 = vmatpush1.msra.mxu0 0.0
    %2206 = vmatprep.subr.mxu0 0.0
    %2207 = vmatpush1.msra.mxu0 0.0
    %2208 = vmatprep.subr.mxu0 0.0
    %2209 = vmatpush1.msra.mxu0 0.0
    %2210 = vmatprep.subr.mxu0 0.0
    %2211 = vmatpush1.msra.mxu0 0.0
    %2212 = vmatprep.subr.mxu0 0.0
    %2213 = vmatpush1.msra.mxu0 0.0
    %2214 = vmatprep.subr.mxu0 0.0
    %2215 = vmatpush1.msra.mxu0 0.0
    %2216 = vmatprep.subr.mxu0 0.0
    %2217 = vmatpush1.msra.mxu0 0.0
    %2218 = vmatprep.subr.mxu0 0.0
    %2219 = vmatpush1.msra.mxu0 0.0
    %2220 = vmatprep.subr.mxu0 0.0
    %2221 = vmatpush1.msra.mxu0 0.0
    %2222 = vmatprep.subr.mxu0 0.0
    %2223 = vmatpush1.msra.mxu0 0.0
    %2224 = vmatprep.subr.mxu0 0.0
    %2225 = vmatpush1.msra.mxu0 0.0
    %2226 = vmatprep.subr.mxu0 0.0
    %2227 = vmatpush1.msra.mxu0 0.0
    %2228 = vmatprep.subr.mxu0 0.0
    %2229 = vmatpush1.msra.mxu0 0.0
    %2230 = vmatprep.subr.mxu0 0.0
    %2231 = vmatpush1.msra.mxu0 0.0
    %2232 = vmatprep.subr.mxu0 0.0
    %2233 = vmatpush1.msra.mxu0 0.0
    %2234 = vmatprep.subr.mxu0 0.0
    %2235 = vmatpush1.msra.mxu0 0.0
    %2236 = vmatprep.subr.mxu0 0.0
    %2237 = vmatpush1.msra.mxu0 0.0
    %2238 = vmatprep.mubr.f32.mxu0 0.0
    %2239 = vmatmul.mubr.f32.gmra.mrb[0].mxu0 %v2172
    %v2240 = vpop.f32.mrb[0].mxu0
    %v2241 = vadd.f32 %v275, %v2240
    %v2242 = vpop.f32.mrb[0].mxu0
    %2243 = vdwg.mxu0
    %v2244 = vmax.f32 %v2241, 0.0
    %v2246 = vsel %vm470, %v2244, 0
    %2248 = vmatprep.subr.mxu0 0.0
    %2249 = vmatpush1.msra.mxu0 %v223
    %2250 = vmatprep.subr.mxu0 0.0
    %2251 = vmatpush1.msra.mxu0 %v224
    %2252 = vmatprep.subr.mxu0 0.0
    %2253 = vmatpush1.msra.mxu0 %v225
    %2254 = vmatprep.subr.mxu0 0.0
    %2255 = vmatpush1.msra.mxu0 %v226
    %2256 = vmatprep.subr.mxu0 0.0
    %2257 = vmatpush1.msra.mxu0 %v227
    %2258 = vmatprep.subr.mxu0 0.0
    %2259 = vmatpush1.msra.mxu0 %v228
    %2260 = vmatprep.subr.mxu0 0.0
    %2261 = vmatpush1.msra.mxu0 %v229
    %2262 = vmatprep.subr.mxu0 0.0
    %2263 = vmatpush1.msra.mxu0 %v230
    %2264 = vmatprep.subr.mxu0 0.0
    %2265 = vmatpush1.msra.mxu0 0.0
    %2266 = vmatprep.subr.mxu0 0.0
    %2267 = vmatpush1.msra.mxu0 0.0
    %2268 = vmatprep.subr.mxu0 0.0
    %2269 = vmatpush1.msra.mxu0 0.0
    %2270 = vmatprep.subr.mxu0 0.0
    %2271 = vmatpush1.msra.mxu0 0.0
    %2272 = vmatprep.subr.mxu0 0.0
    %2273 = vmatpush1.msra.mxu0 0.0
    %2274 = vmatprep.subr.mxu0 0.0
    %2275 = vmatpush1.msra.mxu0 0.0
    %2276 = vmatprep.subr.mxu0 0.0
    %2277 = vmatpush1.msra.mxu0 0.0
    %2278 = vmatprep.subr.mxu0 0.0
    %2279 = vmatpush1.msra.mxu0 0.0
    %2280 = vmatprep.subr.mxu0 0.0
    %2281 = vmatpush1.msra.mxu0 0.0
    %2282 = vmatprep.subr.mxu0 0.0
    %2283 = vmatpush1.msra.mxu0 0.0
    %2284 = vmatprep.subr.mxu0 0.0
    %2285 = vmatpush1.msra.mxu0 0.0
    %2286 = vmatprep.subr.mxu0 0.0
    %2287 = vmatpush1.msra.mxu0 0.0
    %2288 = vmatprep.subr.mxu0 0.0
    %2289 = vmatpush1.msra.mxu0 0.0
    %2290 = vmatprep.subr.mxu0 0.0
    %2291 = vmatpush1.msra.mxu0 0.0
    %2292 = vmatprep.subr.mxu0 0.0
    %2293 = vmatpush1.msra.mxu0 0.0
    %2294 = vmatprep.subr.mxu0 0.0
    %2295 = vmatpush1.msra.mxu0 0.0
    %2296 = vmatprep.subr.mxu0 0.0
    %2297 = vmatpush1.msra.mxu0 0.0
    %2298 = vmatprep.subr.mxu0 0.0
    %2299 = vmatpush1.msra.mxu0 0.0
    %2300 = vmatprep.subr.mxu0 0.0
    %2301 = vmatpush1.msra.mxu0 0.0
    %2302 = vmatprep.subr.mxu0 0.0
    %2303 = vmatpush1.msra.mxu0 0.0
    %2304 = vmatprep.subr.mxu0 0.0
    %2305 = vmatpush1.msra.mxu0 0.0
    %2306 = vmatprep.subr.mxu0 0.0
    %2307 = vmatpush1.msra.mxu0 0.0
    %2308 = vmatprep.subr.mxu0 0.0
    %2309 = vmatpush1.msra.mxu0 0.0
    %2310 = vmatprep.subr.mxu0 0.0
    %2311 = vmatpush1.msra.mxu0 0.0
    %2312 = vmatprep.mubr.f32.mxu0 0.0
    %2313 = vmatmul.mubr.f32.gmra.mrb[0].mxu0 %v2246
    %v2314 = vpop.f32.mrb[0].mxu0
    %v2315 = vadd.f32 %v282, %v2314
    %v2316 = vpop.f32.mrb[0].mxu0
    %2317 = vdwg.mxu0
    %v2318 = vmax.f32 %v2315, 0.0
    %v2320 = vsel %vm470, %v2318, 0
    %2322 = vmatprep.subr.mxu0 0.0
    %2323 = vmatpush1.msra.mxu0 %v231
    %2324 = vmatprep.subr.mxu0 0.0
    %2325 = vmatpush1.msra.mxu0 %v232
    %2326 = vmatprep.subr.mxu0 0.0
    %2327 = vmatpush1.msra.mxu0 %v233
    %2328 = vmatprep.subr.mxu0 0.0
    %2329 = vmatpush1.msra.mxu0 %v234
    %2330 = vmatprep.subr.mxu0 0.0
    %2331 = vmatpush1.msra.mxu0 %v235
    %2332 = vmatprep.subr.mxu0 0.0
    %2333 = vmatpush1.msra.mxu0 %v236
    %2334 = vmatprep.subr.mxu0 0.0
    %2335 = vmatpush1.msra.mxu0 %v237
    %2336 = vmatprep.subr.mxu0 0.0
    %2337 = vmatpush1.msra.mxu0 %v238
    %2338 = vmatprep.subr.mxu0 0.0
    %2339 = vmatpush1.msra.mxu0 0.0
    %2340 = vmatprep.subr.mxu0 0.0
    %2341 = vmatpush1.msra.mxu0 0.0
    %2342 = vmatprep.subr.mxu0 0.0
    %2343 = vmatpush1.msra.mxu0 0.0
    %2344 = vmatprep.subr.mxu0 0.0
    %2345 = vmatpush1.msra.mxu0 0.0
    %2346 = vmatprep.subr.mxu0 0.0
    %2347 = vmatpush1.msra.mxu0 0.0
    %2348 = vmatprep.subr.mxu0 0.0
    %2349 = vmatpush1.msra.mxu0 0.0
    %2350 = vmatprep.subr.mxu0 0.0
    %2351 = vmatpush1.msra.mxu0 0.0
    %2352 = vmatprep.subr.mxu0 0.0
    %2353 = vmatpush1.msra.mxu0 0.0
    %2354 = vmatprep.subr.mxu0 0.0
    %2355 = vmatpush1.msra.mxu0 0.0
    %2356 = vmatprep.subr.mxu0 0.0
    %2357 = vmatpush1.msra.mxu0 0.0
    %2358 = vmatprep.subr.mxu0 0.0
    %2359 = vmatpush1.msra.mxu0 0.0
    %2360 = vmatprep.subr.mxu0 0.0
    %2361 = vmatpush1.msra.mxu0 0.0
    %2362 = vmatprep.subr.mxu0 0.0
    %2363 = vmatpush1.msra.mxu0 0.0
    %2364 = vmatprep.subr.mxu0 0.0
    %2365 = vmatpush1.msra.mxu0 0.0
    %2366 = vmatprep.subr.mxu0 0.0
    %2367 = vmatpush1.msra.mxu0 0.0
    %2368 = vmatprep.subr.mxu0 0.0
    %2369 = vmatpush1.msra.mxu0 0.0
    %2370 = vmatprep.subr.mxu0 0.0
    %2371 = vmatpush1.msra.mxu0 0.0
    %2372 = vmatprep.subr.mxu0 0.0
    %2373 = vmatpush1.msra.mxu0 0.0
    %2374 = vmatprep.subr.mxu0 0.0
    %2375 = vmatpush1.msra.mxu0 0.0
    %2376 = vmatprep.subr.mxu0 0.0
    %2377 = vmatpush1.msra.mxu0 0.0
    %2378 = vmatprep.subr.mxu0 0.0
    %2379 = vmatpush1.msra.mxu0 0.0
    %2380 = vmatprep.subr.mxu0 0.0
    %2381 = vmatpush1.msra.mxu0 0.0
    %2382 = vmatprep.subr.mxu0 0.0
    %2383 = vmatpush1.msra.mxu0 0.0
    %2384 = vmatprep.subr.mxu0 0.0
    %2385 = vmatpush1.msra.mxu0 0.0
    %2386 = vmatprep.mubr.f32.mxu0 0.0
    %2387 = vmatmul.mubr.f32.gmra.mrb[0].mxu0 %v2320
    %v2388 = vpop.f32.mrb[0].mxu0
    %v2389 = vadd.f32 %v289, %v2388
    %v2390 = vpop.f32.mrb[0].mxu0
    %2391 = vdwg.mxu0
    %v2392 = vadd.f32 %v2389, %v2022
    %v2393 = vxor.u32 %v2392, 2147483648
    %v2394 = vmul.f32 %v2393, 1.442695
    %v2395 = vpow.pop %v2394
    %v2396 = vadd.f32 %v2395, 1.0
    %v2397 = vrcp.pop %v2396
    %v2398 = vmul.f32 1.0, %v2397
    %v2399 = vsub.f32 1.0, %v2398
    %2401 = vset.pattern.permute.xlu0 0
    %2402 = vperm.xlu0 %2401, %v2399
    %v2403 = vpop.permute.xlu0 %2402
    %v2405 = vmul.f32 %v2001, %v2403
    %v2407 = vsel %vm321, %v2001, 0
    %2409 = vmatprep.subr.mxu0 0.0
    %2410 = vmatpush1.msra.mxu0 %v251
    %2411 = vmatprep.subr.mxu0 0.0
    %2412 = vmatpush1.msra.mxu0 %v252
    %2413 = vmatprep.subr.mxu0 0.0
    %2414 = vmatpush1.msra.mxu0 %v253
    %2415 = vmatprep.subr.mxu0 0.0
    %2416 = vmatpush1.msra.mxu0 %v254
    %2417 = vmatprep.subr.mxu0 0.0
    %2418 = vmatpush1.msra.mxu0 0.0
    %2419 = vmatprep.subr.mxu0 0.0
    %2420 = vmatpush1.msra.mxu0 0.0
    %2421 = vmatprep.subr.mxu0 0.0
    %2422 = vmatpush1.msra.mxu0 0.0
    %2423 = vmatprep.subr.mxu0 0.0
    %2424 = vmatpush1.msra.mxu0 0.0
    %2425 = vmatprep.subr.mxu0 0.0
    %2426 = vmatpush1.msra.mxu0 0.0
    %2427 = vmatprep.subr.mxu0 0.0
    %2428 = vmatpush1.msra.mxu0 0.0
    %2429 = vmatprep.subr.mxu0 0.0
    %2430 = vmatpush1.msra.mxu0 0.0
    %2431 = vmatprep.subr.mxu0 0.0
    %2432 = vmatpush1.msra.mxu0 0.0
    %2433 = vmatprep.subr.mxu0 0.0
    %2434 = vmatpush1.msra.mxu0 0.0
    %2435 = vmatprep.subr.mxu0 0.0
    %2436 = vmatpush1.msra.mxu0 0.0
    %2437 = vmatprep.subr.mxu0 0.0
    %2438 = vmatpush1.msra.mxu0 0.0
    %2439 = vmatprep.subr.mxu0 0.0
    %2440 = vmatpush1.msra.mxu0 0.0
    %2441 = vmatprep.subr.mxu0 0.0
    %2442 = vmatpush1.msra.mxu0 0.0
    %2443 = vmatprep.subr.mxu0 0.0
    %2444 = vmatpush1.msra.mxu0 0.0
    %2445 = vmatprep.subr.mxu0 0.0
    %2446 = vmatpush1.msra.mxu0 0.0
    %2447 = vmatprep.subr.mxu0 0.0
    %2448 = vmatpush1.msra.mxu0 0.0
    %2449 = vmatprep.subr.mxu0 0.0
    %2450 = vmatpush1.msra.mxu0 0.0
    %2451 = vmatprep.subr.mxu0 0.0
    %2452 = vmatpush1.msra.mxu0 0.0
    %2453 = vmatprep.subr.mxu0 0.0
    %2454 = vmatpush1.msra.mxu0 0.0
    %2455 = vmatprep.subr.mxu0 0.0
    %2456 = vmatpush1.msra.mxu0 0.0
    %2457 = vmatprep.subr.mxu0 0.0
    %2458 = vmatpush1.msra.mxu0 0.0
    %2459 = vmatprep.subr.mxu0 0.0
    %2460 = vmatpush1.msra.mxu0 0.0
    %2461 = vmatprep.subr.mxu0 0.0
    %2462 = vmatpush1.msra.mxu0 0.0
    %2463 = vmatprep.subr.mxu0 0.0
    %2464 = vmatpush1.msra.mxu0 0.0
    %2465 = vmatprep.subr.mxu0 0.0
    %2466 = vmatpush1.msra.mxu0 0.0
    %2467 = vmatprep.subr.mxu0 0.0
    %2468 = vmatpush1.msra.mxu0 0.0
    %2469 = vmatprep.subr.mxu0 0.0
    %2470 = vmatpush1.msra.mxu0 0.0
    %2471 = vmatprep.subr.mxu0 0.0
    %2472 = vmatpush1.msra.mxu0 0.0
    %2473 = vmatprep.mubr.f32.mxu0 0.0
    %2474 = vmatmul.mubr.f32.gmra.mrb[0].mxu0 %v2407
    %v2475 = vpop.f32.mrb[0].mxu0
    %v2476 = vadd.f32 0.0, %v2475
    %v2477 = vpop.f32.mrb[0].mxu0
    %2478 = vdwg.mxu0
    %2479 = vmatprep.subr.mxu0 0.0
    %2480 = vmatpush1.msra.mxu0 %v239
    %2481 = vmatprep.subr.mxu0 0.0
    %2482 = vmatpush1.msra.mxu0 %v240
    %2483 = vmatprep.subr.mxu0 0.0
    %2484 = vmatpush1.msra.mxu0 %v241
    %2485 = vmatprep.subr.mxu0 0.0
    %2486 = vmatpush1.msra.mxu0 %v242
    %2487 = vmatprep.subr.mxu0 0.0
    %2488 = vmatpush1.msra.mxu0 0.0
    %2489 = vmatprep.subr.mxu0 0.0
    %2490 = vmatpush1.msra.mxu0 0.0
    %2491 = vmatprep.subr.mxu0 0.0
    %2492 = vmatpush1.msra.mxu0 0.0
    %2493 = vmatprep.subr.mxu0 0.0
    %2494 = vmatpush1.msra.mxu0 0.0
    %2495 = vmatprep.subr.mxu0 0.0
    %2496 = vmatpush1.msra.mxu0 0.0
    %2497 = vmatprep.subr.mxu0 0.0
    %2498 = vmatpush1.msra.mxu0 0.0
    %2499 = vmatprep.subr.mxu0 0.0
    %2500 = vmatpush1.msra.mxu0 0.0
    %2501 = vmatprep.subr.mxu0 0.0
    %2502 = vmatpush1.msra.mxu0 0.0
    %2503 = vmatprep.subr.mxu0 0.0
    %2504 = vmatpush1.msra.mxu0 0.0
    %2505 = vmatprep.subr.mxu0 0.0
    %2506 = vmatpush1.msra.mxu0 0.0
    %2507 = vmatprep.subr.mxu0 0.0
    %2508 = vmatpush1.msra.mxu0 0.0
    %2509 = vmatprep.subr.mxu0 0.0
    %2510 = vmatpush1.msra.mxu0 0.0
    %2511 = vmatprep.subr.mxu0 0.0
    %2512 = vmatpush1.msra.mxu0 0.0
    %2513 = vmatprep.subr.mxu0 0.0
    %2514 = vmatpush1.msra.mxu0 0.0
    %2515 = vmatprep.subr.mxu0 0.0
    %2516 = vmatpush1.msra.mxu0 0.0
    %2517 = vmatprep.subr.mxu0 0.0
    %2518 = vmatpush1.msra.mxu0 0.0
    %2519 = vmatprep.subr.mxu0 0.0
    %2520 = vmatpush1.msra.mxu0 0.0
    %2521 = vmatprep.subr.mxu0 0.0
    %2522 = vmatpush1.msra.mxu0 0.0
    %2523 = vmatprep.subr.mxu0 0.0
    %2524 = vmatpush1.msra.mxu0 0.0
    %2525 = vmatprep.subr.mxu0 0.0
    %2526 = vmatpush1.msra.mxu0 0.0
    %2527 = vmatprep.subr.mxu0 0.0
    %2528 = vmatpush1.msra.mxu0 0.0
    %2529 = vmatprep.subr.mxu0 0.0
    %2530 = vmatpush1.msra.mxu0 0.0
    %2531 = vmatprep.subr.mxu0 0.0
    %2532 = vmatpush1.msra.mxu0 0.0
    %2533 = vmatprep.subr.mxu0 0.0
    %2534 = vmatpush1.msra.mxu0 0.0
    %2535 = vmatprep.subr.mxu0 0.0
    %2536 = vmatpush1.msra.mxu0 0.0
    %2537 = vmatprep.subr.mxu0 0.0
    %2538 = vmatpush1.msra.mxu0 0.0
    %2539 = vmatprep.subr.mxu0 0.0
    %2540 = vmatpush1.msra.mxu0 0.0
    %2541 = vmatprep.subr.mxu0 0.0
    %2542 = vmatpush1.msra.mxu0 0.0
    %2543 = vmatprep.mubr.f32.mxu0 0.0
    %2544 = vmatmul.mubr.f32.gmra.mrb[0].mxu0 %v2097
    %v2545 = vpop.f32.mrb[0].mxu0
    %v2546 = vadd.f32 %v2476, %v2545
    %v2547 = vpop.f32.mrb[0].mxu0
    %2548 = vdwg.mxu0
    %v2549 = vadd.f32 %v2546, %v296
    %v2550 = vxor.u32 %v2549, 2147483648
    %v2551 = vmul.f32 %v2550, 1.442695
    %v2552 = vpow.pop %v2551
    %v2553 = vadd.f32 %v2552, 1.0
    %v2554 = vrcp.pop %v2553
    %v2555 = vmul.f32 1.0, %v2554
    %2556 = vmatprep.subr.mxu0 0.0
    %2557 = vmatpush1.msra.mxu0 %v255
    %2558 = vmatprep.subr.mxu0 0.0
    %2559 = vmatpush1.msra.mxu0 %v256
    %2560 = vmatprep.subr.mxu0 0.0
    %2561 = vmatpush1.msra.mxu0 %v257
    %2562 = vmatprep.subr.mxu0 0.0
    %2563 = vmatpush1.msra.mxu0 %v258
    %2564 = vmatprep.subr.mxu0 0.0
    %2565 = vmatpush1.msra.mxu0 0.0
    %2566 = vmatprep.subr.mxu0 0.0
    %2567 = vmatpush1.msra.mxu0 0.0
    %2568 = vmatprep.subr.mxu0 0.0
    %2569 = vmatpush1.msra.mxu0 0.0
    %2570 = vmatprep.subr.mxu0 0.0
    %2571 = vmatpush1.msra.mxu0 0.0
    %2572 = vmatprep.subr.mxu0 0.0
    %2573 = vmatpush1.msra.mxu0 0.0
    %2574 = vmatprep.subr.mxu0 0.0
    %2575 = vmatpush1.msra.mxu0 0.0
    %2576 = vmatprep.subr.mxu0 0.0
    %2577 = vmatpush1.msra.mxu0 0.0
    %2578 = vmatprep.subr.mxu0 0.0
    %2579 = vmatpush1.msra.mxu0 0.0
    %2580 = vmatprep.subr.mxu0 0.0
    %2581 = vmatpush1.msra.mxu0 0.0
    %2582 = vmatprep.subr.mxu0 0.0
    %2583 = vmatpush1.msra.mxu0 0.0
    %2584 = vmatprep.subr.mxu0 0.0
    %2585 = vmatpush1.msra.mxu0 0.0
    %2586 = vmatprep.subr.mxu0 0.0
    %2587 = vmatpush1.msra.mxu0 0.0
    %2588 = vmatprep.subr.mxu0 0.0
    %2589 = vmatpush1.msra.mxu0 0.0
    %2590 = vmatprep.subr.mxu0 0.0
    %2591 = vmatpush1.msra.mxu0 0.0
    %2592 = vmatprep.subr.mxu0 0.0
    %2593 = vmatpush1.msra.mxu0 0.0
    %2594 = vmatprep.subr.mxu0 0.0
    %2595 = vmatpush1.msra.mxu0 0.0
    %2596 = vmatprep.subr.mxu0 0.0
    %2597 = vmatpush1.msra.mxu0 0.0
    %2598 = vmatprep.subr.mxu0 0.0
    %2599 = vmatpush1.msra.mxu0 0.0
    %2600 = vmatprep.subr.mxu0 0.0
    %2601 = vmatpush1.msra.mxu0 0.0
    %2602 = vmatprep.subr.mxu0 0.0
    %2603 = vmatpush1.msra.mxu0 0.0
    %2604 = vmatprep.subr.mxu0 0.0
    %2605 = vmatpush1.msra.mxu0 0.0
    %2606 = vmatprep.subr.mxu0 0.0
    %2607 = vmatpush1.msra.mxu0 0.0
    %2608 = vmatprep.subr.mxu0 0.0
    %2609 = vmatpush1.msra.mxu0 0.0
    %2610 = vmatprep.subr.mxu0 0.0
    %2611 = vmatpush1.msra.mxu0 0.0
    %2612 = vmatprep.subr.mxu0 0.0
    %2613 = vmatpush1.msra.mxu0 0.0
    %2614 = vmatprep.subr.mxu0 0.0
    %2615 = vmatpush1.msra.mxu0 0.0
    %2616 = vmatprep.subr.mxu0 0.0
    %2617 = vmatpush1.msra.mxu0 0.0
    %2618 = vmatprep.subr.mxu0 0.0
    %2619 = vmatpush1.msra.mxu0 0.0
    %2620 = vmatprep.mubr.f32.mxu0 0.0
    %2621 = vmatmul.mubr.f32.gmra.mrb[0].mxu0 %v2407
    %v2622 = vpop.f32.mrb[0].mxu0
    %v2623 = vadd.f32 0.0, %v2622
    %v2624 = vpop.f32.mrb[0].mxu0
    %2625 = vdwg.mxu0
    %2626 = vmatprep.subr.mxu0 0.0
    %2627 = vmatpush1.msra.mxu0 %v243
    %2628 = vmatprep.subr.mxu0 0.0
    %2629 = vmatpush1.msra.mxu0 %v244
    %2630 = vmatprep.subr.mxu0 0.0
    %2631 = vmatpush1.msra.mxu0 %v245
    %2632 = vmatprep.subr.mxu0 0.0
    %2633 = vmatpush1.msra.mxu0 %v246
    %2634 = vmatprep.subr.mxu0 0.0
    %2635 = vmatpush1.msra.mxu0 0.0
    %2636 = vmatprep.subr.mxu0 0.0
    %2637 = vmatpush1.msra.mxu0 0.0
    %2638 = vmatprep.subr.mxu0 0.0
    %2639 = vmatpush1.msra.mxu0 0.0
    %2640 = vmatprep.subr.mxu0 0.0
    %2641 = vmatpush1.msra.mxu0 0.0
    %2642 = vmatprep.subr.mxu0 0.0
    %2643 = vmatpush1.msra.mxu0 0.0
    %2644 = vmatprep.subr.mxu0 0.0
    %2645 = vmatpush1.msra.mxu0 0.0
    %2646 = vmatprep.subr.mxu0 0.0
    %2647 = vmatpush1.msra.mxu0 0.0
    %2648 = vmatprep.subr.mxu0 0.0
    %2649 = vmatpush1.msra.mxu0 0.0
    %2650 = vmatprep.subr.mxu0 0.0
    %2651 = vmatpush1.msra.mxu0 0.0
    %2652 = vmatprep.subr.mxu0 0.0
    %2653 = vmatpush1.msra.mxu0 0.0
    %2654 = vmatprep.subr.mxu0 0.0
    %2655 = vmatpush1.msra.mxu0 0.0
    %2656 = vmatprep.subr.mxu0 0.0
    %2657 = vmatpush1.msra.mxu0 0.0
    %2658 = vmatprep.subr.mxu0 0.0
    %2659 = vmatpush1.msra.mxu0 0.0
    %2660 = vmatprep.subr.mxu0 0.0
    %2661 = vmatpush1.msra.mxu0 0.0
    %2662 = vmatprep.subr.mxu0 0.0
    %2663 = vmatpush1.msra.mxu0 0.0
    %2664 = vmatprep.subr.mxu0 0.0
    %2665 = vmatpush1.msra.mxu0 0.0
    %2666 = vmatprep.subr.mxu0 0.0
    %2667 = vmatpush1.msra.mxu0 0.0
    %2668 = vmatprep.subr.mxu0 0.0
    %2669 = vmatpush1.msra.mxu0 0.0
    %2670 = vmatprep.subr.mxu0 0.0
    %2671 = vmatpush1.msra.mxu0 0.0
    %2672 = vmatprep.subr.mxu0 0.0
    %2673 = vmatpush1.msra.mxu0 0.0
    %2674 = vmatprep.subr.mxu0 0.0
    %2675 = vmatpush1.msra.mxu0 0.0
    %2676 = vmatprep.subr.mxu0 0.0
    %2677 = vmatpush1.msra.mxu0 0.0
    %2678 = vmatprep.subr.mxu0 0.0
    %2679 = vmatpush1.msra.mxu0 0.0
    %2680 = vmatprep.subr.mxu0 0.0
    %2681 = vmatpush1.msra.mxu0 0.0
    %2682 = vmatprep.subr.mxu0 0.0
    %2683 = vmatpush1.msra.mxu0 0.0
    %2684 = vmatprep.subr.mxu0 0.0
    %2685 = vmatpush1.msra.mxu0 0.0
    %2686 = vmatprep.subr.mxu0 0.0
    %2687 = vmatpush1.msra.mxu0 0.0
    %2688 = vmatprep.subr.mxu0 0.0
    %2689 = vmatpush1.msra.mxu0 0.0
    %2690 = vmatprep.mubr.f32.mxu0 0.0
    %2691 = vmatmul.mubr.f32.gmra.mrb[0].mxu0 %v2097
    %v2692 = vpop.f32.mrb[0].mxu0
    %v2693 = vadd.f32 %v2623, %v2692
    %v2694 = vpop.f32.mrb[0].mxu0
    %2695 = vdwg.mxu0
    %v2696 = vadd.f32 %v2693, %v303
    %v2697 = vxor.u32 %v2696, 2147483648
    %v2698 = vmul.f32 %v2697, 1.442695
    %v2699 = vpow.pop %v2698
    %v2700 = vadd.f32 %v2699, 1.0
    %v2701 = vrcp.pop %v2700
    %v2702 = vmul.f32 1.0, %v2701
    %2703 = vmatprep.subr.mxu0 0.0
    %2704 = vmatpush1.msra.mxu0 %v259
    %2705 = vmatprep.subr.mxu0 0.0
    %2706 = vmatpush1.msra.mxu0 %v260
    %2707 = vmatprep.subr.mxu0 0.0
    %2708 = vmatpush1.msra.mxu0 %v261
    %2709 = vmatprep.subr.mxu0 0.0
    %2710 = vmatpush1.msra.mxu0 %v262
    %2711 = vmatprep.subr.mxu0 0.0
    %2712 = vmatpush1.msra.mxu0 0.0
    %2713 = vmatprep.subr.mxu0 0.0
    %2714 = vmatpush1.msra.mxu0 0.0
    %2715 = vmatprep.subr.mxu0 0.0
    %2716 = vmatpush1.msra.mxu0 0.0
    %2717 = vmatprep.subr.mxu0 0.0
    %2718 = vmatpush1.msra.mxu0 0.0
    %2719 = vmatprep.subr.mxu0 0.0
    %2720 = vmatpush1.msra.mxu0 0.0
    %2721 = vmatprep.subr.mxu0 0.0
    %2722 = vmatpush1.msra.mxu0 0.0
    %2723 = vmatprep.subr.mxu0 0.0
    %2724 = vmatpush1.msra.mxu0 0.0
    %2725 = vmatprep.subr.mxu0 0.0
    %2726 = vmatpush1.msra.mxu0 0.0
    %2727 = vmatprep.subr.mxu0 0.0
    %2728 = vmatpush1.msra.mxu0 0.0
    %2729 = vmatprep.subr.mxu0 0.0
    %2730 = vmatpush1.msra.mxu0 0.0
    %2731 = vmatprep.subr.mxu0 0.0
    %2732 = vmatpush1.msra.mxu0 0.0
    %2733 = vmatprep.subr.mxu0 0.0
    %2734 = vmatpush1.msra.mxu0 0.0
    %2735 = vmatprep.subr.mxu0 0.0
    %2736 = vmatpush1.msra.mxu0 0.0
    %2737 = vmatprep.subr.mxu0 0.0
    %2738 = vmatpush1.msra.mxu0 0.0
    %2739 = vmatprep.subr.mxu0 0.0
    %2740 = vmatpush1.msra.mxu0 0.0
    %2741 = vmatprep.subr.mxu0 0.0
    %2742 = vmatpush1.msra.mxu0 0.0
    %2743 = vmatprep.subr.mxu0 0.0
    %2744 = vmatpush1.msra.mxu0 0.0
    %2745 = vmatprep.subr.mxu0 0.0
    %2746 = vmatpush1.msra.mxu0 0.0
    %2747 = vmatprep.subr.mxu0 0.0
    %2748 = vmatpush1.msra.mxu0 0.0
    %2749 = vmatprep.subr.mxu0 0.0
    %2750 = vmatpush1.msra.mxu0 0.0
    %2751 = vmatprep.subr.mxu0 0.0
    %2752 = vmatpush1.msra.mxu0 0.0
    %2753 = vmatprep.subr.mxu0 0.0
    %2754 = vmatpush1.msra.mxu0 0.0
    %2755 = vmatprep.subr.mxu0 0.0
    %2756 = vmatpush1.msra.mxu0 0.0
    %2757 = vmatprep.subr.mxu0 0.0
    %2758 = vmatpush1.msra.mxu0 0.0
    %2759 = vmatprep.subr.mxu0 0.0
    %2760 = vmatpush1.msra.mxu0 0.0
    %2761 = vmatprep.subr.mxu0 0.0
    %2762 = vmatpush1.msra.mxu0 0.0
    %2763 = vmatprep.subr.mxu0 0.0
    %2764 = vmatpush1.msra.mxu0 0.0
    %2765 = vmatprep.subr.mxu0 0.0
    %2766 = vmatpush1.msra.mxu0 0.0
    %2767 = vmatprep.mubr.f32.mxu0 0.0
    %2768 = vmatmul.mubr.f32.gmra.mrb[0].mxu0 %v2407
    %v2769 = vpop.f32.mrb[0].mxu0
    %v2770 = vadd.f32 %v317, %v2769
    %v2771 = vpop.f32.mrb[0].mxu0
    %2772 = vdwg.mxu0
    %2773 = vmatprep.subr.mxu0 0.0
    %2774 = vmatpush1.msra.mxu0 %v247
    %2775 = vmatprep.subr.mxu0 0.0
    %2776 = vmatpush1.msra.mxu0 %v248
    %2777 = vmatprep.subr.mxu0 0.0
    %2778 = vmatpush1.msra.mxu0 %v249
    %2779 = vmatprep.subr.mxu0 0.0
    %2780 = vmatpush1.msra.mxu0 %v250
    %2781 = vmatprep.subr.mxu0 0.0
    %2782 = vmatpush1.msra.mxu0 0.0
    %2783 = vmatprep.subr.mxu0 0.0
    %2784 = vmatpush1.msra.mxu0 0.0
    %2785 = vmatprep.subr.mxu0 0.0
    %2786 = vmatpush1.msra.mxu0 0.0
    %2787 = vmatprep.subr.mxu0 0.0
    %2788 = vmatpush1.msra.mxu0 0.0
    %2789 = vmatprep.subr.mxu0 0.0
    %2790 = vmatpush1.msra.mxu0 0.0
    %2791 = vmatprep.subr.mxu0 0.0
    %2792 = vmatpush1.msra.mxu0 0.0
    %2793 = vmatprep.subr.mxu0 0.0
    %2794 = vmatpush1.msra.mxu0 0.0
    %2795 = vmatprep.subr.mxu0 0.0
    %2796 = vmatpush1.msra.mxu0 0.0
    %2797 = vmatprep.subr.mxu0 0.0
    %2798 = vmatpush1.msra.mxu0 0.0
    %2799 = vmatprep.subr.mxu0 0.0
    %2800 = vmatpush1.msra.mxu0 0.0
    %2801 = vmatprep.subr.mxu0 0.0
    %2802 = vmatpush1.msra.mxu0 0.0
    %2803 = vmatprep.subr.mxu0 0.0
    %2804 = vmatpush1.msra.mxu0 0.0
    %2805 = vmatprep.subr.mxu0 0.0
    %2806 = vmatpush1.msra.mxu0 0.0
    %2807 = vmatprep.subr.mxu0 0.0
    %2808 = vmatpush1.msra.mxu0 0.0
    %2809 = vmatprep.subr.mxu0 0.0
    %2810 = vmatpush1.msra.mxu0 0.0
    %2811 = vmatprep.subr.mxu0 0.0
    %2812 = vmatpush1.msra.mxu0 0.0
    %2813 = vmatprep.subr.mxu0 0.0
    %2814 = vmatpush1.msra.mxu0 0.0
    %2815 = vmatprep.subr.mxu0 0.0
    %2816 = vmatpush1.msra.mxu0 0.0
    %2817 = vmatprep.subr.mxu0 0.0
    %2818 = vmatpush1.msra.mxu0 0.0
    %2819 = vmatprep.subr.mxu0 0.0
    %2820 = vmatpush1.msra.mxu0 0.0
    %2821 = vmatprep.subr.mxu0 0.0
    %2822 = vmatpush1.msra.mxu0 0.0
    %2823 = vmatprep.subr.mxu0 0.0
    %2824 = vmatpush1.msra.mxu0 0.0
    %2825 = vmatprep.subr.mxu0 0.0
    %2826 = vmatpush1.msra.mxu0 0.0
    %2827 = vmatprep.subr.mxu0 0.0
    %2828 = vmatpush1.msra.mxu0 0.0
    %2829 = vmatprep.subr.mxu0 0.0
    %2830 = vmatpush1.msra.mxu0 0.0
    %2831 = vmatprep.subr.mxu0 0.0
    %2832 = vmatpush1.msra.mxu0 0.0
    %2833 = vmatprep.subr.mxu0 0.0
    %2834 = vmatpush1.msra.mxu0 0.0
    %2835 = vmatprep.subr.mxu0 0.0
    %2836 = vmatpush1.msra.mxu0 0.0
    %2837 = vmatprep.mubr.f32.mxu0 0.0
    %2838 = vmatmul.mubr.f32.gmra.mrb[0].mxu0 %v2097
    %v2839 = vpop.f32.mrb[0].mxu0
    %v2840 = vadd.f32 %v310, %v2839
    %v2841 = vpop.f32.mrb[0].mxu0
    %2842 = vdwg.mxu0
    %v2843 = vmul.f32 %v2555, %v2770
    %v2844 = vadd.f32 %v2840, %v2843
    %v2845 = vtanh.pop %v2844
    %v2846 = vsub.f32 1.0, %v2702
    %v2847 = vmul.f32 %v2846, %v2845
    %v2848 = vmul.f32 %v2702, %v2001
    %v2849 = vadd.f32 %v2847, %v2848
    %2851 = vset.pattern.permute.xlu0 0
    %2852 = vperm.xlu0 %2851, %v2398
    %v2853 = vpop.permute.xlu0 %2852
    %v2855 = vmul.f32 %v2853, %v2849
    %v2856 = vadd.f32 %v2405, %v2855
    %v2857 = vmul.f32 %v2003, %v2399
    %v2858 = vadd.f32 %v2857, 1.0
    %v2859 = vrcp.pop %v2858
    %2861 = vset.pattern.permute.xlu0 0
    %2862 = vperm.xlu0 %2861, %v2003
    %v2863 = vpop.permute.xlu0 %2862
    %v2865 = vmul.f32 %v2018, %v2863
    %v2866 = vmul.f32 %v2865, %v2403
    %v2867 = vadd.f32 %v2866, %v2020
    %2869 = vset.pattern.permute.xlu0 0
    %2870 = vperm.xlu0 %2869, %v2859
    %v2871 = vpop.permute.xlu0 %2870
    %v2873 = vmul.f32 %v2867, %v2871
    %s2874 = scalar_lea.vmem %s0, 24
    %v2875 = vld [vmem:[%s2874] sm:$0xff]
    %s2876 = scalar_lea.vmem %s1, 24
    %v2877 = vld [vmem:[%s2876] sm:$0xff]
    %v2879 = vsel %vm321, %v2875, 0
    %2881 = vmatprep.subr.mxu0 0.0
    %2882 = vmatpush1.msra.mxu0 %v211
    %2883 = vmatprep.subr.mxu0 0.0
    %2884 = vmatpush1.msra.mxu0 %v212
    %2885 = vmatprep.subr.mxu0 0.0
    %2886 = vmatpush1.msra.mxu0 %v213
    %2887 = vmatprep.subr.mxu0 0.0
    %2888 = vmatpush1.msra.mxu0 %v214
    %2889 = vmatprep.subr.mxu0 0.0
    %2890 = vmatpush1.msra.mxu0 0.0
    %2891 = vmatprep.subr.mxu0 0.0
    %2892 = vmatpush1.msra.mxu0 0.0
    %2893 = vmatprep.subr.mxu0 0.0
    %2894 = vmatpush1.msra.mxu0 0.0
    %2895 = vmatprep.subr.mxu0 0.0
    %2896 = vmatpush1.msra.mxu0 0.0
    %2897 = vmatprep.subr.mxu0 0.0
    %2898 = vmatpush1.msra.mxu0 0.0
    %2899 = vmatprep.subr.mxu0 0.0
    %2900 = vmatpush1.msra.mxu0 0.0
    %2901 = vmatprep.subr.mxu0 0.0
    %2902 = vmatpush1.msra.mxu0 0.0
    %2903 = vmatprep.subr.mxu0 0.0
    %2904 = vmatpush1.msra.mxu0 0.0
    %2905 = vmatprep.subr.mxu0 0.0
    %2906 = vmatpush1.msra.mxu0 0.0
    %2907 = vmatprep.subr.mxu0 0.0
    %2908 = vmatpush1.msra.mxu0 0.0
    %2909 = vmatprep.subr.mxu0 0.0
    %2910 = vmatpush1.msra.mxu0 0.0
    %2911 = vmatprep.subr.mxu0 0.0
    %2912 = vmatpush1.msra.mxu0 0.0
    %2913 = vmatprep.subr.mxu0 0.0
    %2914 = vmatpush1.msra.mxu0 0.0
    %2915 = vmatprep.subr.mxu0 0.0
    %2916 = vmatpush1.msra.mxu0 0.0
    %2917 = vmatprep.subr.mxu0 0.0
    %2918 = vmatpush1.msra.mxu0 0.0
    %2919 = vmatprep.subr.mxu0 0.0
    %2920 = vmatpush1.msra.mxu0 0.0
    %2921 = vmatprep.subr.mxu0 0.0
    %2922 = vmatpush1.msra.mxu0 0.0
    %2923 = vmatprep.subr.mxu0 0.0
    %2924 = vmatpush1.msra.mxu0 0.0
    %2925 = vmatprep.subr.mxu0 0.0
    %2926 = vmatpush1.msra.mxu0 0.0
    %2927 = vmatprep.subr.mxu0 0.0
    %2928 = vmatpush1.msra.mxu0 0.0
    %2929 = vmatprep.subr.mxu0 0.0
    %2930 = vmatpush1.msra.mxu0 0.0
    %2931 = vmatprep.subr.mxu0 0.0
    %2932 = vmatpush1.msra.mxu0 0.0
    %2933 = vmatprep.subr.mxu0 0.0
    %2934 = vmatpush1.msra.mxu0 0.0
    %2935 = vmatprep.subr.mxu0 0.0
    %2936 = vmatpush1.msra.mxu0 0.0
    %2937 = vmatprep.subr.mxu0 0.0
    %2938 = vmatpush1.msra.mxu0 0.0
    %2939 = vmatprep.subr.mxu0 0.0
    %2940 = vmatpush1.msra.mxu0 0.0
    %2941 = vmatprep.subr.mxu0 0.0
    %2942 = vmatpush1.msra.mxu0 0.0
    %2943 = vmatprep.subr.mxu0 0.0
    %2944 = vmatpush1.msra.mxu0 0.0
    %2945 = vmatprep.mubr.f32.mxu0 0.0
    %2946 = vmatmul.mubr.f32.gmra.mrb[0].mxu0 %v2879
    %v2947 = vpop.f32.mrb[0].mxu0
    %v2948 = vadd.f32 0.0, %v2947
    %v2949 = vpop.f32.mrb[0].mxu0
    %2950 = vdwg.mxu0
    %v2952 = vsel %vm321, %v2873, 0
    %2954 = vmatprep.subr.mxu0 0.0
    %2955 = vmatpush1.msra.mxu0 %v207
    %2956 = vmatprep.subr.mxu0 0.0
    %2957 = vmatpush1.msra.mxu0 %v208
    %2958 = vmatprep.subr.mxu0 0.0
    %2959 = vmatpush1.msra.mxu0 %v209
    %2960 = vmatprep.subr.mxu0 0.0
    %2961 = vmatpush1.msra.mxu0 %v210
    %2962 = vmatprep.subr.mxu0 0.0
    %2963 = vmatpush1.msra.mxu0 0.0
    %2964 = vmatprep.subr.mxu0 0.0
    %2965 = vmatpush1.msra.mxu0 0.0
    %2966 = vmatprep.subr.mxu0 0.0
    %2967 = vmatpush1.msra.mxu0 0.0
    %2968 = vmatprep.subr.mxu0 0.0
    %2969 = vmatpush1.msra.mxu0 0.0
    %2970 = vmatprep.subr.mxu0 0.0
    %2971 = vmatpush1.msra.mxu0 0.0
    %2972 = vmatprep.subr.mxu0 0.0
    %2973 = vmatpush1.msra.mxu0 0.0
    %2974 = vmatprep.subr.mxu0 0.0
    %2975 = vmatpush1.msra.mxu0 0.0
    %2976 = vmatprep.subr.mxu0 0.0
    %2977 = vmatpush1.msra.mxu0 0.0
    %2978 = vmatprep.subr.mxu0 0.0
    %2979 = vmatpush1.msra.mxu0 0.0
    %2980 = vmatprep.subr.mxu0 0.0
    %2981 = vmatpush1.msra.mxu0 0.0
    %2982 = vmatprep.subr.mxu0 0.0
    %2983 = vmatpush1.msra.mxu0 0.0
    %2984 = vmatprep.subr.mxu0 0.0
    %2985 = vmatpush1.msra.mxu0 0.0
    %2986 = vmatprep.subr.mxu0 0.0
    %2987 = vmatpush1.msra.mxu0 0.0
    %2988 = vmatprep.subr.mxu0 0.0
    %2989 = vmatpush1.msra.mxu0 0.0
    %2990 = vmatprep.subr.mxu0 0.0
    %2991 = vmatpush1.msra.mxu0 0.0
    %2992 = vmatprep.subr.mxu0 0.0
    %2993 = vmatpush1.msra.mxu0 0.0
    %2994 = vmatprep.subr.mxu0 0.0
    %2995 = vmatpush1.msra.mxu0 0.0
    %2996 = vmatprep.subr.mxu0 0.0
    %2997 = vmatpush1.msra.mxu0 0.0
    %2998 = vmatprep.subr.mxu0 0.0
    %2999 = vmatpush1.msra.mxu0 0.0
    %3000 = vmatprep.subr.mxu0 0.0
    %3001 = vmatpush1.msra.mxu0 0.0
    %3002 = vmatprep.subr.mxu0 0.0
    %3003 = vmatpush1.msra.mxu0 0.0
    %3004 = vmatprep.subr.mxu0 0.0
    %3005 = vmatpush1.msra.mxu0 0.0
    %3006 = vmatprep.subr.mxu0 0.0
    %3007 = vmatpush1.msra.mxu0 0.0
    %3008 = vmatprep.subr.mxu0 0.0
    %3009 = vmatpush1.msra.mxu0 0.0
    %3010 = vmatprep.subr.mxu0 0.0
    %3011 = vmatpush1.msra.mxu0 0.0
    %3012 = vmatprep.subr.mxu0 0.0
    %3013 = vmatpush1.msra.mxu0 0.0
    %3014 = vmatprep.subr.mxu0 0.0
    %3015 = vmatpush1.msra.mxu0 0.0
    %3016 = vmatprep.subr.mxu0 0.0
    %3017 = vmatpush1.msra.mxu0 0.0
    %3018 = vmatprep.mubr.f32.mxu0 0.0
    %3019 = vmatmul.mubr.f32.gmra.mrb[0].mxu0 %v2952
    %v3020 = vpop.f32.mrb[0].mxu0
    %v3021 = vadd.f32 %v2948, %v3020
    %v3022 = vpop.f32.mrb[0].mxu0
    %3023 = vdwg.mxu0
    %v3024 = vadd.f32 %v3021, %v268
    %v3025 = vmax.f32 %v3024, 0.0
    %v3027 = vsel %vm470, %v3025, 0
    %3029 = vmatprep.subr.mxu0 0.0
    %3030 = vmatpush1.msra.mxu0 %v215
    %3031 = vmatprep.subr.mxu0 0.0
    %3032 = vmatpush1.msra.mxu0 %v216
    %3033 = vmatprep.subr.mxu0 0.0
    %3034 = vmatpush1.msra.mxu0 %v217
    %3035 = vmatprep.subr.mxu0 0.0
    %3036 = vmatpush1.msra.mxu0 %v218
    %3037 = vmatprep.subr.mxu0 0.0
    %3038 = vmatpush1.msra.mxu0 %v219
    %3039 = vmatprep.subr.mxu0 0.0
    %3040 = vmatpush1.msra.mxu0 %v220
    %3041 = vmatprep.subr.mxu0 0.0
    %3042 = vmatpush1.msra.mxu0 %v221
    %3043 = vmatprep.subr.mxu0 0.0
    %3044 = vmatpush1.msra.mxu0 %v222
    %3045 = vmatprep.subr.mxu0 0.0
    %3046 = vmatpush1.msra.mxu0 0.0
    %3047 = vmatprep.subr.mxu0 0.0
    %3048 = vmatpush1.msra.mxu0 0.0
    %3049 = vmatprep.subr.mxu0 0.0
    %3050 = vmatpush1.msra.mxu0 0.0
    %3051 = vmatprep.subr.mxu0 0.0
    %3052 = vmatpush1.msra.mxu0 0.0
    %3053 = vmatprep.subr.mxu0 0.0
    %3054 = vmatpush1.msra.mxu0 0.0
    %3055 = vmatprep.subr.mxu0 0.0
    %3056 = vmatpush1.msra.mxu0 0.0
    %3057 = vmatprep.subr.mxu0 0.0
    %3058 = vmatpush1.msra.mxu0 0.0
    %3059 = vmatprep.subr.mxu0 0.0
    %3060 = vmatpush1.msra.mxu0 0.0
    %3061 = vmatprep.subr.mxu0 0.0
    %3062 = vmatpush1.msra.mxu0 0.0
    %3063 = vmatprep.subr.mxu0 0.0
    %3064 = vmatpush1.msra.mxu0 0.0
    %3065 = vmatprep.subr.mxu0 0.0
    %3066 = vmatpush1.msra.mxu0 0.0
    %3067 = vmatprep.subr.mxu0 0.0
    %3068 = vmatpush1.msra.mxu0 0.0
    %3069 = vmatprep.subr.mxu0 0.0
    %3070 = vmatpush1.msra.mxu0 0.0
    %3071 = vmatprep.subr.mxu0 0.0
    %3072 = vmatpush1.msra.mxu0 0.0
    %3073 = vmatprep.subr.mxu0 0.0
    %3074 = vmatpush1.msra.mxu0 0.0
    %3075 = vmatprep.subr.mxu0 0.0
    %3076 = vmatpush1.msra.mxu0 0.0
    %3077 = vmatprep.subr.mxu0 0.0
    %3078 = vmatpush1.msra.mxu0 0.0
    %3079 = vmatprep.subr.mxu0 0.0
    %3080 = vmatpush1.msra.mxu0 0.0
    %3081 = vmatprep.subr.mxu0 0.0
    %3082 = vmatpush1.msra.mxu0 0.0
    %3083 = vmatprep.subr.mxu0 0.0
    %3084 = vmatpush1.msra.mxu0 0.0
    %3085 = vmatprep.subr.mxu0 0.0
    %3086 = vmatpush1.msra.mxu0 0.0
    %3087 = vmatprep.subr.mxu0 0.0
    %3088 = vmatpush1.msra.mxu0 0.0
    %3089 = vmatprep.subr.mxu0 0.0
    %3090 = vmatpush1.msra.mxu0 0.0
    %3091 = vmatprep.subr.mxu0 0.0
    %3092 = vmatpush1.msra.mxu0 0.0
    %3093 = vmatprep.mubr.f32.mxu0 0.0
    %3094 = vmatmul.mubr.f32.gmra.mrb[0].mxu0 %v3027
    %v3095 = vpop.f32.mrb[0].mxu0
    %v3096 = vadd.f32 %v275, %v3095
    %v3097 = vpop.f32.mrb[0].mxu0
    %3098 = vdwg.mxu0
    %v3099 = vmax.f32 %v3096, 0.0
    %v3101 = vsel %vm470, %v3099, 0
    %3103 = vmatprep.subr.mxu0 0.0
    %3104 = vmatpush1.msra.mxu0 %v223
    %3105 = vmatprep.subr.mxu0 0.0
    %3106 = vmatpush1.msra.mxu0 %v224
    %3107 = vmatprep.subr.mxu0 0.0
    %3108 = vmatpush1.msra.mxu0 %v225
    %3109 = vmatprep.subr.mxu0 0.0
    %3110 = vmatpush1.msra.mxu0 %v226
    %3111 = vmatprep.subr.mxu0 0.0
    %3112 = vmatpush1.msra.mxu0 %v227
    %3113 = vmatprep.subr.mxu0 0.0
    %3114 = vmatpush1.msra.mxu0 %v228
    %3115 = vmatprep.subr.mxu0 0.0
    %3116 = vmatpush1.msra.mxu0 %v229
    %3117 = vmatprep.subr.mxu0 0.0
    %3118 = vmatpush1.msra.mxu0 %v230
    %3119 = vmatprep.subr.mxu0 0.0
    %3120 = vmatpush1.msra.mxu0 0.0
    %3121 = vmatprep.subr.mxu0 0.0
    %3122 = vmatpush1.msra.mxu0 0.0
    %3123 = vmatprep.subr.mxu0 0.0
    %3124 = vmatpush1.msra.mxu0 0.0
    %3125 = vmatprep.subr.mxu0 0.0
    %3126 = vmatpush1.msra.mxu0 0.0
    %3127 = vmatprep.subr.mxu0 0.0
    %3128 = vmatpush1.msra.mxu0 0.0
    %3129 = vmatprep.subr.mxu0 0.0
    %3130 = vmatpush1.msra.mxu0 0.0
    %3131 = vmatprep.subr.mxu0 0.0
    %3132 = vmatpush1.msra.mxu0 0.0
    %3133 = vmatprep.subr.mxu0 0.0
    %3134 = vmatpush1.msra.mxu0 0.0
    %3135 = vmatprep.subr.mxu0 0.0
    %3136 = vmatpush1.msra.mxu0 0.0
    %3137 = vmatprep.subr.mxu0 0.0
    %3138 = vmatpush1.msra.mxu0 0.0
    %3139 = vmatprep.subr.mxu0 0.0
    %3140 = vmatpush1.msra.mxu0 0.0
    %3141 = vmatprep.subr.mxu0 0.0
    %3142 = vmatpush1.msra.mxu0 0.0
    %3143 = vmatprep.subr.mxu0 0.0
    %3144 = vmatpush1.msra.mxu0 0.0
    %3145 = vmatprep.subr.mxu0 0.0
    %3146 = vmatpush1.msra.mxu0 0.0
    %3147 = vmatprep.subr.mxu0 0.0
    %3148 = vmatpush1.msra.mxu0 0.0
    %3149 = vmatprep.subr.mxu0 0.0
    %3150 = vmatpush1.msra.mxu0 0.0
    %3151 = vmatprep.subr.mxu0 0.0
    %3152 = vmatpush1.msra.mxu0 0.0
    %3153 = vmatprep.subr.mxu0 0.0
    %3154 = vmatpush1.msra.mxu0 0.0
    %3155 = vmatprep.subr.mxu0 0.0
    %3156 = vmatpush1.msra.mxu0 0.0
    %3157 = vmatprep.subr.mxu0 0.0
    %3158 = vmatpush1.msra.mxu0 0.0
    %3159 = vmatprep.subr.mxu0 0.0
    %3160 = vmatpush1.msra.mxu0 0.0
    %3161 = vmatprep.subr.mxu0 0.0
    %3162 = vmatpush1.msra.mxu0 0.0
    %3163 = vmatprep.subr.mxu0 0.0
    %3164 = vmatpush1.msra.mxu0 0.0
    %3165 = vmatprep.subr.mxu0 0.0
    %3166 = vmatpush1.msra.mxu0 0.0
    %3167 = vmatprep.mubr.f32.mxu0 0.0
    %3168 = vmatmul.mubr.f32.gmra.mrb[0].mxu0 %v3101
    %v3169 = vpop.f32.mrb[0].mxu0
    %v3170 = vadd.f32 %v282, %v3169
    %v3171 = vpop.f32.mrb[0].mxu0
    %3172 = vdwg.mxu0
    %v3173 = vmax.f32 %v3170, 0.0
    %v3175 = vsel %vm470, %v3173, 0
    %3177 = vmatprep.subr.mxu0 0.0
    %3178 = vmatpush1.msra.mxu0 %v231
    %3179 = vmatprep.subr.mxu0 0.0
    %3180 = vmatpush1.msra.mxu0 %v232
    %3181 = vmatprep.subr.mxu0 0.0
    %3182 = vmatpush1.msra.mxu0 %v233
    %3183 = vmatprep.subr.mxu0 0.0
    %3184 = vmatpush1.msra.mxu0 %v234
    %3185 = vmatprep.subr.mxu0 0.0
    %3186 = vmatpush1.msra.mxu0 %v235
    %3187 = vmatprep.subr.mxu0 0.0
    %3188 = vmatpush1.msra.mxu0 %v236
    %3189 = vmatprep.subr.mxu0 0.0
    %3190 = vmatpush1.msra.mxu0 %v237
    %3191 = vmatprep.subr.mxu0 0.0
    %3192 = vmatpush1.msra.mxu0 %v238
    %3193 = vmatprep.subr.mxu0 0.0
    %3194 = vmatpush1.msra.mxu0 0.0
    %3195 = vmatprep.subr.mxu0 0.0
    %3196 = vmatpush1.msra.mxu0 0.0
    %3197 = vmatprep.subr.mxu0 0.0
    %3198 = vmatpush1.msra.mxu0 0.0
    %3199 = vmatprep.subr.mxu0 0.0
    %3200 = vmatpush1.msra.mxu0 0.0
    %3201 = vmatprep.subr.mxu0 0.0
    %3202 = vmatpush1.msra.mxu0 0.0
    %3203 = vmatprep.subr.mxu0 0.0
    %3204 = vmatpush1.msra.mxu0 0.0
    %3205 = vmatprep.subr.mxu0 0.0
    %3206 = vmatpush1.msra.mxu0 0.0
    %3207 = vmatprep.subr.mxu0 0.0
    %3208 = vmatpush1.msra.mxu0 0.0
    %3209 = vmatprep.subr.mxu0 0.0
    %3210 = vmatpush1.msra.mxu0 0.0
    %3211 = vmatprep.subr.mxu0 0.0
    %3212 = vmatpush1.msra.mxu0 0.0
    %3213 = vmatprep.subr.mxu0 0.0
    %3214 = vmatpush1.msra.mxu0 0.0
    %3215 = vmatprep.subr.mxu0 0.0
    %3216 = vmatpush1.msra.mxu0 0.0
    %3217 = vmatprep.subr.mxu0 0.0
    %3218 = vmatpush1.msra.mxu0 0.0
    %3219 = vmatprep.subr.mxu0 0.0
    %3220 = vmatpush1.msra.mxu0 0.0
    %3221 = vmatprep.subr.mxu0 0.0
    %3222 = vmatpush1.msra.mxu0 0.0
    %3223 = vmatprep.subr.mxu0 0.0
    %3224 = vmatpush1.msra.mxu0 0.0
    %3225 = vmatprep.subr.mxu0 0.0
    %3226 = vmatpush1.msra.mxu0 0.0
    %3227 = vmatprep.subr.mxu0 0.0
    %3228 = vmatpush1.msra.mxu0 0.0
    %3229 = vmatprep.subr.mxu0 0.0
    %3230 = vmatpush1.msra.mxu0 0.0
    %3231 = vmatprep.subr.mxu0 0.0
    %3232 = vmatpush1.msra.mxu0 0.0
    %3233 = vmatprep.subr.mxu0 0.0
    %3234 = vmatpush1.msra.mxu0 0.0
    %3235 = vmatprep.subr.mxu0 0.0
    %3236 = vmatpush1.msra.mxu0 0.0
    %3237 = vmatprep.subr.mxu0 0.0
    %3238 = vmatpush1.msra.mxu0 0.0
    %3239 = vmatprep.subr.mxu0 0.0
    %3240 = vmatpush1.msra.mxu0 0.0
    %3241 = vmatprep.mubr.f32.mxu0 0.0
    %3242 = vmatmul.mubr.f32.gmra.mrb[0].mxu0 %v3175
    %v3243 = vpop.f32.mrb[0].mxu0
    %v3244 = vadd.f32 %v289, %v3243
    %v3245 = vpop.f32.mrb[0].mxu0
    %3246 = vdwg.mxu0
    %v3247 = vadd.f32 %v3244, %v2877
    %v3248 = vxor.u32 %v3247, 2147483648
    %v3249 = vmul.f32 %v3248, 1.442695
    %v3250 = vpow.pop %v3249
    %v3251 = vadd.f32 %v3250, 1.0
    %v3252 = vrcp.pop %v3251
    %v3253 = vmul.f32 1.0, %v3252
    %v3254 = vsub.f32 1.0, %v3253
    %3256 = vset.pattern.permute.xlu0 0
    %3257 = vperm.xlu0 %3256, %v3254
    %v3258 = vpop.permute.xlu0 %3257
    %v3260 = vmul.f32 %v2856, %v3258
    %v3262 = vsel %vm321, %v2856, 0
    %3264 = vmatprep.subr.mxu0 0.0
    %3265 = vmatpush1.msra.mxu0 %v251
    %3266 = vmatprep.subr.mxu0 0.0
    %3267 = vmatpush1.msra.mxu0 %v252
    %3268 = vmatprep.subr.mxu0 0.0
    %3269 = vmatpush1.msra.mxu0 %v253
    %3270 = vmatprep.subr.mxu0 0.0
    %3271 = vmatpush1.msra.mxu0 %v254
    %3272 = vmatprep.subr.mxu0 0.0
    %3273 = vmatpush1.msra.mxu0 0.0
    %3274 = vmatprep.subr.mxu0 0.0
    %3275 = vmatpush1.msra.mxu0 0.0
    %3276 = vmatprep.subr.mxu0 0.0
    %3277 = vmatpush1.msra.mxu0 0.0
    %3278 = vmatprep.subr.mxu0 0.0
    %3279 = vmatpush1.msra.mxu0 0.0
    %3280 = vmatprep.subr.mxu0 0.0
    %3281 = vmatpush1.msra.mxu0 0.0
    %3282 = vmatprep.subr.mxu0 0.0
    %3283 = vmatpush1.msra.mxu0 0.0
    %3284 = vmatprep.subr.mxu0 0.0
    %3285 = vmatpush1.msra.mxu0 0.0
    %3286 = vmatprep.subr.mxu0 0.0
    %3287 = vmatpush1.msra.mxu0 0.0
    %3288 = vmatprep.subr.mxu0 0.0
    %3289 = vmatpush1.msra.mxu0 0.0
    %3290 = vmatprep.subr.mxu0 0.0
    %3291 = vmatpush1.msra.mxu0 0.0
    %3292 = vmatprep.subr.mxu0 0.0
    %3293 = vmatpush1.msra.mxu0 0.0
    %3294 = vmatprep.subr.mxu0 0.0
    %3295 = vmatpush1.msra.mxu0 0.0
    %3296 = vmatprep.subr.mxu0 0.0
    %3297 = vmatpush1.msra.mxu0 0.0
    %3298 = vmatprep.subr.mxu0 0.0
    %3299 = vmatpush1.msra.mxu0 0.0
    %3300 = vmatprep.subr.mxu0 0.0
    %3301 = vmatpush1.msra.mxu0 0.0
    %3302 = vmatprep.subr.mxu0 0.0
    %3303 = vmatpush1.msra.mxu0 0.0
    %3304 = vmatprep.subr.mxu0 0.0
    %3305 = vmatpush1.msra.mxu0 0.0
    %3306 = vmatprep.subr.mxu0 0.0
    %3307 = vmatpush1.msra.mxu0 0.0
    %3308 = vmatprep.subr.mxu0 0.0
    %3309 = vmatpush1.msra.mxu0 0.0
    %3310 = vmatprep.subr.mxu0 0.0
    %3311 = vmatpush1.msra.mxu0 0.0
    %3312 = vmatprep.subr.mxu0 0.0
    %3313 = vmatpush1.msra.mxu0 0.0
    %3314 = vmatprep.subr.mxu0 0.0
    %3315 = vmatpush1.msra.mxu0 0.0
    %3316 = vmatprep.subr.mxu0 0.0
    %3317 = vmatpush1.msra.mxu0 0.0
    %3318 = vmatprep.subr.mxu0 0.0
    %3319 = vmatpush1.msra.mxu0 0.0
    %3320 = vmatprep.subr.mxu0 0.0
    %3321 = vmatpush1.msra.mxu0 0.0
    %3322 = vmatprep.subr.mxu0 0.0
    %3323 = vmatpush1.msra.mxu0 0.0
    %3324 = vmatprep.subr.mxu0 0.0
    %3325 = vmatpush1.msra.mxu0 0.0
    %3326 = vmatprep.subr.mxu0 0.0
    %3327 = vmatpush1.msra.mxu0 0.0
    %3328 = vmatprep.mubr.f32.mxu0 0.0
    %3329 = vmatmul.mubr.f32.gmra.mrb[0].mxu0 %v3262
    %v3330 = vpop.f32.mrb[0].mxu0
    %v3331 = vadd.f32 0.0, %v3330
    %v3332 = vpop.f32.mrb[0].mxu0
    %3333 = vdwg.mxu0
    %3334 = vmatprep.subr.mxu0 0.0
    %3335 = vmatpush1.msra.mxu0 %v239
    %3336 = vmatprep.subr.mxu0 0.0
    %3337 = vmatpush1.msra.mxu0 %v240
    %3338 = vmatprep.subr.mxu0 0.0
    %3339 = vmatpush1.msra.mxu0 %v241
    %3340 = vmatprep.subr.mxu0 0.0
    %3341 = vmatpush1.msra.mxu0 %v242
    %3342 = vmatprep.subr.mxu0 0.0
    %3343 = vmatpush1.msra.mxu0 0.0
    %3344 = vmatprep.subr.mxu0 0.0
    %3345 = vmatpush1.msra.mxu0 0.0
    %3346 = vmatprep.subr.mxu0 0.0
    %3347 = vmatpush1.msra.mxu0 0.0
    %3348 = vmatprep.subr.mxu0 0.0
    %3349 = vmatpush1.msra.mxu0 0.0
    %3350 = vmatprep.subr.mxu0 0.0
    %3351 = vmatpush1.msra.mxu0 0.0
    %3352 = vmatprep.subr.mxu0 0.0
    %3353 = vmatpush1.msra.mxu0 0.0
    %3354 = vmatprep.subr.mxu0 0.0
    %3355 = vmatpush1.msra.mxu0 0.0
    %3356 = vmatprep.subr.mxu0 0.0
    %3357 = vmatpush1.msra.mxu0 0.0
    %3358 = vmatprep.subr.mxu0 0.0
    %3359 = vmatpush1.msra.mxu0 0.0
    %3360 = vmatprep.subr.mxu0 0.0
    %3361 = vmatpush1.msra.mxu0 0.0
    %3362 = vmatprep.subr.mxu0 0.0
    %3363 = vmatpush1.msra.mxu0 0.0
    %3364 = vmatprep.subr.mxu0 0.0
    %3365 = vmatpush1.msra.mxu0 0.0
    %3366 = vmatprep.subr.mxu0 0.0
    %3367 = vmatpush1.msra.mxu0 0.0
    %3368 = vmatprep.subr.mxu0 0.0
    %3369 = vmatpush1.msra.mxu0 0.0
    %3370 = vmatprep.subr.mxu0 0.0
    %3371 = vmatpush1.msra.mxu0 0.0
    %3372 = vmatprep.subr.mxu0 0.0
    %3373 = vmatpush1.msra.mxu0 0.0
    %3374 = vmatprep.subr.mxu0 0.0
    %3375 = vmatpush1.msra.mxu0 0.0
    %3376 = vmatprep.subr.mxu0 0.0
    %3377 = vmatpush1.msra.mxu0 0.0
    %3378 = vmatprep.subr.mxu0 0.0
    %3379 = vmatpush1.msra.mxu0 0.0
    %3380 = vmatprep.subr.mxu0 0.0
    %3381 = vmatpush1.msra.mxu0 0.0
    %3382 = vmatprep.subr.mxu0 0.0
    %3383 = vmatpush1.msra.mxu0 0.0
    %3384 = vmatprep.subr.mxu0 0.0
    %3385 = vmatpush1.msra.mxu0 0.0
    %3386 = vmatprep.subr.mxu0 0.0
    %3387 = vmatpush1.msra.mxu0 0.0
    %3388 = vmatprep.subr.mxu0 0.0
    %3389 = vmatpush1.msra.mxu0 0.0
    %3390 = vmatprep.subr.mxu0 0.0
    %3391 = vmatpush1.msra.mxu0 0.0
    %3392 = vmatprep.subr.mxu0 0.0
    %3393 = vmatpush1.msra.mxu0 0.0
    %3394 = vmatprep.subr.mxu0 0.0
    %3395 = vmatpush1.msra.mxu0 0.0
    %3396 = vmatprep.subr.mxu0 0.0
    %3397 = vmatpush1.msra.mxu0 0.0
    %3398 = vmatprep.mubr.f32.mxu0 0.0
    %3399 = vmatmul.mubr.f32.gmra.mrb[0].mxu0 %v2952
    %v3400 = vpop.f32.mrb[0].mxu0
    %v3401 = vadd.f32 %v3331, %v3400
    %v3402 = vpop.f32.mrb[0].mxu0
    %3403 = vdwg.mxu0
    %v3404 = vadd.f32 %v3401, %v296
    %v3405 = vxor.u32 %v3404, 2147483648
    %v3406 = vmul.f32 %v3405, 1.442695
    %v3407 = vpow.pop %v3406
    %v3408 = vadd.f32 %v3407, 1.0
    %v3409 = vrcp.pop %v3408
    %v3410 = vmul.f32 1.0, %v3409
    %3411 = vmatprep.subr.mxu0 0.0
    %3412 = vmatpush1.msra.mxu0 %v255
    %3413 = vmatprep.subr.mxu0 0.0
    %3414 = vmatpush1.msra.mxu0 %v256
    %3415 = vmatprep.subr.mxu0 0.0
    %3416 = vmatpush1.msra.mxu0 %v257
    %3417 = vmatprep.subr.mxu0 0.0
    %3418 = vmatpush1.msra.mxu0 %v258
    %3419 = vmatprep.subr.mxu0 0.0
    %3420 = vmatpush1.msra.mxu0 0.0
    %3421 = vmatprep.subr.mxu0 0.0
    %3422 = vmatpush1.msra.mxu0 0.0
    %3423 = vmatprep.subr.mxu0 0.0
    %3424 = vmatpush1.msra.mxu0 0.0
    %3425 = vmatprep.subr.mxu0 0.0
    %3426 = vmatpush1.msra.mxu0 0.0
    %3427 = vmatprep.subr.mxu0 0.0
    %3428 = vmatpush1.msra.mxu0 0.0
    %3429 = vmatprep.subr.mxu0 0.0
    %3430 = vmatpush1.msra.mxu0 0.0
    %3431 = vmatprep.subr.mxu0 0.0
    %3432 = vmatpush1.msra.mxu0 0.0
    %3433 = vmatprep.subr.mxu0 0.0
    %3434 = vmatpush1.msra.mxu0 0.0
    %3435 = vmatprep.subr.mxu0 0.0
    %3436 = vmatpush1.msra.mxu0 0.0
    %3437 = vmatprep.subr.mxu0 0.0
    %3438 = vmatpush1.msra.mxu0 0.0
    %3439 = vmatprep.subr.mxu0 0.0
    %3440 = vmatpush1.msra.mxu0 0.0
    %3441 = vmatprep.subr.mxu0 0.0
    %3442 = vmatpush1.msra.mxu0 0.0
    %3443 = vmatprep.subr.mxu0 0.0
    %3444 = vmatpush1.msra.mxu0 0.0
    %3445 = vmatprep.subr.mxu0 0.0
    %3446 = vmatpush1.msra.mxu0 0.0
    %3447 = vmatprep.subr.mxu0 0.0
    %3448 = vmatpush1.msra.mxu0 0.0
    %3449 = vmatprep.subr.mxu0 0.0
    %3450 = vmatpush1.msra.mxu0 0.0
    %3451 = vmatprep.subr.mxu0 0.0
    %3452 = vmatpush1.msra.mxu0 0.0
    %3453 = vmatprep.subr.mxu0 0.0
    %3454 = vmatpush1.msra.mxu0 0.0
    %3455 = vmatprep.subr.mxu0 0.0
    %3456 = vmatpush1.msra.mxu0 0.0
    %3457 = vmatprep.subr.mxu0 0.0
    %3458 = vmatpush1.msra.mxu0 0.0
    %3459 = vmatprep.subr.mxu0 0.0
    %3460 = vmatpush1.msra.mxu0 0.0
    %3461 = vmatprep.subr.mxu0 0.0
    %3462 = vmatpush1.msra.mxu0 0.0
    %3463 = vmatprep.subr.mxu0 0.0
    %3464 = vmatpush1.msra.mxu0 0.0
    %3465 = vmatprep.subr.mxu0 0.0
    %3466 = vmatpush1.msra.mxu0 0.0
    %3467 = vmatprep.subr.mxu0 0.0
    %3468 = vmatpush1.msra.mxu0 0.0
    %3469 = vmatprep.subr.mxu0 0.0
    %3470 = vmatpush1.msra.mxu0 0.0
    %3471 = vmatprep.subr.mxu0 0.0
    %3472 = vmatpush1.msra.mxu0 0.0
    %3473 = vmatprep.subr.mxu0 0.0
    %3474 = vmatpush1.msra.mxu0 0.0
    %3475 = vmatprep.mubr.f32.mxu0 0.0
    %3476 = vmatmul.mubr.f32.gmra.mrb[0].mxu0 %v3262
    %v3477 = vpop.f32.mrb[0].mxu0
    %v3478 = vadd.f32 0.0, %v3477
    %v3479 = vpop.f32.mrb[0].mxu0
    %3480 = vdwg.mxu0
    %3481 = vmatprep.subr.mxu0 0.0
    %3482 = vmatpush1.msra.mxu0 %v243
    %3483 = vmatprep.subr.mxu0 0.0
    %3484 = vmatpush1.msra.mxu0 %v244
    %3485 = vmatprep.subr.mxu0 0.0
    %3486 = vmatpush1.msra.mxu0 %v245
    %3487 = vmatprep.subr.mxu0 0.0
    %3488 = vmatpush1.msra.mxu0 %v246
    %3489 = vmatprep.subr.mxu0 0.0
    %3490 = vmatpush1.msra.mxu0 0.0
    %3491 = vmatprep.subr.mxu0 0.0
    %3492 = vmatpush1.msra.mxu0 0.0
    %3493 = vmatprep.subr.mxu0 0.0
    %3494 = vmatpush1.msra.mxu0 0.0
    %3495 = vmatprep.subr.mxu0 0.0
    %3496 = vmatpush1.msra.mxu0 0.0
    %3497 = vmatprep.subr.mxu0 0.0
    %3498 = vmatpush1.msra.mxu0 0.0
    %3499 = vmatprep.subr.mxu0 0.0
    %3500 = vmatpush1.msra.mxu0 0.0
    %3501 = vmatprep.subr.mxu0 0.0
    %3502 = vmatpush1.msra.mxu0 0.0
    %3503 = vmatprep.subr.mxu0 0.0
    %3504 = vmatpush1.msra.mxu0 0.0
    %3505 = vmatprep.subr.mxu0 0.0
    %3506 = vmatpush1.msra.mxu0 0.0
    %3507 = vmatprep.subr.mxu0 0.0
    %3508 = vmatpush1.msra.mxu0 0.0
    %3509 = vmatprep.subr.mxu0 0.0
    %3510 = vmatpush1.msra.mxu0 0.0
    %3511 = vmatprep.subr.mxu0 0.0
    %3512 = vmatpush1.msra.mxu0 0.0
    %3513 = vmatprep.subr.mxu0 0.0
    %3514 = vmatpush1.msra.mxu0 0.0
    %3515 = vmatprep.subr.mxu0 0.0
    %3516 = vmatpush1.msra.mxu0 0.0
    %3517 = vmatprep.subr.mxu0 0.0
    %3518 = vmatpush1.msra.mxu0 0.0
    %3519 = vmatprep.subr.mxu0 0.0
    %3520 = vmatpush1.msra.mxu0 0.0
    %3521 = vmatprep.subr.mxu0 0.0
    %3522 = vmatpush1.msra.mxu0 0.0
    %3523 = vmatprep.subr.mxu0 0.0
    %3524 = vmatpush1.msra.mxu0 0.0
    %3525 = vmatprep.subr.mxu0 0.0
    %3526 = vmatpush1.msra.mxu0 0.0
    %3527 = vmatprep.subr.mxu0 0.0
    %3528 = vmatpush1.msra.mxu0 0.0
    %3529 = vmatprep.subr.mxu0 0.0
    %3530 = vmatpush1.msra.mxu0 0.0
    %3531 = vmatprep.subr.mxu0 0.0
    %3532 = vmatpush1.msra.mxu0 0.0
    %3533 = vmatprep.subr.mxu0 0.0
    %3534 = vmatpush1.msra.mxu0 0.0
    %3535 = vmatprep.subr.mxu0 0.0
    %3536 = vmatpush1.msra.mxu0 0.0
    %3537 = vmatprep.subr.mxu0 0.0
    %3538 = vmatpush1.msra.mxu0 0.0
    %3539 = vmatprep.subr.mxu0 0.0
    %3540 = vmatpush1.msra.mxu0 0.0
    %3541 = vmatprep.subr.mxu0 0.0
    %3542 = vmatpush1.msra.mxu0 0.0
    %3543 = vmatprep.subr.mxu0 0.0
    %3544 = vmatpush1.msra.mxu0 0.0
    %3545 = vmatprep.mubr.f32.mxu0 0.0
    %3546 = vmatmul.mubr.f32.gmra.mrb[0].mxu0 %v2952
    %v3547 = vpop.f32.mrb[0].mxu0
    %v3548 = vadd.f32 %v3478, %v3547
    %v3549 = vpop.f32.mrb[0].mxu0
    %3550 = vdwg.mxu0
    %v3551 = vadd.f32 %v3548, %v303
    %v3552 = vxor.u32 %v3551, 2147483648
    %v3553 = vmul.f32 %v3552, 1.442695
    %v3554 = vpow.pop %v3553
    %v3555 = vadd.f32 %v3554, 1.0
    %v3556 = vrcp.pop %v3555
    %v3557 = vmul.f32 1.0, %v3556
    %3558 = vmatprep.subr.mxu0 0.0
    %3559 = vmatpush1.msra.mxu0 %v259
    %3560 = vmatprep.subr.mxu0 0.0
    %3561 = vmatpush1.msra.mxu0 %v260
    %3562 = vmatprep.subr.mxu0 0.0
    %3563 = vmatpush1.msra.mxu0 %v261
    %3564 = vmatprep.subr.mxu0 0.0
    %3565 = vmatpush1.msra.mxu0 %v262
    %3566 = vmatprep.subr.mxu0 0.0
    %3567 = vmatpush1.msra.mxu0 0.0
    %3568 = vmatprep.subr.mxu0 0.0
    %3569 = vmatpush1.msra.mxu0 0.0
    %3570 = vmatprep.subr.mxu0 0.0
    %3571 = vmatpush1.msra.mxu0 0.0
    %3572 = vmatprep.subr.mxu0 0.0
    %3573 = vmatpush1.msra.mxu0 0.0
    %3574 = vmatprep.subr.mxu0 0.0
    %3575 = vmatpush1.msra.mxu0 0.0
    %3576 = vmatprep.subr.mxu0 0.0
    %3577 = vmatpush1.msra.mxu0 0.0
    %3578 = vmatprep.subr.mxu0 0.0
    %3579 = vmatpush1.msra.mxu0 0.0
    %3580 = vmatprep.subr.mxu0 0.0
    %3581 = vmatpush1.msra.mxu0 0.0
    %3582 = vmatprep.subr.mxu0 0.0
    %3583 = vmatpush1.msra.mxu0 0.0
    %3584 = vmatprep.subr.mxu0 0.0
    %3585 = vmatpush1.msra.mxu0 0.0
    %3586 = vmatprep.subr.mxu0 0.0
    %3587 = vmatpush1.msra.mxu0 0.0
    %3588 = vmatprep.subr.mxu0 0.0
    %3589 = vmatpush1.msra.mxu0 0.0
    %3590 = vmatprep.subr.mxu0 0.0
    %3591 = vmatpush1.msra.mxu0 0.0
    %3592 = vmatprep.subr.mxu0 0.0
    %3593 = vmatpush1.msra.mxu0 0.0
    %3594 = vmatprep.subr.mxu0 0.0
    %3595 = vmatpush1.msra.mxu0 0.0
    %3596 = vmatprep.subr.mxu0 0.0
    %3597 = vmatpush1.msra.mxu0 0.0
    %3598 = vmatprep.subr.mxu0 0.0
    %3599 = vmatpush1.msra.mxu0 0.0
    %3600 = vmatprep.subr.mxu0 0.0
    %3601 = vmatpush1.msra.mxu0 0.0
    %3602 = vmatprep.subr.mxu0 0.0
    %3603 = vmatpush1.msra.mxu0 0.0
    %3604 = vmatprep.subr.mxu0 0.0
    %3605 = vmatpush1.msra.mxu0 0.0
    %3606 = vmatprep.subr.mxu0 0.0
    %3607 = vmatpush1.msra.mxu0 0.0
    %3608 = vmatprep.subr.mxu0 0.0
    %3609 = vmatpush1.msra.mxu0 0.0
    %3610 = vmatprep.subr.mxu0 0.0
    %3611 = vmatpush1.msra.mxu0 0.0
    %3612 = vmatprep.subr.mxu0 0.0
    %3613 = vmatpush1.msra.mxu0 0.0
    %3614 = vmatprep.subr.mxu0 0.0
    %3615 = vmatpush1.msra.mxu0 0.0
    %3616 = vmatprep.subr.mxu0 0.0
    %3617 = vmatpush1.msra.mxu0 0.0
    %3618 = vmatprep.subr.mxu0 0.0
    %3619 = vmatpush1.msra.mxu0 0.0
    %3620 = vmatprep.subr.mxu0 0.0
    %3621 = vmatpush1.msra.mxu0 0.0
    %3622 = vmatprep.mubr.f32.mxu0 0.0
    %3623 = vmatmul.mubr.f32.gmra.mrb[0].mxu0 %v3262
    %v3624 = vpop.f32.mrb[0].mxu0
    %v3625 = vadd.f32 %v317, %v3624
    %v3626 = vpop.f32.mrb[0].mxu0
    %3627 = vdwg.mxu0
    %3628 = vmatprep.subr.mxu0 0.0
    %3629 = vmatpush1.msra.mxu0 %v247
    %3630 = vmatprep.subr.mxu0 0.0
    %3631 = vmatpush1.msra.mxu0 %v248
    %3632 = vmatprep.subr.mxu0 0.0
    %3633 = vmatpush1.msra.mxu0 %v249
    %3634 = vmatprep.subr.mxu0 0.0
    %3635 = vmatpush1.msra.mxu0 %v250
    %3636 = vmatprep.subr.mxu0 0.0
    %3637 = vmatpush1.msra.mxu0 0.0
    %3638 = vmatprep.subr.mxu0 0.0
    %3639 = vmatpush1.msra.mxu0 0.0
    %3640 = vmatprep.subr.mxu0 0.0
    %3641 = vmatpush1.msra.mxu0 0.0
    %3642 = vmatprep.subr.mxu0 0.0
    %3643 = vmatpush1.msra.mxu0 0.0
    %3644 = vmatprep.subr.mxu0 0.0
    %3645 = vmatpush1.msra.mxu0 0.0
    %3646 = vmatprep.subr.mxu0 0.0
    %3647 = vmatpush1.msra.mxu0 0.0
    %3648 = vmatprep.subr.mxu0 0.0
    %3649 = vmatpush1.msra.mxu0 0.0
    %3650 = vmatprep.subr.mxu0 0.0
    %3651 = vmatpush1.msra.mxu0 0.0
    %3652 = vmatprep.subr.mxu0 0.0
    %3653 = vmatpush1.msra.mxu0 0.0
    %3654 = vmatprep.subr.mxu0 0.0
    %3655 = vmatpush1.msra.mxu0 0.0
    %3656 = vmatprep.subr.mxu0 0.0
    %3657 = vmatpush1.msra.mxu0 0.0
    %3658 = vmatprep.subr.mxu0 0.0
    %3659 = vmatpush1.msra.mxu0 0.0
    %3660 = vmatprep.subr.mxu0 0.0
    %3661 = vmatpush1.msra.mxu0 0.0
    %3662 = vmatprep.subr.mxu0 0.0
    %3663 = vmatpush1.msra.mxu0 0.0
    %3664 = vmatprep.subr.mxu0 0.0
    %3665 = vmatpush1.msra.mxu0 0.0
    %3666 = vmatprep.subr.mxu0 0.0
    %3667 = vmatpush1.msra.mxu0 0.0
    %3668 = vmatprep.subr.mxu0 0.0
    %3669 = vmatpush1.msra.mxu0 0.0
    %3670 = vmatprep.subr.mxu0 0.0
    %3671 = vmatpush1.msra.mxu0 0.0
    %3672 = vmatprep.subr.mxu0 0.0
    %3673 = vmatpush1.msra.mxu0 0.0
    %3674 = vmatprep.subr.mxu0 0.0
    %3675 = vmatpush1.msra.mxu0 0.0
    %3676 = vmatprep.subr.mxu0 0.0
    %3677 = vmatpush1.msra.mxu0 0.0
    %3678 = vmatprep.subr.mxu0 0.0
    %3679 = vmatpush1.msra.mxu0 0.0
    %3680 = vmatprep.subr.mxu0 0.0
    %3681 = vmatpush1.msra.mxu0 0.0
    %3682 = vmatprep.subr.mxu0 0.0
    %3683 = vmatpush1.msra.mxu0 0.0
    %3684 = vmatprep.subr.mxu0 0.0
    %3685 = vmatpush1.msra.mxu0 0.0
    %3686 = vmatprep.subr.mxu0 0.0
    %3687 = vmatpush1.msra.mxu0 0.0
    %3688 = vmatprep.subr.mxu0 0.0
    %3689 = vmatpush1.msra.mxu0 0.0
    %3690 = vmatprep.subr.mxu0 0.0
    %3691 = vmatpush1.msra.mxu0 0.0
    %3692 = vmatprep.mubr.f32.mxu0 0.0
    %3693 = vmatmul.mubr.f32.gmra.mrb[0].mxu0 %v2952
    %v3694 = vpop.f32.mrb[0].mxu0
    %v3695 = vadd.f32 %v310, %v3694
    %v3696 = vpop.f32.mrb[0].mxu0
    %3697 = vdwg.mxu0
    %v3698 = vmul.f32 %v3410, %v3625
    %v3699 = vadd.f32 %v3695, %v3698
    %v3700 = vtanh.pop %v3699
    %v3701 = vsub.f32 1.0, %v3557
    %v3702 = vmul.f32 %v3701, %v3700
    %v3703 = vmul.f32 %v3557, %v2856
    %v3704 = vadd.f32 %v3702, %v3703
    %3706 = vset.pattern.permute.xlu0 0
    %3707 = vperm.xlu0 %3706, %v3253
    %v3708 = vpop.permute.xlu0 %3707
    %v3710 = vmul.f32 %v3708, %v3704
    %v3711 = vadd.f32 %v3260, %v3710
    %v3712 = vmul.f32 %v2858, %v3254
    %v3713 = vadd.f32 %v3712, 1.0
    %v3714 = vrcp.pop %v3713
    %3716 = vset.pattern.permute.xlu0 0
    %3717 = vperm.xlu0 %3716, %v2858
    %v3718 = vpop.permute.xlu0 %3717
    %v3720 = vmul.f32 %v2873, %v3718
    %v3721 = vmul.f32 %v3720, %v3258
    %v3722 = vadd.f32 %v3721, %v2875
    %3724 = vset.pattern.permute.xlu0 0
    %3725 = vperm.xlu0 %3724, %v3714
    %v3726 = vpop.permute.xlu0 %3725
    %v3728 = vmul.f32 %v3722, %v3726
    %s3729 = scalar_lea.vmem %s0, 32
    %v3730 = vld [vmem:[%s3729] sm:$0xff]
    %s3731 = scalar_lea.vmem %s1, 32
    %v3732 = vld [vmem:[%s3731] sm:$0xff]
    %v3734 = vsel %vm321, %v3730, 0
    %3736 = vmatprep.subr.mxu0 0.0
    %3737 = vmatpush1.msra.mxu0 %v211
    %3738 = vmatprep.subr.mxu0 0.0
    %3739 = vmatpush1.msra.mxu0 %v212
    %3740 = vmatprep.subr.mxu0 0.0
    %3741 = vmatpush1.msra.mxu0 %v213
    %3742 = vmatprep.subr.mxu0 0.0
    %3743 = vmatpush1.msra.mxu0 %v214
    %3744 = vmatprep.subr.mxu0 0.0
    %3745 = vmatpush1.msra.mxu0 0.0
    %3746 = vmatprep.subr.mxu0 0.0
    %3747 = vmatpush1.msra.mxu0 0.0
    %3748 = vmatprep.subr.mxu0 0.0
    %3749 = vmatpush1.msra.mxu0 0.0
    %3750 = vmatprep.subr.mxu0 0.0
    %3751 = vmatpush1.msra.mxu0 0.0
    %3752 = vmatprep.subr.mxu0 0.0
    %3753 = vmatpush1.msra.mxu0 0.0
    %3754 = vmatprep.subr.mxu0 0.0
    %3755 = vmatpush1.msra.mxu0 0.0
    %3756 = vmatprep.subr.mxu0 0.0
    %3757 = vmatpush1.msra.mxu0 0.0
    %3758 = vmatprep.subr.mxu0 0.0
    %3759 = vmatpush1.msra.mxu0 0.0
    %3760 = vmatprep.subr.mxu0 0.0
    %3761 = vmatpush1.msra.mxu0 0.0
    %3762 = vmatprep.subr.mxu0 0.0
    %3763 = vmatpush1.msra.mxu0 0.0
    %3764 = vmatprep.subr.mxu0 0.0
    %3765 = vmatpush1.msra.mxu0 0.0
    %3766 = vmatprep.subr.mxu0 0.0
    %3767 = vmatpush1.msra.mxu0 0.0
    %3768 = vmatprep.subr.mxu0 0.0
    %3769 = vmatpush1.msra.mxu0 0.0
    %3770 = vmatprep.subr.mxu0 0.0
    %3771 = vmatpush1.msra.mxu0 0.0
    %3772 = vmatprep.subr.mxu0 0.0
    %3773 = vmatpush1.msra.mxu0 0.0
    %3774 = vmatprep.subr.mxu0 0.0
    %3775 = vmatpush1.msra.mxu0 0.0
    %3776 = vmatprep.subr.mxu0 0.0
    %3777 = vmatpush1.msra.mxu0 0.0
    %3778 = vmatprep.subr.mxu0 0.0
    %3779 = vmatpush1.msra.mxu0 0.0
    %3780 = vmatprep.subr.mxu0 0.0
    %3781 = vmatpush1.msra.mxu0 0.0
    %3782 = vmatprep.subr.mxu0 0.0
    %3783 = vmatpush1.msra.mxu0 0.0
    %3784 = vmatprep.subr.mxu0 0.0
    %3785 = vmatpush1.msra.mxu0 0.0
    %3786 = vmatprep.subr.mxu0 0.0
    %3787 = vmatpush1.msra.mxu0 0.0
    %3788 = vmatprep.subr.mxu0 0.0
    %3789 = vmatpush1.msra.mxu0 0.0
    %3790 = vmatprep.subr.mxu0 0.0
    %3791 = vmatpush1.msra.mxu0 0.0
    %3792 = vmatprep.subr.mxu0 0.0
    %3793 = vmatpush1.msra.mxu0 0.0
    %3794 = vmatprep.subr.mxu0 0.0
    %3795 = vmatpush1.msra.mxu0 0.0
    %3796 = vmatprep.subr.mxu0 0.0
    %3797 = vmatpush1.msra.mxu0 0.0
    %3798 = vmatprep.subr.mxu0 0.0
    %3799 = vmatpush1.msra.mxu0 0.0
    %3800 = vmatprep.mubr.f32.mxu0 0.0
    %3801 = vmatmul.mubr.f32.gmra.mrb[0].mxu0 %v3734
    %v3802 = vpop.f32.mrb[0].mxu0
    %v3803 = vadd.f32 0.0, %v3802
    %v3804 = vpop.f32.mrb[0].mxu0
    %3805 = vdwg.mxu0
    %v3807 = vsel %vm321, %v3728, 0
    %3809 = vmatprep.subr.mxu0 0.0
    %3810 = vmatpush1.msra.mxu0 %v207
    %3811 = vmatprep.subr.mxu0 0.0
    %3812 = vmatpush1.msra.mxu0 %v208
    %3813 = vmatprep.subr.mxu0 0.0
    %3814 = vmatpush1.msra.mxu0 %v209
    %3815 = vmatprep.subr.mxu0 0.0
    %3816 = vmatpush1.msra.mxu0 %v210
    %3817 = vmatprep.subr.mxu0 0.0
    %3818 = vmatpush1.msra.mxu0 0.0
    %3819 = vmatprep.subr.mxu0 0.0
    %3820 = vmatpush1.msra.mxu0 0.0
    %3821 = vmatprep.subr.mxu0 0.0
    %3822 = vmatpush1.msra.mxu0 0.0
    %3823 = vmatprep.subr.mxu0 0.0
    %3824 = vmatpush1.msra.mxu0 0.0
    %3825 = vmatprep.subr.mxu0 0.0
    %3826 = vmatpush1.msra.mxu0 0.0
    %3827 = vmatprep.subr.mxu0 0.0
    %3828 = vmatpush1.msra.mxu0 0.0
    %3829 = vmatprep.subr.mxu0 0.0
    %3830 = vmatpush1.msra.mxu0 0.0
    %3831 = vmatprep.subr.mxu0 0.0
    %3832 = vmatpush1.msra.mxu0 0.0
    %3833 = vmatprep.subr.mxu0 0.0
    %3834 = vmatpush1.msra.mxu0 0.0
    %3835 = vmatprep.subr.mxu0 0.0
    %3836 = vmatpush1.msra.mxu0 0.0
    %3837 = vmatprep.subr.mxu0 0.0
    %3838 = vmatpush1.msra.mxu0 0.0
    %3839 = vmatprep.subr.mxu0 0.0
    %3840 = vmatpush1.msra.mxu0 0.0
    %3841 = vmatprep.subr.mxu0 0.0
    %3842 = vmatpush1.msra.mxu0 0.0
    %3843 = vmatprep.subr.mxu0 0.0
    %3844 = vmatpush1.msra.mxu0 0.0
    %3845 = vmatprep.subr.mxu0 0.0
    %3846 = vmatpush1.msra.mxu0 0.0
    %3847 = vmatprep.subr.mxu0 0.0
    %3848 = vmatpush1.msra.mxu0 0.0
    %3849 = vmatprep.subr.mxu0 0.0
    %3850 = vmatpush1.msra.mxu0 0.0
    %3851 = vmatprep.subr.mxu0 0.0
    %3852 = vmatpush1.msra.mxu0 0.0
    %3853 = vmatprep.subr.mxu0 0.0
    %3854 = vmatpush1.msra.mxu0 0.0
    %3855 = vmatprep.subr.mxu0 0.0
    %3856 = vmatpush1.msra.mxu0 0.0
    %3857 = vmatprep.subr.mxu0 0.0
    %3858 = vmatpush1.msra.mxu0 0.0
    %3859 = vmatprep.subr.mxu0 0.0
    %3860 = vmatpush1.msra.mxu0 0.0
    %3861 = vmatprep.subr.mxu0 0.0
    %3862 = vmatpush1.msra.mxu0 0.0
    %3863 = vmatprep.subr.mxu0 0.0
    %3864 = vmatpush1.msra.mxu0 0.0
    %3865 = vmatprep.subr.mxu0 0.0
    %3866 = vmatpush1.msra.mxu0 0.0
    %3867 = vmatprep.subr.mxu0 0.0
    %3868 = vmatpush1.msra.mxu0 0.0
    %3869 = vmatprep.subr.mxu0 0.0
    %3870 = vmatpush1.msra.mxu0 0.0
    %3871 = vmatprep.subr.mxu0 0.0
    %3872 = vmatpush1.msra.mxu0 0.0
    %3873 = vmatprep.mubr.f32.mxu0 0.0
    %3874 = vmatmul.mubr.f32.gmra.mrb[0].mxu0 %v3807
    %v3875 = vpop.f32.mrb[0].mxu0
    %v3876 = vadd.f32 %v3803, %v3875
    %v3877 = vpop.f32.mrb[0].mxu0
    %3878 = vdwg.mxu0
    %v3879 = vadd.f32 %v3876, %v268
    %v3880 = vmax.f32 %v3879, 0.0
    %v3882 = vsel %vm470, %v3880, 0
    %3884 = vmatprep.subr.mxu0 0.0
    %3885 = vmatpush1.msra.mxu0 %v215
    %3886 = vmatprep.subr.mxu0 0.0
    %3887 = vmatpush1.msra.mxu0 %v216
    %3888 = vmatprep.subr.mxu0 0.0
    %3889 = vmatpush1.msra.mxu0 %v217
    %3890 = vmatprep.subr.mxu0 0.0
    %3891 = vmatpush1.msra.mxu0 %v218
    %3892 = vmatprep.subr.mxu0 0.0
    %3893 = vmatpush1.msra.mxu0 %v219
    %3894 = vmatprep.subr.mxu0 0.0
    %3895 = vmatpush1.msra.mxu0 %v220
    %3896 = vmatprep.subr.mxu0 0.0
    %3897 = vmatpush1.msra.mxu0 %v221
    %3898 = vmatprep.subr.mxu0 0.0
    %3899 = vmatpush1.msra.mxu0 %v222
    %3900 = vmatprep.subr.mxu0 0.0
    %3901 = vmatpush1.msra.mxu0 0.0
    %3902 = vmatprep.subr.mxu0 0.0
    %3903 = vmatpush1.msra.mxu0 0.0
    %3904 = vmatprep.subr.mxu0 0.0
    %3905 = vmatpush1.msra.mxu0 0.0
    %3906 = vmatprep.subr.mxu0 0.0
    %3907 = vmatpush1.msra.mxu0 0.0
    %3908 = vmatprep.subr.mxu0 0.0
    %3909 = vmatpush1.msra.mxu0 0.0
    %3910 = vmatprep.subr.mxu0 0.0
    %3911 = vmatpush1.msra.mxu0 0.0
    %3912 = vmatprep.subr.mxu0 0.0
    %3913 = vmatpush1.msra.mxu0 0.0
    %3914 = vmatprep.subr.mxu0 0.0
    %3915 = vmatpush1.msra.mxu0 0.0
    %3916 = vmatprep.subr.mxu0 0.0
    %3917 = vmatpush1.msra.mxu0 0.0
    %3918 = vmatprep.subr.mxu0 0.0
    %3919 = vmatpush1.msra.mxu0 0.0
    %3920 = vmatprep.subr.mxu0 0.0
    %3921 = vmatpush1.msra.mxu0 0.0
    %3922 = vmatprep.subr.mxu0 0.0
    %3923 = vmatpush1.msra.mxu0 0.0
    %3924 = vmatprep.subr.mxu0 0.0
    %3925 = vmatpush1.msra.mxu0 0.0
    %3926 = vmatprep.subr.mxu0 0.0
    %3927 = vmatpush1.msra.mxu0 0.0
    %3928 = vmatprep.subr.mxu0 0.0
    %3929 = vmatpush1.msra.mxu0 0.0
    %3930 = vmatprep.subr.mxu0 0.0
    %3931 = vmatpush1.msra.mxu0 0.0
    %3932 = vmatprep.subr.mxu0 0.0
    %3933 = vmatpush1.msra.mxu0 0.0
    %3934 = vmatprep.subr.mxu0 0.0
    %3935 = vmatpush1.msra.mxu0 0.0
    %3936 = vmatprep.subr.mxu0 0.0
    %3937 = vmatpush1.msra.mxu0 0.0
    %3938 = vmatprep.subr.mxu0 0.0
    %3939 = vmatpush1.msra.mxu0 0.0
    %3940 = vmatprep.subr.mxu0 0.0
    %3941 = vmatpush1.msra.mxu0 0.0
    %3942 = vmatprep.subr.mxu0 0.0
    %3943 = vmatpush1.msra.mxu0 0.0
    %3944 = vmatprep.subr.mxu0 0.0
    %3945 = vmatpush1.msra.mxu0 0.0
    %3946 = vmatprep.subr.mxu0 0.0
    %3947 = vmatpush1.msra.mxu0 0.0
    %3948 = vmatprep.mubr.f32.mxu0 0.0
    %3949 = vmatmul.mubr.f32.gmra.mrb[0].mxu0 %v3882
    %v3950 = vpop.f32.mrb[0].mxu0
    %v3951 = vadd.f32 %v275, %v3950
    %v3952 = vpop.f32.mrb[0].mxu0
    %3953 = vdwg.mxu0
    %v3954 = vmax.f32 %v3951, 0.0
    %v3956 = vsel %vm470, %v3954, 0
    %3958 = vmatprep.subr.mxu0 0.0
    %3959 = vmatpush1.msra.mxu0 %v223
    %3960 = vmatprep.subr.mxu0 0.0
    %3961 = vmatpush1.msra.mxu0 %v224
    %3962 = vmatprep.subr.mxu0 0.0
    %3963 = vmatpush1.msra.mxu0 %v225
    %3964 = vmatprep.subr.mxu0 0.0
    %3965 = vmatpush1.msra.mxu0 %v226
    %3966 = vmatprep.subr.mxu0 0.0
    %3967 = vmatpush1.msra.mxu0 %v227
    %3968 = vmatprep.subr.mxu0 0.0
    %3969 = vmatpush1.msra.mxu0 %v228
    %3970 = vmatprep.subr.mxu0 0.0
    %3971 = vmatpush1.msra.mxu0 %v229
    %3972 = vmatprep.subr.mxu0 0.0
    %3973 = vmatpush1.msra.mxu0 %v230
    %3974 = vmatprep.subr.mxu0 0.0
    %3975 = vmatpush1.msra.mxu0 0.0
    %3976 = vmatprep.subr.mxu0 0.0
    %3977 = vmatpush1.msra.mxu0 0.0
    %3978 = vmatprep.subr.mxu0 0.0
    %3979 = vmatpush1.msra.mxu0 0.0
    %3980 = vmatprep.subr.mxu0 0.0
    %3981 = vmatpush1.msra.mxu0 0.0
    %3982 = vmatprep.subr.mxu0 0.0
    %3983 = vmatpush1.msra.mxu0 0.0
    %3984 = vmatprep.subr.mxu0 0.0
    %3985 = vmatpush1.msra.mxu0 0.0
    %3986 = vmatprep.subr.mxu0 0.0
    %3987 = vmatpush1.msra.mxu0 0.0
    %3988 = vmatprep.subr.mxu0 0.0
    %3989 = vmatpush1.msra.mxu0 0.0
    %3990 = vmatprep.subr.mxu0 0.0
    %3991 = vmatpush1.msra.mxu0 0.0
    %3992 = vmatprep.subr.mxu0 0.0
    %3993 = vmatpush1.msra.mxu0 0.0
    %3994 = vmatprep.subr.mxu0 0.0
    %3995 = vmatpush1.msra.mxu0 0.0
    %3996 = vmatprep.subr.mxu0 0.0
    %3997 = vmatpush1.msra.mxu0 0.0
    %3998 = vmatprep.subr.mxu0 0.0
    %3999 = vmatpush1.msra.mxu0 0.0
    %4000 = vmatprep.subr.mxu0 0.0
    %4001 = vmatpush1.msra.mxu0 0.0
    %4002 = vmatprep.subr.mxu0 0.0
    %4003 = vmatpush1.msra.mxu0 0.0
    %4004 = vmatprep.subr.mxu0 0.0
    %4005 = vmatpush1.msra.mxu0 0.0
    %4006 = vmatprep.subr.mxu0 0.0
    %4007 = vmatpush1.msra.mxu0 0.0
    %4008 = vmatprep.subr.mxu0 0.0
    %4009 = vmatpush1.msra.mxu0 0.0
    %4010 = vmatprep.subr.mxu0 0.0
    %4011 = vmatpush1.msra.mxu0 0.0
    %4012 = vmatprep.subr.mxu0 0.0
    %4013 = vmatpush1.msra.mxu0 0.0
    %4014 = vmatprep.subr.mxu0 0.0
    %4015 = vmatpush1.msra.mxu0 0.0
    %4016 = vmatprep.subr.mxu0 0.0
    %4017 = vmatpush1.msra.mxu0 0.0
    %4018 = vmatprep.subr.mxu0 0.0
    %4019 = vmatpush1.msra.mxu0 0.0
    %4020 = vmatprep.subr.mxu0 0.0
    %4021 = vmatpush1.msra.mxu0 0.0
    %4022 = vmatprep.mubr.f32.mxu0 0.0
    %4023 = vmatmul.mubr.f32.gmra.mrb[0].mxu0 %v3956
    %v4024 = vpop.f32.mrb[0].mxu0
    %v4025 = vadd.f32 %v282, %v4024
    %v4026 = vpop.f32.mrb[0].mxu0
    %4027 = vdwg.mxu0
    %v4028 = vmax.f32 %v4025, 0.0
    %v4030 = vsel %vm470, %v4028, 0
    %4032 = vmatprep.subr.mxu0 0.0
    %4033 = vmatpush1.msra.mxu0 %v231
    %4034 = vmatprep.subr.mxu0 0.0
    %4035 = vmatpush1.msra.mxu0 %v232
    %4036 = vmatprep.subr.mxu0 0.0
    %4037 = vmatpush1.msra.mxu0 %v233
    %4038 = vmatprep.subr.mxu0 0.0
    %4039 = vmatpush1.msra.mxu0 %v234
    %4040 = vmatprep.subr.mxu0 0.0
    %4041 = vmatpush1.msra.mxu0 %v235
    %4042 = vmatprep.subr.mxu0 0.0
    %4043 = vmatpush1.msra.mxu0 %v236
    %4044 = vmatprep.subr.mxu0 0.0
    %4045 = vmatpush1.msra.mxu0 %v237
    %4046 = vmatprep.subr.mxu0 0.0
    %4047 = vmatpush1.msra.mxu0 %v238
    %4048 = vmatprep.subr.mxu0 0.0
    %4049 = vmatpush1.msra.mxu0 0.0
    %4050 = vmatprep.subr.mxu0 0.0
    %4051 = vmatpush1.msra.mxu0 0.0
    %4052 = vmatprep.subr.mxu0 0.0
    %4053 = vmatpush1.msra.mxu0 0.0
    %4054 = vmatprep.subr.mxu0 0.0
    %4055 = vmatpush1.msra.mxu0 0.0
    %4056 = vmatprep.subr.mxu0 0.0
    %4057 = vmatpush1.msra.mxu0 0.0
    %4058 = vmatprep.subr.mxu0 0.0
    %4059 = vmatpush1.msra.mxu0 0.0
    %4060 = vmatprep.subr.mxu0 0.0
    %4061 = vmatpush1.msra.mxu0 0.0
    %4062 = vmatprep.subr.mxu0 0.0
    %4063 = vmatpush1.msra.mxu0 0.0
    %4064 = vmatprep.subr.mxu0 0.0
    %4065 = vmatpush1.msra.mxu0 0.0
    %4066 = vmatprep.subr.mxu0 0.0
    %4067 = vmatpush1.msra.mxu0 0.0
    %4068 = vmatprep.subr.mxu0 0.0
    %4069 = vmatpush1.msra.mxu0 0.0
    %4070 = vmatprep.subr.mxu0 0.0
    %4071 = vmatpush1.msra.mxu0 0.0
    %4072 = vmatprep.subr.mxu0 0.0
    %4073 = vmatpush1.msra.mxu0 0.0
    %4074 = vmatprep.subr.mxu0 0.0
    %4075 = vmatpush1.msra.mxu0 0.0
    %4076 = vmatprep.subr.mxu0 0.0
    %4077 = vmatpush1.msra.mxu0 0.0
    %4078 = vmatprep.subr.mxu0 0.0
    %4079 = vmatpush1.msra.mxu0 0.0
    %4080 = vmatprep.subr.mxu0 0.0
    %4081 = vmatpush1.msra.mxu0 0.0
    %4082 = vmatprep.subr.mxu0 0.0
    %4083 = vmatpush1.msra.mxu0 0.0
    %4084 = vmatprep.subr.mxu0 0.0
    %4085 = vmatpush1.msra.mxu0 0.0
    %4086 = vmatprep.subr.mxu0 0.0
    %4087 = vmatpush1.msra.mxu0 0.0
    %4088 = vmatprep.subr.mxu0 0.0
    %4089 = vmatpush1.msra.mxu0 0.0
    %4090 = vmatprep.subr.mxu0 0.0
    %4091 = vmatpush1.msra.mxu0 0.0
    %4092 = vmatprep.subr.mxu0 0.0
    %4093 = vmatpush1.msra.mxu0 0.0
    %4094 = vmatprep.subr.mxu0 0.0
    %4095 = vmatpush1.msra.mxu0 0.0
    %4096 = vmatprep.mubr.f32.mxu0 0.0
    %4097 = vmatmul.mubr.f32.gmra.mrb[0].mxu0 %v4030
    %v4098 = vpop.f32.mrb[0].mxu0
    %v4099 = vadd.f32 %v289, %v4098
    %v4100 = vpop.f32.mrb[0].mxu0
    %4101 = vdwg.mxu0
    %v4102 = vadd.f32 %v4099, %v3732
    %v4103 = vxor.u32 %v4102, 2147483648
    %v4104 = vmul.f32 %v4103, 1.442695
    %v4105 = vpow.pop %v4104
    %v4106 = vadd.f32 %v4105, 1.0
    %v4107 = vrcp.pop %v4106
    %v4108 = vmul.f32 1.0, %v4107
    %v4109 = vsub.f32 1.0, %v4108
    %4111 = vset.pattern.permute.xlu0 0
    %4112 = vperm.xlu0 %4111, %v4109
    %v4113 = vpop.permute.xlu0 %4112
    %v4115 = vmul.f32 %v3711, %v4113
    %v4117 = vsel %vm321, %v3711, 0
    %4119 = vmatprep.subr.mxu0 0.0
    %4120 = vmatpush1.msra.mxu0 %v251
    %4121 = vmatprep.subr.mxu0 0.0
    %4122 = vmatpush1.msra.mxu0 %v252
    %4123 = vmatprep.subr.mxu0 0.0
    %4124 = vmatpush1.msra.mxu0 %v253
    %4125 = vmatprep.subr.mxu0 0.0
    %4126 = vmatpush1.msra.mxu0 %v254
    %4127 = vmatprep.subr.mxu0 0.0
    %4128 = vmatpush1.msra.mxu0 0.0
    %4129 = vmatprep.subr.mxu0 0.0
    %4130 = vmatpush1.msra.mxu0 0.0
    %4131 = vmatprep.subr.mxu0 0.0
    %4132 = vmatpush1.msra.mxu0 0.0
    %4133 = vmatprep.subr.mxu0 0.0
    %4134 = vmatpush1.msra.mxu0 0.0
    %4135 = vmatprep.subr.mxu0 0.0
    %4136 = vmatpush1.msra.mxu0 0.0
    %4137 = vmatprep.subr.mxu0 0.0
    %4138 = vmatpush1.msra.mxu0 0.0
    %4139 = vmatprep.subr.mxu0 0.0
    %4140 = vmatpush1.msra.mxu0 0.0
    %4141 = vmatprep.subr.mxu0 0.0
    %4142 = vmatpush1.msra.mxu0 0.0
    %4143 = vmatprep.subr.mxu0 0.0
    %4144 = vmatpush1.msra.mxu0 0.0
    %4145 = vmatprep.subr.mxu0 0.0
    %4146 = vmatpush1.msra.mxu0 0.0
    %4147 = vmatprep.subr.mxu0 0.0
    %4148 = vmatpush1.msra.mxu0 0.0
    %4149 = vmatprep.subr.mxu0 0.0
    %4150 = vmatpush1.msra.mxu0 0.0
    %4151 = vmatprep.subr.mxu0 0.0
    %4152 = vmatpush1.msra.mxu0 0.0
    %4153 = vmatprep.subr.mxu0 0.0
    %4154 = vmatpush1.msra.mxu0 0.0
    %4155 = vmatprep.subr.mxu0 0.0
    %4156 = vmatpush1.msra.mxu0 0.0
    %4157 = vmatprep.subr.mxu0 0.0
    %4158 = vmatpush1.msra.mxu0 0.0
    %4159 = vmatprep.subr.mxu0 0.0
    %4160 = vmatpush1.msra.mxu0 0.0
    %4161 = vmatprep.subr.mxu0 0.0
    %4162 = vmatpush1.msra.mxu0 0.0
    %4163 = vmatprep.subr.mxu0 0.0
    %4164 = vmatpush1.msra.mxu0 0.0
    %4165 = vmatprep.subr.mxu0 0.0
    %4166 = vmatpush1.msra.mxu0 0.0
    %4167 = vmatprep.subr.mxu0 0.0
    %4168 = vmatpush1.msra.mxu0 0.0
    %4169 = vmatprep.subr.mxu0 0.0
    %4170 = vmatpush1.msra.mxu0 0.0
    %4171 = vmatprep.subr.mxu0 0.0
    %4172 = vmatpush1.msra.mxu0 0.0
    %4173 = vmatprep.subr.mxu0 0.0
    %4174 = vmatpush1.msra.mxu0 0.0
    %4175 = vmatprep.subr.mxu0 0.0
    %4176 = vmatpush1.msra.mxu0 0.0
    %4177 = vmatprep.subr.mxu0 0.0
    %4178 = vmatpush1.msra.mxu0 0.0
    %4179 = vmatprep.subr.mxu0 0.0
    %4180 = vmatpush1.msra.mxu0 0.0
    %4181 = vmatprep.subr.mxu0 0.0
    %4182 = vmatpush1.msra.mxu0 0.0
    %4183 = vmatprep.mubr.f32.mxu0 0.0
    %4184 = vmatmul.mubr.f32.gmra.mrb[0].mxu0 %v4117
    %v4185 = vpop.f32.mrb[0].mxu0
    %v4186 = vadd.f32 0.0, %v4185
    %v4187 = vpop.f32.mrb[0].mxu0
    %4188 = vdwg.mxu0
    %4189 = vmatprep.subr.mxu0 0.0
    %4190 = vmatpush1.msra.mxu0 %v239
    %4191 = vmatprep.subr.mxu0 0.0
    %4192 = vmatpush1.msra.mxu0 %v240
    %4193 = vmatprep.subr.mxu0 0.0
    %4194 = vmatpush1.msra.mxu0 %v241
    %4195 = vmatprep.subr.mxu0 0.0
    %4196 = vmatpush1.msra.mxu0 %v242
    %4197 = vmatprep.subr.mxu0 0.0
    %4198 = vmatpush1.msra.mxu0 0.0
    %4199 = vmatprep.subr.mxu0 0.0
    %4200 = vmatpush1.msra.mxu0 0.0
    %4201 = vmatprep.subr.mxu0 0.0
    %4202 = vmatpush1.msra.mxu0 0.0
    %4203 = vmatprep.subr.mxu0 0.0
    %4204 = vmatpush1.msra.mxu0 0.0
    %4205 = vmatprep.subr.mxu0 0.0
    %4206 = vmatpush1.msra.mxu0 0.0
    %4207 = vmatprep.subr.mxu0 0.0
    %4208 = vmatpush1.msra.mxu0 0.0
    %4209 = vmatprep.subr.mxu0 0.0
    %4210 = vmatpush1.msra.mxu0 0.0
    %4211 = vmatprep.subr.mxu0 0.0
    %4212 = vmatpush1.msra.mxu0 0.0
    %4213 = vmatprep.subr.mxu0 0.0
    %4214 = vmatpush1.msra.mxu0 0.0
    %4215 = vmatprep.subr.mxu0 0.0
    %4216 = vmatpush1.msra.mxu0 0.0
    %4217 = vmatprep.subr.mxu0 0.0
    %4218 = vmatpush1.msra.mxu0 0.0
    %4219 = vmatprep.subr.mxu0 0.0
    %4220 = vmatpush1.msra.mxu0 0.0
    %4221 = vmatprep.subr.mxu0 0.0
    %4222 = vmatpush1.msra.mxu0 0.0
    %4223 = vmatprep.subr.mxu0 0.0
    %4224 = vmatpush1.msra.mxu0 0.0
    %4225 = vmatprep.subr.mxu0 0.0
    %4226 = vmatpush1.msra.mxu0 0.0
    %4227 = vmatprep.subr.mxu0 0.0
    %4228 = vmatpush1.msra.mxu0 0.0
    %4229 = vmatprep.subr.mxu0 0.0
    %4230 = vmatpush1.msra.mxu0 0.0
    %4231 = vmatprep.subr.mxu0 0.0
    %4232 = vmatpush1.msra.mxu0 0.0
    %4233 = vmatprep.subr.mxu0 0.0
    %4234 = vmatpush1.msra.mxu0 0.0
    %4235 = vmatprep.subr.mxu0 0.0
    %4236 = vmatpush1.msra.mxu0 0.0
    %4237 = vmatprep.subr.mxu0 0.0
    %4238 = vmatpush1.msra.mxu0 0.0
    %4239 = vmatprep.subr.mxu0 0.0
    %4240 = vmatpush1.msra.mxu0 0.0
    %4241 = vmatprep.subr.mxu0 0.0
    %4242 = vmatpush1.msra.mxu0 0.0
    %4243 = vmatprep.subr.mxu0 0.0
    %4244 = vmatpush1.msra.mxu0 0.0
    %4245 = vmatprep.subr.mxu0 0.0
    %4246 = vmatpush1.msra.mxu0 0.0
    %4247 = vmatprep.subr.mxu0 0.0
    %4248 = vmatpush1.msra.mxu0 0.0
    %4249 = vmatprep.subr.mxu0 0.0
    %4250 = vmatpush1.msra.mxu0 0.0
    %4251 = vmatprep.subr.mxu0 0.0
    %4252 = vmatpush1.msra.mxu0 0.0
    %4253 = vmatprep.mubr.f32.mxu0 0.0
    %4254 = vmatmul.mubr.f32.gmra.mrb[0].mxu0 %v3807
    %v4255 = vpop.f32.mrb[0].mxu0
    %v4256 = vadd.f32 %v4186, %v4255
    %v4257 = vpop.f32.mrb[0].mxu0
    %4258 = vdwg.mxu0
    %v4259 = vadd.f32 %v4256, %v296
    %v4260 = vxor.u32 %v4259, 2147483648
    %v4261 = vmul.f32 %v4260, 1.442695
    %v4262 = vpow.pop %v4261
    %v4263 = vadd.f32 %v4262, 1.0
    %v4264 = vrcp.pop %v4263
    %v4265 = vmul.f32 1.0, %v4264
    %4266 = vmatprep.subr.mxu0 0.0
    %4267 = vmatpush1.msra.mxu0 %v255
    %4268 = vmatprep.subr.mxu0 0.0
    %4269 = vmatpush1.msra.mxu0 %v256
    %4270 = vmatprep.subr.mxu0 0.0
    %4271 = vmatpush1.msra.mxu0 %v257
    %4272 = vmatprep.subr.mxu0 0.0
    %4273 = vmatpush1.msra.mxu0 %v258
    %4274 = vmatprep.subr.mxu0 0.0
    %4275 = vmatpush1.msra.mxu0 0.0
    %4276 = vmatprep.subr.mxu0 0.0
    %4277 = vmatpush1.msra.mxu0 0.0
    %4278 = vmatprep.subr.mxu0 0.0
    %4279 = vmatpush1.msra.mxu0 0.0
    %4280 = vmatprep.subr.mxu0 0.0
    %4281 = vmatpush1.msra.mxu0 0.0
    %4282 = vmatprep.subr.mxu0 0.0
    %4283 = vmatpush1.msra.mxu0 0.0
    %4284 = vmatprep.subr.mxu0 0.0
    %4285 = vmatpush1.msra.mxu0 0.0
    %4286 = vmatprep.subr.mxu0 0.0
    %4287 = vmatpush1.msra.mxu0 0.0
    %4288 = vmatprep.subr.mxu0 0.0
    %4289 = vmatpush1.msra.mxu0 0.0
    %4290 = vmatprep.subr.mxu0 0.0
    %4291 = vmatpush1.msra.mxu0 0.0
    %4292 = vmatprep.subr.mxu0 0.0
    %4293 = vmatpush1.msra.mxu0 0.0
    %4294 = vmatprep.subr.mxu0 0.0
    %4295 = vmatpush1.msra.mxu0 0.0
    %4296 = vmatprep.subr.mxu0 0.0
    %4297 = vmatpush1.msra.mxu0 0.0
    %4298 = vmatprep.subr.mxu0 0.0
    %4299 = vmatpush1.msra.mxu0 0.0
    %4300 = vmatprep.subr.mxu0 0.0
    %4301 = vmatpush1.msra.mxu0 0.0
    %4302 = vmatprep.subr.mxu0 0.0
    %4303 = vmatpush1.msra.mxu0 0.0
    %4304 = vmatprep.subr.mxu0 0.0
    %4305 = vmatpush1.msra.mxu0 0.0
    %4306 = vmatprep.subr.mxu0 0.0
    %4307 = vmatpush1.msra.mxu0 0.0
    %4308 = vmatprep.subr.mxu0 0.0
    %4309 = vmatpush1.msra.mxu0 0.0
    %4310 = vmatprep.subr.mxu0 0.0
    %4311 = vmatpush1.msra.mxu0 0.0
    %4312 = vmatprep.subr.mxu0 0.0
    %4313 = vmatpush1.msra.mxu0 0.0
    %4314 = vmatprep.subr.mxu0 0.0
    %4315 = vmatpush1.msra.mxu0 0.0
    %4316 = vmatprep.subr.mxu0 0.0
    %4317 = vmatpush1.msra.mxu0 0.0
    %4318 = vmatprep.subr.mxu0 0.0
    %4319 = vmatpush1.msra.mxu0 0.0
    %4320 = vmatprep.subr.mxu0 0.0
    %4321 = vmatpush1.msra.mxu0 0.0
    %4322 = vmatprep.subr.mxu0 0.0
    %4323 = vmatpush1.msra.mxu0 0.0
    %4324 = vmatprep.subr.mxu0 0.0
    %4325 = vmatpush1.msra.mxu0 0.0
    %4326 = vmatprep.subr.mxu0 0.0
    %4327 = vmatpush1.msra.mxu0 0.0
    %4328 = vmatprep.subr.mxu0 0.0
    %4329 = vmatpush1.msra.mxu0 0.0
    %4330 = vmatprep.mubr.f32.mxu0 0.0
    %4331 = vmatmul.mubr.f32.gmra.mrb[0].mxu0 %v4117
    %v4332 = vpop.f32.mrb[0].mxu0
    %v4333 = vadd.f32 0.0, %v4332
    %v4334 = vpop.f32.mrb[0].mxu0
    %4335 = vdwg.mxu0
    %4336 = vmatprep.subr.mxu0 0.0
    %4337 = vmatpush1.msra.mxu0 %v243
    %4338 = vmatprep.subr.mxu0 0.0
    %4339 = vmatpush1.msra.mxu0 %v244
    %4340 = vmatprep.subr.mxu0 0.0
    %4341 = vmatpush1.msra.mxu0 %v245
    %4342 = vmatprep.subr.mxu0 0.0
    %4343 = vmatpush1.msra.mxu0 %v246
    %4344 = vmatprep.subr.mxu0 0.0
    %4345 = vmatpush1.msra.mxu0 0.0
    %4346 = vmatprep.subr.mxu0 0.0
    %4347 = vmatpush1.msra.mxu0 0.0
    %4348 = vmatprep.subr.mxu0 0.0
    %4349 = vmatpush1.msra.mxu0 0.0
    %4350 = vmatprep.subr.mxu0 0.0
    %4351 = vmatpush1.msra.mxu0 0.0
    %4352 = vmatprep.subr.mxu0 0.0
    %4353 = vmatpush1.msra.mxu0 0.0
    %4354 = vmatprep.subr.mxu0 0.0
    %4355 = vmatpush1.msra.mxu0 0.0
    %4356 = vmatprep.subr.mxu0 0.0
    %4357 = vmatpush1.msra.mxu0 0.0
    %4358 = vmatprep.subr.mxu0 0.0
    %4359 = vmatpush1.msra.mxu0 0.0
    %4360 = vmatprep.subr.mxu0 0.0
    %4361 = vmatpush1.msra.mxu0 0.0
    %4362 = vmatprep.subr.mxu0 0.0
    %4363 = vmatpush1.msra.mxu0 0.0
    %4364 = vmatprep.subr.mxu0 0.0
    %4365 = vmatpush1.msra.mxu0 0.0
    %4366 = vmatprep.subr.mxu0 0.0
    %4367 = vmatpush1.msra.mxu0 0.0
    %4368 = vmatprep.subr.mxu0 0.0
    %4369 = vmatpush1.msra.mxu0 0.0
    %4370 = vmatprep.subr.mxu0 0.0
    %4371 = vmatpush1.msra.mxu0 0.0
    %4372 = vmatprep.subr.mxu0 0.0
    %4373 = vmatpush1.msra.mxu0 0.0
    %4374 = vmatprep.subr.mxu0 0.0
    %4375 = vmatpush1.msra.mxu0 0.0
    %4376 = vmatprep.subr.mxu0 0.0
    %4377 = vmatpush1.msra.mxu0 0.0
    %4378 = vmatprep.subr.mxu0 0.0
    %4379 = vmatpush1.msra.mxu0 0.0
    %4380 = vmatprep.subr.mxu0 0.0
    %4381 = vmatpush1.msra.mxu0 0.0
    %4382 = vmatprep.subr.mxu0 0.0
    %4383 = vmatpush1.msra.mxu0 0.0
    %4384 = vmatprep.subr.mxu0 0.0
    %4385 = vmatpush1.msra.mxu0 0.0
    %4386 = vmatprep.subr.mxu0 0.0
    %4387 = vmatpush1.msra.mxu0 0.0
    %4388 = vmatprep.subr.mxu0 0.0
    %4389 = vmatpush1.msra.mxu0 0.0
    %4390 = vmatprep.subr.mxu0 0.0
    %4391 = vmatpush1.msra.mxu0 0.0
    %4392 = vmatprep.subr.mxu0 0.0
    %4393 = vmatpush1.msra.mxu0 0.0
    %4394 = vmatprep.subr.mxu0 0.0
    %4395 = vmatpush1.msra.mxu0 0.0
    %4396 = vmatprep.subr.mxu0 0.0
    %4397 = vmatpush1.msra.mxu0 0.0
    %4398 = vmatprep.subr.mxu0 0.0
    %4399 = vmatpush1.msra.mxu0 0.0
    %4400 = vmatprep.mubr.f32.mxu0 0.0
    %4401 = vmatmul.mubr.f32.gmra.mrb[0].mxu0 %v3807
    %v4402 = vpop.f32.mrb[0].mxu0
    %v4403 = vadd.f32 %v4333, %v4402
    %v4404 = vpop.f32.mrb[0].mxu0
    %4405 = vdwg.mxu0
    %v4406 = vadd.f32 %v4403, %v303
    %v4407 = vxor.u32 %v4406, 2147483648
    %v4408 = vmul.f32 %v4407, 1.442695
    %v4409 = vpow.pop %v4408
    %v4410 = vadd.f32 %v4409, 1.0
    %v4411 = vrcp.pop %v4410
    %v4412 = vmul.f32 1.0, %v4411
    %4413 = vmatprep.subr.mxu0 0.0
    %4414 = vmatpush1.msra.mxu0 %v259
    %4415 = vmatprep.subr.mxu0 0.0
    %4416 = vmatpush1.msra.mxu0 %v260
    %4417 = vmatprep.subr.mxu0 0.0
    %4418 = vmatpush1.msra.mxu0 %v261
    %4419 = vmatprep.subr.mxu0 0.0
    %4420 = vmatpush1.msra.mxu0 %v262
    %4421 = vmatprep.subr.mxu0 0.0
    %4422 = vmatpush1.msra.mxu0 0.0
    %4423 = vmatprep.subr.mxu0 0.0
    %4424 = vmatpush1.msra.mxu0 0.0
    %4425 = vmatprep.subr.mxu0 0.0
    %4426 = vmatpush1.msra.mxu0 0.0
    %4427 = vmatprep.subr.mxu0 0.0
    %4428 = vmatpush1.msra.mxu0 0.0
    %4429 = vmatprep.subr.mxu0 0.0
    %4430 = vmatpush1.msra.mxu0 0.0
    %4431 = vmatprep.subr.mxu0 0.0
    %4432 = vmatpush1.msra.mxu0 0.0
    %4433 = vmatprep.subr.mxu0 0.0
    %4434 = vmatpush1.msra.mxu0 0.0
    %4435 = vmatprep.subr.mxu0 0.0
    %4436 = vmatpush1.msra.mxu0 0.0
    %4437 = vmatprep.subr.mxu0 0.0
    %4438 = vmatpush1.msra.mxu0 0.0
    %4439 = vmatprep.subr.mxu0 0.0
    %4440 = vmatpush1.msra.mxu0 0.0
    %4441 = vmatprep.subr.mxu0 0.0
    %4442 = vmatpush1.msra.mxu0 0.0
    %4443 = vmatprep.subr.mxu0 0.0
    %4444 = vmatpush1.msra.mxu0 0.0
    %4445 = vmatprep.subr.mxu0 0.0
    %4446 = vmatpush1.msra.mxu0 0.0
    %4447 = vmatprep.subr.mxu0 0.0
    %4448 = vmatpush1.msra.mxu0 0.0
    %4449 = vmatprep.subr.mxu0 0.0
    %4450 = vmatpush1.msra.mxu0 0.0
    %4451 = vmatprep.subr.mxu0 0.0
    %4452 = vmatpush1.msra.mxu0 0.0
    %4453 = vmatprep.subr.mxu0 0.0
    %4454 = vmatpush1.msra.mxu0 0.0
    %4455 = vmatprep.subr.mxu0 0.0
    %4456 = vmatpush1.msra.mxu0 0.0
    %4457 = vmatprep.subr.mxu0 0.0
    %4458 = vmatpush1.msra.mxu0 0.0
    %4459 = vmatprep.subr.mxu0 0.0
    %4460 = vmatpush1.msra.mxu0 0.0
    %4461 = vmatprep.subr.mxu0 0.0
    %4462 = vmatpush1.msra.mxu0 0.0
    %4463 = vmatprep.subr.mxu0 0.0
    %4464 = vmatpush1.msra.mxu0 0.0
    %4465 = vmatprep.subr.mxu0 0.0
    %4466 = vmatpush1.msra.mxu0 0.0
    %4467 = vmatprep.subr.mxu0 0.0
    %4468 = vmatpush1.msra.mxu0 0.0
    %4469 = vmatprep.subr.mxu0 0.0
    %4470 = vmatpush1.msra.mxu0 0.0
    %4471 = vmatprep.subr.mxu0 0.0
    %4472 = vmatpush1.msra.mxu0 0.0
    %4473 = vmatprep.subr.mxu0 0.0
    %4474 = vmatpush1.msra.mxu0 0.0
    %4475 = vmatprep.subr.mxu0 0.0
    %4476 = vmatpush1.msra.mxu0 0.0
    %4477 = vmatprep.mubr.f32.mxu0 0.0
    %4478 = vmatmul.mubr.f32.gmra.mrb[0].mxu0 %v4117
    %v4479 = vpop.f32.mrb[0].mxu0
    %v4480 = vadd.f32 %v317, %v4479
    %v4481 = vpop.f32.mrb[0].mxu0
    %4482 = vdwg.mxu0
    %4483 = vmatprep.subr.mxu0 0.0
    %4484 = vmatpush1.msra.mxu0 %v247
    %4485 = vmatprep.subr.mxu0 0.0
    %4486 = vmatpush1.msra.mxu0 %v248
    %4487 = vmatprep.subr.mxu0 0.0
    %4488 = vmatpush1.msra.mxu0 %v249
    %4489 = vmatprep.subr.mxu0 0.0
    %4490 = vmatpush1.msra.mxu0 %v250
    %4491 = vmatprep.subr.mxu0 0.0
    %4492 = vmatpush1.msra.mxu0 0.0
    %4493 = vmatprep.subr.mxu0 0.0
    %4494 = vmatpush1.msra.mxu0 0.0
    %4495 = vmatprep.subr.mxu0 0.0
    %4496 = vmatpush1.msra.mxu0 0.0
    %4497 = vmatprep.subr.mxu0 0.0
    %4498 = vmatpush1.msra.mxu0 0.0
    %4499 = vmatprep.subr.mxu0 0.0
    %4500 = vmatpush1.msra.mxu0 0.0
    %4501 = vmatprep.subr.mxu0 0.0
    %4502 = vmatpush1.msra.mxu0 0.0
    %4503 = vmatprep.subr.mxu0 0.0
    %4504 = vmatpush1.msra.mxu0 0.0
    %4505 = vmatprep.subr.mxu0 0.0
    %4506 = vmatpush1.msra.mxu0 0.0
    %4507 = vmatprep.subr.mxu0 0.0
    %4508 = vmatpush1.msra.mxu0 0.0
    %4509 = vmatprep.subr.mxu0 0.0
    %4510 = vmatpush1.msra.mxu0 0.0
    %4511 = vmatprep.subr.mxu0 0.0
    %4512 = vmatpush1.msra.mxu0 0.0
    %4513 = vmatprep.subr.mxu0 0.0
    %4514 = vmatpush1.msra.mxu0 0.0
    %4515 = vmatprep.subr.mxu0 0.0
    %4516 = vmatpush1.msra.mxu0 0.0
    %4517 = vmatprep.subr.mxu0 0.0
    %4518 = vmatpush1.msra.mxu0 0.0
    %4519 = vmatprep.subr.mxu0 0.0
    %4520 = vmatpush1.msra.mxu0 0.0
    %4521 = vmatprep.subr.mxu0 0.0
    %4522 = vmatpush1.msra.mxu0 0.0
    %4523 = vmatprep.subr.mxu0 0.0
    %4524 = vmatpush1.msra.mxu0 0.0
    %4525 = vmatprep.subr.mxu0 0.0
    %4526 = vmatpush1.msra.mxu0 0.0
    %4527 = vmatprep.subr.mxu0 0.0
    %4528 = vmatpush1.msra.mxu0 0.0
    %4529 = vmatprep.subr.mxu0 0.0
    %4530 = vmatpush1.msra.mxu0 0.0
    %4531 = vmatprep.subr.mxu0 0.0
    %4532 = vmatpush1.msra.mxu0 0.0
    %4533 = vmatprep.subr.mxu0 0.0
    %4534 = vmatpush1.msra.mxu0 0.0
    %4535 = vmatprep.subr.mxu0 0.0
    %4536 = vmatpush1.msra.mxu0 0.0
    %4537 = vmatprep.subr.mxu0 0.0
    %4538 = vmatpush1.msra.mxu0 0.0
    %4539 = vmatprep.subr.mxu0 0.0
    %4540 = vmatpush1.msra.mxu0 0.0
    %4541 = vmatprep.subr.mxu0 0.0
    %4542 = vmatpush1.msra.mxu0 0.0
    %4543 = vmatprep.subr.mxu0 0.0
    %4544 = vmatpush1.msra.mxu0 0.0
    %4545 = vmatprep.subr.mxu0 0.0
    %4546 = vmatpush1.msra.mxu0 0.0
    %4547 = vmatprep.mubr.f32.mxu0 0.0
    %4548 = vmatmul.mubr.f32.gmra.mrb[0].mxu0 %v3807
    %v4549 = vpop.f32.mrb[0].mxu0
    %v4550 = vadd.f32 %v310, %v4549
    %v4551 = vpop.f32.mrb[0].mxu0
    %4552 = vdwg.mxu0
    %v4553 = vmul.f32 %v4265, %v4480
    %v4554 = vadd.f32 %v4550, %v4553
    %v4555 = vtanh.pop %v4554
    %v4556 = vsub.f32 1.0, %v4412
    %v4557 = vmul.f32 %v4556, %v4555
    %v4558 = vmul.f32 %v4412, %v3711
    %v4559 = vadd.f32 %v4557, %v4558
    %4561 = vset.pattern.permute.xlu0 0
    %4562 = vperm.xlu0 %4561, %v4108
    %v4563 = vpop.permute.xlu0 %4562
    %v4565 = vmul.f32 %v4563, %v4559
    %v4566 = vadd.f32 %v4115, %v4565
    %v4567 = vmul.f32 %v3713, %v4109
    %v4568 = vadd.f32 %v4567, 1.0
    %v4569 = vrcp.pop %v4568
    %4571 = vset.pattern.permute.xlu0 0
    %4572 = vperm.xlu0 %4571, %v3713
    %v4573 = vpop.permute.xlu0 %4572
    %v4575 = vmul.f32 %v3728, %v4573
    %v4576 = vmul.f32 %v4575, %v4113
    %v4577 = vadd.f32 %v4576, %v3730
    %4579 = vset.pattern.permute.xlu0 0
    %4580 = vperm.xlu0 %4579, %v4569
    %v4581 = vpop.permute.xlu0 %4580
    %v4583 = vmul.f32 %v4577, %v4581
    %s4584 = scalar_lea.vmem %s0, 40
    %v4585 = vld [vmem:[%s4584] sm:$0xff]
    %s4586 = scalar_lea.vmem %s1, 40
    %v4587 = vld [vmem:[%s4586] sm:$0xff]
    %v4589 = vsel %vm321, %v4585, 0
    %4591 = vmatprep.subr.mxu0 0.0
    %4592 = vmatpush1.msra.mxu0 %v211
    %4593 = vmatprep.subr.mxu0 0.0
    %4594 = vmatpush1.msra.mxu0 %v212
    %4595 = vmatprep.subr.mxu0 0.0
    %4596 = vmatpush1.msra.mxu0 %v213
    %4597 = vmatprep.subr.mxu0 0.0
    %4598 = vmatpush1.msra.mxu0 %v214
    %4599 = vmatprep.subr.mxu0 0.0
    %4600 = vmatpush1.msra.mxu0 0.0
    %4601 = vmatprep.subr.mxu0 0.0
    %4602 = vmatpush1.msra.mxu0 0.0
    %4603 = vmatprep.subr.mxu0 0.0
    %4604 = vmatpush1.msra.mxu0 0.0
    %4605 = vmatprep.subr.mxu0 0.0
    %4606 = vmatpush1.msra.mxu0 0.0
    %4607 = vmatprep.subr.mxu0 0.0
    %4608 = vmatpush1.msra.mxu0 0.0
    %4609 = vmatprep.subr.mxu0 0.0
    %4610 = vmatpush1.msra.mxu0 0.0
    %4611 = vmatprep.subr.mxu0 0.0
    %4612 = vmatpush1.msra.mxu0 0.0
    %4613 = vmatprep.subr.mxu0 0.0
    %4614 = vmatpush1.msra.mxu0 0.0
    %4615 = vmatprep.subr.mxu0 0.0
    %4616 = vmatpush1.msra.mxu0 0.0
    %4617 = vmatprep.subr.mxu0 0.0
    %4618 = vmatpush1.msra.mxu0 0.0
    %4619 = vmatprep.subr.mxu0 0.0
    %4620 = vmatpush1.msra.mxu0 0.0
    %4621 = vmatprep.subr.mxu0 0.0
    %4622 = vmatpush1.msra.mxu0 0.0
    %4623 = vmatprep.subr.mxu0 0.0
    %4624 = vmatpush1.msra.mxu0 0.0
    %4625 = vmatprep.subr.mxu0 0.0
    %4626 = vmatpush1.msra.mxu0 0.0
    %4627 = vmatprep.subr.mxu0 0.0
    %4628 = vmatpush1.msra.mxu0 0.0
    %4629 = vmatprep.subr.mxu0 0.0
    %4630 = vmatpush1.msra.mxu0 0.0
    %4631 = vmatprep.subr.mxu0 0.0
    %4632 = vmatpush1.msra.mxu0 0.0
    %4633 = vmatprep.subr.mxu0 0.0
    %4634 = vmatpush1.msra.mxu0 0.0
    %4635 = vmatprep.subr.mxu0 0.0
    %4636 = vmatpush1.msra.mxu0 0.0
    %4637 = vmatprep.subr.mxu0 0.0
    %4638 = vmatpush1.msra.mxu0 0.0
    %4639 = vmatprep.subr.mxu0 0.0
    %4640 = vmatpush1.msra.mxu0 0.0
    %4641 = vmatprep.subr.mxu0 0.0
    %4642 = vmatpush1.msra.mxu0 0.0
    %4643 = vmatprep.subr.mxu0 0.0
    %4644 = vmatpush1.msra.mxu0 0.0
    %4645 = vmatprep.subr.mxu0 0.0
    %4646 = vmatpush1.msra.mxu0 0.0
    %4647 = vmatprep.subr.mxu0 0.0
    %4648 = vmatpush1.msra.mxu0 0.0
    %4649 = vmatprep.subr.mxu0 0.0
    %4650 = vmatpush1.msra.mxu0 0.0
    %4651 = vmatprep.subr.mxu0 0.0
    %4652 = vmatpush1.msra.mxu0 0.0
    %4653 = vmatprep.subr.mxu0 0.0
    %4654 = vmatpush1.msra.mxu0 0.0
    %4655 = vmatprep.mubr.f32.mxu0 0.0
    %4656 = vmatmul.mubr.f32.gmra.mrb[0].mxu0 %v4589
    %v4657 = vpop.f32.mrb[0].mxu0
    %v4658 = vadd.f32 0.0, %v4657
    %v4659 = vpop.f32.mrb[0].mxu0
    %4660 = vdwg.mxu0
    %v4662 = vsel %vm321, %v4583, 0
    %4664 = vmatprep.subr.mxu0 0.0
    %4665 = vmatpush1.msra.mxu0 %v207
    %4666 = vmatprep.subr.mxu0 0.0
    %4667 = vmatpush1.msra.mxu0 %v208
    %4668 = vmatprep.subr.mxu0 0.0
    %4669 = vmatpush1.msra.mxu0 %v209
    %4670 = vmatprep.subr.mxu0 0.0
    %4671 = vmatpush1.msra.mxu0 %v210
    %4672 = vmatprep.subr.mxu0 0.0
    %4673 = vmatpush1.msra.mxu0 0.0
    %4674 = vmatprep.subr.mxu0 0.0
    %4675 = vmatpush1.msra.mxu0 0.0
    %4676 = vmatprep.subr.mxu0 0.0
    %4677 = vmatpush1.msra.mxu0 0.0
    %4678 = vmatprep.subr.mxu0 0.0
    %4679 = vmatpush1.msra.mxu0 0.0
    %4680 = vmatprep.subr.mxu0 0.0
    %4681 = vmatpush1.msra.mxu0 0.0
    %4682 = vmatprep.subr.mxu0 0.0
    %4683 = vmatpush1.msra.mxu0 0.0
    %4684 = vmatprep.subr.mxu0 0.0
    %4685 = vmatpush1.msra.mxu0 0.0
    %4686 = vmatprep.subr.mxu0 0.0
    %4687 = vmatpush1.msra.mxu0 0.0
    %4688 = vmatprep.subr.mxu0 0.0
    %4689 = vmatpush1.msra.mxu0 0.0
    %4690 = vmatprep.subr.mxu0 0.0
    %4691 = vmatpush1.msra.mxu0 0.0
    %4692 = vmatprep.subr.mxu0 0.0
    %4693 = vmatpush1.msra.mxu0 0.0
    %4694 = vmatprep.subr.mxu0 0.0
    %4695 = vmatpush1.msra.mxu0 0.0
    %4696 = vmatprep.subr.mxu0 0.0
    %4697 = vmatpush1.msra.mxu0 0.0
    %4698 = vmatprep.subr.mxu0 0.0
    %4699 = vmatpush1.msra.mxu0 0.0
    %4700 = vmatprep.subr.mxu0 0.0
    %4701 = vmatpush1.msra.mxu0 0.0
    %4702 = vmatprep.subr.mxu0 0.0
    %4703 = vmatpush1.msra.mxu0 0.0
    %4704 = vmatprep.subr.mxu0 0.0
    %4705 = vmatpush1.msra.mxu0 0.0
    %4706 = vmatprep.subr.mxu0 0.0
    %4707 = vmatpush1.msra.mxu0 0.0
    %4708 = vmatprep.subr.mxu0 0.0
    %4709 = vmatpush1.msra.mxu0 0.0
    %4710 = vmatprep.subr.mxu0 0.0
    %4711 = vmatpush1.msra.mxu0 0.0
    %4712 = vmatprep.subr.mxu0 0.0
    %4713 = vmatpush1.msra.mxu0 0.0
    %4714 = vmatprep.subr.mxu0 0.0
    %4715 = vmatpush1.msra.mxu0 0.0
    %4716 = vmatprep.subr.mxu0 0.0
    %4717 = vmatpush1.msra.mxu0 0.0
    %4718 = vmatprep.subr.mxu0 0.0
    %4719 = vmatpush1.msra.mxu0 0.0
    %4720 = vmatprep.subr.mxu0 0.0
    %4721 = vmatpush1.msra.mxu0 0.0
    %4722 = vmatprep.subr.mxu0 0.0
    %4723 = vmatpush1.msra.mxu0 0.0
    %4724 = vmatprep.subr.mxu0 0.0
    %4725 = vmatpush1.msra.mxu0 0.0
    %4726 = vmatprep.subr.mxu0 0.0
    %4727 = vmatpush1.msra.mxu0 0.0
    %4728 = vmatprep.mubr.f32.mxu0 0.0
    %4729 = vmatmul.mubr.f32.gmra.mrb[0].mxu0 %v4662
    %v4730 = vpop.f32.mrb[0].mxu0
    %v4731 = vadd.f32 %v4658, %v4730
    %v4732 = vpop.f32.mrb[0].mxu0
    %4733 = vdwg.mxu0
    %v4734 = vadd.f32 %v4731, %v268
    %v4735 = vmax.f32 %v4734, 0.0
    %v4737 = vsel %vm470, %v4735, 0
    %4739 = vmatprep.subr.mxu0 0.0
    %4740 = vmatpush1.msra.mxu0 %v215
    %4741 = vmatprep.subr.mxu0 0.0
    %4742 = vmatpush1.msra.mxu0 %v216
    %4743 = vmatprep.subr.mxu0 0.0
    %4744 = vmatpush1.msra.mxu0 %v217
    %4745 = vmatprep.subr.mxu0 0.0
    %4746 = vmatpush1.msra.mxu0 %v218
    %4747 = vmatprep.subr.mxu0 0.0
    %4748 = vmatpush1.msra.mxu0 %v219
    %4749 = vmatprep.subr.mxu0 0.0
    %4750 = vmatpush1.msra.mxu0 %v220
    %4751 = vmatprep.subr.mxu0 0.0
    %4752 = vmatpush1.msra.mxu0 %v221
    %4753 = vmatprep.subr.mxu0 0.0
    %4754 = vmatpush1.msra.mxu0 %v222
    %4755 = vmatprep.subr.mxu0 0.0
    %4756 = vmatpush1.msra.mxu0 0.0
    %4757 = vmatprep.subr.mxu0 0.0
    %4758 = vmatpush1.msra.mxu0 0.0
    %4759 = vmatprep.subr.mxu0 0.0
    %4760 = vmatpush1.msra.mxu0 0.0
    %4761 = vmatprep.subr.mxu0 0.0
    %4762 = vmatpush1.msra.mxu0 0.0
    %4763 = vmatprep.subr.mxu0 0.0
    %4764 = vmatpush1.msra.mxu0 0.0
    %4765 = vmatprep.subr.mxu0 0.0
    %4766 = vmatpush1.msra.mxu0 0.0
    %4767 = vmatprep.subr.mxu0 0.0
    %4768 = vmatpush1.msra.mxu0 0.0
    %4769 = vmatprep.subr.mxu0 0.0
    %4770 = vmatpush1.msra.mxu0 0.0
    %4771 = vmatprep.subr.mxu0 0.0
    %4772 = vmatpush1.msra.mxu0 0.0
    %4773 = vmatprep.subr.mxu0 0.0
    %4774 = vmatpush1.msra.mxu0 0.0
    %4775 = vmatprep.subr.mxu0 0.0
    %4776 = vmatpush1.msra.mxu0 0.0
    %4777 = vmatprep.subr.mxu0 0.0
    %4778 = vmatpush1.msra.mxu0 0.0
    %4779 = vmatprep.subr.mxu0 0.0
    %4780 = vmatpush1.msra.mxu0 0.0
    %4781 = vmatprep.subr.mxu0 0.0
    %4782 = vmatpush1.msra.mxu0 0.0
    %4783 = vmatprep.subr.mxu0 0.0
    %4784 = vmatpush1.msra.mxu0 0.0
    %4785 = vmatprep.subr.mxu0 0.0
    %4786 = vmatpush1.msra.mxu0 0.0
    %4787 = vmatprep.subr.mxu0 0.0
    %4788 = vmatpush1.msra.mxu0 0.0
    %4789 = vmatprep.subr.mxu0 0.0
    %4790 = vmatpush1.msra.mxu0 0.0
    %4791 = vmatprep.subr.mxu0 0.0
    %4792 = vmatpush1.msra.mxu0 0.0
    %4793 = vmatprep.subr.mxu0 0.0
    %4794 = vmatpush1.msra.mxu0 0.0
    %4795 = vmatprep.subr.mxu0 0.0
    %4796 = vmatpush1.msra.mxu0 0.0
    %4797 = vmatprep.subr.mxu0 0.0
    %4798 = vmatpush1.msra.mxu0 0.0
    %4799 = vmatprep.subr.mxu0 0.0
    %4800 = vmatpush1.msra.mxu0 0.0
    %4801 = vmatprep.subr.mxu0 0.0
    %4802 = vmatpush1.msra.mxu0 0.0
    %4803 = vmatprep.mubr.f32.mxu0 0.0
    %4804 = vmatmul.mubr.f32.gmra.mrb[0].mxu0 %v4737
    %v4805 = vpop.f32.mrb[0].mxu0
    %v4806 = vadd.f32 %v275, %v4805
    %v4807 = vpop.f32.mrb[0].mxu0
    %4808 = vdwg.mxu0
    %v4809 = vmax.f32 %v4806, 0.0
    %v4811 = vsel %vm470, %v4809, 0
    %4813 = vmatprep.subr.mxu0 0.0
    %4814 = vmatpush1.msra.mxu0 %v223
    %4815 = vmatprep.subr.mxu0 0.0
    %4816 = vmatpush1.msra.mxu0 %v224
    %4817 = vmatprep.subr.mxu0 0.0
    %4818 = vmatpush1.msra.mxu0 %v225
    %4819 = vmatprep.subr.mxu0 0.0
    %4820 = vmatpush1.msra.mxu0 %v226
    %4821 = vmatprep.subr.mxu0 0.0
    %4822 = vmatpush1.msra.mxu0 %v227
    %4823 = vmatprep.subr.mxu0 0.0
    %4824 = vmatpush1.msra.mxu0 %v228
    %4825 = vmatprep.subr.mxu0 0.0
    %4826 = vmatpush1.msra.mxu0 %v229
    %4827 = vmatprep.subr.mxu0 0.0
    %4828 = vmatpush1.msra.mxu0 %v230
    %4829 = vmatprep.subr.mxu0 0.0
    %4830 = vmatpush1.msra.mxu0 0.0
    %4831 = vmatprep.subr.mxu0 0.0
    %4832 = vmatpush1.msra.mxu0 0.0
    %4833 = vmatprep.subr.mxu0 0.0
    %4834 = vmatpush1.msra.mxu0 0.0
    %4835 = vmatprep.subr.mxu0 0.0
    %4836 = vmatpush1.msra.mxu0 0.0
    %4837 = vmatprep.subr.mxu0 0.0
    %4838 = vmatpush1.msra.mxu0 0.0
    %4839 = vmatprep.subr.mxu0 0.0
    %4840 = vmatpush1.msra.mxu0 0.0
    %4841 = vmatprep.subr.mxu0 0.0
    %4842 = vmatpush1.msra.mxu0 0.0
    %4843 = vmatprep.subr.mxu0 0.0
    %4844 = vmatpush1.msra.mxu0 0.0
    %4845 = vmatprep.subr.mxu0 0.0
    %4846 = vmatpush1.msra.mxu0 0.0
    %4847 = vmatprep.subr.mxu0 0.0
    %4848 = vmatpush1.msra.mxu0 0.0
    %4849 = vmatprep.subr.mxu0 0.0
    %4850 = vmatpush1.msra.mxu0 0.0
    %4851 = vmatprep.subr.mxu0 0.0
    %4852 = vmatpush1.msra.mxu0 0.0
    %4853 = vmatprep.subr.mxu0 0.0
    %4854 = vmatpush1.msra.mxu0 0.0
    %4855 = vmatprep.subr.mxu0 0.0
    %4856 = vmatpush1.msra.mxu0 0.0
    %4857 = vmatprep.subr.mxu0 0.0
    %4858 = vmatpush1.msra.mxu0 0.0
    %4859 = vmatprep.subr.mxu0 0.0
    %4860 = vmatpush1.msra.mxu0 0.0
    %4861 = vmatprep.subr.mxu0 0.0
    %4862 = vmatpush1.msra.mxu0 0.0
    %4863 = vmatprep.subr.mxu0 0.0
    %4864 = vmatpush1.msra.mxu0 0.0
    %4865 = vmatprep.subr.mxu0 0.0
    %4866 = vmatpush1.msra.mxu0 0.0
    %4867 = vmatprep.subr.mxu0 0.0
    %4868 = vmatpush1.msra.mxu0 0.0
    %4869 = vmatprep.subr.mxu0 0.0
    %4870 = vmatpush1.msra.mxu0 0.0
    %4871 = vmatprep.subr.mxu0 0.0
    %4872 = vmatpush1.msra.mxu0 0.0
    %4873 = vmatprep.subr.mxu0 0.0
    %4874 = vmatpush1.msra.mxu0 0.0
    %4875 = vmatprep.subr.mxu0 0.0
    %4876 = vmatpush1.msra.mxu0 0.0
    %4877 = vmatprep.mubr.f32.mxu0 0.0
    %4878 = vmatmul.mubr.f32.gmra.mrb[0].mxu0 %v4811
    %v4879 = vpop.f32.mrb[0].mxu0
    %v4880 = vadd.f32 %v282, %v4879
    %v4881 = vpop.f32.mrb[0].mxu0
    %4882 = vdwg.mxu0
    %v4883 = vmax.f32 %v4880, 0.0
    %v4885 = vsel %vm470, %v4883, 0
    %4887 = vmatprep.subr.mxu0 0.0
    %4888 = vmatpush1.msra.mxu0 %v231
    %4889 = vmatprep.subr.mxu0 0.0
    %4890 = vmatpush1.msra.mxu0 %v232
    %4891 = vmatprep.subr.mxu0 0.0
    %4892 = vmatpush1.msra.mxu0 %v233
    %4893 = vmatprep.subr.mxu0 0.0
    %4894 = vmatpush1.msra.mxu0 %v234
    %4895 = vmatprep.subr.mxu0 0.0
    %4896 = vmatpush1.msra.mxu0 %v235
    %4897 = vmatprep.subr.mxu0 0.0
    %4898 = vmatpush1.msra.mxu0 %v236
    %4899 = vmatprep.subr.mxu0 0.0
    %4900 = vmatpush1.msra.mxu0 %v237
    %4901 = vmatprep.subr.mxu0 0.0
    %4902 = vmatpush1.msra.mxu0 %v238
    %4903 = vmatprep.subr.mxu0 0.0
    %4904 = vmatpush1.msra.mxu0 0.0
    %4905 = vmatprep.subr.mxu0 0.0
    %4906 = vmatpush1.msra.mxu0 0.0
    %4907 = vmatprep.subr.mxu0 0.0
    %4908 = vmatpush1.msra.mxu0 0.0
    %4909 = vmatprep.subr.mxu0 0.0
    %4910 = vmatpush1.msra.mxu0 0.0
    %4911 = vmatprep.subr.mxu0 0.0
    %4912 = vmatpush1.msra.mxu0 0.0
    %4913 = vmatprep.subr.mxu0 0.0
    %4914 = vmatpush1.msra.mxu0 0.0
    %4915 = vmatprep.subr.mxu0 0.0
    %4916 = vmatpush1.msra.mxu0 0.0
    %4917 = vmatprep.subr.mxu0 0.0
    %4918 = vmatpush1.msra.mxu0 0.0
    %4919 = vmatprep.subr.mxu0 0.0
    %4920 = vmatpush1.msra.mxu0 0.0
    %4921 = vmatprep.subr.mxu0 0.0
    %4922 = vmatpush1.msra.mxu0 0.0
    %4923 = vmatprep.subr.mxu0 0.0
    %4924 = vmatpush1.msra.mxu0 0.0
    %4925 = vmatprep.subr.mxu0 0.0
    %4926 = vmatpush1.msra.mxu0 0.0
    %4927 = vmatprep.subr.mxu0 0.0
    %4928 = vmatpush1.msra.mxu0 0.0
    %4929 = vmatprep.subr.mxu0 0.0
    %4930 = vmatpush1.msra.mxu0 0.0
    %4931 = vmatprep.subr.mxu0 0.0
    %4932 = vmatpush1.msra.mxu0 0.0
    %4933 = vmatprep.subr.mxu0 0.0
    %4934 = vmatpush1.msra.mxu0 0.0
    %4935 = vmatprep.subr.mxu0 0.0
    %4936 = vmatpush1.msra.mxu0 0.0
    %4937 = vmatprep.subr.mxu0 0.0
    %4938 = vmatpush1.msra.mxu0 0.0
    %4939 = vmatprep.subr.mxu0 0.0
    %4940 = vmatpush1.msra.mxu0 0.0
    %4941 = vmatprep.subr.mxu0 0.0
    %4942 = vmatpush1.msra.mxu0 0.0
    %4943 = vmatprep.subr.mxu0 0.0
    %4944 = vmatpush1.msra.mxu0 0.0
    %4945 = vmatprep.subr.mxu0 0.0
    %4946 = vmatpush1.msra.mxu0 0.0
    %4947 = vmatprep.subr.mxu0 0.0
    %4948 = vmatpush1.msra.mxu0 0.0
    %4949 = vmatprep.subr.mxu0 0.0
    %4950 = vmatpush1.msra.mxu0 0.0
    %4951 = vmatprep.mubr.f32.mxu0 0.0
    %4952 = vmatmul.mubr.f32.gmra.mrb[0].mxu0 %v4885
    %v4953 = vpop.f32.mrb[0].mxu0
    %v4954 = vadd.f32 %v289, %v4953
    %v4955 = vpop.f32.mrb[0].mxu0
    %4956 = vdwg.mxu0
    %v4957 = vadd.f32 %v4954, %v4587
    %v4958 = vxor.u32 %v4957, 2147483648
    %v4959 = vmul.f32 %v4958, 1.442695
    %v4960 = vpow.pop %v4959
    %v4961 = vadd.f32 %v4960, 1.0
    %v4962 = vrcp.pop %v4961
    %v4963 = vmul.f32 1.0, %v4962
    %v4964 = vsub.f32 1.0, %v4963
    %4966 = vset.pattern.permute.xlu0 0
    %4967 = vperm.xlu0 %4966, %v4964
    %v4968 = vpop.permute.xlu0 %4967
    %v4970 = vmul.f32 %v4566, %v4968
    %v4972 = vsel %vm321, %v4566, 0
    %4974 = vmatprep.subr.mxu0 0.0
    %4975 = vmatpush1.msra.mxu0 %v251
    %4976 = vmatprep.subr.mxu0 0.0
    %4977 = vmatpush1.msra.mxu0 %v252
    %4978 = vmatprep.subr.mxu0 0.0
    %4979 = vmatpush1.msra.mxu0 %v253
    %4980 = vmatprep.subr.mxu0 0.0
    %4981 = vmatpush1.msra.mxu0 %v254
    %4982 = vmatprep.subr.mxu0 0.0
    %4983 = vmatpush1.msra.mxu0 0.0
    %4984 = vmatprep.subr.mxu0 0.0
    %4985 = vmatpush1.msra.mxu0 0.0
    %4986 = vmatprep.subr.mxu0 0.0
    %4987 = vmatpush1.msra.mxu0 0.0
    %4988 = vmatprep.subr.mxu0 0.0
    %4989 = vmatpush1.msra.mxu0 0.0
    %4990 = vmatprep.subr.mxu0 0.0
    %4991 = vmatpush1.msra.mxu0 0.0
    %4992 = vmatprep.subr.mxu0 0.0
    %4993 = vmatpush1.msra.mxu0 0.0
    %4994 = vmatprep.subr.mxu0 0.0
    %4995 = vmatpush1.msra.mxu0 0.0
    %4996 = vmatprep.subr.mxu0 0.0
    %4997 = vmatpush1.msra.mxu0 0.0
    %4998 = vmatprep.subr.mxu0 0.0
    %4999 = vmatpush1.msra.mxu0 0.0
    %5000 = vmatprep.subr.mxu0 0.0
    %5001 = vmatpush1.msra.mxu0 0.0
    %5002 = vmatprep.subr.mxu0 0.0
    %5003 = vmatpush1.msra.mxu0 0.0
    %5004 = vmatprep.subr.mxu0 0.0
    %5005 = vmatpush1.msra.mxu0 0.0
    %5006 = vmatprep.subr.mxu0 0.0
    %5007 = vmatpush1.msra.mxu0 0.0
    %5008 = vmatprep.subr.mxu0 0.0
    %5009 = vmatpush1.msra.mxu0 0.0
    %5010 = vmatprep.subr.mxu0 0.0
    %5011 = vmatpush1.msra.mxu0 0.0
    %5012 = vmatprep.subr.mxu0 0.0
    %5013 = vmatpush1.msra.mxu0 0.0
    %5014 = vmatprep.subr.mxu0 0.0
    %5015 = vmatpush1.msra.mxu0 0.0
    %5016 = vmatprep.subr.mxu0 0.0
    %5017 = vmatpush1.msra.mxu0 0.0
    %5018 = vmatprep.subr.mxu0 0.0
    %5019 = vmatpush1.msra.mxu0 0.0
    %5020 = vmatprep.subr.mxu0 0.0
    %5021 = vmatpush1.msra.mxu0 0.0
    %5022 = vmatprep.subr.mxu0 0.0
    %5023 = vmatpush1.msra.mxu0 0.0
    %5024 = vmatprep.subr.mxu0 0.0
    %5025 = vmatpush1.msra.mxu0 0.0
    %5026 = vmatprep.subr.mxu0 0.0
    %5027 = vmatpush1.msra.mxu0 0.0
    %5028 = vmatprep.subr.mxu0 0.0
    %5029 = vmatpush1.msra.mxu0 0.0
    %5030 = vmatprep.subr.mxu0 0.0
    %5031 = vmatpush1.msra.mxu0 0.0
    %5032 = vmatprep.subr.mxu0 0.0
    %5033 = vmatpush1.msra.mxu0 0.0
    %5034 = vmatprep.subr.mxu0 0.0
    %5035 = vmatpush1.msra.mxu0 0.0
    %5036 = vmatprep.subr.mxu0 0.0
    %5037 = vmatpush1.msra.mxu0 0.0
    %5038 = vmatprep.mubr.f32.mxu0 0.0
    %5039 = vmatmul.mubr.f32.gmra.mrb[0].mxu0 %v4972
    %v5040 = vpop.f32.mrb[0].mxu0
    %v5041 = vadd.f32 0.0, %v5040
    %v5042 = vpop.f32.mrb[0].mxu0
    %5043 = vdwg.mxu0
    %5044 = vmatprep.subr.mxu0 0.0
    %5045 = vmatpush1.msra.mxu0 %v239
    %5046 = vmatprep.subr.mxu0 0.0
    %5047 = vmatpush1.msra.mxu0 %v240
    %5048 = vmatprep.subr.mxu0 0.0
    %5049 = vmatpush1.msra.mxu0 %v241
    %5050 = vmatprep.subr.mxu0 0.0
    %5051 = vmatpush1.msra.mxu0 %v242
    %5052 = vmatprep.subr.mxu0 0.0
    %5053 = vmatpush1.msra.mxu0 0.0
    %5054 = vmatprep.subr.mxu0 0.0
    %5055 = vmatpush1.msra.mxu0 0.0
    %5056 = vmatprep.subr.mxu0 0.0
    %5057 = vmatpush1.msra.mxu0 0.0
    %5058 = vmatprep.subr.mxu0 0.0
    %5059 = vmatpush1.msra.mxu0 0.0
    %5060 = vmatprep.subr.mxu0 0.0
    %5061 = vmatpush1.msra.mxu0 0.0
    %5062 = vmatprep.subr.mxu0 0.0
    %5063 = vmatpush1.msra.mxu0 0.0
    %5064 = vmatprep.subr.mxu0 0.0
    %5065 = vmatpush1.msra.mxu0 0.0
    %5066 = vmatprep.subr.mxu0 0.0
    %5067 = vmatpush1.msra.mxu0 0.0
    %5068 = vmatprep.subr.mxu0 0.0
    %5069 = vmatpush1.msra.mxu0 0.0
    %5070 = vmatprep.subr.mxu0 0.0
    %5071 = vmatpush1.msra.mxu0 0.0
    %5072 = vmatprep.subr.mxu0 0.0
    %5073 = vmatpush1.msra.mxu0 0.0
    %5074 = vmatprep.subr.mxu0 0.0
    %5075 = vmatpush1.msra.mxu0 0.0
    %5076 = vmatprep.subr.mxu0 0.0
    %5077 = vmatpush1.msra.mxu0 0.0
    %5078 = vmatprep.subr.mxu0 0.0
    %5079 = vmatpush1.msra.mxu0 0.0
    %5080 = vmatprep.subr.mxu0 0.0
    %5081 = vmatpush1.msra.mxu0 0.0
    %5082 = vmatprep.subr.mxu0 0.0
    %5083 = vmatpush1.msra.mxu0 0.0
    %5084 = vmatprep.subr.mxu0 0.0
    %5085 = vmatpush1.msra.mxu0 0.0
    %5086 = vmatprep.subr.mxu0 0.0
    %5087 = vmatpush1.msra.mxu0 0.0
    %5088 = vmatprep.subr.mxu0 0.0
    %5089 = vmatpush1.msra.mxu0 0.0
    %5090 = vmatprep.subr.mxu0 0.0
    %5091 = vmatpush1.msra.mxu0 0.0
    %5092 = vmatprep.subr.mxu0 0.0
    %5093 = vmatpush1.msra.mxu0 0.0
    %5094 = vmatprep.subr.mxu0 0.0
    %5095 = vmatpush1.msra.mxu0 0.0
    %5096 = vmatprep.subr.mxu0 0.0
    %5097 = vmatpush1.msra.mxu0 0.0
    %5098 = vmatprep.subr.mxu0 0.0
    %5099 = vmatpush1.msra.mxu0 0.0
    %5100 = vmatprep.subr.mxu0 0.0
    %5101 = vmatpush1.msra.mxu0 0.0
    %5102 = vmatprep.subr.mxu0 0.0
    %5103 = vmatpush1.msra.mxu0 0.0
    %5104 = vmatprep.subr.mxu0 0.0
    %5105 = vmatpush1.msra.mxu0 0.0
    %5106 = vmatprep.subr.mxu0 0.0
    %5107 = vmatpush1.msra.mxu0 0.0
    %5108 = vmatprep.mubr.f32.mxu0 0.0
    %5109 = vmatmul.mubr.f32.gmra.mrb[0].mxu0 %v4662
    %v5110 = vpop.f32.mrb[0].mxu0
    %v5111 = vadd.f32 %v5041, %v5110
    %v5112 = vpop.f32.mrb[0].mxu0
    %5113 = vdwg.mxu0
    %v5114 = vadd.f32 %v5111, %v296
    %v5115 = vxor.u32 %v5114, 2147483648
    %v5116 = vmul.f32 %v5115, 1.442695
    %v5117 = vpow.pop %v5116
    %v5118 = vadd.f32 %v5117, 1.0
    %v5119 = vrcp.pop %v5118
    %v5120 = vmul.f32 1.0, %v5119
    %5121 = vmatprep.subr.mxu0 0.0
    %5122 = vmatpush1.msra.mxu0 %v255
    %5123 = vmatprep.subr.mxu0 0.0
    %5124 = vmatpush1.msra.mxu0 %v256
    %5125 = vmatprep.subr.mxu0 0.0
    %5126 = vmatpush1.msra.mxu0 %v257
    %5127 = vmatprep.subr.mxu0 0.0
    %5128 = vmatpush1.msra.mxu0 %v258
    %5129 = vmatprep.subr.mxu0 0.0
    %5130 = vmatpush1.msra.mxu0 0.0
    %5131 = vmatprep.subr.mxu0 0.0
    %5132 = vmatpush1.msra.mxu0 0.0
    %5133 = vmatprep.subr.mxu0 0.0
    %5134 = vmatpush1.msra.mxu0 0.0
    %5135 = vmatprep.subr.mxu0 0.0
    %5136 = vmatpush1.msra.mxu0 0.0
    %5137 = vmatprep.subr.mxu0 0.0
    %5138 = vmatpush1.msra.mxu0 0.0
    %5139 = vmatprep.subr.mxu0 0.0
    %5140 = vmatpush1.msra.mxu0 0.0
    %5141 = vmatprep.subr.mxu0 0.0
    %5142 = vmatpush1.msra.mxu0 0.0
    %5143 = vmatprep.subr.mxu0 0.0
    %5144 = vmatpush1.msra.mxu0 0.0
    %5145 = vmatprep.subr.mxu0 0.0
    %5146 = vmatpush1.msra.mxu0 0.0
    %5147 = vmatprep.subr.mxu0 0.0
    %5148 = vmatpush1.msra.mxu0 0.0
    %5149 = vmatprep.subr.mxu0 0.0
    %5150 = vmatpush1.msra.mxu0 0.0
    %5151 = vmatprep.subr.mxu0 0.0
    %5152 = vmatpush1.msra.mxu0 0.0
    %5153 = vmatprep.subr.mxu0 0.0
    %5154 = vmatpush1.msra.mxu0 0.0
    %5155 = vmatprep.subr.mxu0 0.0
    %5156 = vmatpush1.msra.mxu0 0.0
    %5157 = vmatprep.subr.mxu0 0.0
    %5158 = vmatpush1.msra.mxu0 0.0
    %5159 = vmatprep.subr.mxu0 0.0
    %5160 = vmatpush1.msra.mxu0 0.0
    %5161 = vmatprep.subr.mxu0 0.0
    %5162 = vmatpush1.msra.mxu0 0.0
    %5163 = vmatprep.subr.mxu0 0.0
    %5164 = vmatpush1.msra.mxu0 0.0
    %5165 = vmatprep.subr.mxu0 0.0
    %5166 = vmatpush1.msra.mxu0 0.0
    %5167 = vmatprep.subr.mxu0 0.0
    %5168 = vmatpush1.msra.mxu0 0.0
    %5169 = vmatprep.subr.mxu0 0.0
    %5170 = vmatpush1.msra.mxu0 0.0
    %5171 = vmatprep.subr.mxu0 0.0
    %5172 = vmatpush1.msra.mxu0 0.0
    %5173 = vmatprep.subr.mxu0 0.0
    %5174 = vmatpush1.msra.mxu0 0.0
    %5175 = vmatprep.subr.mxu0 0.0
    %5176 = vmatpush1.msra.mxu0 0.0
    %5177 = vmatprep.subr.mxu0 0.0
    %5178 = vmatpush1.msra.mxu0 0.0
    %5179 = vmatprep.subr.mxu0 0.0
    %5180 = vmatpush1.msra.mxu0 0.0
    %5181 = vmatprep.subr.mxu0 0.0
    %5182 = vmatpush1.msra.mxu0 0.0
    %5183 = vmatprep.subr.mxu0 0.0
    %5184 = vmatpush1.msra.mxu0 0.0
    %5185 = vmatprep.mubr.f32.mxu0 0.0
    %5186 = vmatmul.mubr.f32.gmra.mrb[0].mxu0 %v4972
    %v5187 = vpop.f32.mrb[0].mxu0
    %v5188 = vadd.f32 0.0, %v5187
    %v5189 = vpop.f32.mrb[0].mxu0
    %5190 = vdwg.mxu0
    %5191 = vmatprep.subr.mxu0 0.0
    %5192 = vmatpush1.msra.mxu0 %v243
    %5193 = vmatprep.subr.mxu0 0.0
    %5194 = vmatpush1.msra.mxu0 %v244
    %5195 = vmatprep.subr.mxu0 0.0
    %5196 = vmatpush1.msra.mxu0 %v245
    %5197 = vmatprep.subr.mxu0 0.0
    %5198 = vmatpush1.msra.mxu0 %v246
    %5199 = vmatprep.subr.mxu0 0.0
    %5200 = vmatpush1.msra.mxu0 0.0
    %5201 = vmatprep.subr.mxu0 0.0
    %5202 = vmatpush1.msra.mxu0 0.0
    %5203 = vmatprep.subr.mxu0 0.0
    %5204 = vmatpush1.msra.mxu0 0.0
    %5205 = vmatprep.subr.mxu0 0.0
    %5206 = vmatpush1.msra.mxu0 0.0
    %5207 = vmatprep.subr.mxu0 0.0
    %5208 = vmatpush1.msra.mxu0 0.0
    %5209 = vmatprep.subr.mxu0 0.0
    %5210 = vmatpush1.msra.mxu0 0.0
    %5211 = vmatprep.subr.mxu0 0.0
    %5212 = vmatpush1.msra.mxu0 0.0
    %5213 = vmatprep.subr.mxu0 0.0
    %5214 = vmatpush1.msra.mxu0 0.0
    %5215 = vmatprep.subr.mxu0 0.0
    %5216 = vmatpush1.msra.mxu0 0.0
    %5217 = vmatprep.subr.mxu0 0.0
    %5218 = vmatpush1.msra.mxu0 0.0
    %5219 = vmatprep.subr.mxu0 0.0
    %5220 = vmatpush1.msra.mxu0 0.0
    %5221 = vmatprep.subr.mxu0 0.0
    %5222 = vmatpush1.msra.mxu0 0.0
    %5223 = vmatprep.subr.mxu0 0.0
    %5224 = vmatpush1.msra.mxu0 0.0
    %5225 = vmatprep.subr.mxu0 0.0
    %5226 = vmatpush1.msra.mxu0 0.0
    %5227 = vmatprep.subr.mxu0 0.0
    %5228 = vmatpush1.msra.mxu0 0.0
    %5229 = vmatprep.subr.mxu0 0.0
    %5230 = vmatpush1.msra.mxu0 0.0
    %5231 = vmatprep.subr.mxu0 0.0
    %5232 = vmatpush1.msra.mxu0 0.0
    %5233 = vmatprep.subr.mxu0 0.0
    %5234 = vmatpush1.msra.mxu0 0.0
    %5235 = vmatprep.subr.mxu0 0.0
    %5236 = vmatpush1.msra.mxu0 0.0
    %5237 = vmatprep.subr.mxu0 0.0
    %5238 = vmatpush1.msra.mxu0 0.0
    %5239 = vmatprep.subr.mxu0 0.0
    %5240 = vmatpush1.msra.mxu0 0.0
    %5241 = vmatprep.subr.mxu0 0.0
    %5242 = vmatpush1.msra.mxu0 0.0
    %5243 = vmatprep.subr.mxu0 0.0
    %5244 = vmatpush1.msra.mxu0 0.0
    %5245 = vmatprep.subr.mxu0 0.0
    %5246 = vmatpush1.msra.mxu0 0.0
    %5247 = vmatprep.subr.mxu0 0.0
    %5248 = vmatpush1.msra.mxu0 0.0
    %5249 = vmatprep.subr.mxu0 0.0
    %5250 = vmatpush1.msra.mxu0 0.0
    %5251 = vmatprep.subr.mxu0 0.0
    %5252 = vmatpush1.msra.mxu0 0.0
    %5253 = vmatprep.subr.mxu0 0.0
    %5254 = vmatpush1.msra.mxu0 0.0
    %5255 = vmatprep.mubr.f32.mxu0 0.0
    %5256 = vmatmul.mubr.f32.gmra.mrb[0].mxu0 %v4662
    %v5257 = vpop.f32.mrb[0].mxu0
    %v5258 = vadd.f32 %v5188, %v5257
    %v5259 = vpop.f32.mrb[0].mxu0
    %5260 = vdwg.mxu0
    %v5261 = vadd.f32 %v5258, %v303
    %v5262 = vxor.u32 %v5261, 2147483648
    %v5263 = vmul.f32 %v5262, 1.442695
    %v5264 = vpow.pop %v5263
    %v5265 = vadd.f32 %v5264, 1.0
    %v5266 = vrcp.pop %v5265
    %v5267 = vmul.f32 1.0, %v5266
    %5268 = vmatprep.subr.mxu0 0.0
    %5269 = vmatpush1.msra.mxu0 %v259
    %5270 = vmatprep.subr.mxu0 0.0
    %5271 = vmatpush1.msra.mxu0 %v260
    %5272 = vmatprep.subr.mxu0 0.0
    %5273 = vmatpush1.msra.mxu0 %v261
    %5274 = vmatprep.subr.mxu0 0.0
    %5275 = vmatpush1.msra.mxu0 %v262
    %5276 = vmatprep.subr.mxu0 0.0
    %5277 = vmatpush1.msra.mxu0 0.0
    %5278 = vmatprep.subr.mxu0 0.0
    %5279 = vmatpush1.msra.mxu0 0.0
    %5280 = vmatprep.subr.mxu0 0.0
    %5281 = vmatpush1.msra.mxu0 0.0
    %5282 = vmatprep.subr.mxu0 0.0
    %5283 = vmatpush1.msra.mxu0 0.0
    %5284 = vmatprep.subr.mxu0 0.0
    %5285 = vmatpush1.msra.mxu0 0.0
    %5286 = vmatprep.subr.mxu0 0.0
    %5287 = vmatpush1.msra.mxu0 0.0
    %5288 = vmatprep.subr.mxu0 0.0
    %5289 = vmatpush1.msra.mxu0 0.0
    %5290 = vmatprep.subr.mxu0 0.0
    %5291 = vmatpush1.msra.mxu0 0.0
    %5292 = vmatprep.subr.mxu0 0.0
    %5293 = vmatpush1.msra.mxu0 0.0
    %5294 = vmatprep.subr.mxu0 0.0
    %5295 = vmatpush1.msra.mxu0 0.0
    %5296 = vmatprep.subr.mxu0 0.0
    %5297 = vmatpush1.msra.mxu0 0.0
    %5298 = vmatprep.subr.mxu0 0.0
    %5299 = vmatpush1.msra.mxu0 0.0
    %5300 = vmatprep.subr.mxu0 0.0
    %5301 = vmatpush1.msra.mxu0 0.0
    %5302 = vmatprep.subr.mxu0 0.0
    %5303 = vmatpush1.msra.mxu0 0.0
    %5304 = vmatprep.subr.mxu0 0.0
    %5305 = vmatpush1.msra.mxu0 0.0
    %5306 = vmatprep.subr.mxu0 0.0
    %5307 = vmatpush1.msra.mxu0 0.0
    %5308 = vmatprep.subr.mxu0 0.0
    %5309 = vmatpush1.msra.mxu0 0.0
    %5310 = vmatprep.subr.mxu0 0.0
    %5311 = vmatpush1.msra.mxu0 0.0
    %5312 = vmatprep.subr.mxu0 0.0
    %5313 = vmatpush1.msra.mxu0 0.0
    %5314 = vmatprep.subr.mxu0 0.0
    %5315 = vmatpush1.msra.mxu0 0.0
    %5316 = vmatprep.subr.mxu0 0.0
    %5317 = vmatpush1.msra.mxu0 0.0
    %5318 = vmatprep.subr.mxu0 0.0
    %5319 = vmatpush1.msra.mxu0 0.0
    %5320 = vmatprep.subr.mxu0 0.0
    %5321 = vmatpush1.msra.mxu0 0.0
    %5322 = vmatprep.subr.mxu0 0.0
    %5323 = vmatpush1.msra.mxu0 0.0
    %5324 = vmatprep.subr.mxu0 0.0
    %5325 = vmatpush1.msra.mxu0 0.0
    %5326 = vmatprep.subr.mxu0 0.0
    %5327 = vmatpush1.msra.mxu0 0.0
    %5328 = vmatprep.subr.mxu0 0.0
    %5329 = vmatpush1.msra.mxu0 0.0
    %5330 = vmatprep.subr.mxu0 0.0
    %5331 = vmatpush1.msra.mxu0 0.0
    %5332 = vmatprep.mubr.f32.mxu0 0.0
    %5333 = vmatmul.mubr.f32.gmra.mrb[0].mxu0 %v4972
    %v5334 = vpop.f32.mrb[0].mxu0
    %v5335 = vadd.f32 %v317, %v5334
    %v5336 = vpop.f32.mrb[0].mxu0
    %5337 = vdwg.mxu0
    %5338 = vmatprep.subr.mxu0 0.0
    %5339 = vmatpush1.msra.mxu0 %v247
    %5340 = vmatprep.subr.mxu0 0.0
    %5341 = vmatpush1.msra.mxu0 %v248
    %5342 = vmatprep.subr.mxu0 0.0
    %5343 = vmatpush1.msra.mxu0 %v249
    %5344 = vmatprep.subr.mxu0 0.0
    %5345 = vmatpush1.msra.mxu0 %v250
    %5346 = vmatprep.subr.mxu0 0.0
    %5347 = vmatpush1.msra.mxu0 0.0
    %5348 = vmatprep.subr.mxu0 0.0
    %5349 = vmatpush1.msra.mxu0 0.0
    %5350 = vmatprep.subr.mxu0 0.0
    %5351 = vmatpush1.msra.mxu0 0.0
    %5352 = vmatprep.subr.mxu0 0.0
    %5353 = vmatpush1.msra.mxu0 0.0
    %5354 = vmatprep.subr.mxu0 0.0
    %5355 = vmatpush1.msra.mxu0 0.0
    %5356 = vmatprep.subr.mxu0 0.0
    %5357 = vmatpush1.msra.mxu0 0.0
    %5358 = vmatprep.subr.mxu0 0.0
    %5359 = vmatpush1.msra.mxu0 0.0
    %5360 = vmatprep.subr.mxu0 0.0
    %5361 = vmatpush1.msra.mxu0 0.0
    %5362 = vmatprep.subr.mxu0 0.0
    %5363 = vmatpush1.msra.mxu0 0.0
    %5364 = vmatprep.subr.mxu0 0.0
    %5365 = vmatpush1.msra.mxu0 0.0
    %5366 = vmatprep.subr.mxu0 0.0
    %5367 = vmatpush1.msra.mxu0 0.0
    %5368 = vmatprep.subr.mxu0 0.0
    %5369 = vmatpush1.msra.mxu0 0.0
    %5370 = vmatprep.subr.mxu0 0.0
    %5371 = vmatpush1.msra.mxu0 0.0
    %5372 = vmatprep.subr.mxu0 0.0
    %5373 = vmatpush1.msra.mxu0 0.0
    %5374 = vmatprep.subr.mxu0 0.0
    %5375 = vmatpush1.msra.mxu0 0.0
    %5376 = vmatprep.subr.mxu0 0.0
    %5377 = vmatpush1.msra.mxu0 0.0
    %5378 = vmatprep.subr.mxu0 0.0
    %5379 = vmatpush1.msra.mxu0 0.0
    %5380 = vmatprep.subr.mxu0 0.0
    %5381 = vmatpush1.msra.mxu0 0.0
    %5382 = vmatprep.subr.mxu0 0.0
    %5383 = vmatpush1.msra.mxu0 0.0
    %5384 = vmatprep.subr.mxu0 0.0
    %5385 = vmatpush1.msra.mxu0 0.0
    %5386 = vmatprep.subr.mxu0 0.0
    %5387 = vmatpush1.msra.mxu0 0.0
    %5388 = vmatprep.subr.mxu0 0.0
    %5389 = vmatpush1.msra.mxu0 0.0
    %5390 = vmatprep.subr.mxu0 0.0
    %5391 = vmatpush1.msra.mxu0 0.0
    %5392 = vmatprep.subr.mxu0 0.0
    %5393 = vmatpush1.msra.mxu0 0.0
    %5394 = vmatprep.subr.mxu0 0.0
    %5395 = vmatpush1.msra.mxu0 0.0
    %5396 = vmatprep.subr.mxu0 0.0
    %5397 = vmatpush1.msra.mxu0 0.0
    %5398 = vmatprep.subr.mxu0 0.0
    %5399 = vmatpush1.msra.mxu0 0.0
    %5400 = vmatprep.subr.mxu0 0.0
    %5401 = vmatpush1.msra.mxu0 0.0
    %5402 = vmatprep.mubr.f32.mxu0 0.0
    %5403 = vmatmul.mubr.f32.gmra.mrb[0].mxu0 %v4662
    %v5404 = vpop.f32.mrb[0].mxu0
    %v5405 = vadd.f32 %v310, %v5404
    %v5406 = vpop.f32.mrb[0].mxu0
    %5407 = vdwg.mxu0
    %v5408 = vmul.f32 %v5120, %v5335
    %v5409 = vadd.f32 %v5405, %v5408
    %v5410 = vtanh.pop %v5409
    %v5411 = vsub.f32 1.0, %v5267
    %v5412 = vmul.f32 %v5411, %v5410
    %v5413 = vmul.f32 %v5267, %v4566
    %v5414 = vadd.f32 %v5412, %v5413
    %5416 = vset.pattern.permute.xlu0 0
    %5417 = vperm.xlu0 %5416, %v4963
    %v5418 = vpop.permute.xlu0 %5417
    %v5420 = vmul.f32 %v5418, %v5414
    %v5421 = vadd.f32 %v4970, %v5420
    %v5422 = vmul.f32 %v4568, %v4964
    %v5423 = vadd.f32 %v5422, 1.0
    %v5424 = vrcp.pop %v5423
    %5426 = vset.pattern.permute.xlu0 0
    %5427 = vperm.xlu0 %5426, %v4568
    %v5428 = vpop.permute.xlu0 %5427
    %v5430 = vmul.f32 %v4583, %v5428
    %v5431 = vmul.f32 %v5430, %v4968
    %v5432 = vadd.f32 %v5431, %v4585
    %5434 = vset.pattern.permute.xlu0 0
    %5435 = vperm.xlu0 %5434, %v5424
    %v5436 = vpop.permute.xlu0 %5435
    %v5438 = vmul.f32 %v5432, %v5436
    %s5439 = scalar_lea.vmem %s0, 48
    %v5440 = vld [vmem:[%s5439] sm:$0xff]
    %s5441 = scalar_lea.vmem %s1, 48
    %v5442 = vld [vmem:[%s5441] sm:$0xff]
    %v5444 = vsel %vm321, %v5440, 0
    %5446 = vmatprep.subr.mxu0 0.0
    %5447 = vmatpush1.msra.mxu0 %v211
    %5448 = vmatprep.subr.mxu0 0.0
    %5449 = vmatpush1.msra.mxu0 %v212
    %5450 = vmatprep.subr.mxu0 0.0
    %5451 = vmatpush1.msra.mxu0 %v213
    %5452 = vmatprep.subr.mxu0 0.0
    %5453 = vmatpush1.msra.mxu0 %v214
    %5454 = vmatprep.subr.mxu0 0.0
    %5455 = vmatpush1.msra.mxu0 0.0
    %5456 = vmatprep.subr.mxu0 0.0
    %5457 = vmatpush1.msra.mxu0 0.0
    %5458 = vmatprep.subr.mxu0 0.0
    %5459 = vmatpush1.msra.mxu0 0.0
    %5460 = vmatprep.subr.mxu0 0.0
    %5461 = vmatpush1.msra.mxu0 0.0
    %5462 = vmatprep.subr.mxu0 0.0
    %5463 = vmatpush1.msra.mxu0 0.0
    %5464 = vmatprep.subr.mxu0 0.0
    %5465 = vmatpush1.msra.mxu0 0.0
    %5466 = vmatprep.subr.mxu0 0.0
    %5467 = vmatpush1.msra.mxu0 0.0
    %5468 = vmatprep.subr.mxu0 0.0
    %5469 = vmatpush1.msra.mxu0 0.0
    %5470 = vmatprep.subr.mxu0 0.0
    %5471 = vmatpush1.msra.mxu0 0.0
    %5472 = vmatprep.subr.mxu0 0.0
    %5473 = vmatpush1.msra.mxu0 0.0
    %5474 = vmatprep.subr.mxu0 0.0
    %5475 = vmatpush1.msra.mxu0 0.0
    %5476 = vmatprep.subr.mxu0 0.0
    %5477 = vmatpush1.msra.mxu0 0.0
    %5478 = vmatprep.subr.mxu0 0.0
    %5479 = vmatpush1.msra.mxu0 0.0
    %5480 = vmatprep.subr.mxu0 0.0
    %5481 = vmatpush1.msra.mxu0 0.0
    %5482 = vmatprep.subr.mxu0 0.0
    %5483 = vmatpush1.msra.mxu0 0.0
    %5484 = vmatprep.subr.mxu0 0.0
    %5485 = vmatpush1.msra.mxu0 0.0
    %5486 = vmatprep.subr.mxu0 0.0
    %5487 = vmatpush1.msra.mxu0 0.0
    %5488 = vmatprep.subr.mxu0 0.0
    %5489 = vmatpush1.msra.mxu0 0.0
    %5490 = vmatprep.subr.mxu0 0.0
    %5491 = vmatpush1.msra.mxu0 0.0
    %5492 = vmatprep.subr.mxu0 0.0
    %5493 = vmatpush1.msra.mxu0 0.0
    %5494 = vmatprep.subr.mxu0 0.0
    %5495 = vmatpush1.msra.mxu0 0.0
    %5496 = vmatprep.subr.mxu0 0.0
    %5497 = vmatpush1.msra.mxu0 0.0
    %5498 = vmatprep.subr.mxu0 0.0
    %5499 = vmatpush1.msra.mxu0 0.0
    %5500 = vmatprep.subr.mxu0 0.0
    %5501 = vmatpush1.msra.mxu0 0.0
    %5502 = vmatprep.subr.mxu0 0.0
    %5503 = vmatpush1.msra.mxu0 0.0
    %5504 = vmatprep.subr.mxu0 0.0
    %5505 = vmatpush1.msra.mxu0 0.0
    %5506 = vmatprep.subr.mxu0 0.0
    %5507 = vmatpush1.msra.mxu0 0.0
    %5508 = vmatprep.subr.mxu0 0.0
    %5509 = vmatpush1.msra.mxu0 0.0
    %5510 = vmatprep.mubr.f32.mxu0 0.0
    %5511 = vmatmul.mubr.f32.gmra.mrb[0].mxu0 %v5444
    %v5512 = vpop.f32.mrb[0].mxu0
    %v5513 = vadd.f32 0.0, %v5512
    %v5514 = vpop.f32.mrb[0].mxu0
    %5515 = vdwg.mxu0
    %v5517 = vsel %vm321, %v5438, 0
    %5519 = vmatprep.subr.mxu0 0.0
    %5520 = vmatpush1.msra.mxu0 %v207
    %5521 = vmatprep.subr.mxu0 0.0
    %5522 = vmatpush1.msra.mxu0 %v208
    %5523 = vmatprep.subr.mxu0 0.0
    %5524 = vmatpush1.msra.mxu0 %v209
    %5525 = vmatprep.subr.mxu0 0.0
    %5526 = vmatpush1.msra.mxu0 %v210
    %5527 = vmatprep.subr.mxu0 0.0
    %5528 = vmatpush1.msra.mxu0 0.0
    %5529 = vmatprep.subr.mxu0 0.0
    %5530 = vmatpush1.msra.mxu0 0.0
    %5531 = vmatprep.subr.mxu0 0.0
    %5532 = vmatpush1.msra.mxu0 0.0
    %5533 = vmatprep.subr.mxu0 0.0
    %5534 = vmatpush1.msra.mxu0 0.0
    %5535 = vmatprep.subr.mxu0 0.0
    %5536 = vmatpush1.msra.mxu0 0.0
    %5537 = vmatprep.subr.mxu0 0.0
    %5538 = vmatpush1.msra.mxu0 0.0
    %5539 = vmatprep.subr.mxu0 0.0
    %5540 = vmatpush1.msra.mxu0 0.0
    %5541 = vmatprep.subr.mxu0 0.0
    %5542 = vmatpush1.msra.mxu0 0.0
    %5543 = vmatprep.subr.mxu0 0.0
    %5544 = vmatpush1.msra.mxu0 0.0
    %5545 = vmatprep.subr.mxu0 0.0
    %5546 = vmatpush1.msra.mxu0 0.0
    %5547 = vmatprep.subr.mxu0 0.0
    %5548 = vmatpush1.msra.mxu0 0.0
    %5549 = vmatprep.subr.mxu0 0.0
    %5550 = vmatpush1.msra.mxu0 0.0
    %5551 = vmatprep.subr.mxu0 0.0
    %5552 = vmatpush1.msra.mxu0 0.0
    %5553 = vmatprep.subr.mxu0 0.0
    %5554 = vmatpush1.msra.mxu0 0.0
    %5555 = vmatprep.subr.mxu0 0.0
    %5556 = vmatpush1.msra.mxu0 0.0
    %5557 = vmatprep.subr.mxu0 0.0
    %5558 = vmatpush1.msra.mxu0 0.0
    %5559 = vmatprep.subr.mxu0 0.0
    %5560 = vmatpush1.msra.mxu0 0.0
    %5561 = vmatprep.subr.mxu0 0.0
    %5562 = vmatpush1.msra.mxu0 0.0
    %5563 = vmatprep.subr.mxu0 0.0
    %5564 = vmatpush1.msra.mxu0 0.0
    %5565 = vmatprep.subr.mxu0 0.0
    %5566 = vmatpush1.msra.mxu0 0.0
    %5567 = vmatprep.subr.mxu0 0.0
    %5568 = vmatpush1.msra.mxu0 0.0
    %5569 = vmatprep.subr.mxu0 0.0
    %5570 = vmatpush1.msra.mxu0 0.0
    %5571 = vmatprep.subr.mxu0 0.0
    %5572 = vmatpush1.msra.mxu0 0.0
    %5573 = vmatprep.subr.mxu0 0.0
    %5574 = vmatpush1.msra.mxu0 0.0
    %5575 = vmatprep.subr.mxu0 0.0
    %5576 = vmatpush1.msra.mxu0 0.0
    %5577 = vmatprep.subr.mxu0 0.0
    %5578 = vmatpush1.msra.mxu0 0.0
    %5579 = vmatprep.subr.mxu0 0.0
    %5580 = vmatpush1.msra.mxu0 0.0
    %5581 = vmatprep.subr.mxu0 0.0
    %5582 = vmatpush1.msra.mxu0 0.0
    %5583 = vmatprep.mubr.f32.mxu0 0.0
    %5584 = vmatmul.mubr.f32.gmra.mrb[0].mxu0 %v5517
    %v5585 = vpop.f32.mrb[0].mxu0
    %v5586 = vadd.f32 %v5513, %v5585
    %v5587 = vpop.f32.mrb[0].mxu0
    %5588 = vdwg.mxu0
    %v5589 = vadd.f32 %v5586, %v268
    %v5590 = vmax.f32 %v5589, 0.0
    %v5592 = vsel %vm470, %v5590, 0
    %5594 = vmatprep.subr.mxu0 0.0
    %5595 = vmatpush1.msra.mxu0 %v215
    %5596 = vmatprep.subr.mxu0 0.0
    %5597 = vmatpush1.msra.mxu0 %v216
    %5598 = vmatprep.subr.mxu0 0.0
    %5599 = vmatpush1.msra.mxu0 %v217
    %5600 = vmatprep.subr.mxu0 0.0
    %5601 = vmatpush1.msra.mxu0 %v218
    %5602 = vmatprep.subr.mxu0 0.0
    %5603 = vmatpush1.msra.mxu0 %v219
    %5604 = vmatprep.subr.mxu0 0.0
    %5605 = vmatpush1.msra.mxu0 %v220
    %5606 = vmatprep.subr.mxu0 0.0
    %5607 = vmatpush1.msra.mxu0 %v221
    %5608 = vmatprep.subr.mxu0 0.0
    %5609 = vmatpush1.msra.mxu0 %v222
    %5610 = vmatprep.subr.mxu0 0.0
    %5611 = vmatpush1.msra.mxu0 0.0
    %5612 = vmatprep.subr.mxu0 0.0
    %5613 = vmatpush1.msra.mxu0 0.0
    %5614 = vmatprep.subr.mxu0 0.0
    %5615 = vmatpush1.msra.mxu0 0.0
    %5616 = vmatprep.subr.mxu0 0.0
    %5617 = vmatpush1.msra.mxu0 0.0
    %5618 = vmatprep.subr.mxu0 0.0
    %5619 = vmatpush1.msra.mxu0 0.0
    %5620 = vmatprep.subr.mxu0 0.0
    %5621 = vmatpush1.msra.mxu0 0.0
    %5622 = vmatprep.subr.mxu0 0.0
    %5623 = vmatpush1.msra.mxu0 0.0
    %5624 = vmatprep.subr.mxu0 0.0
    %5625 = vmatpush1.msra.mxu0 0.0
    %5626 = vmatprep.subr.mxu0 0.0
    %5627 = vmatpush1.msra.mxu0 0.0
    %5628 = vmatprep.subr.mxu0 0.0
    %5629 = vmatpush1.msra.mxu0 0.0
    %5630 = vmatprep.subr.mxu0 0.0
    %5631 = vmatpush1.msra.mxu0 0.0
    %5632 = vmatprep.subr.mxu0 0.0
    %5633 = vmatpush1.msra.mxu0 0.0
    %5634 = vmatprep.subr.mxu0 0.0
    %5635 = vmatpush1.msra.mxu0 0.0
    %5636 = vmatprep.subr.mxu0 0.0
    %5637 = vmatpush1.msra.mxu0 0.0
    %5638 = vmatprep.subr.mxu0 0.0
    %5639 = vmatpush1.msra.mxu0 0.0
    %5640 = vmatprep.subr.mxu0 0.0
    %5641 = vmatpush1.msra.mxu0 0.0
    %5642 = vmatprep.subr.mxu0 0.0
    %5643 = vmatpush1.msra.mxu0 0.0
    %5644 = vmatprep.subr.mxu0 0.0
    %5645 = vmatpush1.msra.mxu0 0.0
    %5646 = vmatprep.subr.mxu0 0.0
    %5647 = vmatpush1.msra.mxu0 0.0
    %5648 = vmatprep.subr.mxu0 0.0
    %5649 = vmatpush1.msra.mxu0 0.0
    %5650 = vmatprep.subr.mxu0 0.0
    %5651 = vmatpush1.msra.mxu0 0.0
    %5652 = vmatprep.subr.mxu0 0.0
    %5653 = vmatpush1.msra.mxu0 0.0
    %5654 = vmatprep.subr.mxu0 0.0
    %5655 = vmatpush1.msra.mxu0 0.0
    %5656 = vmatprep.subr.mxu0 0.0
    %5657 = vmatpush1.msra.mxu0 0.0
    %5658 = vmatprep.mubr.f32.mxu0 0.0
    %5659 = vmatmul.mubr.f32.gmra.mrb[0].mxu0 %v5592
    %v5660 = vpop.f32.mrb[0].mxu0
    %v5661 = vadd.f32 %v275, %v5660
    %v5662 = vpop.f32.mrb[0].mxu0
    %5663 = vdwg.mxu0
    %v5664 = vmax.f32 %v5661, 0.0
    %v5666 = vsel %vm470, %v5664, 0
    %5668 = vmatprep.subr.mxu0 0.0
    %5669 = vmatpush1.msra.mxu0 %v223
    %5670 = vmatprep.subr.mxu0 0.0
    %5671 = vmatpush1.msra.mxu0 %v224
    %5672 = vmatprep.subr.mxu0 0.0
    %5673 = vmatpush1.msra.mxu0 %v225
    %5674 = vmatprep.subr.mxu0 0.0
    %5675 = vmatpush1.msra.mxu0 %v226
    %5676 = vmatprep.subr.mxu0 0.0
    %5677 = vmatpush1.msra.mxu0 %v227
    %5678 = vmatprep.subr.mxu0 0.0
    %5679 = vmatpush1.msra.mxu0 %v228
    %5680 = vmatprep.subr.mxu0 0.0
    %5681 = vmatpush1.msra.mxu0 %v229
    %5682 = vmatprep.subr.mxu0 0.0
    %5683 = vmatpush1.msra.mxu0 %v230
    %5684 = vmatprep.subr.mxu0 0.0
    %5685 = vmatpush1.msra.mxu0 0.0
    %5686 = vmatprep.subr.mxu0 0.0
    %5687 = vmatpush1.msra.mxu0 0.0
    %5688 = vmatprep.subr.mxu0 0.0
    %5689 = vmatpush1.msra.mxu0 0.0
    %5690 = vmatprep.subr.mxu0 0.0
    %5691 = vmatpush1.msra.mxu0 0.0
    %5692 = vmatprep.subr.mxu0 0.0
    %5693 = vmatpush1.msra.mxu0 0.0
    %5694 = vmatprep.subr.mxu0 0.0
    %5695 = vmatpush1.msra.mxu0 0.0
    %5696 = vmatprep.subr.mxu0 0.0
    %5697 = vmatpush1.msra.mxu0 0.0
    %5698 = vmatprep.subr.mxu0 0.0
    %5699 = vmatpush1.msra.mxu0 0.0
    %5700 = vmatprep.subr.mxu0 0.0
    %5701 = vmatpush1.msra.mxu0 0.0
    %5702 = vmatprep.subr.mxu0 0.0
    %5703 = vmatpush1.msra.mxu0 0.0
    %5704 = vmatprep.subr.mxu0 0.0
    %5705 = vmatpush1.msra.mxu0 0.0
    %5706 = vmatprep.subr.mxu0 0.0
    %5707 = vmatpush1.msra.mxu0 0.0
    %5708 = vmatprep.subr.mxu0 0.0
    %5709 = vmatpush1.msra.mxu0 0.0
    %5710 = vmatprep.subr.mxu0 0.0
    %5711 = vmatpush1.msra.mxu0 0.0
    %5712 = vmatprep.subr.mxu0 0.0
    %5713 = vmatpush1.msra.mxu0 0.0
    %5714 = vmatprep.subr.mxu0 0.0
    %5715 = vmatpush1.msra.mxu0 0.0
    %5716 = vmatprep.subr.mxu0 0.0
    %5717 = vmatpush1.msra.mxu0 0.0
    %5718 = vmatprep.subr.mxu0 0.0
    %5719 = vmatpush1.msra.mxu0 0.0
    %5720 = vmatprep.subr.mxu0 0.0
    %5721 = vmatpush1.msra.mxu0 0.0
    %5722 = vmatprep.subr.mxu0 0.0
    %5723 = vmatpush1.msra.mxu0 0.0
    %5724 = vmatprep.subr.mxu0 0.0
    %5725 = vmatpush1.msra.mxu0 0.0
    %5726 = vmatprep.subr.mxu0 0.0
    %5727 = vmatpush1.msra.mxu0 0.0
    %5728 = vmatprep.subr.mxu0 0.0
    %5729 = vmatpush1.msra.mxu0 0.0
    %5730 = vmatprep.subr.mxu0 0.0
    %5731 = vmatpush1.msra.mxu0 0.0
    %5732 = vmatprep.mubr.f32.mxu0 0.0
    %5733 = vmatmul.mubr.f32.gmra.mrb[0].mxu0 %v5666
    %v5734 = vpop.f32.mrb[0].mxu0
    %v5735 = vadd.f32 %v282, %v5734
    %v5736 = vpop.f32.mrb[0].mxu0
    %5737 = vdwg.mxu0
    %v5738 = vmax.f32 %v5735, 0.0
    %v5740 = vsel %vm470, %v5738, 0
    %5742 = vmatprep.subr.mxu0 0.0
    %5743 = vmatpush1.msra.mxu0 %v231
    %5744 = vmatprep.subr.mxu0 0.0
    %5745 = vmatpush1.msra.mxu0 %v232
    %5746 = vmatprep.subr.mxu0 0.0
    %5747 = vmatpush1.msra.mxu0 %v233
    %5748 = vmatprep.subr.mxu0 0.0
    %5749 = vmatpush1.msra.mxu0 %v234
    %5750 = vmatprep.subr.mxu0 0.0
    %5751 = vmatpush1.msra.mxu0 %v235
    %5752 = vmatprep.subr.mxu0 0.0
    %5753 = vmatpush1.msra.mxu0 %v236
    %5754 = vmatprep.subr.mxu0 0.0
    %5755 = vmatpush1.msra.mxu0 %v237
    %5756 = vmatprep.subr.mxu0 0.0
    %5757 = vmatpush1.msra.mxu0 %v238
    %5758 = vmatprep.subr.mxu0 0.0
    %5759 = vmatpush1.msra.mxu0 0.0
    %5760 = vmatprep.subr.mxu0 0.0
    %5761 = vmatpush1.msra.mxu0 0.0
    %5762 = vmatprep.subr.mxu0 0.0
    %5763 = vmatpush1.msra.mxu0 0.0
    %5764 = vmatprep.subr.mxu0 0.0
    %5765 = vmatpush1.msra.mxu0 0.0
    %5766 = vmatprep.subr.mxu0 0.0
    %5767 = vmatpush1.msra.mxu0 0.0
    %5768 = vmatprep.subr.mxu0 0.0
    %5769 = vmatpush1.msra.mxu0 0.0
    %5770 = vmatprep.subr.mxu0 0.0
    %5771 = vmatpush1.msra.mxu0 0.0
    %5772 = vmatprep.subr.mxu0 0.0
    %5773 = vmatpush1.msra.mxu0 0.0
    %5774 = vmatprep.subr.mxu0 0.0
    %5775 = vmatpush1.msra.mxu0 0.0
    %5776 = vmatprep.subr.mxu0 0.0
    %5777 = vmatpush1.msra.mxu0 0.0
    %5778 = vmatprep.subr.mxu0 0.0
    %5779 = vmatpush1.msra.mxu0 0.0
    %5780 = vmatprep.subr.mxu0 0.0
    %5781 = vmatpush1.msra.mxu0 0.0
    %5782 = vmatprep.subr.mxu0 0.0
    %5783 = vmatpush1.msra.mxu0 0.0
    %5784 = vmatprep.subr.mxu0 0.0
    %5785 = vmatpush1.msra.mxu0 0.0
    %5786 = vmatprep.subr.mxu0 0.0
    %5787 = vmatpush1.msra.mxu0 0.0
    %5788 = vmatprep.subr.mxu0 0.0
    %5789 = vmatpush1.msra.mxu0 0.0
    %5790 = vmatprep.subr.mxu0 0.0
    %5791 = vmatpush1.msra.mxu0 0.0
    %5792 = vmatprep.subr.mxu0 0.0
    %5793 = vmatpush1.msra.mxu0 0.0
    %5794 = vmatprep.subr.mxu0 0.0
    %5795 = vmatpush1.msra.mxu0 0.0
    %5796 = vmatprep.subr.mxu0 0.0
    %5797 = vmatpush1.msra.mxu0 0.0
    %5798 = vmatprep.subr.mxu0 0.0
    %5799 = vmatpush1.msra.mxu0 0.0
    %5800 = vmatprep.subr.mxu0 0.0
    %5801 = vmatpush1.msra.mxu0 0.0
    %5802 = vmatprep.subr.mxu0 0.0
    %5803 = vmatpush1.msra.mxu0 0.0
    %5804 = vmatprep.subr.mxu0 0.0
    %5805 = vmatpush1.msra.mxu0 0.0
    %5806 = vmatprep.mubr.f32.mxu0 0.0
    %5807 = vmatmul.mubr.f32.gmra.mrb[0].mxu0 %v5740
    %v5808 = vpop.f32.mrb[0].mxu0
    %v5809 = vadd.f32 %v289, %v5808
    %v5810 = vpop.f32.mrb[0].mxu0
    %5811 = vdwg.mxu0
    %v5812 = vadd.f32 %v5809, %v5442
    %v5813 = vxor.u32 %v5812, 2147483648
    %v5814 = vmul.f32 %v5813, 1.442695
    %v5815 = vpow.pop %v5814
    %v5816 = vadd.f32 %v5815, 1.0
    %v5817 = vrcp.pop %v5816
    %v5818 = vmul.f32 1.0, %v5817
    %v5819 = vsub.f32 1.0, %v5818
    %5821 = vset.pattern.permute.xlu0 0
    %5822 = vperm.xlu0 %5821, %v5819
    %v5823 = vpop.permute.xlu0 %5822
    %v5825 = vmul.f32 %v5421, %v5823
    %v5827 = vsel %vm321, %v5421, 0
    %5829 = vmatprep.subr.mxu0 0.0
    %5830 = vmatpush1.msra.mxu0 %v251
    %5831 = vmatprep.subr.mxu0 0.0
    %5832 = vmatpush1.msra.mxu0 %v252
    %5833 = vmatprep.subr.mxu0 0.0
    %5834 = vmatpush1.msra.mxu0 %v253
    %5835 = vmatprep.subr.mxu0 0.0
    %5836 = vmatpush1.msra.mxu0 %v254
    %5837 = vmatprep.subr.mxu0 0.0
    %5838 = vmatpush1.msra.mxu0 0.0
    %5839 = vmatprep.subr.mxu0 0.0
    %5840 = vmatpush1.msra.mxu0 0.0
    %5841 = vmatprep.subr.mxu0 0.0
    %5842 = vmatpush1.msra.mxu0 0.0
    %5843 = vmatprep.subr.mxu0 0.0
    %5844 = vmatpush1.msra.mxu0 0.0
    %5845 = vmatprep.subr.mxu0 0.0
    %5846 = vmatpush1.msra.mxu0 0.0
    %5847 = vmatprep.subr.mxu0 0.0
    %5848 = vmatpush1.msra.mxu0 0.0
    %5849 = vmatprep.subr.mxu0 0.0
    %5850 = vmatpush1.msra.mxu0 0.0
    %5851 = vmatprep.subr.mxu0 0.0
    %5852 = vmatpush1.msra.mxu0 0.0
    %5853 = vmatprep.subr.mxu0 0.0
    %5854 = vmatpush1.msra.mxu0 0.0
    %5855 = vmatprep.subr.mxu0 0.0
    %5856 = vmatpush1.msra.mxu0 0.0
    %5857 = vmatprep.subr.mxu0 0.0
    %5858 = vmatpush1.msra.mxu0 0.0
    %5859 = vmatprep.subr.mxu0 0.0
    %5860 = vmatpush1.msra.mxu0 0.0
    %5861 = vmatprep.subr.mxu0 0.0
    %5862 = vmatpush1.msra.mxu0 0.0
    %5863 = vmatprep.subr.mxu0 0.0
    %5864 = vmatpush1.msra.mxu0 0.0
    %5865 = vmatprep.subr.mxu0 0.0
    %5866 = vmatpush1.msra.mxu0 0.0
    %5867 = vmatprep.subr.mxu0 0.0
    %5868 = vmatpush1.msra.mxu0 0.0
    %5869 = vmatprep.subr.mxu0 0.0
    %5870 = vmatpush1.msra.mxu0 0.0
    %5871 = vmatprep.subr.mxu0 0.0
    %5872 = vmatpush1.msra.mxu0 0.0
    %5873 = vmatprep.subr.mxu0 0.0
    %5874 = vmatpush1.msra.mxu0 0.0
    %5875 = vmatprep.subr.mxu0 0.0
    %5876 = vmatpush1.msra.mxu0 0.0
    %5877 = vmatprep.subr.mxu0 0.0
    %5878 = vmatpush1.msra.mxu0 0.0
    %5879 = vmatprep.subr.mxu0 0.0
    %5880 = vmatpush1.msra.mxu0 0.0
    %5881 = vmatprep.subr.mxu0 0.0
    %5882 = vmatpush1.msra.mxu0 0.0
    %5883 = vmatprep.subr.mxu0 0.0
    %5884 = vmatpush1.msra.mxu0 0.0
    %5885 = vmatprep.subr.mxu0 0.0
    %5886 = vmatpush1.msra.mxu0 0.0
    %5887 = vmatprep.subr.mxu0 0.0
    %5888 = vmatpush1.msra.mxu0 0.0
    %5889 = vmatprep.subr.mxu0 0.0
    %5890 = vmatpush1.msra.mxu0 0.0
    %5891 = vmatprep.subr.mxu0 0.0
    %5892 = vmatpush1.msra.mxu0 0.0
    %5893 = vmatprep.mubr.f32.mxu0 0.0
    %5894 = vmatmul.mubr.f32.gmra.mrb[0].mxu0 %v5827
    %v5895 = vpop.f32.mrb[0].mxu0
    %v5896 = vadd.f32 0.0, %v5895
    %v5897 = vpop.f32.mrb[0].mxu0
    %5898 = vdwg.mxu0
    %5899 = vmatprep.subr.mxu0 0.0
    %5900 = vmatpush1.msra.mxu0 %v239
    %5901 = vmatprep.subr.mxu0 0.0
    %5902 = vmatpush1.msra.mxu0 %v240
    %5903 = vmatprep.subr.mxu0 0.0
    %5904 = vmatpush1.msra.mxu0 %v241
    %5905 = vmatprep.subr.mxu0 0.0
    %5906 = vmatpush1.msra.mxu0 %v242
    %5907 = vmatprep.subr.mxu0 0.0
    %5908 = vmatpush1.msra.mxu0 0.0
    %5909 = vmatprep.subr.mxu0 0.0
    %5910 = vmatpush1.msra.mxu0 0.0
    %5911 = vmatprep.subr.mxu0 0.0
    %5912 = vmatpush1.msra.mxu0 0.0
    %5913 = vmatprep.subr.mxu0 0.0
    %5914 = vmatpush1.msra.mxu0 0.0
    %5915 = vmatprep.subr.mxu0 0.0
    %5916 = vmatpush1.msra.mxu0 0.0
    %5917 = vmatprep.subr.mxu0 0.0
    %5918 = vmatpush1.msra.mxu0 0.0
    %5919 = vmatprep.subr.mxu0 0.0
    %5920 = vmatpush1.msra.mxu0 0.0
    %5921 = vmatprep.subr.mxu0 0.0
    %5922 = vmatpush1.msra.mxu0 0.0
    %5923 = vmatprep.subr.mxu0 0.0
    %5924 = vmatpush1.msra.mxu0 0.0
    %5925 = vmatprep.subr.mxu0 0.0
    %5926 = vmatpush1.msra.mxu0 0.0
    %5927 = vmatprep.subr.mxu0 0.0
    %5928 = vmatpush1.msra.mxu0 0.0
    %5929 = vmatprep.subr.mxu0 0.0
    %5930 = vmatpush1.msra.mxu0 0.0
    %5931 = vmatprep.subr.mxu0 0.0
    %5932 = vmatpush1.msra.mxu0 0.0
    %5933 = vmatprep.subr.mxu0 0.0
    %5934 = vmatpush1.msra.mxu0 0.0
    %5935 = vmatprep.subr.mxu0 0.0
    %5936 = vmatpush1.msra.mxu0 0.0
    %5937 = vmatprep.subr.mxu0 0.0
    %5938 = vmatpush1.msra.mxu0 0.0
    %5939 = vmatprep.subr.mxu0 0.0
    %5940 = vmatpush1.msra.mxu0 0.0
    %5941 = vmatprep.subr.mxu0 0.0
    %5942 = vmatpush1.msra.mxu0 0.0
    %5943 = vmatprep.subr.mxu0 0.0
    %5944 = vmatpush1.msra.mxu0 0.0
    %5945 = vmatprep.subr.mxu0 0.0
    %5946 = vmatpush1.msra.mxu0 0.0
    %5947 = vmatprep.subr.mxu0 0.0
    %5948 = vmatpush1.msra.mxu0 0.0
    %5949 = vmatprep.subr.mxu0 0.0
    %5950 = vmatpush1.msra.mxu0 0.0
    %5951 = vmatprep.subr.mxu0 0.0
    %5952 = vmatpush1.msra.mxu0 0.0
    %5953 = vmatprep.subr.mxu0 0.0
    %5954 = vmatpush1.msra.mxu0 0.0
    %5955 = vmatprep.subr.mxu0 0.0
    %5956 = vmatpush1.msra.mxu0 0.0
    %5957 = vmatprep.subr.mxu0 0.0
    %5958 = vmatpush1.msra.mxu0 0.0
    %5959 = vmatprep.subr.mxu0 0.0
    %5960 = vmatpush1.msra.mxu0 0.0
    %5961 = vmatprep.subr.mxu0 0.0
    %5962 = vmatpush1.msra.mxu0 0.0
    %5963 = vmatprep.mubr.f32.mxu0 0.0
    %5964 = vmatmul.mubr.f32.gmra.mrb[0].mxu0 %v5517
    %v5965 = vpop.f32.mrb[0].mxu0
    %v5966 = vadd.f32 %v5896, %v5965
    %v5967 = vpop.f32.mrb[0].mxu0
    %5968 = vdwg.mxu0
    %v5969 = vadd.f32 %v5966, %v296
    %v5970 = vxor.u32 %v5969, 2147483648
    %v5971 = vmul.f32 %v5970, 1.442695
    %v5972 = vpow.pop %v5971
    %v5973 = vadd.f32 %v5972, 1.0
    %v5974 = vrcp.pop %v5973
    %v5975 = vmul.f32 1.0, %v5974
    %5976 = vmatprep.subr.mxu0 0.0
    %5977 = vmatpush1.msra.mxu0 %v255
    %5978 = vmatprep.subr.mxu0 0.0
    %5979 = vmatpush1.msra.mxu0 %v256
    %5980 = vmatprep.subr.mxu0 0.0
    %5981 = vmatpush1.msra.mxu0 %v257
    %5982 = vmatprep.subr.mxu0 0.0
    %5983 = vmatpush1.msra.mxu0 %v258
    %5984 = vmatprep.subr.mxu0 0.0
    %5985 = vmatpush1.msra.mxu0 0.0
    %5986 = vmatprep.subr.mxu0 0.0
    %5987 = vmatpush1.msra.mxu0 0.0
    %5988 = vmatprep.subr.mxu0 0.0
    %5989 = vmatpush1.msra.mxu0 0.0
    %5990 = vmatprep.subr.mxu0 0.0
    %5991 = vmatpush1.msra.mxu0 0.0
    %5992 = vmatprep.subr.mxu0 0.0
    %5993 = vmatpush1.msra.mxu0 0.0
    %5994 = vmatprep.subr.mxu0 0.0
    %5995 = vmatpush1.msra.mxu0 0.0
    %5996 = vmatprep.subr.mxu0 0.0
    %5997 = vmatpush1.msra.mxu0 0.0
    %5998 = vmatprep.subr.mxu0 0.0
    %5999 = vmatpush1.msra.mxu0 0.0
    %6000 = vmatprep.subr.mxu0 0.0
    %6001 = vmatpush1.msra.mxu0 0.0
    %6002 = vmatprep.subr.mxu0 0.0
    %6003 = vmatpush1.msra.mxu0 0.0
    %6004 = vmatprep.subr.mxu0 0.0
    %6005 = vmatpush1.msra.mxu0 0.0
    %6006 = vmatprep.subr.mxu0 0.0
    %6007 = vmatpush1.msra.mxu0 0.0
    %6008 = vmatprep.subr.mxu0 0.0
    %6009 = vmatpush1.msra.mxu0 0.0
    %6010 = vmatprep.subr.mxu0 0.0
    %6011 = vmatpush1.msra.mxu0 0.0
    %6012 = vmatprep.subr.mxu0 0.0
    %6013 = vmatpush1.msra.mxu0 0.0
    %6014 = vmatprep.subr.mxu0 0.0
    %6015 = vmatpush1.msra.mxu0 0.0
    %6016 = vmatprep.subr.mxu0 0.0
    %6017 = vmatpush1.msra.mxu0 0.0
    %6018 = vmatprep.subr.mxu0 0.0
    %6019 = vmatpush1.msra.mxu0 0.0
    %6020 = vmatprep.subr.mxu0 0.0
    %6021 = vmatpush1.msra.mxu0 0.0
    %6022 = vmatprep.subr.mxu0 0.0
    %6023 = vmatpush1.msra.mxu0 0.0
    %6024 = vmatprep.subr.mxu0 0.0
    %6025 = vmatpush1.msra.mxu0 0.0
    %6026 = vmatprep.subr.mxu0 0.0
    %6027 = vmatpush1.msra.mxu0 0.0
    %6028 = vmatprep.subr.mxu0 0.0
    %6029 = vmatpush1.msra.mxu0 0.0
    %6030 = vmatprep.subr.mxu0 0.0
    %6031 = vmatpush1.msra.mxu0 0.0
    %6032 = vmatprep.subr.mxu0 0.0
    %6033 = vmatpush1.msra.mxu0 0.0
    %6034 = vmatprep.subr.mxu0 0.0
    %6035 = vmatpush1.msra.mxu0 0.0
    %6036 = vmatprep.subr.mxu0 0.0
    %6037 = vmatpush1.msra.mxu0 0.0
    %6038 = vmatprep.subr.mxu0 0.0
    %6039 = vmatpush1.msra.mxu0 0.0
    %6040 = vmatprep.mubr.f32.mxu0 0.0
    %6041 = vmatmul.mubr.f32.gmra.mrb[0].mxu0 %v5827
    %v6042 = vpop.f32.mrb[0].mxu0
    %v6043 = vadd.f32 0.0, %v6042
    %v6044 = vpop.f32.mrb[0].mxu0
    %6045 = vdwg.mxu0
    %6046 = vmatprep.subr.mxu0 0.0
    %6047 = vmatpush1.msra.mxu0 %v243
    %6048 = vmatprep.subr.mxu0 0.0
    %6049 = vmatpush1.msra.mxu0 %v244
    %6050 = vmatprep.subr.mxu0 0.0
    %6051 = vmatpush1.msra.mxu0 %v245
    %6052 = vmatprep.subr.mxu0 0.0
    %6053 = vmatpush1.msra.mxu0 %v246
    %6054 = vmatprep.subr.mxu0 0.0
    %6055 = vmatpush1.msra.mxu0 0.0
    %6056 = vmatprep.subr.mxu0 0.0
    %6057 = vmatpush1.msra.mxu0 0.0
    %6058 = vmatprep.subr.mxu0 0.0
    %6059 = vmatpush1.msra.mxu0 0.0
    %6060 = vmatprep.subr.mxu0 0.0
    %6061 = vmatpush1.msra.mxu0 0.0
    %6062 = vmatprep.subr.mxu0 0.0
    %6063 = vmatpush1.msra.mxu0 0.0
    %6064 = vmatprep.subr.mxu0 0.0
    %6065 = vmatpush1.msra.mxu0 0.0
    %6066 = vmatprep.subr.mxu0 0.0
    %6067 = vmatpush1.msra.mxu0 0.0
    %6068 = vmatprep.subr.mxu0 0.0
    %6069 = vmatpush1.msra.mxu0 0.0
    %6070 = vmatprep.subr.mxu0 0.0
    %6071 = vmatpush1.msra.mxu0 0.0
    %6072 = vmatprep.subr.mxu0 0.0
    %6073 = vmatpush1.msra.mxu0 0.0
    %6074 = vmatprep.subr.mxu0 0.0
    %6075 = vmatpush1.msra.mxu0 0.0
    %6076 = vmatprep.subr.mxu0 0.0
    %6077 = vmatpush1.msra.mxu0 0.0
    %6078 = vmatprep.subr.mxu0 0.0
    %6079 = vmatpush1.msra.mxu0 0.0
    %6080 = vmatprep.subr.mxu0 0.0
    %6081 = vmatpush1.msra.mxu0 0.0
    %6082 = vmatprep.subr.mxu0 0.0
    %6083 = vmatpush1.msra.mxu0 0.0
    %6084 = vmatprep.subr.mxu0 0.0
    %6085 = vmatpush1.msra.mxu0 0.0
    %6086 = vmatprep.subr.mxu0 0.0
    %6087 = vmatpush1.msra.mxu0 0.0
    %6088 = vmatprep.subr.mxu0 0.0
    %6089 = vmatpush1.msra.mxu0 0.0
    %6090 = vmatprep.subr.mxu0 0.0
    %6091 = vmatpush1.msra.mxu0 0.0
    %6092 = vmatprep.subr.mxu0 0.0
    %6093 = vmatpush1.msra.mxu0 0.0
    %6094 = vmatprep.subr.mxu0 0.0
    %6095 = vmatpush1.msra.mxu0 0.0
    %6096 = vmatprep.subr.mxu0 0.0
    %6097 = vmatpush1.msra.mxu0 0.0
    %6098 = vmatprep.subr.mxu0 0.0
    %6099 = vmatpush1.msra.mxu0 0.0
    %6100 = vmatprep.subr.mxu0 0.0
    %6101 = vmatpush1.msra.mxu0 0.0
    %6102 = vmatprep.subr.mxu0 0.0
    %6103 = vmatpush1.msra.mxu0 0.0
    %6104 = vmatprep.subr.mxu0 0.0
    %6105 = vmatpush1.msra.mxu0 0.0
    %6106 = vmatprep.subr.mxu0 0.0
    %6107 = vmatpush1.msra.mxu0 0.0
    %6108 = vmatprep.subr.mxu0 0.0
    %6109 = vmatpush1.msra.mxu0 0.0
    %6110 = vmatprep.mubr.f32.mxu0 0.0
    %6111 = vmatmul.mubr.f32.gmra.mrb[0].mxu0 %v5517
    %v6112 = vpop.f32.mrb[0].mxu0
    %v6113 = vadd.f32 %v6043, %v6112
    %v6114 = vpop.f32.mrb[0].mxu0
    %6115 = vdwg.mxu0
    %v6116 = vadd.f32 %v6113, %v303
    %v6117 = vxor.u32 %v6116, 2147483648
    %v6118 = vmul.f32 %v6117, 1.442695
    %v6119 = vpow.pop %v6118
    %v6120 = vadd.f32 %v6119, 1.0
    %v6121 = vrcp.pop %v6120
    %v6122 = vmul.f32 1.0, %v6121
    %6123 = vmatprep.subr.mxu0 0.0
    %6124 = vmatpush1.msra.mxu0 %v259
    %6125 = vmatprep.subr.mxu0 0.0
    %6126 = vmatpush1.msra.mxu0 %v260
    %6127 = vmatprep.subr.mxu0 0.0
    %6128 = vmatpush1.msra.mxu0 %v261
    %6129 = vmatprep.subr.mxu0 0.0
    %6130 = vmatpush1.msra.mxu0 %v262
    %6131 = vmatprep.subr.mxu0 0.0
    %6132 = vmatpush1.msra.mxu0 0.0
    %6133 = vmatprep.subr.mxu0 0.0
    %6134 = vmatpush1.msra.mxu0 0.0
    %6135 = vmatprep.subr.mxu0 0.0
    %6136 = vmatpush1.msra.mxu0 0.0
    %6137 = vmatprep.subr.mxu0 0.0
    %6138 = vmatpush1.msra.mxu0 0.0
    %6139 = vmatprep.subr.mxu0 0.0
    %6140 = vmatpush1.msra.mxu0 0.0
    %6141 = vmatprep.subr.mxu0 0.0
    %6142 = vmatpush1.msra.mxu0 0.0
    %6143 = vmatprep.subr.mxu0 0.0
    %6144 = vmatpush1.msra.mxu0 0.0
    %6145 = vmatprep.subr.mxu0 0.0
    %6146 = vmatpush1.msra.mxu0 0.0
    %6147 = vmatprep.subr.mxu0 0.0
    %6148 = vmatpush1.msra.mxu0 0.0
    %6149 = vmatprep.subr.mxu0 0.0
    %6150 = vmatpush1.msra.mxu0 0.0
    %6151 = vmatprep.subr.mxu0 0.0
    %6152 = vmatpush1.msra.mxu0 0.0
    %6153 = vmatprep.subr.mxu0 0.0
    %6154 = vmatpush1.msra.mxu0 0.0
    %6155 = vmatprep.subr.mxu0 0.0
    %6156 = vmatpush1.msra.mxu0 0.0
    %6157 = vmatprep.subr.mxu0 0.0
    %6158 = vmatpush1.msra.mxu0 0.0
    %6159 = vmatprep.subr.mxu0 0.0
    %6160 = vmatpush1.msra.mxu0 0.0
    %6161 = vmatprep.subr.mxu0 0.0
    %6162 = vmatpush1.msra.mxu0 0.0
    %6163 = vmatprep.subr.mxu0 0.0
    %6164 = vmatpush1.msra.mxu0 0.0
    %6165 = vmatprep.subr.mxu0 0.0
    %6166 = vmatpush1.msra.mxu0 0.0
    %6167 = vmatprep.subr.mxu0 0.0
    %6168 = vmatpush1.msra.mxu0 0.0
    %6169 = vmatprep.subr.mxu0 0.0
    %6170 = vmatpush1.msra.mxu0 0.0
    %6171 = vmatprep.subr.mxu0 0.0
    %6172 = vmatpush1.msra.mxu0 0.0
    %6173 = vmatprep.subr.mxu0 0.0
    %6174 = vmatpush1.msra.mxu0 0.0
    %6175 = vmatprep.subr.mxu0 0.0
    %6176 = vmatpush1.msra.mxu0 0.0
    %6177 = vmatprep.subr.mxu0 0.0
    %6178 = vmatpush1.msra.mxu0 0.0
    %6179 = vmatprep.subr.mxu0 0.0
    %6180 = vmatpush1.msra.mxu0 0.0
    %6181 = vmatprep.subr.mxu0 0.0
    %6182 = vmatpush1.msra.mxu0 0.0
    %6183 = vmatprep.subr.mxu0 0.0
    %6184 = vmatpush1.msra.mxu0 0.0
    %6185 = vmatprep.subr.mxu0 0.0
    %6186 = vmatpush1.msra.mxu0 0.0
    %6187 = vmatprep.mubr.f32.mxu0 0.0
    %6188 = vmatmul.mubr.f32.gmra.mrb[0].mxu0 %v5827
    %v6189 = vpop.f32.mrb[0].mxu0
    %v6190 = vadd.f32 %v317, %v6189
    %v6191 = vpop.f32.mrb[0].mxu0
    %6192 = vdwg.mxu0
    %6193 = vmatprep.subr.mxu0 0.0
    %6194 = vmatpush1.msra.mxu0 %v247
    %6195 = vmatprep.subr.mxu0 0.0
    %6196 = vmatpush1.msra.mxu0 %v248
    %6197 = vmatprep.subr.mxu0 0.0
    %6198 = vmatpush1.msra.mxu0 %v249
    %6199 = vmatprep.subr.mxu0 0.0
    %6200 = vmatpush1.msra.mxu0 %v250
    %6201 = vmatprep.subr.mxu0 0.0
    %6202 = vmatpush1.msra.mxu0 0.0
    %6203 = vmatprep.subr.mxu0 0.0
    %6204 = vmatpush1.msra.mxu0 0.0
    %6205 = vmatprep.subr.mxu0 0.0
    %6206 = vmatpush1.msra.mxu0 0.0
    %6207 = vmatprep.subr.mxu0 0.0
    %6208 = vmatpush1.msra.mxu0 0.0
    %6209 = vmatprep.subr.mxu0 0.0
    %6210 = vmatpush1.msra.mxu0 0.0
    %6211 = vmatprep.subr.mxu0 0.0
    %6212 = vmatpush1.msra.mxu0 0.0
    %6213 = vmatprep.subr.mxu0 0.0
    %6214 = vmatpush1.msra.mxu0 0.0
    %6215 = vmatprep.subr.mxu0 0.0
    %6216 = vmatpush1.msra.mxu0 0.0
    %6217 = vmatprep.subr.mxu0 0.0
    %6218 = vmatpush1.msra.mxu0 0.0
    %6219 = vmatprep.subr.mxu0 0.0
    %6220 = vmatpush1.msra.mxu0 0.0
    %6221 = vmatprep.subr.mxu0 0.0
    %6222 = vmatpush1.msra.mxu0 0.0
    %6223 = vmatprep.subr.mxu0 0.0
    %6224 = vmatpush1.msra.mxu0 0.0
    %6225 = vmatprep.subr.mxu0 0.0
    %6226 = vmatpush1.msra.mxu0 0.0
    %6227 = vmatprep.subr.mxu0 0.0
    %6228 = vmatpush1.msra.mxu0 0.0
    %6229 = vmatprep.subr.mxu0 0.0
    %6230 = vmatpush1.msra.mxu0 0.0
    %6231 = vmatprep.subr.mxu0 0.0
    %6232 = vmatpush1.msra.mxu0 0.0
    %6233 = vmatprep.subr.mxu0 0.0
    %6234 = vmatpush1.msra.mxu0 0.0
    %6235 = vmatprep.subr.mxu0 0.0
    %6236 = vmatpush1.msra.mxu0 0.0
    %6237 = vmatprep.subr.mxu0 0.0
    %6238 = vmatpush1.msra.mxu0 0.0
    %6239 = vmatprep.subr.mxu0 0.0
    %6240 = vmatpush1.msra.mxu0 0.0
    %6241 = vmatprep.subr.mxu0 0.0
    %6242 = vmatpush1.msra.mxu0 0.0
    %6243 = vmatprep.subr.mxu0 0.0
    %6244 = vmatpush1.msra.mxu0 0.0
    %6245 = vmatprep.subr.mxu0 0.0
    %6246 = vmatpush1.msra.mxu0 0.0
    %6247 = vmatprep.subr.mxu0 0.0
    %6248 = vmatpush1.msra.mxu0 0.0
    %6249 = vmatprep.subr.mxu0 0.0
    %6250 = vmatpush1.msra.mxu0 0.0
    %6251 = vmatprep.subr.mxu0 0.0
    %6252 = vmatpush1.msra.mxu0 0.0
    %6253 = vmatprep.subr.mxu0 0.0
    %6254 = vmatpush1.msra.mxu0 0.0
    %6255 = vmatprep.subr.mxu0 0.0
    %6256 = vmatpush1.msra.mxu0 0.0
    %6257 = vmatprep.mubr.f32.mxu0 0.0
    %6258 = vmatmul.mubr.f32.gmra.mrb[0].mxu0 %v5517
    %v6259 = vpop.f32.mrb[0].mxu0
    %v6260 = vadd.f32 %v310, %v6259
    %v6261 = vpop.f32.mrb[0].mxu0
    %6262 = vdwg.mxu0
    %v6263 = vmul.f32 %v5975, %v6190
    %v6264 = vadd.f32 %v6260, %v6263
    %v6265 = vtanh.pop %v6264
    %v6266 = vsub.f32 1.0, %v6122
    %v6267 = vmul.f32 %v6266, %v6265
    %v6268 = vmul.f32 %v6122, %v5421
    %v6269 = vadd.f32 %v6267, %v6268
    %6271 = vset.pattern.permute.xlu0 0
    %6272 = vperm.xlu0 %6271, %v5818
    %v6273 = vpop.permute.xlu0 %6272
    %v6275 = vmul.f32 %v6273, %v6269
    %v6276 = vadd.f32 %v5825, %v6275
    %v6277 = vmul.f32 %v5423, %v5819
    %v6278 = vadd.f32 %v6277, 1.0
    %v6279 = vrcp.pop %v6278
    %6281 = vset.pattern.permute.xlu0 0
    %6282 = vperm.xlu0 %6281, %v5423
    %v6283 = vpop.permute.xlu0 %6282
    %v6285 = vmul.f32 %v5438, %v6283
    %v6286 = vmul.f32 %v6285, %v5823
    %v6287 = vadd.f32 %v6286, %v5440
    %6289 = vset.pattern.permute.xlu0 0
    %6290 = vperm.xlu0 %6289, %v6279
    %v6291 = vpop.permute.xlu0 %6290
    %v6293 = vmul.f32 %v6287, %v6291
    %s6294 = scalar_lea.vmem %s0, 56
    %v6295 = vld [vmem:[%s6294] sm:$0xff]
    %s6296 = scalar_lea.vmem %s1, 56
    %v6297 = vld [vmem:[%s6296] sm:$0xff]
    %v6299 = vsel %vm321, %v6295, 0
    %6301 = vmatprep.subr.mxu0 0.0
    %6302 = vmatpush1.msra.mxu0 %v211
    %6303 = vmatprep.subr.mxu0 0.0
    %6304 = vmatpush1.msra.mxu0 %v212
    %6305 = vmatprep.subr.mxu0 0.0
    %6306 = vmatpush1.msra.mxu0 %v213
    %6307 = vmatprep.subr.mxu0 0.0
    %6308 = vmatpush1.msra.mxu0 %v214
    %6309 = vmatprep.subr.mxu0 0.0
    %6310 = vmatpush1.msra.mxu0 0.0
    %6311 = vmatprep.subr.mxu0 0.0
    %6312 = vmatpush1.msra.mxu0 0.0
    %6313 = vmatprep.subr.mxu0 0.0
    %6314 = vmatpush1.msra.mxu0 0.0
    %6315 = vmatprep.subr.mxu0 0.0
    %6316 = vmatpush1.msra.mxu0 0.0
    %6317 = vmatprep.subr.mxu0 0.0
    %6318 = vmatpush1.msra.mxu0 0.0
    %6319 = vmatprep.subr.mxu0 0.0
    %6320 = vmatpush1.msra.mxu0 0.0
    %6321 = vmatprep.subr.mxu0 0.0
    %6322 = vmatpush1.msra.mxu0 0.0
    %6323 = vmatprep.subr.mxu0 0.0
    %6324 = vmatpush1.msra.mxu0 0.0
    %6325 = vmatprep.subr.mxu0 0.0
    %6326 = vmatpush1.msra.mxu0 0.0
    %6327 = vmatprep.subr.mxu0 0.0
    %6328 = vmatpush1.msra.mxu0 0.0
    %6329 = vmatprep.subr.mxu0 0.0
    %6330 = vmatpush1.msra.mxu0 0.0
    %6331 = vmatprep.subr.mxu0 0.0
    %6332 = vmatpush1.msra.mxu0 0.0
    %6333 = vmatprep.subr.mxu0 0.0
    %6334 = vmatpush1.msra.mxu0 0.0
    %6335 = vmatprep.subr.mxu0 0.0
    %6336 = vmatpush1.msra.mxu0 0.0
    %6337 = vmatprep.subr.mxu0 0.0
    %6338 = vmatpush1.msra.mxu0 0.0
    %6339 = vmatprep.subr.mxu0 0.0
    %6340 = vmatpush1.msra.mxu0 0.0
    %6341 = vmatprep.subr.mxu0 0.0
    %6342 = vmatpush1.msra.mxu0 0.0
    %6343 = vmatprep.subr.mxu0 0.0
    %6344 = vmatpush1.msra.mxu0 0.0
    %6345 = vmatprep.subr.mxu0 0.0
    %6346 = vmatpush1.msra.mxu0 0.0
    %6347 = vmatprep.subr.mxu0 0.0
    %6348 = vmatpush1.msra.mxu0 0.0
    %6349 = vmatprep.subr.mxu0 0.0
    %6350 = vmatpush1.msra.mxu0 0.0
    %6351 = vmatprep.subr.mxu0 0.0
    %6352 = vmatpush1.msra.mxu0 0.0
    %6353 = vmatprep.subr.mxu0 0.0
    %6354 = vmatpush1.msra.mxu0 0.0
    %6355 = vmatprep.subr.mxu0 0.0
    %6356 = vmatpush1.msra.mxu0 0.0
    %6357 = vmatprep.subr.mxu0 0.0
    %6358 = vmatpush1.msra.mxu0 0.0
    %6359 = vmatprep.subr.mxu0 0.0
    %6360 = vmatpush1.msra.mxu0 0.0
    %6361 = vmatprep.subr.mxu0 0.0
    %6362 = vmatpush1.msra.mxu0 0.0
    %6363 = vmatprep.subr.mxu0 0.0
    %6364 = vmatpush1.msra.mxu0 0.0
    %6365 = vmatprep.mubr.f32.mxu0 0.0
    %6366 = vmatmul.mubr.f32.gmra.mrb[0].mxu0 %v6299
    %v6367 = vpop.f32.mrb[0].mxu0
    %v6368 = vadd.f32 0.0, %v6367
    %v6369 = vpop.f32.mrb[0].mxu0
    %6370 = vdwg.mxu0
    %v6372 = vsel %vm321, %v6293, 0
    %6374 = vmatprep.subr.mxu0 0.0
    %6375 = vmatpush1.msra.mxu0 %v207
    %6376 = vmatprep.subr.mxu0 0.0
    %6377 = vmatpush1.msra.mxu0 %v208
    %6378 = vmatprep.subr.mxu0 0.0
    %6379 = vmatpush1.msra.mxu0 %v209
    %6380 = vmatprep.subr.mxu0 0.0
    %6381 = vmatpush1.msra.mxu0 %v210
    %6382 = vmatprep.subr.mxu0 0.0
    %6383 = vmatpush1.msra.mxu0 0.0
    %6384 = vmatprep.subr.mxu0 0.0
    %6385 = vmatpush1.msra.mxu0 0.0
    %6386 = vmatprep.subr.mxu0 0.0
    %6387 = vmatpush1.msra.mxu0 0.0
    %6388 = vmatprep.subr.mxu0 0.0
    %6389 = vmatpush1.msra.mxu0 0.0
    %6390 = vmatprep.subr.mxu0 0.0
    %6391 = vmatpush1.msra.mxu0 0.0
    %6392 = vmatprep.subr.mxu0 0.0
    %6393 = vmatpush1.msra.mxu0 0.0
    %6394 = vmatprep.subr.mxu0 0.0
    %6395 = vmatpush1.msra.mxu0 0.0
    %6396 = vmatprep.subr.mxu0 0.0
    %6397 = vmatpush1.msra.mxu0 0.0
    %6398 = vmatprep.subr.mxu0 0.0
    %6399 = vmatpush1.msra.mxu0 0.0
    %6400 = vmatprep.subr.mxu0 0.0
    %6401 = vmatpush1.msra.mxu0 0.0
    %6402 = vmatprep.subr.mxu0 0.0
    %6403 = vmatpush1.msra.mxu0 0.0
    %6404 = vmatprep.subr.mxu0 0.0
    %6405 = vmatpush1.msra.mxu0 0.0
    %6406 = vmatprep.subr.mxu0 0.0
    %6407 = vmatpush1.msra.mxu0 0.0
    %6408 = vmatprep.subr.mxu0 0.0
    %6409 = vmatpush1.msra.mxu0 0.0
    %6410 = vmatprep.subr.mxu0 0.0
    %6411 = vmatpush1.msra.mxu0 0.0
    %6412 = vmatprep.subr.mxu0 0.0
    %6413 = vmatpush1.msra.mxu0 0.0
    %6414 = vmatprep.subr.mxu0 0.0
    %6415 = vmatpush1.msra.mxu0 0.0
    %6416 = vmatprep.subr.mxu0 0.0
    %6417 = vmatpush1.msra.mxu0 0.0
    %6418 = vmatprep.subr.mxu0 0.0
    %6419 = vmatpush1.msra.mxu0 0.0
    %6420 = vmatprep.subr.mxu0 0.0
    %6421 = vmatpush1.msra.mxu0 0.0
    %6422 = vmatprep.subr.mxu0 0.0
    %6423 = vmatpush1.msra.mxu0 0.0
    %6424 = vmatprep.subr.mxu0 0.0
    %6425 = vmatpush1.msra.mxu0 0.0
    %6426 = vmatprep.subr.mxu0 0.0
    %6427 = vmatpush1.msra.mxu0 0.0
    %6428 = vmatprep.subr.mxu0 0.0
    %6429 = vmatpush1.msra.mxu0 0.0
    %6430 = vmatprep.subr.mxu0 0.0
    %6431 = vmatpush1.msra.mxu0 0.0
    %6432 = vmatprep.subr.mxu0 0.0
    %6433 = vmatpush1.msra.mxu0 0.0
    %6434 = vmatprep.subr.mxu0 0.0
    %6435 = vmatpush1.msra.mxu0 0.0
    %6436 = vmatprep.subr.mxu0 0.0
    %6437 = vmatpush1.msra.mxu0 0.0
    %6438 = vmatprep.mubr.f32.mxu0 0.0
    %6439 = vmatmul.mubr.f32.gmra.mrb[0].mxu0 %v6372
    %v6440 = vpop.f32.mrb[0].mxu0
    %v6441 = vadd.f32 %v6368, %v6440
    %v6442 = vpop.f32.mrb[0].mxu0
    %6443 = vdwg.mxu0
    %v6444 = vadd.f32 %v6441, %v268
    %v6445 = vmax.f32 %v6444, 0.0
    %v6447 = vsel %vm470, %v6445, 0
    %6449 = vmatprep.subr.mxu0 0.0
    %6450 = vmatpush1.msra.mxu0 %v215
    %6451 = vmatprep.subr.mxu0 0.0
    %6452 = vmatpush1.msra.mxu0 %v216
    %6453 = vmatprep.subr.mxu0 0.0
    %6454 = vmatpush1.msra.mxu0 %v217
    %6455 = vmatprep.subr.mxu0 0.0
    %6456 = vmatpush1.msra.mxu0 %v218
    %6457 = vmatprep.subr.mxu0 0.0
    %6458 = vmatpush1.msra.mxu0 %v219
    %6459 = vmatprep.subr.mxu0 0.0
    %6460 = vmatpush1.msra.mxu0 %v220
    %6461 = vmatprep.subr.mxu0 0.0
    %6462 = vmatpush1.msra.mxu0 %v221
    %6463 = vmatprep.subr.mxu0 0.0
    %6464 = vmatpush1.msra.mxu0 %v222
    %6465 = vmatprep.subr.mxu0 0.0
    %6466 = vmatpush1.msra.mxu0 0.0
    %6467 = vmatprep.subr.mxu0 0.0
    %6468 = vmatpush1.msra.mxu0 0.0
    %6469 = vmatprep.subr.mxu0 0.0
    %6470 = vmatpush1.msra.mxu0 0.0
    %6471 = vmatprep.subr.mxu0 0.0
    %6472 = vmatpush1.msra.mxu0 0.0
    %6473 = vmatprep.subr.mxu0 0.0
    %6474 = vmatpush1.msra.mxu0 0.0
    %6475 = vmatprep.subr.mxu0 0.0
    %6476 = vmatpush1.msra.mxu0 0.0
    %6477 = vmatprep.subr.mxu0 0.0
    %6478 = vmatpush1.msra.mxu0 0.0
    %6479 = vmatprep.subr.mxu0 0.0
    %6480 = vmatpush1.msra.mxu0 0.0
    %6481 = vmatprep.subr.mxu0 0.0
    %6482 = vmatpush1.msra.mxu0 0.0
    %6483 = vmatprep.subr.mxu0 0.0
    %6484 = vmatpush1.msra.mxu0 0.0
    %6485 = vmatprep.subr.mxu0 0.0
    %6486 = vmatpush1.msra.mxu0 0.0
    %6487 = vmatprep.subr.mxu0 0.0
    %6488 = vmatpush1.msra.mxu0 0.0
    %6489 = vmatprep.subr.mxu0 0.0
    %6490 = vmatpush1.msra.mxu0 0.0
    %6491 = vmatprep.subr.mxu0 0.0
    %6492 = vmatpush1.msra.mxu0 0.0
    %6493 = vmatprep.subr.mxu0 0.0
    %6494 = vmatpush1.msra.mxu0 0.0
    %6495 = vmatprep.subr.mxu0 0.0
    %6496 = vmatpush1.msra.mxu0 0.0
    %6497 = vmatprep.subr.mxu0 0.0
    %6498 = vmatpush1.msra.mxu0 0.0
    %6499 = vmatprep.subr.mxu0 0.0
    %6500 = vmatpush1.msra.mxu0 0.0
    %6501 = vmatprep.subr.mxu0 0.0
    %6502 = vmatpush1.msra.mxu0 0.0
    %6503 = vmatprep.subr.mxu0 0.0
    %6504 = vmatpush1.msra.mxu0 0.0
    %6505 = vmatprep.subr.mxu0 0.0
    %6506 = vmatpush1.msra.mxu0 0.0
    %6507 = vmatprep.subr.mxu0 0.0
    %6508 = vmatpush1.msra.mxu0 0.0
    %6509 = vmatprep.subr.mxu0 0.0
    %6510 = vmatpush1.msra.mxu0 0.0
    %6511 = vmatprep.subr.mxu0 0.0
    %6512 = vmatpush1.msra.mxu0 0.0
    %6513 = vmatprep.mubr.f32.mxu0 0.0
    %6514 = vmatmul.mubr.f32.gmra.mrb[0].mxu0 %v6447
    %v6515 = vpop.f32.mrb[0].mxu0
    %v6516 = vadd.f32 %v275, %v6515
    %v6517 = vpop.f32.mrb[0].mxu0
    %6518 = vdwg.mxu0
    %v6519 = vmax.f32 %v6516, 0.0
    %v6521 = vsel %vm470, %v6519, 0
    %6523 = vmatprep.subr.mxu0 0.0
    %6524 = vmatpush1.msra.mxu0 %v223
    %6525 = vmatprep.subr.mxu0 0.0
    %6526 = vmatpush1.msra.mxu0 %v224
    %6527 = vmatprep.subr.mxu0 0.0
    %6528 = vmatpush1.msra.mxu0 %v225
    %6529 = vmatprep.subr.mxu0 0.0
    %6530 = vmatpush1.msra.mxu0 %v226
    %6531 = vmatprep.subr.mxu0 0.0
    %6532 = vmatpush1.msra.mxu0 %v227
    %6533 = vmatprep.subr.mxu0 0.0
    %6534 = vmatpush1.msra.mxu0 %v228
    %6535 = vmatprep.subr.mxu0 0.0
    %6536 = vmatpush1.msra.mxu0 %v229
    %6537 = vmatprep.subr.mxu0 0.0
    %6538 = vmatpush1.msra.mxu0 %v230
    %6539 = vmatprep.subr.mxu0 0.0
    %6540 = vmatpush1.msra.mxu0 0.0
    %6541 = vmatprep.subr.mxu0 0.0
    %6542 = vmatpush1.msra.mxu0 0.0
    %6543 = vmatprep.subr.mxu0 0.0
    %6544 = vmatpush1.msra.mxu0 0.0
    %6545 = vmatprep.subr.mxu0 0.0
    %6546 = vmatpush1.msra.mxu0 0.0
    %6547 = vmatprep.subr.mxu0 0.0
    %6548 = vmatpush1.msra.mxu0 0.0
    %6549 = vmatprep.subr.mxu0 0.0
    %6550 = vmatpush1.msra.mxu0 0.0
    %6551 = vmatprep.subr.mxu0 0.0
    %6552 = vmatpush1.msra.mxu0 0.0
    %6553 = vmatprep.subr.mxu0 0.0
    %6554 = vmatpush1.msra.mxu0 0.0
    %6555 = vmatprep.subr.mxu0 0.0
    %6556 = vmatpush1.msra.mxu0 0.0
    %6557 = vmatprep.subr.mxu0 0.0
    %6558 = vmatpush1.msra.mxu0 0.0
    %6559 = vmatprep.subr.mxu0 0.0
    %6560 = vmatpush1.msra.mxu0 0.0
    %6561 = vmatprep.subr.mxu0 0.0
    %6562 = vmatpush1.msra.mxu0 0.0
    %6563 = vmatprep.subr.mxu0 0.0
    %6564 = vmatpush1.msra.mxu0 0.0
    %6565 = vmatprep.subr.mxu0 0.0
    %6566 = vmatpush1.msra.mxu0 0.0
    %6567 = vmatprep.subr.mxu0 0.0
    %6568 = vmatpush1.msra.mxu0 0.0
    %6569 = vmatprep.subr.mxu0 0.0
    %6570 = vmatpush1.msra.mxu0 0.0
    %6571 = vmatprep.subr.mxu0 0.0
    %6572 = vmatpush1.msra.mxu0 0.0
    %6573 = vmatprep.subr.mxu0 0.0
    %6574 = vmatpush1.msra.mxu0 0.0
    %6575 = vmatprep.subr.mxu0 0.0
    %6576 = vmatpush1.msra.mxu0 0.0
    %6577 = vmatprep.subr.mxu0 0.0
    %6578 = vmatpush1.msra.mxu0 0.0
    %6579 = vmatprep.subr.mxu0 0.0
    %6580 = vmatpush1.msra.mxu0 0.0
    %6581 = vmatprep.subr.mxu0 0.0
    %6582 = vmatpush1.msra.mxu0 0.0
    %6583 = vmatprep.subr.mxu0 0.0
    %6584 = vmatpush1.msra.mxu0 0.0
    %6585 = vmatprep.subr.mxu0 0.0
    %6586 = vmatpush1.msra.mxu0 0.0
    %6587 = vmatprep.mubr.f32.mxu0 0.0
    %6588 = vmatmul.mubr.f32.gmra.mrb[0].mxu0 %v6521
    %v6589 = vpop.f32.mrb[0].mxu0
    %v6590 = vadd.f32 %v282, %v6589
    %v6591 = vpop.f32.mrb[0].mxu0
    %6592 = vdwg.mxu0
    %v6593 = vmax.f32 %v6590, 0.0
    %v6595 = vsel %vm470, %v6593, 0
    %6597 = vmatprep.subr.mxu0 0.0
    %6598 = vmatpush1.msra.mxu0 %v231
    %6599 = vmatprep.subr.mxu0 0.0
    %6600 = vmatpush1.msra.mxu0 %v232
    %6601 = vmatprep.subr.mxu0 0.0
    %6602 = vmatpush1.msra.mxu0 %v233
    %6603 = vmatprep.subr.mxu0 0.0
    %6604 = vmatpush1.msra.mxu0 %v234
    %6605 = vmatprep.subr.mxu0 0.0
    %6606 = vmatpush1.msra.mxu0 %v235
    %6607 = vmatprep.subr.mxu0 0.0
    %6608 = vmatpush1.msra.mxu0 %v236
    %6609 = vmatprep.subr.mxu0 0.0
    %6610 = vmatpush1.msra.mxu0 %v237
    %6611 = vmatprep.subr.mxu0 0.0
    %6612 = vmatpush1.msra.mxu0 %v238
    %6613 = vmatprep.subr.mxu0 0.0
    %6614 = vmatpush1.msra.mxu0 0.0
    %6615 = vmatprep.subr.mxu0 0.0
    %6616 = vmatpush1.msra.mxu0 0.0
    %6617 = vmatprep.subr.mxu0 0.0
    %6618 = vmatpush1.msra.mxu0 0.0
    %6619 = vmatprep.subr.mxu0 0.0
    %6620 = vmatpush1.msra.mxu0 0.0
    %6621 = vmatprep.subr.mxu0 0.0
    %6622 = vmatpush1.msra.mxu0 0.0
    %6623 = vmatprep.subr.mxu0 0.0
    %6624 = vmatpush1.msra.mxu0 0.0
    %6625 = vmatprep.subr.mxu0 0.0
    %6626 = vmatpush1.msra.mxu0 0.0
    %6627 = vmatprep.subr.mxu0 0.0
    %6628 = vmatpush1.msra.mxu0 0.0
    %6629 = vmatprep.subr.mxu0 0.0
    %6630 = vmatpush1.msra.mxu0 0.0
    %6631 = vmatprep.subr.mxu0 0.0
    %6632 = vmatpush1.msra.mxu0 0.0
    %6633 = vmatprep.subr.mxu0 0.0
    %6634 = vmatpush1.msra.mxu0 0.0
    %6635 = vmatprep.subr.mxu0 0.0
    %6636 = vmatpush1.msra.mxu0 0.0
    %6637 = vmatprep.subr.mxu0 0.0
    %6638 = vmatpush1.msra.mxu0 0.0
    %6639 = vmatprep.subr.mxu0 0.0
    %6640 = vmatpush1.msra.mxu0 0.0
    %6641 = vmatprep.subr.mxu0 0.0
    %6642 = vmatpush1.msra.mxu0 0.0
    %6643 = vmatprep.subr.mxu0 0.0
    %6644 = vmatpush1.msra.mxu0 0.0
    %6645 = vmatprep.subr.mxu0 0.0
    %6646 = vmatpush1.msra.mxu0 0.0
    %6647 = vmatprep.subr.mxu0 0.0
    %6648 = vmatpush1.msra.mxu0 0.0
    %6649 = vmatprep.subr.mxu0 0.0
    %6650 = vmatpush1.msra.mxu0 0.0
    %6651 = vmatprep.subr.mxu0 0.0
    %6652 = vmatpush1.msra.mxu0 0.0
    %6653 = vmatprep.subr.mxu0 0.0
    %6654 = vmatpush1.msra.mxu0 0.0
    %6655 = vmatprep.subr.mxu0 0.0
    %6656 = vmatpush1.msra.mxu0 0.0
    %6657 = vmatprep.subr.mxu0 0.0
    %6658 = vmatpush1.msra.mxu0 0.0
    %6659 = vmatprep.subr.mxu0 0.0
    %6660 = vmatpush1.msra.mxu0 0.0
    %6661 = vmatprep.mubr.f32.mxu0 0.0
    %6662 = vmatmul.mubr.f32.gmra.mrb[0].mxu0 %v6595
    %v6663 = vpop.f32.mrb[0].mxu0
    %v6664 = vadd.f32 %v289, %v6663
    %v6665 = vpop.f32.mrb[0].mxu0
    %6666 = vdwg.mxu0
    %v6667 = vadd.f32 %v6664, %v6297
    %v6668 = vxor.u32 %v6667, 2147483648
    %v6669 = vmul.f32 %v6668, 1.442695
    %v6670 = vpow.pop %v6669
    %v6671 = vadd.f32 %v6670, 1.0
    %v6672 = vrcp.pop %v6671
    %v6673 = vmul.f32 1.0, %v6672
    %v6674 = vsub.f32 1.0, %v6673
    %6676 = vset.pattern.permute.xlu0 0
    %6677 = vperm.xlu0 %6676, %v6674
    %v6678 = vpop.permute.xlu0 %6677
    %v6680 = vmul.f32 %v6276, %v6678
    %v6682 = vsel %vm321, %v6276, 0
    %6684 = vmatprep.subr.mxu0 0.0
    %6685 = vmatpush1.msra.mxu0 %v251
    %6686 = vmatprep.subr.mxu0 0.0
    %6687 = vmatpush1.msra.mxu0 %v252
    %6688 = vmatprep.subr.mxu0 0.0
    %6689 = vmatpush1.msra.mxu0 %v253
    %6690 = vmatprep.subr.mxu0 0.0
    %6691 = vmatpush1.msra.mxu0 %v254
    %6692 = vmatprep.subr.mxu0 0.0
    %6693 = vmatpush1.msra.mxu0 0.0
    %6694 = vmatprep.subr.mxu0 0.0
    %6695 = vmatpush1.msra.mxu0 0.0
    %6696 = vmatprep.subr.mxu0 0.0
    %6697 = vmatpush1.msra.mxu0 0.0
    %6698 = vmatprep.subr.mxu0 0.0
    %6699 = vmatpush1.msra.mxu0 0.0
    %6700 = vmatprep.subr.mxu0 0.0
    %6701 = vmatpush1.msra.mxu0 0.0
    %6702 = vmatprep.subr.mxu0 0.0
    %6703 = vmatpush1.msra.mxu0 0.0
    %6704 = vmatprep.subr.mxu0 0.0
    %6705 = vmatpush1.msra.mxu0 0.0
    %6706 = vmatprep.subr.mxu0 0.0
    %6707 = vmatpush1.msra.mxu0 0.0
    %6708 = vmatprep.subr.mxu0 0.0
    %6709 = vmatpush1.msra.mxu0 0.0
    %6710 = vmatprep.subr.mxu0 0.0
    %6711 = vmatpush1.msra.mxu0 0.0
    %6712 = vmatprep.subr.mxu0 0.0
    %6713 = vmatpush1.msra.mxu0 0.0
    %6714 = vmatprep.subr.mxu0 0.0
    %6715 = vmatpush1.msra.mxu0 0.0
    %6716 = vmatprep.subr.mxu0 0.0
    %6717 = vmatpush1.msra.mxu0 0.0
    %6718 = vmatprep.subr.mxu0 0.0
    %6719 = vmatpush1.msra.mxu0 0.0
    %6720 = vmatprep.subr.mxu0 0.0
    %6721 = vmatpush1.msra.mxu0 0.0
    %6722 = vmatprep.subr.mxu0 0.0
    %6723 = vmatpush1.msra.mxu0 0.0
    %6724 = vmatprep.subr.mxu0 0.0
    %6725 = vmatpush1.msra.mxu0 0.0
    %6726 = vmatprep.subr.mxu0 0.0
    %6727 = vmatpush1.msra.mxu0 0.0
    %6728 = vmatprep.subr.mxu0 0.0
    %6729 = vmatpush1.msra.mxu0 0.0
    %6730 = vmatprep.subr.mxu0 0.0
    %6731 = vmatpush1.msra.mxu0 0.0
    %6732 = vmatprep.subr.mxu0 0.0
    %6733 = vmatpush1.msra.mxu0 0.0
    %6734 = vmatprep.subr.mxu0 0.0
    %6735 = vmatpush1.msra.mxu0 0.0
    %6736 = vmatprep.subr.mxu0 0.0
    %6737 = vmatpush1.msra.mxu0 0.0
    %6738 = vmatprep.subr.mxu0 0.0
    %6739 = vmatpush1.msra.mxu0 0.0
    %6740 = vmatprep.subr.mxu0 0.0
    %6741 = vmatpush1.msra.mxu0 0.0
    %6742 = vmatprep.subr.mxu0 0.0
    %6743 = vmatpush1.msra.mxu0 0.0
    %6744 = vmatprep.subr.mxu0 0.0
    %6745 = vmatpush1.msra.mxu0 0.0
    %6746 = vmatprep.subr.mxu0 0.0
    %6747 = vmatpush1.msra.mxu0 0.0
    %6748 = vmatprep.mubr.f32.mxu0 0.0
    %6749 = vmatmul.mubr.f32.gmra.mrb[0].mxu0 %v6682
    %v6750 = vpop.f32.mrb[0].mxu0
    %v6751 = vadd.f32 0.0, %v6750
    %v6752 = vpop.f32.mrb[0].mxu0
    %6753 = vdwg.mxu0
    %6754 = vmatprep.subr.mxu0 0.0
    %6755 = vmatpush1.msra.mxu0 %v239
    %6756 = vmatprep.subr.mxu0 0.0
    %6757 = vmatpush1.msra.mxu0 %v240
    %6758 = vmatprep.subr.mxu0 0.0
    %6759 = vmatpush1.msra.mxu0 %v241
    %6760 = vmatprep.subr.mxu0 0.0
    %6761 = vmatpush1.msra.mxu0 %v242
    %6762 = vmatprep.subr.mxu0 0.0
    %6763 = vmatpush1.msra.mxu0 0.0
    %6764 = vmatprep.subr.mxu0 0.0
    %6765 = vmatpush1.msra.mxu0 0.0
    %6766 = vmatprep.subr.mxu0 0.0
    %6767 = vmatpush1.msra.mxu0 0.0
    %6768 = vmatprep.subr.mxu0 0.0
    %6769 = vmatpush1.msra.mxu0 0.0
    %6770 = vmatprep.subr.mxu0 0.0
    %6771 = vmatpush1.msra.mxu0 0.0
    %6772 = vmatprep.subr.mxu0 0.0
    %6773 = vmatpush1.msra.mxu0 0.0
    %6774 = vmatprep.subr.mxu0 0.0
    %6775 = vmatpush1.msra.mxu0 0.0
    %6776 = vmatprep.subr.mxu0 0.0
    %6777 = vmatpush1.msra.mxu0 0.0
    %6778 = vmatprep.subr.mxu0 0.0
    %6779 = vmatpush1.msra.mxu0 0.0
    %6780 = vmatprep.subr.mxu0 0.0
    %6781 = vmatpush1.msra.mxu0 0.0
    %6782 = vmatprep.subr.mxu0 0.0
    %6783 = vmatpush1.msra.mxu0 0.0
    %6784 = vmatprep.subr.mxu0 0.0
    %6785 = vmatpush1.msra.mxu0 0.0
    %6786 = vmatprep.subr.mxu0 0.0
    %6787 = vmatpush1.msra.mxu0 0.0
    %6788 = vmatprep.subr.mxu0 0.0
    %6789 = vmatpush1.msra.mxu0 0.0
    %6790 = vmatprep.subr.mxu0 0.0
    %6791 = vmatpush1.msra.mxu0 0.0
    %6792 = vmatprep.subr.mxu0 0.0
    %6793 = vmatpush1.msra.mxu0 0.0
    %6794 = vmatprep.subr.mxu0 0.0
    %6795 = vmatpush1.msra.mxu0 0.0
    %6796 = vmatprep.subr.mxu0 0.0
    %6797 = vmatpush1.msra.mxu0 0.0
    %6798 = vmatprep.subr.mxu0 0.0
    %6799 = vmatpush1.msra.mxu0 0.0
    %6800 = vmatprep.subr.mxu0 0.0
    %6801 = vmatpush1.msra.mxu0 0.0
    %6802 = vmatprep.subr.mxu0 0.0
    %6803 = vmatpush1.msra.mxu0 0.0
    %6804 = vmatprep.subr.mxu0 0.0
    %6805 = vmatpush1.msra.mxu0 0.0
    %6806 = vmatprep.subr.mxu0 0.0
    %6807 = vmatpush1.msra.mxu0 0.0
    %6808 = vmatprep.subr.mxu0 0.0
    %6809 = vmatpush1.msra.mxu0 0.0
    %6810 = vmatprep.subr.mxu0 0.0
    %6811 = vmatpush1.msra.mxu0 0.0
    %6812 = vmatprep.subr.mxu0 0.0
    %6813 = vmatpush1.msra.mxu0 0.0
    %6814 = vmatprep.subr.mxu0 0.0
    %6815 = vmatpush1.msra.mxu0 0.0
    %6816 = vmatprep.subr.mxu0 0.0
    %6817 = vmatpush1.msra.mxu0 0.0
    %6818 = vmatprep.mubr.f32.mxu0 0.0
    %6819 = vmatmul.mubr.f32.gmra.mrb[0].mxu0 %v6372
    %v6820 = vpop.f32.mrb[0].mxu0
    %v6821 = vadd.f32 %v6751, %v6820
    %v6822 = vpop.f32.mrb[0].mxu0
    %6823 = vdwg.mxu0
    %v6824 = vadd.f32 %v6821, %v296
    %v6825 = vxor.u32 %v6824, 2147483648
    %v6826 = vmul.f32 %v6825, 1.442695
    %v6827 = vpow.pop %v6826
    %v6828 = vadd.f32 %v6827, 1.0
    %v6829 = vrcp.pop %v6828
    %v6830 = vmul.f32 1.0, %v6829
    %6831 = vmatprep.subr.mxu0 0.0
    %6832 = vmatpush1.msra.mxu0 %v255
    %6833 = vmatprep.subr.mxu0 0.0
    %6834 = vmatpush1.msra.mxu0 %v256
    %6835 = vmatprep.subr.mxu0 0.0
    %6836 = vmatpush1.msra.mxu0 %v257
    %6837 = vmatprep.subr.mxu0 0.0
    %6838 = vmatpush1.msra.mxu0 %v258
    %6839 = vmatprep.subr.mxu0 0.0
    %6840 = vmatpush1.msra.mxu0 0.0
    %6841 = vmatprep.subr.mxu0 0.0
    %6842 = vmatpush1.msra.mxu0 0.0
    %6843 = vmatprep.subr.mxu0 0.0
    %6844 = vmatpush1.msra.mxu0 0.0
    %6845 = vmatprep.subr.mxu0 0.0
    %6846 = vmatpush1.msra.mxu0 0.0
    %6847 = vmatprep.subr.mxu0 0.0
    %6848 = vmatpush1.msra.mxu0 0.0
    %6849 = vmatprep.subr.mxu0 0.0
    %6850 = vmatpush1.msra.mxu0 0.0
    %6851 = vmatprep.subr.mxu0 0.0
    %6852 = vmatpush1.msra.mxu0 0.0
    %6853 = vmatprep.subr.mxu0 0.0
    %6854 = vmatpush1.msra.mxu0 0.0
    %6855 = vmatprep.subr.mxu0 0.0
    %6856 = vmatpush1.msra.mxu0 0.0
    %6857 = vmatprep.subr.mxu0 0.0
    %6858 = vmatpush1.msra.mxu0 0.0
    %6859 = vmatprep.subr.mxu0 0.0
    %6860 = vmatpush1.msra.mxu0 0.0
    %6861 = vmatprep.subr.mxu0 0.0
    %6862 = vmatpush1.msra.mxu0 0.0
    %6863 = vmatprep.subr.mxu0 0.0
    %6864 = vmatpush1.msra.mxu0 0.0
    %6865 = vmatprep.subr.mxu0 0.0
    %6866 = vmatpush1.msra.mxu0 0.0
    %6867 = vmatprep.subr.mxu0 0.0
    %6868 = vmatpush1.msra.mxu0 0.0
    %6869 = vmatprep.subr.mxu0 0.0
    %6870 = vmatpush1.msra.mxu0 0.0
    %6871 = vmatprep.subr.mxu0 0.0
    %6872 = vmatpush1.msra.mxu0 0.0
    %6873 = vmatprep.subr.mxu0 0.0
    %6874 = vmatpush1.msra.mxu0 0.0
    %6875 = vmatprep.subr.mxu0 0.0
    %6876 = vmatpush1.msra.mxu0 0.0
    %6877 = vmatprep.subr.mxu0 0.0
    %6878 = vmatpush1.msra.mxu0 0.0
    %6879 = vmatprep.subr.mxu0 0.0
    %6880 = vmatpush1.msra.mxu0 0.0
    %6881 = vmatprep.subr.mxu0 0.0
    %6882 = vmatpush1.msra.mxu0 0.0
    %6883 = vmatprep.subr.mxu0 0.0
    %6884 = vmatpush1.msra.mxu0 0.0
    %6885 = vmatprep.subr.mxu0 0.0
    %6886 = vmatpush1.msra.mxu0 0.0
    %6887 = vmatprep.subr.mxu0 0.0
    %6888 = vmatpush1.msra.mxu0 0.0
    %6889 = vmatprep.subr.mxu0 0.0
    %6890 = vmatpush1.msra.mxu0 0.0
    %6891 = vmatprep.subr.mxu0 0.0
    %6892 = vmatpush1.msra.mxu0 0.0
    %6893 = vmatprep.subr.mxu0 0.0
    %6894 = vmatpush1.msra.mxu0 0.0
    %6895 = vmatprep.mubr.f32.mxu0 0.0
    %6896 = vmatmul.mubr.f32.gmra.mrb[0].mxu0 %v6682
    %v6897 = vpop.f32.mrb[0].mxu0
    %v6898 = vadd.f32 0.0, %v6897
    %v6899 = vpop.f32.mrb[0].mxu0
    %6900 = vdwg.mxu0
    %6901 = vmatprep.subr.mxu0 0.0
    %6902 = vmatpush1.msra.mxu0 %v243
    %6903 = vmatprep.subr.mxu0 0.0
    %6904 = vmatpush1.msra.mxu0 %v244
    %6905 = vmatprep.subr.mxu0 0.0
    %6906 = vmatpush1.msra.mxu0 %v245
    %6907 = vmatprep.subr.mxu0 0.0
    %6908 = vmatpush1.msra.mxu0 %v246
    %6909 = vmatprep.subr.mxu0 0.0
    %6910 = vmatpush1.msra.mxu0 0.0
    %6911 = vmatprep.subr.mxu0 0.0
    %6912 = vmatpush1.msra.mxu0 0.0
    %6913 = vmatprep.subr.mxu0 0.0
    %6914 = vmatpush1.msra.mxu0 0.0
    %6915 = vmatprep.subr.mxu0 0.0
    %6916 = vmatpush1.msra.mxu0 0.0
    %6917 = vmatprep.subr.mxu0 0.0
    %6918 = vmatpush1.msra.mxu0 0.0
    %6919 = vmatprep.subr.mxu0 0.0
    %6920 = vmatpush1.msra.mxu0 0.0
    %6921 = vmatprep.subr.mxu0 0.0
    %6922 = vmatpush1.msra.mxu0 0.0
    %6923 = vmatprep.subr.mxu0 0.0
    %6924 = vmatpush1.msra.mxu0 0.0
    %6925 = vmatprep.subr.mxu0 0.0
    %6926 = vmatpush1.msra.mxu0 0.0
    %6927 = vmatprep.subr.mxu0 0.0
    %6928 = vmatpush1.msra.mxu0 0.0
    %6929 = vmatprep.subr.mxu0 0.0
    %6930 = vmatpush1.msra.mxu0 0.0
    %6931 = vmatprep.subr.mxu0 0.0
    %6932 = vmatpush1.msra.mxu0 0.0
    %6933 = vmatprep.subr.mxu0 0.0
    %6934 = vmatpush1.msra.mxu0 0.0
    %6935 = vmatprep.subr.mxu0 0.0
    %6936 = vmatpush1.msra.mxu0 0.0
    %6937 = vmatprep.subr.mxu0 0.0
    %6938 = vmatpush1.msra.mxu0 0.0
    %6939 = vmatprep.subr.mxu0 0.0
    %6940 = vmatpush1.msra.mxu0 0.0
    %6941 = vmatprep.subr.mxu0 0.0
    %6942 = vmatpush1.msra.mxu0 0.0
    %6943 = vmatprep.subr.mxu0 0.0
    %6944 = vmatpush1.msra.mxu0 0.0
    %6945 = vmatprep.subr.mxu0 0.0
    %6946 = vmatpush1.msra.mxu0 0.0
    %6947 = vmatprep.subr.mxu0 0.0
    %6948 = vmatpush1.msra.mxu0 0.0
    %6949 = vmatprep.subr.mxu0 0.0
    %6950 = vmatpush1.msra.mxu0 0.0
    %6951 = vmatprep.subr.mxu0 0.0
    %6952 = vmatpush1.msra.mxu0 0.0
    %6953 = vmatprep.subr.mxu0 0.0
    %6954 = vmatpush1.msra.mxu0 0.0
    %6955 = vmatprep.subr.mxu0 0.0
    %6956 = vmatpush1.msra.mxu0 0.0
    %6957 = vmatprep.subr.mxu0 0.0
    %6958 = vmatpush1.msra.mxu0 0.0
    %6959 = vmatprep.subr.mxu0 0.0
    %6960 = vmatpush1.msra.mxu0 0.0
    %6961 = vmatprep.subr.mxu0 0.0
    %6962 = vmatpush1.msra.mxu0 0.0
    %6963 = vmatprep.subr.mxu0 0.0
    %6964 = vmatpush1.msra.mxu0 0.0
    %6965 = vmatprep.mubr.f32.mxu0 0.0
    %6966 = vmatmul.mubr.f32.gmra.mrb[0].mxu0 %v6372
    %v6967 = vpop.f32.mrb[0].mxu0
    %v6968 = vadd.f32 %v6898, %v6967
    %v6969 = vpop.f32.mrb[0].mxu0
    %6970 = vdwg.mxu0
    %v6971 = vadd.f32 %v6968, %v303
    %v6972 = vxor.u32 %v6971, 2147483648
    %v6973 = vmul.f32 %v6972, 1.442695
    %v6974 = vpow.pop %v6973
    %v6975 = vadd.f32 %v6974, 1.0
    %v6976 = vrcp.pop %v6975
    %v6977 = vmul.f32 1.0, %v6976
    %6978 = vmatprep.subr.mxu0 0.0
    %6979 = vmatpush1.msra.mxu0 %v259
    %6980 = vmatprep.subr.mxu0 0.0
    %6981 = vmatpush1.msra.mxu0 %v260
    %6982 = vmatprep.subr.mxu0 0.0
    %6983 = vmatpush1.msra.mxu0 %v261
    %6984 = vmatprep.subr.mxu0 0.0
    %6985 = vmatpush1.msra.mxu0 %v262
    %6986 = vmatprep.subr.mxu0 0.0
    %6987 = vmatpush1.msra.mxu0 0.0
    %6988 = vmatprep.subr.mxu0 0.0
    %6989 = vmatpush1.msra.mxu0 0.0
    %6990 = vmatprep.subr.mxu0 0.0
    %6991 = vmatpush1.msra.mxu0 0.0
    %6992 = vmatprep.subr.mxu0 0.0
    %6993 = vmatpush1.msra.mxu0 0.0
    %6994 = vmatprep.subr.mxu0 0.0
    %6995 = vmatpush1.msra.mxu0 0.0
    %6996 = vmatprep.subr.mxu0 0.0
    %6997 = vmatpush1.msra.mxu0 0.0
    %6998 = vmatprep.subr.mxu0 0.0
    %6999 = vmatpush1.msra.mxu0 0.0
    %7000 = vmatprep.subr.mxu0 0.0
    %7001 = vmatpush1.msra.mxu0 0.0
    %7002 = vmatprep.subr.mxu0 0.0
    %7003 = vmatpush1.msra.mxu0 0.0
    %7004 = vmatprep.subr.mxu0 0.0
    %7005 = vmatpush1.msra.mxu0 0.0
    %7006 = vmatprep.subr.mxu0 0.0
    %7007 = vmatpush1.msra.mxu0 0.0
    %7008 = vmatprep.subr.mxu0 0.0
    %7009 = vmatpush1.msra.mxu0 0.0
    %7010 = vmatprep.subr.mxu0 0.0
    %7011 = vmatpush1.msra.mxu0 0.0
    %7012 = vmatprep.subr.mxu0 0.0
    %7013 = vmatpush1.msra.mxu0 0.0
    %7014 = vmatprep.subr.mxu0 0.0
    %7015 = vmatpush1.msra.mxu0 0.0
    %7016 = vmatprep.subr.mxu0 0.0
    %7017 = vmatpush1.msra.mxu0 0.0
    %7018 = vmatprep.subr.mxu0 0.0
    %7019 = vmatpush1.msra.mxu0 0.0
    %7020 = vmatprep.subr.mxu0 0.0
    %7021 = vmatpush1.msra.mxu0 0.0
    %7022 = vmatprep.subr.mxu0 0.0
    %7023 = vmatpush1.msra.mxu0 0.0
    %7024 = vmatprep.subr.mxu0 0.0
    %7025 = vmatpush1.msra.mxu0 0.0
    %7026 = vmatprep.subr.mxu0 0.0
    %7027 = vmatpush1.msra.mxu0 0.0
    %7028 = vmatprep.subr.mxu0 0.0
    %7029 = vmatpush1.msra.mxu0 0.0
    %7030 = vmatprep.subr.mxu0 0.0
    %7031 = vmatpush1.msra.mxu0 0.0
    %7032 = vmatprep.subr.mxu0 0.0
    %7033 = vmatpush1.msra.mxu0 0.0
    %7034 = vmatprep.subr.mxu0 0.0
    %7035 = vmatpush1.msra.mxu0 0.0
    %7036 = vmatprep.subr.mxu0 0.0
    %7037 = vmatpush1.msra.mxu0 0.0
    %7038 = vmatprep.subr.mxu0 0.0
    %7039 = vmatpush1.msra.mxu0 0.0
    %7040 = vmatprep.subr.mxu0 0.0
    %7041 = vmatpush1.msra.mxu0 0.0
    %7042 = vmatprep.mubr.f32.mxu0 0.0
    %7043 = vmatmul.mubr.f32.gmra.mrb[0].mxu0 %v6682
    %v7044 = vpop.f32.mrb[0].mxu0
    %v7045 = vadd.f32 %v317, %v7044
    %v7046 = vpop.f32.mrb[0].mxu0
    %7047 = vdwg.mxu0
    %7048 = vmatprep.subr.mxu0 0.0
    %7049 = vmatpush1.msra.mxu0 %v247
    %7050 = vmatprep.subr.mxu0 0.0
    %7051 = vmatpush1.msra.mxu0 %v248
    %7052 = vmatprep.subr.mxu0 0.0
    %7053 = vmatpush1.msra.mxu0 %v249
    %7054 = vmatprep.subr.mxu0 0.0
    %7055 = vmatpush1.msra.mxu0 %v250
    %7056 = vmatprep.subr.mxu0 0.0
    %7057 = vmatpush1.msra.mxu0 0.0
    %7058 = vmatprep.subr.mxu0 0.0
    %7059 = vmatpush1.msra.mxu0 0.0
    %7060 = vmatprep.subr.mxu0 0.0
    %7061 = vmatpush1.msra.mxu0 0.0
    %7062 = vmatprep.subr.mxu0 0.0
    %7063 = vmatpush1.msra.mxu0 0.0
    %7064 = vmatprep.subr.mxu0 0.0
    %7065 = vmatpush1.msra.mxu0 0.0
    %7066 = vmatprep.subr.mxu0 0.0
    %7067 = vmatpush1.msra.mxu0 0.0
    %7068 = vmatprep.subr.mxu0 0.0
    %7069 = vmatpush1.msra.mxu0 0.0
    %7070 = vmatprep.subr.mxu0 0.0
    %7071 = vmatpush1.msra.mxu0 0.0
    %7072 = vmatprep.subr.mxu0 0.0
    %7073 = vmatpush1.msra.mxu0 0.0
    %7074 = vmatprep.subr.mxu0 0.0
    %7075 = vmatpush1.msra.mxu0 0.0
    %7076 = vmatprep.subr.mxu0 0.0
    %7077 = vmatpush1.msra.mxu0 0.0
    %7078 = vmatprep.subr.mxu0 0.0
    %7079 = vmatpush1.msra.mxu0 0.0
    %7080 = vmatprep.subr.mxu0 0.0
    %7081 = vmatpush1.msra.mxu0 0.0
    %7082 = vmatprep.subr.mxu0 0.0
    %7083 = vmatpush1.msra.mxu0 0.0
    %7084 = vmatprep.subr.mxu0 0.0
    %7085 = vmatpush1.msra.mxu0 0.0
    %7086 = vmatprep.subr.mxu0 0.0
    %7087 = vmatpush1.msra.mxu0 0.0
    %7088 = vmatprep.subr.mxu0 0.0
    %7089 = vmatpush1.msra.mxu0 0.0
    %7090 = vmatprep.subr.mxu0 0.0
    %7091 = vmatpush1.msra.mxu0 0.0
    %7092 = vmatprep.subr.mxu0 0.0
    %7093 = vmatpush1.msra.mxu0 0.0
    %7094 = vmatprep.subr.mxu0 0.0
    %7095 = vmatpush1.msra.mxu0 0.0
    %7096 = vmatprep.subr.mxu0 0.0
    %7097 = vmatpush1.msra.mxu0 0.0
    %7098 = vmatprep.subr.mxu0 0.0
    %7099 = vmatpush1.msra.mxu0 0.0
    %7100 = vmatprep.subr.mxu0 0.0
    %7101 = vmatpush1.msra.mxu0 0.0
    %7102 = vmatprep.subr.mxu0 0.0
    %7103 = vmatpush1.msra.mxu0 0.0
    %7104 = vmatprep.subr.mxu0 0.0
    %7105 = vmatpush1.msra.mxu0 0.0
    %7106 = vmatprep.subr.mxu0 0.0
    %7107 = vmatpush1.msra.mxu0 0.0
    %7108 = vmatprep.subr.mxu0 0.0
    %7109 = vmatpush1.msra.mxu0 0.0
    %7110 = vmatprep.subr.mxu0 0.0
    %7111 = vmatpush1.msra.mxu0 0.0
    %7112 = vmatprep.mubr.f32.mxu0 0.0
    %7113 = vmatmul.mubr.f32.gmra.mrb[0].mxu0 %v6372
    %v7114 = vpop.f32.mrb[0].mxu0
    %v7115 = vadd.f32 %v310, %v7114
    %v7116 = vpop.f32.mrb[0].mxu0
    %7117 = vdwg.mxu0
    %v7118 = vmul.f32 %v6830, %v7045
    %v7119 = vadd.f32 %v7115, %v7118
    %v7120 = vtanh.pop %v7119
    %v7121 = vsub.f32 1.0, %v6977
    %v7122 = vmul.f32 %v7121, %v7120
    %v7123 = vmul.f32 %v6977, %v6276
    %v7124 = vadd.f32 %v7122, %v7123
    %7126 = vset.pattern.permute.xlu0 0
    %7127 = vperm.xlu0 %7126, %v6673
    %v7128 = vpop.permute.xlu0 %7127
    %v7130 = vmul.f32 %v7128, %v7124
    %v7131 = vadd.f32 %v6680, %v7130
    %v7132 = vmul.f32 %v6278, %v6674
    %v7133 = vadd.f32 %v7132, 1.0
    %v7134 = vrcp.pop %v7133
    %7136 = vset.pattern.permute.xlu0 0
    %7137 = vperm.xlu0 %7136, %v6278
    %v7138 = vpop.permute.xlu0 %7137
    %v7140 = vmul.f32 %v6293, %v7138
    %v7141 = vmul.f32 %v7140, %v6678
    %v7142 = vadd.f32 %v7141, %v6295
    %7144 = vset.pattern.permute.xlu0 0
    %7145 = vperm.xlu0 %7144, %v7134
    %v7146 = vpop.permute.xlu0 %7145
    %v7148 = vmul.f32 %v7142, %v7146
    %v7150 = vsel %vm321, %v7131, 0
    %7152 = vmatprep.subr.mxu0 0.0
    %7153 = vmatpush1.msra.mxu0 %v251
    %7154 = vmatprep.subr.mxu0 0.0
    %7155 = vmatpush1.msra.mxu0 %v252
    %7156 = vmatprep.subr.mxu0 0.0
    %7157 = vmatpush1.msra.mxu0 %v253
    %7158 = vmatprep.subr.mxu0 0.0
    %7159 = vmatpush1.msra.mxu0 %v254
    %7160 = vmatprep.subr.mxu0 0.0
    %7161 = vmatpush1.msra.mxu0 0.0
    %7162 = vmatprep.subr.mxu0 0.0
    %7163 = vmatpush1.msra.mxu0 0.0
    %7164 = vmatprep.subr.mxu0 0.0
    %7165 = vmatpush1.msra.mxu0 0.0
    %7166 = vmatprep.subr.mxu0 0.0
    %7167 = vmatpush1.msra.mxu0 0.0
    %7168 = vmatprep.subr.mxu0 0.0
    %7169 = vmatpush1.msra.mxu0 0.0
    %7170 = vmatprep.subr.mxu0 0.0
    %7171 = vmatpush1.msra.mxu0 0.0
    %7172 = vmatprep.subr.mxu0 0.0
    %7173 = vmatpush1.msra.mxu0 0.0
    %7174 = vmatprep.subr.mxu0 0.0
    %7175 = vmatpush1.msra.mxu0 0.0
    %7176 = vmatprep.subr.mxu0 0.0
    %7177 = vmatpush1.msra.mxu0 0.0
    %7178 = vmatprep.subr.mxu0 0.0
    %7179 = vmatpush1.msra.mxu0 0.0
    %7180 = vmatprep.subr.mxu0 0.0
    %7181 = vmatpush1.msra.mxu0 0.0
    %7182 = vmatprep.subr.mxu0 0.0
    %7183 = vmatpush1.msra.mxu0 0.0
    %7184 = vmatprep.subr.mxu0 0.0
    %7185 = vmatpush1.msra.mxu0 0.0
    %7186 = vmatprep.subr.mxu0 0.0
    %7187 = vmatpush1.msra.mxu0 0.0
    %7188 = vmatprep.subr.mxu0 0.0
    %7189 = vmatpush1.msra.mxu0 0.0
    %7190 = vmatprep.subr.mxu0 0.0
    %7191 = vmatpush1.msra.mxu0 0.0
    %7192 = vmatprep.subr.mxu0 0.0
    %7193 = vmatpush1.msra.mxu0 0.0
    %7194 = vmatprep.subr.mxu0 0.0
    %7195 = vmatpush1.msra.mxu0 0.0
    %7196 = vmatprep.subr.mxu0 0.0
    %7197 = vmatpush1.msra.mxu0 0.0
    %7198 = vmatprep.subr.mxu0 0.0
    %7199 = vmatpush1.msra.mxu0 0.0
    %7200 = vmatprep.subr.mxu0 0.0
    %7201 = vmatpush1.msra.mxu0 0.0
    %7202 = vmatprep.subr.mxu0 0.0
    %7203 = vmatpush1.msra.mxu0 0.0
    %7204 = vmatprep.subr.mxu0 0.0
    %7205 = vmatpush1.msra.mxu0 0.0
    %7206 = vmatprep.subr.mxu0 0.0
    %7207 = vmatpush1.msra.mxu0 0.0
    %7208 = vmatprep.subr.mxu0 0.0
    %7209 = vmatpush1.msra.mxu0 0.0
    %7210 = vmatprep.subr.mxu0 0.0
    %7211 = vmatpush1.msra.mxu0 0.0
    %7212 = vmatprep.subr.mxu0 0.0
    %7213 = vmatpush1.msra.mxu0 0.0
    %7214 = vmatprep.subr.mxu0 0.0
    %7215 = vmatpush1.msra.mxu0 0.0
    %7216 = vmatprep.mubr.f32.mxu0 0.0
    %7217 = vmatmul.mubr.f32.gmra.mrb[0].mxu0 %v7150
    %v7218 = vpop.f32.mrb[0].mxu0
    %v7219 = vadd.f32 0.0, %v7218
    %v7220 = vpop.f32.mrb[0].mxu0
    %7221 = vdwg.mxu0
    %v7223 = vsel %vm321, %v7148, 0
    %7225 = vmatprep.subr.mxu0 0.0
    %7226 = vmatpush1.msra.mxu0 %v239
    %7227 = vmatprep.subr.mxu0 0.0
    %7228 = vmatpush1.msra.mxu0 %v240
    %7229 = vmatprep.subr.mxu0 0.0
    %7230 = vmatpush1.msra.mxu0 %v241
    %7231 = vmatprep.subr.mxu0 0.0
    %7232 = vmatpush1.msra.mxu0 %v242
    %7233 = vmatprep.subr.mxu0 0.0
    %7234 = vmatpush1.msra.mxu0 0.0
    %7235 = vmatprep.subr.mxu0 0.0
    %7236 = vmatpush1.msra.mxu0 0.0
    %7237 = vmatprep.subr.mxu0 0.0
    %7238 = vmatpush1.msra.mxu0 0.0
    %7239 = vmatprep.subr.mxu0 0.0
    %7240 = vmatpush1.msra.mxu0 0.0
    %7241 = vmatprep.subr.mxu0 0.0
    %7242 = vmatpush1.msra.mxu0 0.0
    %7243 = vmatprep.subr.mxu0 0.0
    %7244 = vmatpush1.msra.mxu0 0.0
    %7245 = vmatprep.subr.mxu0 0.0
    %7246 = vmatpush1.msra.mxu0 0.0
    %7247 = vmatprep.subr.mxu0 0.0
    %7248 = vmatpush1.msra.mxu0 0.0
    %7249 = vmatprep.subr.mxu0 0.0
    %7250 = vmatpush1.msra.mxu0 0.0
    %7251 = vmatprep.subr.mxu0 0.0
    %7252 = vmatpush1.msra.mxu0 0.0
    %7253 = vmatprep.subr.mxu0 0.0
    %7254 = vmatpush1.msra.mxu0 0.0
    %7255 = vmatprep.subr.mxu0 0.0
    %7256 = vmatpush1.msra.mxu0 0.0
    %7257 = vmatprep.subr.mxu0 0.0
    %7258 = vmatpush1.msra.mxu0 0.0
    %7259 = vmatprep.subr.mxu0 0.0
    %7260 = vmatpush1.msra.mxu0 0.0
    %7261 = vmatprep.subr.mxu0 0.0
    %7262 = vmatpush1.msra.mxu0 0.0
    %7263 = vmatprep.subr.mxu0 0.0
    %7264 = vmatpush1.msra.mxu0 0.0
    %7265 = vmatprep.subr.mxu0 0.0
    %7266 = vmatpush1.msra.mxu0 0.0
    %7267 = vmatprep.subr.mxu0 0.0
    %7268 = vmatpush1.msra.mxu0 0.0
    %7269 = vmatprep.subr.mxu0 0.0
    %7270 = vmatpush1.msra.mxu0 0.0
    %7271 = vmatprep.subr.mxu0 0.0
    %7272 = vmatpush1.msra.mxu0 0.0
    %7273 = vmatprep.subr.mxu0 0.0
    %7274 = vmatpush1.msra.mxu0 0.0
    %7275 = vmatprep.subr.mxu0 0.0
    %7276 = vmatpush1.msra.mxu0 0.0
    %7277 = vmatprep.subr.mxu0 0.0
    %7278 = vmatpush1.msra.mxu0 0.0
    %7279 = vmatprep.subr.mxu0 0.0
    %7280 = vmatpush1.msra.mxu0 0.0
    %7281 = vmatprep.subr.mxu0 0.0
    %7282 = vmatpush1.msra.mxu0 0.0
    %7283 = vmatprep.subr.mxu0 0.0
    %7284 = vmatpush1.msra.mxu0 0.0
    %7285 = vmatprep.subr.mxu0 0.0
    %7286 = vmatpush1.msra.mxu0 0.0
    %7287 = vmatprep.subr.mxu0 0.0
    %7288 = vmatpush1.msra.mxu0 0.0
    %7289 = vmatprep.mubr.f32.mxu0 0.0
    %7290 = vmatmul.mubr.f32.gmra.mrb[0].mxu0 %v7223
    %v7291 = vpop.f32.mrb[0].mxu0
    %v7292 = vadd.f32 %v7219, %v7291
    %v7293 = vpop.f32.mrb[0].mxu0
    %7294 = vdwg.mxu0
    %v7295 = vadd.f32 %v7292, %v296
    %v7296 = vxor.u32 %v7295, 2147483648
    %v7297 = vmul.f32 %v7296, 1.442695
    %v7298 = vpow.pop %v7297
    %v7299 = vadd.f32 %v7298, 1.0
    %v7300 = vrcp.pop %v7299
    %v7301 = vmul.f32 1.0, %v7300
    %7302 = vmatprep.subr.mxu0 0.0
    %7303 = vmatpush1.msra.mxu0 %v255
    %7304 = vmatprep.subr.mxu0 0.0
    %7305 = vmatpush1.msra.mxu0 %v256
    %7306 = vmatprep.subr.mxu0 0.0
    %7307 = vmatpush1.msra.mxu0 %v257
    %7308 = vmatprep.subr.mxu0 0.0
    %7309 = vmatpush1.msra.mxu0 %v258
    %7310 = vmatprep.subr.mxu0 0.0
    %7311 = vmatpush1.msra.mxu0 0.0
    %7312 = vmatprep.subr.mxu0 0.0
    %7313 = vmatpush1.msra.mxu0 0.0
    %7314 = vmatprep.subr.mxu0 0.0
    %7315 = vmatpush1.msra.mxu0 0.0
    %7316 = vmatprep.subr.mxu0 0.0
    %7317 = vmatpush1.msra.mxu0 0.0
    %7318 = vmatprep.subr.mxu0 0.0
    %7319 = vmatpush1.msra.mxu0 0.0
    %7320 = vmatprep.subr.mxu0 0.0
    %7321 = vmatpush1.msra.mxu0 0.0
    %7322 = vmatprep.subr.mxu0 0.0
    %7323 = vmatpush1.msra.mxu0 0.0
    %7324 = vmatprep.subr.mxu0 0.0
    %7325 = vmatpush1.msra.mxu0 0.0
    %7326 = vmatprep.subr.mxu0 0.0
    %7327 = vmatpush1.msra.mxu0 0.0
    %7328 = vmatprep.subr.mxu0 0.0
    %7329 = vmatpush1.msra.mxu0 0.0
    %7330 = vmatprep.subr.mxu0 0.0
    %7331 = vmatpush1.msra.mxu0 0.0
    %7332 = vmatprep.subr.mxu0 0.0
    %7333 = vmatpush1.msra.mxu0 0.0
    %7334 = vmatprep.subr.mxu0 0.0
    %7335 = vmatpush1.msra.mxu0 0.0
    %7336 = vmatprep.subr.mxu0 0.0
    %7337 = vmatpush1.msra.mxu0 0.0
    %7338 = vmatprep.subr.mxu0 0.0
    %7339 = vmatpush1.msra.mxu0 0.0
    %7340 = vmatprep.subr.mxu0 0.0
    %7341 = vmatpush1.msra.mxu0 0.0
    %7342 = vmatprep.subr.mxu0 0.0
    %7343 = vmatpush1.msra.mxu0 0.0
    %7344 = vmatprep.subr.mxu0 0.0
    %7345 = vmatpush1.msra.mxu0 0.0
    %7346 = vmatprep.subr.mxu0 0.0
    %7347 = vmatpush1.msra.mxu0 0.0
    %7348 = vmatprep.subr.mxu0 0.0
    %7349 = vmatpush1.msra.mxu0 0.0
    %7350 = vmatprep.subr.mxu0 0.0
    %7351 = vmatpush1.msra.mxu0 0.0
    %7352 = vmatprep.subr.mxu0 0.0
    %7353 = vmatpush1.msra.mxu0 0.0
    %7354 = vmatprep.subr.mxu0 0.0
    %7355 = vmatpush1.msra.mxu0 0.0
    %7356 = vmatprep.subr.mxu0 0.0
    %7357 = vmatpush1.msra.mxu0 0.0
    %7358 = vmatprep.subr.mxu0 0.0
    %7359 = vmatpush1.msra.mxu0 0.0
    %7360 = vmatprep.subr.mxu0 0.0
    %7361 = vmatpush1.msra.mxu0 0.0
    %7362 = vmatprep.subr.mxu0 0.0
    %7363 = vmatpush1.msra.mxu0 0.0
    %7364 = vmatprep.subr.mxu0 0.0
    %7365 = vmatpush1.msra.mxu0 0.0
    %7366 = vmatprep.mubr.f32.mxu0 0.0
    %7367 = vmatmul.mubr.f32.gmra.mrb[0].mxu0 %v7150
    %v7368 = vpop.f32.mrb[0].mxu0
    %v7369 = vadd.f32 0.0, %v7368
    %v7370 = vpop.f32.mrb[0].mxu0
    %7371 = vdwg.mxu0
    %7372 = vmatprep.subr.mxu0 0.0
    %7373 = vmatpush1.msra.mxu0 %v243
    %7374 = vmatprep.subr.mxu0 0.0
    %7375 = vmatpush1.msra.mxu0 %v244
    %7376 = vmatprep.subr.mxu0 0.0
    %7377 = vmatpush1.msra.mxu0 %v245
    %7378 = vmatprep.subr.mxu0 0.0
    %7379 = vmatpush1.msra.mxu0 %v246
    %7380 = vmatprep.subr.mxu0 0.0
    %7381 = vmatpush1.msra.mxu0 0.0
    %7382 = vmatprep.subr.mxu0 0.0
    %7383 = vmatpush1.msra.mxu0 0.0
    %7384 = vmatprep.subr.mxu0 0.0
    %7385 = vmatpush1.msra.mxu0 0.0
    %7386 = vmatprep.subr.mxu0 0.0
    %7387 = vmatpush1.msra.mxu0 0.0
    %7388 = vmatprep.subr.mxu0 0.0
    %7389 = vmatpush1.msra.mxu0 0.0
    %7390 = vmatprep.subr.mxu0 0.0
    %7391 = vmatpush1.msra.mxu0 0.0
    %7392 = vmatprep.subr.mxu0 0.0
    %7393 = vmatpush1.msra.mxu0 0.0
    %7394 = vmatprep.subr.mxu0 0.0
    %7395 = vmatpush1.msra.mxu0 0.0
    %7396 = vmatprep.subr.mxu0 0.0
    %7397 = vmatpush1.msra.mxu0 0.0
    %7398 = vmatprep.subr.mxu0 0.0
    %7399 = vmatpush1.msra.mxu0 0.0
    %7400 = vmatprep.subr.mxu0 0.0
    %7401 = vmatpush1.msra.mxu0 0.0
    %7402 = vmatprep.subr.mxu0 0.0
    %7403 = vmatpush1.msra.mxu0 0.0
    %7404 = vmatprep.subr.mxu0 0.0
    %7405 = vmatpush1.msra.mxu0 0.0
    %7406 = vmatprep.subr.mxu0 0.0
    %7407 = vmatpush1.msra.mxu0 0.0
    %7408 = vmatprep.subr.mxu0 0.0
    %7409 = vmatpush1.msra.mxu0 0.0
    %7410 = vmatprep.subr.mxu0 0.0
    %7411 = vmatpush1.msra.mxu0 0.0
    %7412 = vmatprep.subr.mxu0 0.0
    %7413 = vmatpush1.msra.mxu0 0.0
    %7414 = vmatprep.subr.mxu0 0.0
    %7415 = vmatpush1.msra.mxu0 0.0
    %7416 = vmatprep.subr.mxu0 0.0
    %7417 = vmatpush1.msra.mxu0 0.0
    %7418 = vmatprep.subr.mxu0 0.0
    %7419 = vmatpush1.msra.mxu0 0.0
    %7420 = vmatprep.subr.mxu0 0.0
    %7421 = vmatpush1.msra.mxu0 0.0
    %7422 = vmatprep.subr.mxu0 0.0
    %7423 = vmatpush1.msra.mxu0 0.0
    %7424 = vmatprep.subr.mxu0 0.0
    %7425 = vmatpush1.msra.mxu0 0.0
    %7426 = vmatprep.subr.mxu0 0.0
    %7427 = vmatpush1.msra.mxu0 0.0
    %7428 = vmatprep.subr.mxu0 0.0
    %7429 = vmatpush1.msra.mxu0 0.0
    %7430 = vmatprep.subr.mxu0 0.0
    %7431 = vmatpush1.msra.mxu0 0.0
    %7432 = vmatprep.subr.mxu0 0.0
    %7433 = vmatpush1.msra.mxu0 0.0
    %7434 = vmatprep.subr.mxu0 0.0
    %7435 = vmatpush1.msra.mxu0 0.0
    %7436 = vmatprep.mubr.f32.mxu0 0.0
    %7437 = vmatmul.mubr.f32.gmra.mrb[0].mxu0 %v7223
    %v7438 = vpop.f32.mrb[0].mxu0
    %v7439 = vadd.f32 %v7369, %v7438
    %v7440 = vpop.f32.mrb[0].mxu0
    %7441 = vdwg.mxu0
    %v7442 = vadd.f32 %v7439, %v303
    %v7443 = vxor.u32 %v7442, 2147483648
    %v7444 = vmul.f32 %v7443, 1.442695
    %v7445 = vpow.pop %v7444
    %v7446 = vadd.f32 %v7445, 1.0
    %v7447 = vrcp.pop %v7446
    %v7448 = vmul.f32 1.0, %v7447
    %7449 = vmatprep.subr.mxu0 0.0
    %7450 = vmatpush1.msra.mxu0 %v259
    %7451 = vmatprep.subr.mxu0 0.0
    %7452 = vmatpush1.msra.mxu0 %v260
    %7453 = vmatprep.subr.mxu0 0.0
    %7454 = vmatpush1.msra.mxu0 %v261
    %7455 = vmatprep.subr.mxu0 0.0
    %7456 = vmatpush1.msra.mxu0 %v262
    %7457 = vmatprep.subr.mxu0 0.0
    %7458 = vmatpush1.msra.mxu0 0.0
    %7459 = vmatprep.subr.mxu0 0.0
    %7460 = vmatpush1.msra.mxu0 0.0
    %7461 = vmatprep.subr.mxu0 0.0
    %7462 = vmatpush1.msra.mxu0 0.0
    %7463 = vmatprep.subr.mxu0 0.0
    %7464 = vmatpush1.msra.mxu0 0.0
    %7465 = vmatprep.subr.mxu0 0.0
    %7466 = vmatpush1.msra.mxu0 0.0
    %7467 = vmatprep.subr.mxu0 0.0
    %7468 = vmatpush1.msra.mxu0 0.0
    %7469 = vmatprep.subr.mxu0 0.0
    %7470 = vmatpush1.msra.mxu0 0.0
    %7471 = vmatprep.subr.mxu0 0.0
    %7472 = vmatpush1.msra.mxu0 0.0
    %7473 = vmatprep.subr.mxu0 0.0
    %7474 = vmatpush1.msra.mxu0 0.0
    %7475 = vmatprep.subr.mxu0 0.0
    %7476 = vmatpush1.msra.mxu0 0.0
    %7477 = vmatprep.subr.mxu0 0.0
    %7478 = vmatpush1.msra.mxu0 0.0
    %7479 = vmatprep.subr.mxu0 0.0
    %7480 = vmatpush1.msra.mxu0 0.0
    %7481 = vmatprep.subr.mxu0 0.0
    %7482 = vmatpush1.msra.mxu0 0.0
    %7483 = vmatprep.subr.mxu0 0.0
    %7484 = vmatpush1.msra.mxu0 0.0
    %7485 = vmatprep.subr.mxu0 0.0
    %7486 = vmatpush1.msra.mxu0 0.0
    %7487 = vmatprep.subr.mxu0 0.0
    %7488 = vmatpush1.msra.mxu0 0.0
    %7489 = vmatprep.subr.mxu0 0.0
    %7490 = vmatpush1.msra.mxu0 0.0
    %7491 = vmatprep.subr.mxu0 0.0
    %7492 = vmatpush1.msra.mxu0 0.0
    %7493 = vmatprep.subr.mxu0 0.0
    %7494 = vmatpush1.msra.mxu0 0.0
    %7495 = vmatprep.subr.mxu0 0.0
    %7496 = vmatpush1.msra.mxu0 0.0
    %7497 = vmatprep.subr.mxu0 0.0
    %7498 = vmatpush1.msra.mxu0 0.0
    %7499 = vmatprep.subr.mxu0 0.0
    %7500 = vmatpush1.msra.mxu0 0.0
    %7501 = vmatprep.subr.mxu0 0.0
    %7502 = vmatpush1.msra.mxu0 0.0
    %7503 = vmatprep.subr.mxu0 0.0
    %7504 = vmatpush1.msra.mxu0 0.0
    %7505 = vmatprep.subr.mxu0 0.0
    %7506 = vmatpush1.msra.mxu0 0.0
    %7507 = vmatprep.subr.mxu0 0.0
    %7508 = vmatpush1.msra.mxu0 0.0
    %7509 = vmatprep.subr.mxu0 0.0
    %7510 = vmatpush1.msra.mxu0 0.0
    %7511 = vmatprep.subr.mxu0 0.0
    %7512 = vmatpush1.msra.mxu0 0.0
    %7513 = vmatprep.mubr.f32.mxu0 0.0
    %7514 = vmatmul.mubr.f32.gmra.mrb[0].mxu0 %v7150
    %v7515 = vpop.f32.mrb[0].mxu0
    %v7516 = vadd.f32 %v317, %v7515
    %v7517 = vpop.f32.mrb[0].mxu0
    %7518 = vdwg.mxu0
    %7519 = vmatprep.subr.mxu0 0.0
    %7520 = vmatpush1.msra.mxu0 %v247
    %7521 = vmatprep.subr.mxu0 0.0
    %7522 = vmatpush1.msra.mxu0 %v248
    %7523 = vmatprep.subr.mxu0 0.0
    %7524 = vmatpush1.msra.mxu0 %v249
    %7525 = vmatprep.subr.mxu0 0.0
    %7526 = vmatpush1.msra.mxu0 %v250
    %7527 = vmatprep.subr.mxu0 0.0
    %7528 = vmatpush1.msra.mxu0 0.0
    %7529 = vmatprep.subr.mxu0 0.0
    %7530 = vmatpush1.msra.mxu0 0.0
    %7531 = vmatprep.subr.mxu0 0.0
    %7532 = vmatpush1.msra.mxu0 0.0
    %7533 = vmatprep.subr.mxu0 0.0
    %7534 = vmatpush1.msra.mxu0 0.0
    %7535 = vmatprep.subr.mxu0 0.0
    %7536 = vmatpush1.msra.mxu0 0.0
    %7537 = vmatprep.subr.mxu0 0.0
    %7538 = vmatpush1.msra.mxu0 0.0
    %7539 = vmatprep.subr.mxu0 0.0
    %7540 = vmatpush1.msra.mxu0 0.0
    %7541 = vmatprep.subr.mxu0 0.0
    %7542 = vmatpush1.msra.mxu0 0.0
    %7543 = vmatprep.subr.mxu0 0.0
    %7544 = vmatpush1.msra.mxu0 0.0
    %7545 = vmatprep.subr.mxu0 0.0
    %7546 = vmatpush1.msra.mxu0 0.0
    %7547 = vmatprep.subr.mxu0 0.0
    %7548 = vmatpush1.msra.mxu0 0.0
    %7549 = vmatprep.subr.mxu0 0.0
    %7550 = vmatpush1.msra.mxu0 0.0
    %7551 = vmatprep.subr.mxu0 0.0
    %7552 = vmatpush1.msra.mxu0 0.0
    %7553 = vmatprep.subr.mxu0 0.0
    %7554 = vmatpush1.msra.mxu0 0.0
    %7555 = vmatprep.subr.mxu0 0.0
    %7556 = vmatpush1.msra.mxu0 0.0
    %7557 = vmatprep.subr.mxu0 0.0
    %7558 = vmatpush1.msra.mxu0 0.0
    %7559 = vmatprep.subr.mxu0 0.0
    %7560 = vmatpush1.msra.mxu0 0.0
    %7561 = vmatprep.subr.mxu0 0.0
    %7562 = vmatpush1.msra.mxu0 0.0
    %7563 = vmatprep.subr.mxu0 0.0
    %7564 = vmatpush1.msra.mxu0 0.0
    %7565 = vmatprep.subr.mxu0 0.0
    %7566 = vmatpush1.msra.mxu0 0.0
    %7567 = vmatprep.subr.mxu0 0.0
    %7568 = vmatpush1.msra.mxu0 0.0
    %7569 = vmatprep.subr.mxu0 0.0
    %7570 = vmatpush1.msra.mxu0 0.0
    %7571 = vmatprep.subr.mxu0 0.0
    %7572 = vmatpush1.msra.mxu0 0.0
    %7573 = vmatprep.subr.mxu0 0.0
    %7574 = vmatpush1.msra.mxu0 0.0
    %7575 = vmatprep.subr.mxu0 0.0
    %7576 = vmatpush1.msra.mxu0 0.0
    %7577 = vmatprep.subr.mxu0 0.0
    %7578 = vmatpush1.msra.mxu0 0.0
    %7579 = vmatprep.subr.mxu0 0.0
    %7580 = vmatpush1.msra.mxu0 0.0
    %7581 = vmatprep.subr.mxu0 0.0
    %7582 = vmatpush1.msra.mxu0 0.0
    %7583 = vmatprep.mubr.f32.mxu0 0.0
    %7584 = vmatmul.mubr.f32.gmra.mrb[0].mxu0 %v7223
    %v7585 = vpop.f32.mrb[0].mxu0
    %v7586 = vadd.f32 %v310, %v7585
    %v7587 = vpop.f32.mrb[0].mxu0
    %7588 = vdwg.mxu0
    %v7589 = vmul.f32 %v7301, %v7516
    %v7590 = vadd.f32 %v7586, %v7589
    %v7591 = vtanh.pop %v7590
    %v7592 = vsub.f32 1.0, %v7448
    %v7593 = vmul.f32 %v7592, %v7591
    %v7594 = vmul.f32 %v7448, %v7131
    %v7595 = vadd.f32 %v7593, %v7594
    %v7596 = vld [vmem:[%s21] sm:$0xff]
    %v7597 = vld [vmem:[%s21 + $0x8] sm:$0xff]
    %v7598 = vld [vmem:[%s21 + $0x10] sm:$0xff]
    %v7599 = vld [vmem:[%s21 + $0x18] sm:$0xff]
    %v7600 = vld [vmem:[%s22] sm:$0x1]
    %v7602 = vlaneseq
    %v7603 = vshrl.u32 %v7602, 7
    %v7604 = vsub.s32 0, %v7603
    %v7605 = vrot.slane %v7600, %v7604
    %v7608 = vsel %vm321, %v7595, 0
    %7610 = vmatprep.subr.mxu0 0.0
    %7611 = vmatpush1.msra.mxu0 %v7596
    %7612 = vmatprep.subr.mxu0 0.0
    %7613 = vmatpush1.msra.mxu0 %v7597
    %7614 = vmatprep.subr.mxu0 0.0
    %7615 = vmatpush1.msra.mxu0 %v7598
    %7616 = vmatprep.subr.mxu0 0.0
    %7617 = vmatpush1.msra.mxu0 %v7599
    %7618 = vmatprep.subr.mxu0 0.0
    %7619 = vmatpush1.msra.mxu0 0.0
    %7620 = vmatprep.subr.mxu0 0.0
    %7621 = vmatpush1.msra.mxu0 0.0
    %7622 = vmatprep.subr.mxu0 0.0
    %7623 = vmatpush1.msra.mxu0 0.0
    %7624 = vmatprep.subr.mxu0 0.0
    %7625 = vmatpush1.msra.mxu0 0.0
    %7626 = vmatprep.subr.mxu0 0.0
    %7627 = vmatpush1.msra.mxu0 0.0
    %7628 = vmatprep.subr.mxu0 0.0
    %7629 = vmatpush1.msra.mxu0 0.0
    %7630 = vmatprep.subr.mxu0 0.0
    %7631 = vmatpush1.msra.mxu0 0.0
    %7632 = vmatprep.subr.mxu0 0.0
    %7633 = vmatpush1.msra.mxu0 0.0
    %7634 = vmatprep.subr.mxu0 0.0
    %7635 = vmatpush1.msra.mxu0 0.0
    %7636 = vmatprep.subr.mxu0 0.0
    %7637 = vmatpush1.msra.mxu0 0.0
    %7638 = vmatprep.subr.mxu0 0.0
    %7639 = vmatpush1.msra.mxu0 0.0
    %7640 = vmatprep.subr.mxu0 0.0
    %7641 = vmatpush1.msra.mxu0 0.0
    %7642 = vmatprep.subr.mxu0 0.0
    %7643 = vmatpush1.msra.mxu0 0.0
    %7644 = vmatprep.subr.mxu0 0.0
    %7645 = vmatpush1.msra.mxu0 0.0
    %7646 = vmatprep.subr.mxu0 0.0
    %7647 = vmatpush1.msra.mxu0 0.0
    %7648 = vmatprep.subr.mxu0 0.0
    %7649 = vmatpush1.msra.mxu0 0.0
    %7650 = vmatprep.subr.mxu0 0.0
    %7651 = vmatpush1.msra.mxu0 0.0
    %7652 = vmatprep.subr.mxu0 0.0
    %7653 = vmatpush1.msra.mxu0 0.0
    %7654 = vmatprep.subr.mxu0 0.0
    %7655 = vmatpush1.msra.mxu0 0.0
    %7656 = vmatprep.subr.mxu0 0.0
    %7657 = vmatpush1.msra.mxu0 0.0
    %7658 = vmatprep.subr.mxu0 0.0
    %7659 = vmatpush1.msra.mxu0 0.0
    %7660 = vmatprep.subr.mxu0 0.0
    %7661 = vmatpush1.msra.mxu0 0.0
    %7662 = vmatprep.subr.mxu0 0.0
    %7663 = vmatpush1.msra.mxu0 0.0
    %7664 = vmatprep.subr.mxu0 0.0
    %7665 = vmatpush1.msra.mxu0 0.0
    %7666 = vmatprep.subr.mxu0 0.0
    %7667 = vmatpush1.msra.mxu0 0.0
    %7668 = vmatprep.subr.mxu0 0.0
    %7669 = vmatpush1.msra.mxu0 0.0
    %7670 = vmatprep.subr.mxu0 0.0
    %7671 = vmatpush1.msra.mxu0 0.0
    %7672 = vmatprep.subr.mxu0 0.0
    %7673 = vmatpush1.msra.mxu0 0.0
    %7674 = vmatprep.mubr.f32.mxu0 0.0
    %7675 = vmatmul.mubr.f32.gmra.mrb[0].mxu0 %v7608
    %v7676 = vpop.f32.mrb[0].mxu0
    %v7677 = vadd.f32 %v7605, %v7676
    %v7678 = vpop.f32.mrb[0].mxu0
    %7679 = vdwg.mxu0
    %vm7680 = vcmask 64512
    %7681 = vst.msk [vmem:[#allocation20] sm:$0xff] %vm7680, %v7677
    // Predicated region
    $region134: #{tpu_custom_call.1} parent=1 // pred_check
      _
    $region135: #{tpu_custom_call.1} parent=1 // pred_check_branch
      %7683 = sbr.rel (0) target = $region137
    $region136: #{tpu_custom_call.1} parent=1 // pred_region
      %s7685 = ssub.s32 128, 128
      %7686 = vsyncadd [#allocation5], %s7685
      %s7688 = sshll.u32 [#allocation20], 4
      %s7689 = int_to_ptr.vmem [resolvable:$true] %s7688
      %7691 = dma.vmem_to_hbm [thread:$0]  %s7689, 128, %s23, [#allocation5]
    $region137: #{tpu_custom_call.1} parent=1 // pred_fallthru
      _
    // Predicated region
    $region138: #{tpu_custom_call.1} parent=1 // pred_check
      _
    $region139: #{tpu_custom_call.1} parent=1 // pred_check_branch
      %7693 = sbr.rel (0) target = $region141
    $region140: #{tpu_custom_call.1} parent=1 // pred_region
      %7694 = dma.done [#allocation5], 128
    $region141: #{tpu_custom_call.1} parent=1 // pred_fallthru
      _
    %7695 = vsyncpa [#allocation4], 1
    %7696 = vsyncpa [#allocation7], 1
    %7697 = vsyncpa [#allocation10], 1
    %7698 = vsyncpa [#allocation13], 1
    %7699 = vsyncpa [#allocation16], 1
    %7700 = vsyncpa [#allocation19], 1
    %7701 = vsyncpa [#allocation5], 1

</llo_original>
